<compile_context>
chip_gen: v7x
topology: tpu7x:2x2x1
jax: 0.10.0
libtpu: 0.0.40
codegen_flags: <defaults>
</compile_context>

<pallas_src>
import math
import numpy as np
import jax
import jax.numpy as jnp
from jax.experimental import pallas as pl
from jax.experimental.pallas import tpu as pltpu


def _round_up(x, m):
    return ((x + m - 1) // m) * m


# ----------------------------- Pallas kernel --------------------------------

def make_fused_sa_kernel(scale_specs, pool_method, c_pad):
    """Fused multi-scale shared-MLP (1x1 conv w/ folded BN + ReLU) + pool over samples.

    scale_specs: tuple of (nsample, n_layers) per radius scale.
    Input refs, in order, per scale:
        grouped_flat (tm*ns, Cin)            [compute dtype, e.g. bf16]
        then per layer: w_folded (Cl, Cl+1)  [compute dtype]
                        bias     (1, Cl+1)   [f32]
    Output ref: (tm, c_pad) f32 — all scales' pooled channels concatenated and
    lane-padded to a multiple of 128 for unmasked stores.
    """
    def kernel(*refs):
        o_ref = refs[-1]
        it = iter(refs[:-1])
        tm = o_ref.shape[0]
        pooled = []
        for (ns, n_layers) in scale_specs:
            g_ref = next(it)
            layers = [(next(it), next(it)) for _ in range(n_layers)]
            # One tall matmul per layer: samples are flattened into the M dimension.
            h = g_ref[...]                                   # (tm*ns, Cin), compute dtype
            for li, (w_ref, b_ref) in enumerate(layers):
                lhs = h if li == 0 else h.astype(w_ref.dtype)
                acc = jnp.dot(lhs, w_ref[...], preferred_element_type=jnp.float32)
                h = jnp.maximum(acc + b_ref[...], 0.0)       # f32 epilogue (BN folded)
            cout = h.shape[-1]
            hv = h.reshape(tm, ns, cout)                     # f32, cheap sublane reshape
            if pool_method == 'max_pool':
                pooled.append(jnp.max(hv, axis=1))
            elif pool_method == 'avg_pool':
                # Divides by nsample incl. repeated/padded slots (F.avg_pool2d semantics).
                pooled.append(jnp.sum(hv, axis=1) * (1.0 / ns))
            else:
                raise NotImplementedError(pool_method)
        cat = pooled[0] if len(pooled) == 1 else jnp.concatenate(pooled, axis=1)
        c_total = cat.shape[-1]
        if c_pad > c_total:                                  # lane-dense (128) store
            cat = jnp.concatenate(
                [cat, jnp.zeros((tm, c_pad - c_total), cat.dtype)], axis=1)
        o_ref[...] = cat
    return kernel


def fused_sa_pallas(grouped_list, params_list, pool_method='max_pool',
                    tm=256, compute_dtype=jnp.bfloat16):
    """grouped_list[k]: (M, nsample_k, Cin_k) f32 grouped features.
    params_list[k]: list of (w, bn_scale, bn_bias) per MLP layer of scale k.
    Returns pooled features (M, sum_k Cout_k) f32."""
    assert len(grouped_list) == len(params_list)
    M = grouped_list[0].shape[0]

    # Point tile: multiple of 128; clamp so tiny problems use a single small tile.
    tm = max(128, min(_round_up(tm, 128), _round_up(M, 128)))
    m_pad = _round_up(M, tm)
    grid = m_pad // tm

    inputs, in_specs, scale_specs, couts = [], [], [], []
    for grouped, layers in zip(grouped_list, params_list):
        ns, cin = grouped.shape[1], grouped.shape[2]
        g = grouped
        if m_pad != M:
            g = jnp.pad(g, ((0, m_pad - M), (0, 0), (0, 0)))
        # (M_pad, ns, cin) -> (M_pad*ns, cin) is a free row-major view; feeding it flat
        # avoids any wrapper transpose and any in-kernel bf16 reshape.
        g = g.reshape(m_pad * ns, cin).astype(compute_dtype)
        inputs.append(g)
        in_specs.append(pl.BlockSpec((tm * ns, cin), lambda i: (i, 0)))
        for (w, s, b) in layers:
            wf = (w * s).astype(compute_dtype)       # fold eval-mode BN scale into W
            bf = b.astype(jnp.float32)
            inputs += [wf, bf]
            in_specs += [pl.BlockSpec(wf.shape, lambda i: (0, 0)),
                         pl.BlockSpec(bf.shape, lambda i: (0, 0))]
        scale_specs.append((ns, len(layers)))
        couts.append(layers[-1][0].shape[1])

    c_total = sum(couts)
    c_pad = _round_up(c_total, 128)                  # unmasked (lane-dense) stores

    kernel = make_fused_sa_kernel(tuple(scale_specs), pool_method, c_pad)
    out = pl.pallas_call(
        kernel,
        out_shape=jax.ShapeDtypeStruct((m_pad, c_pad), jnp.float32),
        grid_spec=pltpu.PrefetchScalarGridSpec(
            num_scalar_prefetch=0,
            grid=(grid,),
            in_specs=in_specs,
            out_specs=pl.BlockSpec((tm, c_pad), lambda i: (i, 0)),
        ),
        compiler_params=pltpu.CompilerParams(
            dimension_semantics=("parallel",)),      # shards point tiles across TCs (v7x)
    )(*inputs)
    return out[:M, :c_total]


# ------------------------ QueryAndGroup (JAX glue) ---------------------------

def query_and_group(xyz, xyz_batch_cnt, new_xyz, new_xyz_batch_cnt,
                    features, radius, nsample):
    """Ball-query + grouping with use_xyz=True; mirrors pointnet2_stack semantics.

    Returns grouped features of shape (M, nsample, 3 + C).
    Empty balls are zeroed; partially-filled balls repeat the first neighbor.
    """
    # TODO(synk): move ball-query + grouping into a scalar-prefetch Pallas gather
    # kernel (indices in SMEM, per-point row DMA) — at realistic N/M the dense
    # O(M*N) distance + sort + XLA gather below dominates end-to-end time.
    N = xyz.shape[0]
    b_xyz = jnp.asarray(np.repeat(np.arange(len(xyz_batch_cnt)), xyz_batch_cnt))
    b_new = jnp.asarray(np.repeat(np.arange(len(new_xyz_batch_cnt)), new_xyz_batch_cnt))

    d2 = jnp.sum((new_xyz[:, None, :] - xyz[None, :, :]) ** 2, axis=-1)   # (M, N)
    valid = (d2 < radius * radius) & (b_new[:, None] == b_xyz[None, :])

    key = jnp.where(valid, jnp.arange(N)[None, :], N)       # invalid -> sentinel N
    ordered = jnp.sort(key, axis=1)
    idx = ordered[:, :nsample]                               # first nsample neighbors
    cnt = jnp.sum(valid, axis=1)
    empty = cnt == 0
    first = ordered[:, :1]
    slot = jnp.arange(nsample)[None, :]
    idx = jnp.where(slot < cnt[:, None], idx, first)         # pad by repeating first idx
    idx = jnp.where(empty[:, None], 0, idx)
    idx = jnp.clip(idx, 0, N - 1)

    grouped_xyz = xyz[idx] - new_xyz[:, None, :]              # (M, nsample, 3)
    grouped = jnp.concatenate([grouped_xyz, features[idx]], axis=-1)
    grouped = jnp.where(empty[:, None, None], 0.0, grouped)
    return grouped


# ---------------------------- Module forward ---------------------------------

def stack_sa_module_msg_forward(xyz, xyz_batch_cnt, new_xyz, new_xyz_batch_cnt,
                                features, radii, nsamples, params_per_scale,
                                pool_method='max_pool', tm=256,
                                compute_dtype=jnp.bfloat16):
    assert len(radii) == len(nsamples) == len(params_per_scale)
    grouped_list = [
        query_and_group(xyz, xyz_batch_cnt, new_xyz, new_xyz_batch_cnt,
                        features, radii[k], nsamples[k])      # (M, ns_k, Cin_k)
        for k in range(len(radii))
    ]
    new_features = fused_sa_pallas(grouped_list, params_per_scale,
                                   pool_method=pool_method, tm=tm,
                                   compute_dtype=compute_dtype)
    return new_xyz, new_features


# ------------------------ Parameters (deterministic) -------------------------

def init_params(key, mlps, use_xyz=True):
    """Conv2d 1x1 weights via kaiming_normal (fan_in, gain sqrt(2)); BN folded to
    eval-mode scale/bias with gamma=1, beta=0, running_mean=0, running_var=1."""
    params_per_scale = []
    for spec in mlps:
        spec = list(spec)
        if use_xyz:
            spec[0] += 3
        layers = []
        for k in range(len(spec) - 1):
            cin, cout = spec[k], spec[k + 1]
            key, sub = jax.random.split(key)
            w = jax.random.normal(sub, (cin, cout), jnp.float32) * math.sqrt(2.0 / cin)
            scale = jnp.full((1, cout), 1.0 / math.sqrt(1.0 + 1e-5), jnp.float32)
            bias = jnp.zeros((1, cout), jnp.float32)
            layers.append((w, scale, bias))
        params_per_scale.append(layers)
    return params_per_scale, key


# ------------------------------ Reference ------------------------------------

def reference_forward(xyz, xyz_batch_cnt, new_xyz, new_xyz_batch_cnt,
                      features, radii, nsamples, params_per_scale, pool_method,
                      compute_dtype=jnp.bfloat16):
    """Pure-JAX reference using the same precision path (bf16 matmul, f32 accum)."""
    outs = []
    for k in range(len(radii)):
        g = query_and_group(xyz, xyz_batch_cnt, new_xyz, new_xyz_batch_cnt,
                            features, radii[k], nsamples[k])          # (M, ns, Cin)
        h = g
        for (w, s, b) in params_per_scale[k]:
            wf = (w * s).astype(compute_dtype)
            acc = jnp.einsum('mnc,cd->mnd', h.astype(compute_dtype), wf,
                             preferred_element_type=jnp.float32)
            h = jnp.maximum(acc + b, 0.0)
        if pool_method == 'max_pool':
            outs.append(jnp.max(h, axis=1))
        else:
            outs.append(jnp.mean(h, axis=1))
    return jnp.concatenate(outs, axis=1)


# --------------------------------- Main ---------------------------------------

if __name__ == "__main__":
    key = jax.random.PRNGKey(0)

    # Small, module-consistent shapes.
    xyz_batch_cnt = [48, 80]          # N1, N2  -> N = 128
    new_xyz_batch_cnt = [24, 40]      # M1, M2  -> M = 64
    N = sum(xyz_batch_cnt)
    M = sum(new_xyz_batch_cnt)
    C = 4                             # input feature channels
    radii = [0.4, 0.8]
    nsamples = [8, 16]
    mlps = [[C, 16, 32], [C, 16, 32]]  # use_xyz=True -> effective [C+3, 16, 32]
    pool_method = 'max_pool'

    key, k1, k2, k3 = jax.random.split(key, 4)
    xyz = jax.random.uniform(k1, (N, 3), jnp.float32)
    new_xyz = jax.random.uniform(k2, (M, 3), jnp.float32)
    features = jax.random.normal(k3, (N, C), jnp.float32)

    params_per_scale, key = init_params(key, mlps, use_xyz=True)

    out_xyz, out_feat = stack_sa_module_msg_forward(
        xyz, xyz_batch_cnt, new_xyz, new_xyz_batch_cnt, features,
        radii, nsamples, params_per_scale, pool_method)
    jax.block_until_ready(out_feat)

    assert out_xyz.shape == (M, 3)
    assert out_feat.shape == (M, sum(m[-1] for m in mlps))

    ref = reference_forward(xyz, xyz_batch_cnt, new_xyz, new_xyz_batch_cnt, features,
                            radii, nsamples, params_per_scale, pool_method)
    np.testing.assert_allclose(np.asarray(out_feat), np.asarray(ref),
                               rtol=1e-2, atol=1e-2)

    print("KERNEL_OK")
</pallas_src>

<mosaic_0001>
module attributes {stable_mosaic.version = 11 : i64} {
  func.func @kernel(%arg0: i32, %arg1: memref<1024x7xbf16, #tpu.memory_space<vmem>>, %arg2: memref<7x16xbf16, #tpu.memory_space<vmem>>, %arg3: memref<1x16xf32, #tpu.memory_space<vmem>>, %arg4: memref<16x32xbf16, #tpu.memory_space<vmem>>, %arg5: memref<1x32xf32, #tpu.memory_space<vmem>>, %arg6: memref<2048x7xbf16, #tpu.memory_space<vmem>>, %arg7: memref<7x16xbf16, #tpu.memory_space<vmem>>, %arg8: memref<1x16xf32, #tpu.memory_space<vmem>>, %arg9: memref<16x32xbf16, #tpu.memory_space<vmem>>, %arg10: memref<1x32xf32, #tpu.memory_space<vmem>>, %arg11: memref<128x128xf32, #tpu.memory_space<vmem>>) attributes {dimension_semantics = [#tpu.dimension_semantics<parallel>], iteration_bounds = array<i64: 1>, scalar_prefetch = 0 : i64, scratch_operands = 0 : i64, tpu.core_type = #tpu.core_type<tc>, window_params = [{transform_indices = @transform_0, window_bounds = array<i64: 1024, 7>}, {pipeline_mode = #tpu.pipeline_mode<synchronous>, transform_indices = @transform_1, window_bounds = array<i64: 7, 16>}, {pipeline_mode = #tpu.pipeline_mode<synchronous>, transform_indices = @transform_2, window_bounds = array<i64: 1, 16>}, {pipeline_mode = #tpu.pipeline_mode<synchronous>, transform_indices = @transform_3, window_bounds = array<i64: 16, 32>}, {pipeline_mode = #tpu.pipeline_mode<synchronous>, transform_indices = @transform_4, window_bounds = array<i64: 1, 32>}, {transform_indices = @transform_5, window_bounds = array<i64: 2048, 7>}, {pipeline_mode = #tpu.pipeline_mode<synchronous>, transform_indices = @transform_6, window_bounds = array<i64: 7, 16>}, {pipeline_mode = #tpu.pipeline_mode<synchronous>, transform_indices = @transform_7, window_bounds = array<i64: 1, 16>}, {pipeline_mode = #tpu.pipeline_mode<synchronous>, transform_indices = @transform_8, window_bounds = array<i64: 16, 32>}, {pipeline_mode = #tpu.pipeline_mode<synchronous>, transform_indices = @transform_9, window_bounds = array<i64: 1, 32>}, {transform_indices = @transform_10, window_bounds = array<i64: 128, 128>}]} {
    %c0 = arith.constant 0 : index
    %c0_0 = arith.constant 0 : index
    %0 = vector.load %arg1[%c0, %c0_0] : memref<1024x7xbf16, #tpu.memory_space<vmem>>, vector<1024x7xbf16>
    %c0_1 = arith.constant 0 : index
    %c0_2 = arith.constant 0 : index
    %1 = vector.load %arg2[%c0_1, %c0_2] : memref<7x16xbf16, #tpu.memory_space<vmem>>, vector<7x16xbf16>
    %cst = arith.constant dense<0.000000e+00> : vector<1024x16xf32>
    %2 = tpu.matmul %0, %1, %cst {dimension_numbers = #tpu.dot_dimension_numbers<[1], [0], [0], [1], [0, 0, 1, 1], [], []>} : vector<1024x7xbf16>, vector<7x16xbf16>, vector<1024x16xf32> -> vector<1024x16xf32>
    %c0_3 = arith.constant 0 : index
    %c0_4 = arith.constant 0 : index
    %3 = vector.load %arg3[%c0_3, %c0_4] : memref<1x16xf32, #tpu.memory_space<vmem>>, vector<1x16xf32>
    %4 = vector.broadcast %3 : vector<1x16xf32> to vector<1024x16xf32>
    %5 = arith.addf %2, %4 : vector<1024x16xf32>
    %cst_5 = arith.constant 0.000000e+00 : f32
    %6 = vector.broadcast %cst_5 : f32 to vector<1024x16xf32>
    %7 = arith.maximumf %5, %6 : vector<1024x16xf32>
    %8 = arith.truncf %7 : vector<1024x16xf32> to vector<1024x16xbf16>
    %c0_6 = arith.constant 0 : index
    %c0_7 = arith.constant 0 : index
    %9 = vector.load %arg4[%c0_6, %c0_7] : memref<16x32xbf16, #tpu.memory_space<vmem>>, vector<16x32xbf16>
    %cst_8 = arith.constant dense<0.000000e+00> : vector<1024x32xf32>
    %10 = tpu.matmul %8, %9, %cst_8 {dimension_numbers = #tpu.dot_dimension_numbers<[1], [0], [0], [1], [0, 0, 1, 1], [], []>} : vector<1024x16xbf16>, vector<16x32xbf16>, vector<1024x32xf32> -> vector<1024x32xf32>
    %c0_9 = arith.constant 0 : index
    %c0_10 = arith.constant 0 : index
    %11 = vector.load %arg5[%c0_9, %c0_10] : memref<1x32xf32, #tpu.memory_space<vmem>>, vector<1x32xf32>
    %12 = vector.broadcast %11 : vector<1x32xf32> to vector<1024x32xf32>
    %13 = arith.addf %10, %12 : vector<1024x32xf32>
    %cst_11 = arith.constant 0.000000e+00 : f32
    %14 = vector.broadcast %cst_11 : f32 to vector<1024x32xf32>
    %15 = arith.maximumf %13, %14 : vector<1024x32xf32>
    %16 = vector.shape_cast %15 : vector<1024x32xf32> to vector<128x8x32xf32>
    %cst_12 = arith.constant dense<0xFF800000> : vector<128x32xf32>
    %17 = vector.multi_reduction <maximumf>, %16, %cst_12 [1] : vector<128x8x32xf32> to vector<128x32xf32>
    %c0_13 = arith.constant 0 : index
    %c0_14 = arith.constant 0 : index
    %18 = vector.load %arg6[%c0_13, %c0_14] : memref<2048x7xbf16, #tpu.memory_space<vmem>>, vector<2048x7xbf16>
    %c0_15 = arith.constant 0 : index
    %c0_16 = arith.constant 0 : index
    %19 = vector.load %arg7[%c0_15, %c0_16] : memref<7x16xbf16, #tpu.memory_space<vmem>>, vector<7x16xbf16>
    %cst_17 = arith.constant dense<0.000000e+00> : vector<2048x16xf32>
    %20 = tpu.matmul %18, %19, %cst_17 {dimension_numbers = #tpu.dot_dimension_numbers<[1], [0], [0], [1], [0, 0, 1, 1], [], []>} : vector<2048x7xbf16>, vector<7x16xbf16>, vector<2048x16xf32> -> vector<2048x16xf32>
    %c0_18 = arith.constant 0 : index
    %c0_19 = arith.constant 0 : index
    %21 = vector.load %arg8[%c0_18, %c0_19] : memref<1x16xf32, #tpu.memory_space<vmem>>, vector<1x16xf32>
    %22 = vector.broadcast %21 : vector<1x16xf32> to vector<2048x16xf32>
    %23 = arith.addf %20, %22 : vector<2048x16xf32>
    %cst_20 = arith.constant 0.000000e+00 : f32
    %24 = vector.broadcast %cst_20 : f32 to vector<2048x16xf32>
    %25 = arith.maximumf %23, %24 : vector<2048x16xf32>
    %26 = arith.truncf %25 : vector<2048x16xf32> to vector<2048x16xbf16>
    %c0_21 = arith.constant 0 : index
    %c0_22 = arith.constant 0 : index
    %27 = vector.load %arg9[%c0_21, %c0_22] : memref<16x32xbf16, #tpu.memory_space<vmem>>, vector<16x32xbf16>
    %cst_23 = arith.constant dense<0.000000e+00> : vector<2048x32xf32>
    %28 = tpu.matmul %26, %27, %cst_23 {dimension_numbers = #tpu.dot_dimension_numbers<[1], [0], [0], [1], [0, 0, 1, 1], [], []>} : vector<2048x16xbf16>, vector<16x32xbf16>, vector<2048x32xf32> -> vector<2048x32xf32>
    %c0_24 = arith.constant 0 : index
    %c0_25 = arith.constant 0 : index
    %29 = vector.load %arg10[%c0_24, %c0_25] : memref<1x32xf32, #tpu.memory_space<vmem>>, vector<1x32xf32>
    %30 = vector.broadcast %29 : vector<1x32xf32> to vector<2048x32xf32>
    %31 = arith.addf %28, %30 : vector<2048x32xf32>
    %cst_26 = arith.constant 0.000000e+00 : f32
    %32 = vector.broadcast %cst_26 : f32 to vector<2048x32xf32>
    %33 = arith.maximumf %31, %32 : vector<2048x32xf32>
    %34 = vector.shape_cast %33 : vector<2048x32xf32> to vector<128x16x32xf32>
    %cst_27 = arith.constant dense<0xFF800000> : vector<128x32xf32>
    %35 = vector.multi_reduction <maximumf>, %34, %cst_27 [1] : vector<128x16x32xf32> to vector<128x32xf32>
    %36 = tpu.concatenate %17, %35 in 1 : vector<128x32xf32>, vector<128x32xf32> -> vector<128x64xf32>
    %cst_28 = arith.constant 0.000000e+00 : f32
    %37 = vector.broadcast %cst_28 : f32 to vector<128x64xf32>
    %38 = tpu.concatenate %36, %37 in 1 : vector<128x64xf32>, vector<128x64xf32> -> vector<128x128xf32>
    %c0_29 = arith.constant 0 : index
    %c0_30 = arith.constant 0 : index
    %39 = vector.load %arg11[%c0_29, %c0_30] : memref<128x128xf32, #tpu.memory_space<vmem>>, vector<128x128xf32>
    tpu.vector_store %arg11[%c0_29, %c0_30], %38 {strides = array<i32>} : memref<128x128xf32, #tpu.memory_space<vmem>>, vector<128x128xf32>,
    return
  }
  func.func @transform_0(%arg0: i32) -> (i32, i32) {
    %c0_i32 = arith.constant 0 : i32
    %c0_i32_0 = arith.constant 0 : i32
    return %arg0, %c0_i32 : i32, i32
  }
  func.func @transform_1(%arg0: i32) -> (i32, i32) {
    %c0_i32 = arith.constant 0 : i32
    %c0_i32_0 = arith.constant 0 : i32
    %c0_i32_1 = arith.constant 0 : i32
    return %c0_i32, %c0_i32_0 : i32, i32
  }
  func.func @transform_2(%arg0: i32) -> (i32, i32) {
    %c0_i32 = arith.constant 0 : i32
    %c0_i32_0 = arith.constant 0 : i32
    %c0_i32_1 = arith.constant 0 : i32
    return %c0_i32, %c0_i32_0 : i32, i32
  }
  func.func @transform_3(%arg0: i32) -> (i32, i32) {
    %c0_i32 = arith.constant 0 : i32
    %c0_i32_0 = arith.constant 0 : i32
    %c0_i32_1 = arith.constant 0 : i32
    return %c0_i32, %c0_i32_0 : i32, i32
  }
  func.func @transform_4(%arg0: i32) -> (i32, i32) {
    %c0_i32 = arith.constant 0 : i32
    %c0_i32_0 = arith.constant 0 : i32
    %c0_i32_1 = arith.constant 0 : i32
    return %c0_i32, %c0_i32_0 : i32, i32
  }
  func.func @transform_5(%arg0: i32) -> (i32, i32) {
    %c0_i32 = arith.constant 0 : i32
    %c0_i32_0 = arith.constant 0 : i32
    return %arg0, %c0_i32 : i32, i32
  }
  func.func @transform_6(%arg0: i32) -> (i32, i32) {
    %c0_i32 = arith.constant 0 : i32
    %c0_i32_0 = arith.constant 0 : i32
    %c0_i32_1 = arith.constant 0 : i32
    return %c0_i32, %c0_i32_0 : i32, i32
  }
  func.func @transform_7(%arg0: i32) -> (i32, i32) {
    %c0_i32 = arith.constant 0 : i32
    %c0_i32_0 = arith.constant 0 : i32
    %c0_i32_1 = arith.constant 0 : i32
    return %c0_i32, %c0_i32_0 : i32, i32
  }
  func.func @transform_8(%arg0: i32) -> (i32, i32) {
    %c0_i32 = arith.constant 0 : i32
    %c0_i32_0 = arith.constant 0 : i32
    %c0_i32_1 = arith.constant 0 : i32
    return %c0_i32, %c0_i32_0 : i32, i32
  }
  func.func @transform_9(%arg0: i32) -> (i32, i32) {
    %c0_i32 = arith.constant 0 : i32
    %c0_i32_0 = arith.constant 0 : i32
    %c0_i32_1 = arith.constant 0 : i32
    return %c0_i32, %c0_i32_0 : i32, i32
  }
  func.func @transform_10(%arg0: i32) -> (i32, i32) {
    %c0_i32 = arith.constant 0 : i32
    %c0_i32_0 = arith.constant 0 : i32
    return %arg0, %c0_i32 : i32, i32
  }
}

</mosaic_0001>

<llo_original>
// kernel: tpu_custom_call.1
$region0: #{tpu_custom_call.1}
  #allocation0 [shape = 'u32[]', space=smem, size = 0x4, offset = 0x4, fixed_abs, tag = 'smem constant byte address 0x4 - core index']
  #allocation1 [shape = 'u32[144,128]{1,0:T(1,128)}', space=vmem, size = 0x12000, scoped, tag = 'internal scratch']
  %s0 = inlined_call_operand.vmem [shape: bf16[1024,7], index: 0, kind: input, shape index: {}]
  %s1 = inlined_call_operand.vmem [shape: bf16[7,16], index: 1, kind: input, shape index: {}]
  %s2 = inlined_call_operand.vmem [shape: f32[1,16], index: 2, kind: input, shape index: {}]
  %s3 = inlined_call_operand.vmem [shape: bf16[16,32], index: 3, kind: input, shape index: {}]
  %s4 = inlined_call_operand.vmem [shape: f32[1,32], index: 4, kind: input, shape index: {}]
  %s5 = inlined_call_operand.vmem [shape: bf16[2048,7], index: 5, kind: input, shape index: {}]
  %s6 = inlined_call_operand.vmem [shape: bf16[7,16], index: 6, kind: input, shape index: {}]
  %s7 = inlined_call_operand.vmem [shape: f32[1,16], index: 7, kind: input, shape index: {}]
  %s8 = inlined_call_operand.vmem [shape: bf16[16,32], index: 8, kind: input, shape index: {}]
  %s9 = inlined_call_operand.vmem [shape: f32[1,32], index: 9, kind: input, shape index: {}]
  %s10 = inlined_call_operand.hbm [shape: f32[128,128], index: 10, kind: output, shape index: {}]
  %s11 = sld [smem:[#allocation0]]
  $region50: #{tpu_custom_call.1} parent=0
    _
  %s13 = ssub.s32 1, %s11
  %s14 = scalar_select 0, %s13, %s11
  $region1: #{tpu_custom_call.1} parent=0
    #allocation2 [shape = 'u8[65536]{0}', space=vmem, size = 0x10000, scoped, tag = 'output window, operand 0, single buffered']
    #allocation3 [shape = 's32[1]{0}', space=sflag, size = 0x4, scoped, tag = 'scoped memory for tpu_custom_call.1']
    %15 = vsyncpa [#allocation3], 0
    // Predicated region
    $region2: #{tpu_custom_call.1} parent=1 // pred_check
      _
    $region3: #{tpu_custom_call.1} parent=1 // pred_check_branch
      %17 = sbr.rel (0) target = $region5
    $region4: #{tpu_custom_call.1} parent=1 // pred_region
      _
    $region5: #{tpu_custom_call.1} parent=1 // pred_fallthru
      _
    // Predicated region
    $region6: #{tpu_custom_call.1} parent=1 // pred_check
      _
    $region7: #{tpu_custom_call.1} parent=1 // pred_check_branch
      %19 = sbr.rel (0) target = $region9
    $region8: #{tpu_custom_call.1} parent=1 // pred_region
      _
    $region9: #{tpu_custom_call.1} parent=1 // pred_fallthru
      _
    // Predicated region
    $region10: #{tpu_custom_call.1} parent=1 // pred_check
      _
    $region11: #{tpu_custom_call.1} parent=1 // pred_check_branch
      %21 = sbr.rel (0) target = $region13
    $region12: #{tpu_custom_call.1} parent=1 // pred_region
      _
    $region13: #{tpu_custom_call.1} parent=1 // pred_fallthru
      _
    // Predicated region
    $region14: #{tpu_custom_call.1} parent=1 // pred_check
      _
    $region15: #{tpu_custom_call.1} parent=1 // pred_check_branch
      %23 = sbr.rel (0) target = $region17
    $region16: #{tpu_custom_call.1} parent=1 // pred_region
      _
    $region17: #{tpu_custom_call.1} parent=1 // pred_fallthru
      _
    // Predicated region
    $region18: #{tpu_custom_call.1} parent=1 // pred_check
      _
    $region19: #{tpu_custom_call.1} parent=1 // pred_check_branch
      %25 = sbr.rel (0) target = $region21
    $region20: #{tpu_custom_call.1} parent=1 // pred_region
      _
    $region21: #{tpu_custom_call.1} parent=1 // pred_fallthru
      _
    // Predicated region
    $region22: #{tpu_custom_call.1} parent=1 // pred_check
      _
    $region23: #{tpu_custom_call.1} parent=1 // pred_check_branch
      %27 = sbr.rel (0) target = $region25
    $region24: #{tpu_custom_call.1} parent=1 // pred_region
      _
    $region25: #{tpu_custom_call.1} parent=1 // pred_fallthru
      _
    // Predicated region
    $region26: #{tpu_custom_call.1} parent=1 // pred_check
      _
    $region27: #{tpu_custom_call.1} parent=1 // pred_check_branch
      %29 = sbr.rel (0) target = $region29
    $region28: #{tpu_custom_call.1} parent=1 // pred_region
      _
    $region29: #{tpu_custom_call.1} parent=1 // pred_fallthru
      _
    // Predicated region
    $region30: #{tpu_custom_call.1} parent=1 // pred_check
      _
    $region31: #{tpu_custom_call.1} parent=1 // pred_check_branch
      %31 = sbr.rel (0) target = $region33
    $region32: #{tpu_custom_call.1} parent=1 // pred_region
      _
    $region33: #{tpu_custom_call.1} parent=1 // pred_fallthru
      _
    // Predicated region
    $region34: #{tpu_custom_call.1} parent=1 // pred_check
      _
    $region35: #{tpu_custom_call.1} parent=1 // pred_check_branch
      %33 = sbr.rel (0) target = $region37
    $region36: #{tpu_custom_call.1} parent=1 // pred_region
      _
    $region37: #{tpu_custom_call.1} parent=1 // pred_fallthru
      _
    // Predicated region
    $region38: #{tpu_custom_call.1} parent=1 // pred_check
      _
    $region39: #{tpu_custom_call.1} parent=1 // pred_check_branch
      %35 = sbr.rel (0) target = $region41
    $region40: #{tpu_custom_call.1} parent=1 // pred_region
      _
    $region41: #{tpu_custom_call.1} parent=1 // pred_fallthru
      _
    %v37 = vld [vmem:[%s0] sm:$0xf]
    %v38 = vld [vmem:[%s0 + $0x4] sm:$0xf]
    %v39 = vld [vmem:[%s0 + $0x8] sm:$0xf]
    %v40 = vld [vmem:[%s0 + $0xc] sm:$0xf]
    %v41 = vld [vmem:[%s0 + $0x10] sm:$0xf]
    %v42 = vld [vmem:[%s0 + $0x14] sm:$0xf]
    %v43 = vld [vmem:[%s0 + $0x18] sm:$0xf]
    %v44 = vld [vmem:[%s0 + $0x1c] sm:$0xf]
    %v45 = vld [vmem:[%s0 + $0x20] sm:$0xf]
    %v46 = vld [vmem:[%s0 + $0x24] sm:$0xf]
    %v47 = vld [vmem:[%s0 + $0x28] sm:$0xf]
    %v48 = vld [vmem:[%s0 + $0x2c] sm:$0xf]
    %v49 = vld [vmem:[%s0 + $0x30] sm:$0xf]
    %v50 = vld [vmem:[%s0 + $0x34] sm:$0xf]
    %v51 = vld [vmem:[%s0 + $0x38] sm:$0xf]
    %v52 = vld [vmem:[%s0 + $0x3c] sm:$0xf]
    %v53 = vld [vmem:[%s0 + $0x40] sm:$0xf]
    %v54 = vld [vmem:[%s0 + $0x44] sm:$0xf]
    %v55 = vld [vmem:[%s0 + $0x48] sm:$0xf]
    %v56 = vld [vmem:[%s0 + $0x4c] sm:$0xf]
    %v57 = vld [vmem:[%s0 + $0x50] sm:$0xf]
    %v58 = vld [vmem:[%s0 + $0x54] sm:$0xf]
    %v59 = vld [vmem:[%s0 + $0x58] sm:$0xf]
    %v60 = vld [vmem:[%s0 + $0x5c] sm:$0xf]
    %v61 = vld [vmem:[%s0 + $0x60] sm:$0xf]
    %v62 = vld [vmem:[%s0 + $0x64] sm:$0xf]
    %v63 = vld [vmem:[%s0 + $0x68] sm:$0xf]
    %v64 = vld [vmem:[%s0 + $0x6c] sm:$0xf]
    %v65 = vld [vmem:[%s0 + $0x70] sm:$0xf]
    %v66 = vld [vmem:[%s0 + $0x74] sm:$0xf]
    %v67 = vld [vmem:[%s0 + $0x78] sm:$0xf]
    %v68 = vld [vmem:[%s0 + $0x7c] sm:$0xf]
    %v69 = vld [vmem:[%s0 + $0x80] sm:$0xf]
    %v70 = vld [vmem:[%s0 + $0x84] sm:$0xf]
    %v71 = vld [vmem:[%s0 + $0x88] sm:$0xf]
    %v72 = vld [vmem:[%s0 + $0x8c] sm:$0xf]
    %v73 = vld [vmem:[%s0 + $0x90] sm:$0xf]
    %v74 = vld [vmem:[%s0 + $0x94] sm:$0xf]
    %v75 = vld [vmem:[%s0 + $0x98] sm:$0xf]
    %v76 = vld [vmem:[%s0 + $0x9c] sm:$0xf]
    %v77 = vld [vmem:[%s0 + $0xa0] sm:$0xf]
    %v78 = vld [vmem:[%s0 + $0xa4] sm:$0xf]
    %v79 = vld [vmem:[%s0 + $0xa8] sm:$0xf]
    %v80 = vld [vmem:[%s0 + $0xac] sm:$0xf]
    %v81 = vld [vmem:[%s0 + $0xb0] sm:$0xf]
    %v82 = vld [vmem:[%s0 + $0xb4] sm:$0xf]
    %v83 = vld [vmem:[%s0 + $0xb8] sm:$0xf]
    %v84 = vld [vmem:[%s0 + $0xbc] sm:$0xf]
    %v85 = vld [vmem:[%s0 + $0xc0] sm:$0xf]
    %v86 = vld [vmem:[%s0 + $0xc4] sm:$0xf]
    %v87 = vld [vmem:[%s0 + $0xc8] sm:$0xf]
    %v88 = vld [vmem:[%s0 + $0xcc] sm:$0xf]
    %v89 = vld [vmem:[%s0 + $0xd0] sm:$0xf]
    %v90 = vld [vmem:[%s0 + $0xd4] sm:$0xf]
    %v91 = vld [vmem:[%s0 + $0xd8] sm:$0xf]
    %v92 = vld [vmem:[%s0 + $0xdc] sm:$0xf]
    %v93 = vld [vmem:[%s0 + $0xe0] sm:$0xf]
    %v94 = vld [vmem:[%s0 + $0xe4] sm:$0xf]
    %v95 = vld [vmem:[%s0 + $0xe8] sm:$0xf]
    %v96 = vld [vmem:[%s0 + $0xec] sm:$0xf]
    %v97 = vld [vmem:[%s0 + $0xf0] sm:$0xf]
    %v98 = vld [vmem:[%s0 + $0xf4] sm:$0xf]
    %v99 = vld [vmem:[%s0 + $0xf8] sm:$0xf]
    %v100 = vld [vmem:[%s0 + $0xfc] sm:$0xf]
    %v101 = vld [vmem:[%s0 + $0x100] sm:$0xf]
    %v102 = vld [vmem:[%s0 + $0x104] sm:$0xf]
    %v103 = vld [vmem:[%s0 + $0x108] sm:$0xf]
    %v104 = vld [vmem:[%s0 + $0x10c] sm:$0xf]
    %v105 = vld [vmem:[%s0 + $0x110] sm:$0xf]
    %v106 = vld [vmem:[%s0 + $0x114] sm:$0xf]
    %v107 = vld [vmem:[%s0 + $0x118] sm:$0xf]
    %v108 = vld [vmem:[%s0 + $0x11c] sm:$0xf]
    %v109 = vld [vmem:[%s0 + $0x120] sm:$0xf]
    %v110 = vld [vmem:[%s0 + $0x124] sm:$0xf]
    %v111 = vld [vmem:[%s0 + $0x128] sm:$0xf]
    %v112 = vld [vmem:[%s0 + $0x12c] sm:$0xf]
    %v113 = vld [vmem:[%s0 + $0x130] sm:$0xf]
    %v114 = vld [vmem:[%s0 + $0x134] sm:$0xf]
    %v115 = vld [vmem:[%s0 + $0x138] sm:$0xf]
    %v116 = vld [vmem:[%s0 + $0x13c] sm:$0xf]
    %v117 = vld [vmem:[%s0 + $0x140] sm:$0xf]
    %v118 = vld [vmem:[%s0 + $0x144] sm:$0xf]
    %v119 = vld [vmem:[%s0 + $0x148] sm:$0xf]
    %v120 = vld [vmem:[%s0 + $0x14c] sm:$0xf]
    %v121 = vld [vmem:[%s0 + $0x150] sm:$0xf]
    %v122 = vld [vmem:[%s0 + $0x154] sm:$0xf]
    %v123 = vld [vmem:[%s0 + $0x158] sm:$0xf]
    %v124 = vld [vmem:[%s0 + $0x15c] sm:$0xf]
    %v125 = vld [vmem:[%s0 + $0x160] sm:$0xf]
    %v126 = vld [vmem:[%s0 + $0x164] sm:$0xf]
    %v127 = vld [vmem:[%s0 + $0x168] sm:$0xf]
    %v128 = vld [vmem:[%s0 + $0x16c] sm:$0xf]
    %v129 = vld [vmem:[%s0 + $0x170] sm:$0xf]
    %v130 = vld [vmem:[%s0 + $0x174] sm:$0xf]
    %v131 = vld [vmem:[%s0 + $0x178] sm:$0xf]
    %v132 = vld [vmem:[%s0 + $0x17c] sm:$0xf]
    %v133 = vld [vmem:[%s0 + $0x180] sm:$0xf]
    %v134 = vld [vmem:[%s0 + $0x184] sm:$0xf]
    %v135 = vld [vmem:[%s0 + $0x188] sm:$0xf]
    %v136 = vld [vmem:[%s0 + $0x18c] sm:$0xf]
    %v137 = vld [vmem:[%s0 + $0x190] sm:$0xf]
    %v138 = vld [vmem:[%s0 + $0x194] sm:$0xf]
    %v139 = vld [vmem:[%s0 + $0x198] sm:$0xf]
    %v140 = vld [vmem:[%s0 + $0x19c] sm:$0xf]
    %v141 = vld [vmem:[%s0 + $0x1a0] sm:$0xf]
    %v142 = vld [vmem:[%s0 + $0x1a4] sm:$0xf]
    %v143 = vld [vmem:[%s0 + $0x1a8] sm:$0xf]
    %v144 = vld [vmem:[%s0 + $0x1ac] sm:$0xf]
    %v145 = vld [vmem:[%s0 + $0x1b0] sm:$0xf]
    %v146 = vld [vmem:[%s0 + $0x1b4] sm:$0xf]
    %v147 = vld [vmem:[%s0 + $0x1b8] sm:$0xf]
    %v148 = vld [vmem:[%s0 + $0x1bc] sm:$0xf]
    %v149 = vld [vmem:[%s0 + $0x1c0] sm:$0xf]
    %v150 = vld [vmem:[%s0 + $0x1c4] sm:$0xf]
    %v151 = vld [vmem:[%s0 + $0x1c8] sm:$0xf]
    %v152 = vld [vmem:[%s0 + $0x1cc] sm:$0xf]
    %v153 = vld [vmem:[%s0 + $0x1d0] sm:$0xf]
    %v154 = vld [vmem:[%s0 + $0x1d4] sm:$0xf]
    %v155 = vld [vmem:[%s0 + $0x1d8] sm:$0xf]
    %v156 = vld [vmem:[%s0 + $0x1dc] sm:$0xf]
    %v157 = vld [vmem:[%s0 + $0x1e0] sm:$0xf]
    %v158 = vld [vmem:[%s0 + $0x1e4] sm:$0xf]
    %v159 = vld [vmem:[%s0 + $0x1e8] sm:$0xf]
    %v160 = vld [vmem:[%s0 + $0x1ec] sm:$0xf]
    %v161 = vld [vmem:[%s0 + $0x1f0] sm:$0xf]
    %v162 = vld [vmem:[%s0 + $0x1f4] sm:$0xf]
    %v163 = vld [vmem:[%s0 + $0x1f8] sm:$0xf]
    %v164 = vld [vmem:[%s0 + $0x1fc] sm:$0xf]
    %v165 = vld [vmem:[%s1] sm:$0xf]
    %v166 = vld [vmem:[%s2] sm:$0x1]
    %v168 = vlaneseq
    %v169 = vshrl.u32 %v168, 7
    %v170 = vsub.s32 0, %v169
    %v171 = vrot.slane %v166, %v170
    %v301 = vunpack.c.l.b16 %v37
    %v302 = vunpack.c.l.b16 %v38
    %v303 = vunpack.c.l.b16 %v39
    %v304 = vunpack.c.l.b16 %v40
    %v305 = vunpack.c.l.b16 %v41
    %v306 = vunpack.c.l.b16 %v42
    %v307 = vunpack.c.l.b16 %v43
    %v308 = vunpack.c.l.b16 %v44
    %v309 = vunpack.c.l.b16 %v45
    %v310 = vunpack.c.l.b16 %v46
    %v311 = vunpack.c.l.b16 %v47
    %v312 = vunpack.c.l.b16 %v48
    %v313 = vunpack.c.l.b16 %v49
    %v314 = vunpack.c.l.b16 %v50
    %v315 = vunpack.c.l.b16 %v51
    %v316 = vunpack.c.l.b16 %v52
    %v317 = vunpack.c.l.b16 %v53
    %v318 = vunpack.c.l.b16 %v54
    %v319 = vunpack.c.l.b16 %v55
    %v320 = vunpack.c.l.b16 %v56
    %v321 = vunpack.c.l.b16 %v57
    %v322 = vunpack.c.l.b16 %v58
    %v323 = vunpack.c.l.b16 %v59
    %v324 = vunpack.c.l.b16 %v60
    %v325 = vunpack.c.l.b16 %v61
    %v326 = vunpack.c.l.b16 %v62
    %v327 = vunpack.c.l.b16 %v63
    %v328 = vunpack.c.l.b16 %v64
    %v329 = vunpack.c.l.b16 %v65
    %v330 = vunpack.c.l.b16 %v66
    %v331 = vunpack.c.l.b16 %v67
    %v332 = vunpack.c.l.b16 %v68
    %v333 = vunpack.c.l.b16 %v69
    %v334 = vunpack.c.l.b16 %v70
    %v335 = vunpack.c.l.b16 %v71
    %v336 = vunpack.c.l.b16 %v72
    %v337 = vunpack.c.l.b16 %v73
    %v338 = vunpack.c.l.b16 %v74
    %v339 = vunpack.c.l.b16 %v75
    %v340 = vunpack.c.l.b16 %v76
    %v341 = vunpack.c.l.b16 %v77
    %v342 = vunpack.c.l.b16 %v78
    %v343 = vunpack.c.l.b16 %v79
    %v344 = vunpack.c.l.b16 %v80
    %v345 = vunpack.c.l.b16 %v81
    %v346 = vunpack.c.l.b16 %v82
    %v347 = vunpack.c.l.b16 %v83
    %v348 = vunpack.c.l.b16 %v84
    %v349 = vunpack.c.l.b16 %v85
    %v350 = vunpack.c.l.b16 %v86
    %v351 = vunpack.c.l.b16 %v87
    %v352 = vunpack.c.l.b16 %v88
    %v353 = vunpack.c.l.b16 %v89
    %v354 = vunpack.c.l.b16 %v90
    %v355 = vunpack.c.l.b16 %v91
    %v356 = vunpack.c.l.b16 %v92
    %v357 = vunpack.c.l.b16 %v93
    %v358 = vunpack.c.l.b16 %v94
    %v359 = vunpack.c.l.b16 %v95
    %v360 = vunpack.c.l.b16 %v96
    %v361 = vunpack.c.l.b16 %v97
    %v362 = vunpack.c.l.b16 %v98
    %v363 = vunpack.c.l.b16 %v99
    %v364 = vunpack.c.l.b16 %v100
    %v365 = vunpack.c.l.b16 %v101
    %v366 = vunpack.c.l.b16 %v102
    %v367 = vunpack.c.l.b16 %v103
    %v368 = vunpack.c.l.b16 %v104
    %v369 = vunpack.c.l.b16 %v105
    %v370 = vunpack.c.l.b16 %v106
    %v371 = vunpack.c.l.b16 %v107
    %v372 = vunpack.c.l.b16 %v108
    %v373 = vunpack.c.l.b16 %v109
    %v374 = vunpack.c.l.b16 %v110
    %v375 = vunpack.c.l.b16 %v111
    %v376 = vunpack.c.l.b16 %v112
    %v377 = vunpack.c.l.b16 %v113
    %v378 = vunpack.c.l.b16 %v114
    %v379 = vunpack.c.l.b16 %v115
    %v380 = vunpack.c.l.b16 %v116
    %v381 = vunpack.c.l.b16 %v117
    %v382 = vunpack.c.l.b16 %v118
    %v383 = vunpack.c.l.b16 %v119
    %v384 = vunpack.c.l.b16 %v120
    %v385 = vunpack.c.l.b16 %v121
    %v386 = vunpack.c.l.b16 %v122
    %v387 = vunpack.c.l.b16 %v123
    %v388 = vunpack.c.l.b16 %v124
    %v389 = vunpack.c.l.b16 %v125
    %v390 = vunpack.c.l.b16 %v126
    %v391 = vunpack.c.l.b16 %v127
    %v392 = vunpack.c.l.b16 %v128
    %v393 = vunpack.c.l.b16 %v129
    %v394 = vunpack.c.l.b16 %v130
    %v395 = vunpack.c.l.b16 %v131
    %v396 = vunpack.c.l.b16 %v132
    %v397 = vunpack.c.l.b16 %v133
    %v398 = vunpack.c.l.b16 %v134
    %v399 = vunpack.c.l.b16 %v135
    %v400 = vunpack.c.l.b16 %v136
    %v401 = vunpack.c.l.b16 %v137
    %v402 = vunpack.c.l.b16 %v138
    %v403 = vunpack.c.l.b16 %v139
    %v404 = vunpack.c.l.b16 %v140
    %v405 = vunpack.c.l.b16 %v141
    %v406 = vunpack.c.l.b16 %v142
    %v407 = vunpack.c.l.b16 %v143
    %v408 = vunpack.c.l.b16 %v144
    %v409 = vunpack.c.l.b16 %v145
    %v410 = vunpack.c.l.b16 %v146
    %v411 = vunpack.c.l.b16 %v147
    %v412 = vunpack.c.l.b16 %v148
    %v413 = vunpack.c.l.b16 %v149
    %v414 = vunpack.c.l.b16 %v150
    %v415 = vunpack.c.l.b16 %v151
    %v416 = vunpack.c.l.b16 %v152
    %v417 = vunpack.c.l.b16 %v153
    %v418 = vunpack.c.l.b16 %v154
    %v419 = vunpack.c.l.b16 %v155
    %v420 = vunpack.c.l.b16 %v156
    %v421 = vunpack.c.l.b16 %v157
    %v422 = vunpack.c.l.b16 %v158
    %v423 = vunpack.c.l.b16 %v159
    %v424 = vunpack.c.l.b16 %v160
    %v425 = vunpack.c.l.b16 %v161
    %v426 = vunpack.c.l.b16 %v162
    %v427 = vunpack.c.l.b16 %v163
    %v428 = vunpack.c.l.b16 %v164
    %v429 = vpack.c.b16 %v302, %v301
    %v430 = vpack.c.b16 %v304, %v303
    %v431 = vpack.c.b16 %v306, %v305
    %v432 = vpack.c.b16 %v308, %v307
    %v433 = vpack.c.b16 %v310, %v309
    %v434 = vpack.c.b16 %v312, %v311
    %v435 = vpack.c.b16 %v314, %v313
    %v436 = vpack.c.b16 %v316, %v315
    %v437 = vpack.c.b16 %v318, %v317
    %v438 = vpack.c.b16 %v320, %v319
    %v439 = vpack.c.b16 %v322, %v321
    %v440 = vpack.c.b16 %v324, %v323
    %v441 = vpack.c.b16 %v326, %v325
    %v442 = vpack.c.b16 %v328, %v327
    %v443 = vpack.c.b16 %v330, %v329
    %v444 = vpack.c.b16 %v332, %v331
    %v445 = vpack.c.b16 %v334, %v333
    %v446 = vpack.c.b16 %v336, %v335
    %v447 = vpack.c.b16 %v338, %v337
    %v448 = vpack.c.b16 %v340, %v339
    %v449 = vpack.c.b16 %v342, %v341
    %v450 = vpack.c.b16 %v344, %v343
    %v451 = vpack.c.b16 %v346, %v345
    %v452 = vpack.c.b16 %v348, %v347
    %v453 = vpack.c.b16 %v350, %v349
    %v454 = vpack.c.b16 %v352, %v351
    %v455 = vpack.c.b16 %v354, %v353
    %v456 = vpack.c.b16 %v356, %v355
    %v457 = vpack.c.b16 %v358, %v357
    %v458 = vpack.c.b16 %v360, %v359
    %v459 = vpack.c.b16 %v362, %v361
    %v460 = vpack.c.b16 %v364, %v363
    %v461 = vpack.c.b16 %v366, %v365
    %v462 = vpack.c.b16 %v368, %v367
    %v463 = vpack.c.b16 %v370, %v369
    %v464 = vpack.c.b16 %v372, %v371
    %v465 = vpack.c.b16 %v374, %v373
    %v466 = vpack.c.b16 %v376, %v375
    %v467 = vpack.c.b16 %v378, %v377
    %v468 = vpack.c.b16 %v380, %v379
    %v469 = vpack.c.b16 %v382, %v381
    %v470 = vpack.c.b16 %v384, %v383
    %v471 = vpack.c.b16 %v386, %v385
    %v472 = vpack.c.b16 %v388, %v387
    %v473 = vpack.c.b16 %v390, %v389
    %v474 = vpack.c.b16 %v392, %v391
    %v475 = vpack.c.b16 %v394, %v393
    %v476 = vpack.c.b16 %v396, %v395
    %v477 = vpack.c.b16 %v398, %v397
    %v478 = vpack.c.b16 %v400, %v399
    %v479 = vpack.c.b16 %v402, %v401
    %v480 = vpack.c.b16 %v404, %v403
    %v481 = vpack.c.b16 %v406, %v405
    %v482 = vpack.c.b16 %v408, %v407
    %v483 = vpack.c.b16 %v410, %v409
    %v484 = vpack.c.b16 %v412, %v411
    %v485 = vpack.c.b16 %v414, %v413
    %v486 = vpack.c.b16 %v416, %v415
    %v487 = vpack.c.b16 %v418, %v417
    %v488 = vpack.c.b16 %v420, %v419
    %v489 = vpack.c.b16 %v422, %v421
    %v490 = vpack.c.b16 %v424, %v423
    %v491 = vpack.c.b16 %v426, %v425
    %v492 = vpack.c.b16 %v428, %v427
    %vm493 = vcmask 56320
    %v495 = vsel %vm493, %v429, 0
    %v498 = vsel %vm493, %v430, 0
    %v501 = vsel %vm493, %v431, 0
    %v504 = vsel %vm493, %v432, 0
    %v507 = vsel %vm493, %v433, 0
    %v510 = vsel %vm493, %v434, 0
    %v513 = vsel %vm493, %v435, 0
    %v516 = vsel %vm493, %v436, 0
    %v519 = vsel %vm493, %v437, 0
    %v522 = vsel %vm493, %v438, 0
    %v525 = vsel %vm493, %v439, 0
    %v528 = vsel %vm493, %v440, 0
    %v531 = vsel %vm493, %v441, 0
    %v534 = vsel %vm493, %v442, 0
    %v537 = vsel %vm493, %v443, 0
    %v540 = vsel %vm493, %v444, 0
    %v543 = vsel %vm493, %v445, 0
    %v546 = vsel %vm493, %v446, 0
    %v549 = vsel %vm493, %v447, 0
    %v552 = vsel %vm493, %v448, 0
    %v555 = vsel %vm493, %v449, 0
    %v558 = vsel %vm493, %v450, 0
    %v561 = vsel %vm493, %v451, 0
    %v564 = vsel %vm493, %v452, 0
    %v567 = vsel %vm493, %v453, 0
    %v570 = vsel %vm493, %v454, 0
    %v573 = vsel %vm493, %v455, 0
    %v576 = vsel %vm493, %v456, 0
    %v579 = vsel %vm493, %v457, 0
    %v582 = vsel %vm493, %v458, 0
    %v585 = vsel %vm493, %v459, 0
    %v588 = vsel %vm493, %v460, 0
    %v591 = vsel %vm493, %v461, 0
    %v594 = vsel %vm493, %v462, 0
    %v597 = vsel %vm493, %v463, 0
    %v600 = vsel %vm493, %v464, 0
    %v603 = vsel %vm493, %v465, 0
    %v606 = vsel %vm493, %v466, 0
    %v609 = vsel %vm493, %v467, 0
    %v612 = vsel %vm493, %v468, 0
    %v615 = vsel %vm493, %v469, 0
    %v618 = vsel %vm493, %v470, 0
    %v621 = vsel %vm493, %v471, 0
    %v624 = vsel %vm493, %v472, 0
    %v627 = vsel %vm493, %v473, 0
    %v630 = vsel %vm493, %v474, 0
    %v633 = vsel %vm493, %v475, 0
    %v636 = vsel %vm493, %v476, 0
    %v639 = vsel %vm493, %v477, 0
    %v642 = vsel %vm493, %v478, 0
    %v645 = vsel %vm493, %v479, 0
    %v648 = vsel %vm493, %v480, 0
    %v651 = vsel %vm493, %v481, 0
    %v654 = vsel %vm493, %v482, 0
    %v657 = vsel %vm493, %v483, 0
    %v660 = vsel %vm493, %v484, 0
    %v663 = vsel %vm493, %v485, 0
    %v666 = vsel %vm493, %v486, 0
    %v669 = vsel %vm493, %v487, 0
    %v672 = vsel %vm493, %v488, 0
    %v675 = vsel %vm493, %v489, 0
    %v678 = vsel %vm493, %v490, 0
    %v681 = vsel %vm493, %v491, 0
    %v684 = vsel %vm493, %v492, 0
    %vm686 = vcmask 1042432
    %vm687 = vcmask 1043456
    %v688 = vsel %vm686, 4294967295, 65535
    %v689 = vsel %vm687, %v688, 0
    %v691 = vand.u32 %v165, %v689
    %693 = vmatprep.subr.bf16.mxu0 0
    %694 = vmatpush1.bf16.msra.mxu0 %v691
    %695 = vmatprep.subr.bf16.mxu0 0
    %696 = vmatpush1.bf16.msra.mxu0 0
    %697 = vmatprep.subr.bf16.mxu0 0
    %698 = vmatpush1.bf16.msra.mxu0 0
    %699 = vmatprep.subr.bf16.mxu0 0
    %700 = vmatpush1.bf16.msra.mxu0 0
    %701 = vmatprep.subr.bf16.mxu0 0
    %702 = vmatpush1.bf16.msra.mxu0 0
    %703 = vmatprep.subr.bf16.mxu0 0
    %704 = vmatpush1.bf16.msra.mxu0 0
    %705 = vmatprep.subr.bf16.mxu0 0
    %706 = vmatpush1.bf16.msra.mxu0 0
    %707 = vmatprep.subr.bf16.mxu0 0
    %708 = vmatpush1.bf16.msra.mxu0 0
    %709 = vmatprep.subr.bf16.mxu0 0
    %710 = vmatpush1.bf16.msra.mxu0 0
    %711 = vmatprep.subr.bf16.mxu0 0
    %712 = vmatpush1.bf16.msra.mxu0 0
    %713 = vmatprep.subr.bf16.mxu0 0
    %714 = vmatpush1.bf16.msra.mxu0 0
    %715 = vmatprep.subr.bf16.mxu0 0
    %716 = vmatpush1.bf16.msra.mxu0 0
    %717 = vmatprep.subr.bf16.mxu0 0
    %718 = vmatpush1.bf16.msra.mxu0 0
    %719 = vmatprep.subr.bf16.mxu0 0
    %720 = vmatpush1.bf16.msra.mxu0 0
    %721 = vmatprep.subr.bf16.mxu0 0
    %722 = vmatpush1.bf16.msra.mxu0 0
    %723 = vmatprep.subr.bf16.mxu0 0
    %724 = vmatpush1.bf16.msra.mxu0 0
    %725 = vmatprep.mubr.bf16.mxu0 0
    %726 = vmatmul.mubr.bf16.gmra.mrb[0].mxu0 %v495
    %v727 = vpop.f32.mrb[0].mxu0
    %v728 = vadd.f32 %v171, %v727
    %v729 = vpop.f32.mrb[0].mxu0
    %v730 = vpop.f32.mrb[0].mxu0
    %v731 = vadd.f32 %v171, %v730
    %v732 = vpop.f32.mrb[0].mxu0
    %733 = vmatprep.mubr.bf16.mxu0 0
    %734 = vmatmul.mubr.bf16.gmra.mrb[0].mxu0 %v498
    %v735 = vpop.f32.mrb[0].mxu0
    %v736 = vadd.f32 %v171, %v735
    %v737 = vpop.f32.mrb[0].mxu0
    %v738 = vpop.f32.mrb[0].mxu0
    %v739 = vadd.f32 %v171, %v738
    %v740 = vpop.f32.mrb[0].mxu0
    %741 = vmatprep.mubr.bf16.mxu0 0
    %742 = vmatmul.mubr.bf16.gmra.mrb[0].mxu0 %v501
    %v743 = vpop.f32.mrb[0].mxu0
    %v744 = vadd.f32 %v171, %v743
    %v745 = vpop.f32.mrb[0].mxu0
    %v746 = vpop.f32.mrb[0].mxu0
    %v747 = vadd.f32 %v171, %v746
    %v748 = vpop.f32.mrb[0].mxu0
    %749 = vmatprep.mubr.bf16.mxu0 0
    %750 = vmatmul.mubr.bf16.gmra.mrb[0].mxu0 %v504
    %v751 = vpop.f32.mrb[0].mxu0
    %v752 = vadd.f32 %v171, %v751
    %v753 = vpop.f32.mrb[0].mxu0
    %v754 = vpop.f32.mrb[0].mxu0
    %v755 = vadd.f32 %v171, %v754
    %v756 = vpop.f32.mrb[0].mxu0
    %757 = vmatprep.mubr.bf16.mxu0 0
    %758 = vmatmul.mubr.bf16.gmra.mrb[0].mxu0 %v507
    %v759 = vpop.f32.mrb[0].mxu0
    %v760 = vadd.f32 %v171, %v759
    %v761 = vpop.f32.mrb[0].mxu0
    %v762 = vpop.f32.mrb[0].mxu0
    %v763 = vadd.f32 %v171, %v762
    %v764 = vpop.f32.mrb[0].mxu0
    %765 = vmatprep.mubr.bf16.mxu0 0
    %766 = vmatmul.mubr.bf16.gmra.mrb[0].mxu0 %v510
    %v767 = vpop.f32.mrb[0].mxu0
    %v768 = vadd.f32 %v171, %v767
    %v769 = vpop.f32.mrb[0].mxu0
    %v770 = vpop.f32.mrb[0].mxu0
    %v771 = vadd.f32 %v171, %v770
    %v772 = vpop.f32.mrb[0].mxu0
    %773 = vmatprep.mubr.bf16.mxu0 0
    %774 = vmatmul.mubr.bf16.gmra.mrb[0].mxu0 %v513
    %v775 = vpop.f32.mrb[0].mxu0
    %v776 = vadd.f32 %v171, %v775
    %v777 = vpop.f32.mrb[0].mxu0
    %v778 = vpop.f32.mrb[0].mxu0
    %v779 = vadd.f32 %v171, %v778
    %v780 = vpop.f32.mrb[0].mxu0
    %781 = vmatprep.mubr.bf16.mxu0 0
    %782 = vmatmul.mubr.bf16.gmra.mrb[0].mxu0 %v516
    %v783 = vpop.f32.mrb[0].mxu0
    %v784 = vadd.f32 %v171, %v783
    %v785 = vpop.f32.mrb[0].mxu0
    %v786 = vpop.f32.mrb[0].mxu0
    %v787 = vadd.f32 %v171, %v786
    %v788 = vpop.f32.mrb[0].mxu0
    %789 = vmatprep.mubr.bf16.mxu0 0
    %790 = vmatmul.mubr.bf16.gmra.mrb[0].mxu0 %v519
    %v791 = vpop.f32.mrb[0].mxu0
    %v792 = vadd.f32 %v171, %v791
    %v793 = vpop.f32.mrb[0].mxu0
    %v794 = vpop.f32.mrb[0].mxu0
    %v795 = vadd.f32 %v171, %v794
    %v796 = vpop.f32.mrb[0].mxu0
    %797 = vmatprep.mubr.bf16.mxu0 0
    %798 = vmatmul.mubr.bf16.gmra.mrb[0].mxu0 %v522
    %v799 = vpop.f32.mrb[0].mxu0
    %v800 = vadd.f32 %v171, %v799
    %v801 = vpop.f32.mrb[0].mxu0
    %v802 = vpop.f32.mrb[0].mxu0
    %v803 = vadd.f32 %v171, %v802
    %v804 = vpop.f32.mrb[0].mxu0
    %805 = vmatprep.mubr.bf16.mxu0 0
    %806 = vmatmul.mubr.bf16.gmra.mrb[0].mxu0 %v525
    %v807 = vpop.f32.mrb[0].mxu0
    %v808 = vadd.f32 %v171, %v807
    %v809 = vpop.f32.mrb[0].mxu0
    %v810 = vpop.f32.mrb[0].mxu0
    %v811 = vadd.f32 %v171, %v810
    %v812 = vpop.f32.mrb[0].mxu0
    %813 = vmatprep.mubr.bf16.mxu0 0
    %814 = vmatmul.mubr.bf16.gmra.mrb[0].mxu0 %v528
    %v815 = vpop.f32.mrb[0].mxu0
    %v816 = vadd.f32 %v171, %v815
    %v817 = vpop.f32.mrb[0].mxu0
    %v818 = vpop.f32.mrb[0].mxu0
    %v819 = vadd.f32 %v171, %v818
    %v820 = vpop.f32.mrb[0].mxu0
    %821 = vmatprep.mubr.bf16.mxu0 0
    %822 = vmatmul.mubr.bf16.gmra.mrb[0].mxu0 %v531
    %v823 = vpop.f32.mrb[0].mxu0
    %v824 = vadd.f32 %v171, %v823
    %v825 = vpop.f32.mrb[0].mxu0
    %v826 = vpop.f32.mrb[0].mxu0
    %v827 = vadd.f32 %v171, %v826
    %v828 = vpop.f32.mrb[0].mxu0
    %829 = vmatprep.mubr.bf16.mxu0 0
    %830 = vmatmul.mubr.bf16.gmra.mrb[0].mxu0 %v534
    %v831 = vpop.f32.mrb[0].mxu0
    %v832 = vadd.f32 %v171, %v831
    %v833 = vpop.f32.mrb[0].mxu0
    %v834 = vpop.f32.mrb[0].mxu0
    %v835 = vadd.f32 %v171, %v834
    %v836 = vpop.f32.mrb[0].mxu0
    %837 = vmatprep.mubr.bf16.mxu0 0
    %838 = vmatmul.mubr.bf16.gmra.mrb[0].mxu0 %v537
    %v839 = vpop.f32.mrb[0].mxu0
    %v840 = vadd.f32 %v171, %v839
    %v841 = vpop.f32.mrb[0].mxu0
    %v842 = vpop.f32.mrb[0].mxu0
    %v843 = vadd.f32 %v171, %v842
    %v844 = vpop.f32.mrb[0].mxu0
    %845 = vmatprep.mubr.bf16.mxu0 0
    %846 = vmatmul.mubr.bf16.gmra.mrb[0].mxu0 %v540
    %v847 = vpop.f32.mrb[0].mxu0
    %v848 = vadd.f32 %v171, %v847
    %v849 = vpop.f32.mrb[0].mxu0
    %v850 = vpop.f32.mrb[0].mxu0
    %v851 = vadd.f32 %v171, %v850
    %v852 = vpop.f32.mrb[0].mxu0
    %853 = vmatprep.mubr.bf16.mxu0 0
    %854 = vmatmul.mubr.bf16.gmra.mrb[0].mxu0 %v543
    %v855 = vpop.f32.mrb[0].mxu0
    %v856 = vadd.f32 %v171, %v855
    %v857 = vpop.f32.mrb[0].mxu0
    %v858 = vpop.f32.mrb[0].mxu0
    %v859 = vadd.f32 %v171, %v858
    %v860 = vpop.f32.mrb[0].mxu0
    %861 = vmatprep.mubr.bf16.mxu0 0
    %862 = vmatmul.mubr.bf16.gmra.mrb[0].mxu0 %v546
    %v863 = vpop.f32.mrb[0].mxu0
    %v864 = vadd.f32 %v171, %v863
    %v865 = vpop.f32.mrb[0].mxu0
    %v866 = vpop.f32.mrb[0].mxu0
    %v867 = vadd.f32 %v171, %v866
    %v868 = vpop.f32.mrb[0].mxu0
    %869 = vmatprep.mubr.bf16.mxu0 0
    %870 = vmatmul.mubr.bf16.gmra.mrb[0].mxu0 %v549
    %v871 = vpop.f32.mrb[0].mxu0
    %v872 = vadd.f32 %v171, %v871
    %v873 = vpop.f32.mrb[0].mxu0
    %v874 = vpop.f32.mrb[0].mxu0
    %v875 = vadd.f32 %v171, %v874
    %v876 = vpop.f32.mrb[0].mxu0
    %877 = vmatprep.mubr.bf16.mxu0 0
    %878 = vmatmul.mubr.bf16.gmra.mrb[0].mxu0 %v552
    %v879 = vpop.f32.mrb[0].mxu0
    %v880 = vadd.f32 %v171, %v879
    %v881 = vpop.f32.mrb[0].mxu0
    %v882 = vpop.f32.mrb[0].mxu0
    %v883 = vadd.f32 %v171, %v882
    %v884 = vpop.f32.mrb[0].mxu0
    %885 = vmatprep.mubr.bf16.mxu0 0
    %886 = vmatmul.mubr.bf16.gmra.mrb[0].mxu0 %v555
    %v887 = vpop.f32.mrb[0].mxu0
    %v888 = vadd.f32 %v171, %v887
    %v889 = vpop.f32.mrb[0].mxu0
    %v890 = vpop.f32.mrb[0].mxu0
    %v891 = vadd.f32 %v171, %v890
    %v892 = vpop.f32.mrb[0].mxu0
    %893 = vmatprep.mubr.bf16.mxu0 0
    %894 = vmatmul.mubr.bf16.gmra.mrb[0].mxu0 %v558
    %v895 = vpop.f32.mrb[0].mxu0
    %v896 = vadd.f32 %v171, %v895
    %v897 = vpop.f32.mrb[0].mxu0
    %v898 = vpop.f32.mrb[0].mxu0
    %v899 = vadd.f32 %v171, %v898
    %v900 = vpop.f32.mrb[0].mxu0
    %901 = vmatprep.mubr.bf16.mxu0 0
    %902 = vmatmul.mubr.bf16.gmra.mrb[0].mxu0 %v561
    %v903 = vpop.f32.mrb[0].mxu0
    %v904 = vadd.f32 %v171, %v903
    %v905 = vpop.f32.mrb[0].mxu0
    %v906 = vpop.f32.mrb[0].mxu0
    %v907 = vadd.f32 %v171, %v906
    %v908 = vpop.f32.mrb[0].mxu0
    %909 = vmatprep.mubr.bf16.mxu0 0
    %910 = vmatmul.mubr.bf16.gmra.mrb[0].mxu0 %v564
    %v911 = vpop.f32.mrb[0].mxu0
    %v912 = vadd.f32 %v171, %v911
    %v913 = vpop.f32.mrb[0].mxu0
    %v914 = vpop.f32.mrb[0].mxu0
    %v915 = vadd.f32 %v171, %v914
    %v916 = vpop.f32.mrb[0].mxu0
    %917 = vmatprep.mubr.bf16.mxu0 0
    %918 = vmatmul.mubr.bf16.gmra.mrb[0].mxu0 %v567
    %v919 = vpop.f32.mrb[0].mxu0
    %v920 = vadd.f32 %v171, %v919
    %v921 = vpop.f32.mrb[0].mxu0
    %v922 = vpop.f32.mrb[0].mxu0
    %v923 = vadd.f32 %v171, %v922
    %v924 = vpop.f32.mrb[0].mxu0
    %925 = vmatprep.mubr.bf16.mxu0 0
    %926 = vmatmul.mubr.bf16.gmra.mrb[0].mxu0 %v570
    %v927 = vpop.f32.mrb[0].mxu0
    %v928 = vadd.f32 %v171, %v927
    %v929 = vpop.f32.mrb[0].mxu0
    %v930 = vpop.f32.mrb[0].mxu0
    %v931 = vadd.f32 %v171, %v930
    %v932 = vpop.f32.mrb[0].mxu0
    %933 = vmatprep.mubr.bf16.mxu0 0
    %934 = vmatmul.mubr.bf16.gmra.mrb[0].mxu0 %v573
    %v935 = vpop.f32.mrb[0].mxu0
    %v936 = vadd.f32 %v171, %v935
    %v937 = vpop.f32.mrb[0].mxu0
    %v938 = vpop.f32.mrb[0].mxu0
    %v939 = vadd.f32 %v171, %v938
    %v940 = vpop.f32.mrb[0].mxu0
    %941 = vmatprep.mubr.bf16.mxu0 0
    %942 = vmatmul.mubr.bf16.gmra.mrb[0].mxu0 %v576
    %v943 = vpop.f32.mrb[0].mxu0
    %v944 = vadd.f32 %v171, %v943
    %v945 = vpop.f32.mrb[0].mxu0
    %v946 = vpop.f32.mrb[0].mxu0
    %v947 = vadd.f32 %v171, %v946
    %v948 = vpop.f32.mrb[0].mxu0
    %949 = vmatprep.mubr.bf16.mxu0 0
    %950 = vmatmul.mubr.bf16.gmra.mrb[0].mxu0 %v579
    %v951 = vpop.f32.mrb[0].mxu0
    %v952 = vadd.f32 %v171, %v951
    %v953 = vpop.f32.mrb[0].mxu0
    %v954 = vpop.f32.mrb[0].mxu0
    %v955 = vadd.f32 %v171, %v954
    %v956 = vpop.f32.mrb[0].mxu0
    %957 = vmatprep.mubr.bf16.mxu0 0
    %958 = vmatmul.mubr.bf16.gmra.mrb[0].mxu0 %v582
    %v959 = vpop.f32.mrb[0].mxu0
    %v960 = vadd.f32 %v171, %v959
    %v961 = vpop.f32.mrb[0].mxu0
    %v962 = vpop.f32.mrb[0].mxu0
    %v963 = vadd.f32 %v171, %v962
    %v964 = vpop.f32.mrb[0].mxu0
    %965 = vmatprep.mubr.bf16.mxu0 0
    %966 = vmatmul.mubr.bf16.gmra.mrb[0].mxu0 %v585
    %v967 = vpop.f32.mrb[0].mxu0
    %v968 = vadd.f32 %v171, %v967
    %v969 = vpop.f32.mrb[0].mxu0
    %v970 = vpop.f32.mrb[0].mxu0
    %v971 = vadd.f32 %v171, %v970
    %v972 = vpop.f32.mrb[0].mxu0
    %973 = vmatprep.mubr.bf16.mxu0 0
    %974 = vmatmul.mubr.bf16.gmra.mrb[0].mxu0 %v588
    %v975 = vpop.f32.mrb[0].mxu0
    %v976 = vadd.f32 %v171, %v975
    %v977 = vpop.f32.mrb[0].mxu0
    %v978 = vpop.f32.mrb[0].mxu0
    %v979 = vadd.f32 %v171, %v978
    %v980 = vpop.f32.mrb[0].mxu0
    %981 = vmatprep.mubr.bf16.mxu0 0
    %982 = vmatmul.mubr.bf16.gmra.mrb[0].mxu0 %v591
    %v983 = vpop.f32.mrb[0].mxu0
    %v984 = vadd.f32 %v171, %v983
    %v985 = vpop.f32.mrb[0].mxu0
    %v986 = vpop.f32.mrb[0].mxu0
    %v987 = vadd.f32 %v171, %v986
    %v988 = vpop.f32.mrb[0].mxu0
    %989 = vmatprep.mubr.bf16.mxu0 0
    %990 = vmatmul.mubr.bf16.gmra.mrb[0].mxu0 %v594
    %v991 = vpop.f32.mrb[0].mxu0
    %v992 = vadd.f32 %v171, %v991
    %v993 = vpop.f32.mrb[0].mxu0
    %v994 = vpop.f32.mrb[0].mxu0
    %v995 = vadd.f32 %v171, %v994
    %v996 = vpop.f32.mrb[0].mxu0
    %997 = vmatprep.mubr.bf16.mxu0 0
    %998 = vmatmul.mubr.bf16.gmra.mrb[0].mxu0 %v597
    %v999 = vpop.f32.mrb[0].mxu0
    %v1000 = vadd.f32 %v171, %v999
    %v1001 = vpop.f32.mrb[0].mxu0
    %v1002 = vpop.f32.mrb[0].mxu0
    %v1003 = vadd.f32 %v171, %v1002
    %v1004 = vpop.f32.mrb[0].mxu0
    %1005 = vmatprep.mubr.bf16.mxu0 0
    %1006 = vmatmul.mubr.bf16.gmra.mrb[0].mxu0 %v600
    %v1007 = vpop.f32.mrb[0].mxu0
    %v1008 = vadd.f32 %v171, %v1007
    %v1009 = vpop.f32.mrb[0].mxu0
    %v1010 = vpop.f32.mrb[0].mxu0
    %v1011 = vadd.f32 %v171, %v1010
    %v1012 = vpop.f32.mrb[0].mxu0
    %1013 = vmatprep.mubr.bf16.mxu0 0
    %1014 = vmatmul.mubr.bf16.gmra.mrb[0].mxu0 %v603
    %v1015 = vpop.f32.mrb[0].mxu0
    %v1016 = vadd.f32 %v171, %v1015
    %v1017 = vpop.f32.mrb[0].mxu0
    %v1018 = vpop.f32.mrb[0].mxu0
    %v1019 = vadd.f32 %v171, %v1018
    %v1020 = vpop.f32.mrb[0].mxu0
    %1021 = vmatprep.mubr.bf16.mxu0 0
    %1022 = vmatmul.mubr.bf16.gmra.mrb[0].mxu0 %v606
    %v1023 = vpop.f32.mrb[0].mxu0
    %v1024 = vadd.f32 %v171, %v1023
    %v1025 = vpop.f32.mrb[0].mxu0
    %v1026 = vpop.f32.mrb[0].mxu0
    %v1027 = vadd.f32 %v171, %v1026
    %v1028 = vpop.f32.mrb[0].mxu0
    %1029 = vmatprep.mubr.bf16.mxu0 0
    %1030 = vmatmul.mubr.bf16.gmra.mrb[0].mxu0 %v609
    %v1031 = vpop.f32.mrb[0].mxu0
    %v1032 = vadd.f32 %v171, %v1031
    %v1033 = vpop.f32.mrb[0].mxu0
    %v1034 = vpop.f32.mrb[0].mxu0
    %v1035 = vadd.f32 %v171, %v1034
    %v1036 = vpop.f32.mrb[0].mxu0
    %1037 = vmatprep.mubr.bf16.mxu0 0
    %1038 = vmatmul.mubr.bf16.gmra.mrb[0].mxu0 %v612
    %v1039 = vpop.f32.mrb[0].mxu0
    %v1040 = vadd.f32 %v171, %v1039
    %v1041 = vpop.f32.mrb[0].mxu0
    %v1042 = vpop.f32.mrb[0].mxu0
    %v1043 = vadd.f32 %v171, %v1042
    %v1044 = vpop.f32.mrb[0].mxu0
    %1045 = vmatprep.mubr.bf16.mxu0 0
    %1046 = vmatmul.mubr.bf16.gmra.mrb[0].mxu0 %v615
    %v1047 = vpop.f32.mrb[0].mxu0
    %v1048 = vadd.f32 %v171, %v1047
    %v1049 = vpop.f32.mrb[0].mxu0
    %v1050 = vpop.f32.mrb[0].mxu0
    %v1051 = vadd.f32 %v171, %v1050
    %v1052 = vpop.f32.mrb[0].mxu0
    %1053 = vmatprep.mubr.bf16.mxu0 0
    %1054 = vmatmul.mubr.bf16.gmra.mrb[0].mxu0 %v618
    %v1055 = vpop.f32.mrb[0].mxu0
    %v1056 = vadd.f32 %v171, %v1055
    %v1057 = vpop.f32.mrb[0].mxu0
    %v1058 = vpop.f32.mrb[0].mxu0
    %v1059 = vadd.f32 %v171, %v1058
    %v1060 = vpop.f32.mrb[0].mxu0
    %1061 = vmatprep.mubr.bf16.mxu0 0
    %1062 = vmatmul.mubr.bf16.gmra.mrb[0].mxu0 %v621
    %v1063 = vpop.f32.mrb[0].mxu0
    %v1064 = vadd.f32 %v171, %v1063
    %v1065 = vpop.f32.mrb[0].mxu0
    %v1066 = vpop.f32.mrb[0].mxu0
    %v1067 = vadd.f32 %v171, %v1066
    %v1068 = vpop.f32.mrb[0].mxu0
    %1069 = vmatprep.mubr.bf16.mxu0 0
    %1070 = vmatmul.mubr.bf16.gmra.mrb[0].mxu0 %v624
    %v1071 = vpop.f32.mrb[0].mxu0
    %v1072 = vadd.f32 %v171, %v1071
    %v1073 = vpop.f32.mrb[0].mxu0
    %v1074 = vpop.f32.mrb[0].mxu0
    %v1075 = vadd.f32 %v171, %v1074
    %v1076 = vpop.f32.mrb[0].mxu0
    %1077 = vmatprep.mubr.bf16.mxu0 0
    %1078 = vmatmul.mubr.bf16.gmra.mrb[0].mxu0 %v627
    %v1079 = vpop.f32.mrb[0].mxu0
    %v1080 = vadd.f32 %v171, %v1079
    %v1081 = vpop.f32.mrb[0].mxu0
    %v1082 = vpop.f32.mrb[0].mxu0
    %v1083 = vadd.f32 %v171, %v1082
    %v1084 = vpop.f32.mrb[0].mxu0
    %1085 = vmatprep.mubr.bf16.mxu0 0
    %1086 = vmatmul.mubr.bf16.gmra.mrb[0].mxu0 %v630
    %v1087 = vpop.f32.mrb[0].mxu0
    %v1088 = vadd.f32 %v171, %v1087
    %v1089 = vpop.f32.mrb[0].mxu0
    %v1090 = vpop.f32.mrb[0].mxu0
    %v1091 = vadd.f32 %v171, %v1090
    %v1092 = vpop.f32.mrb[0].mxu0
    %1093 = vmatprep.mubr.bf16.mxu0 0
    %1094 = vmatmul.mubr.bf16.gmra.mrb[0].mxu0 %v633
    %v1095 = vpop.f32.mrb[0].mxu0
    %v1096 = vadd.f32 %v171, %v1095
    %v1097 = vpop.f32.mrb[0].mxu0
    %v1098 = vpop.f32.mrb[0].mxu0
    %v1099 = vadd.f32 %v171, %v1098
    %v1100 = vpop.f32.mrb[0].mxu0
    %1101 = vmatprep.mubr.bf16.mxu0 0
    %1102 = vmatmul.mubr.bf16.gmra.mrb[0].mxu0 %v636
    %v1103 = vpop.f32.mrb[0].mxu0
    %v1104 = vadd.f32 %v171, %v1103
    %v1105 = vpop.f32.mrb[0].mxu0
    %v1106 = vpop.f32.mrb[0].mxu0
    %v1107 = vadd.f32 %v171, %v1106
    %v1108 = vpop.f32.mrb[0].mxu0
    %1109 = vmatprep.mubr.bf16.mxu0 0
    %1110 = vmatmul.mubr.bf16.gmra.mrb[0].mxu0 %v639
    %v1111 = vpop.f32.mrb[0].mxu0
    %v1112 = vadd.f32 %v171, %v1111
    %v1113 = vpop.f32.mrb[0].mxu0
    %v1114 = vpop.f32.mrb[0].mxu0
    %v1115 = vadd.f32 %v171, %v1114
    %v1116 = vpop.f32.mrb[0].mxu0
    %1117 = vmatprep.mubr.bf16.mxu0 0
    %1118 = vmatmul.mubr.bf16.gmra.mrb[0].mxu0 %v642
    %v1119 = vpop.f32.mrb[0].mxu0
    %v1120 = vadd.f32 %v171, %v1119
    %v1121 = vpop.f32.mrb[0].mxu0
    %v1122 = vpop.f32.mrb[0].mxu0
    %v1123 = vadd.f32 %v171, %v1122
    %v1124 = vpop.f32.mrb[0].mxu0
    %1125 = vmatprep.mubr.bf16.mxu0 0
    %1126 = vmatmul.mubr.bf16.gmra.mrb[0].mxu0 %v645
    %v1127 = vpop.f32.mrb[0].mxu0
    %v1128 = vadd.f32 %v171, %v1127
    %v1129 = vpop.f32.mrb[0].mxu0
    %v1130 = vpop.f32.mrb[0].mxu0
    %v1131 = vadd.f32 %v171, %v1130
    %v1132 = vpop.f32.mrb[0].mxu0
    %1133 = vmatprep.mubr.bf16.mxu0 0
    %1134 = vmatmul.mubr.bf16.gmra.mrb[0].mxu0 %v648
    %v1135 = vpop.f32.mrb[0].mxu0
    %v1136 = vadd.f32 %v171, %v1135
    %v1137 = vpop.f32.mrb[0].mxu0
    %v1138 = vpop.f32.mrb[0].mxu0
    %v1139 = vadd.f32 %v171, %v1138
    %v1140 = vpop.f32.mrb[0].mxu0
    %1141 = vmatprep.mubr.bf16.mxu0 0
    %1142 = vmatmul.mubr.bf16.gmra.mrb[0].mxu0 %v651
    %v1143 = vpop.f32.mrb[0].mxu0
    %v1144 = vadd.f32 %v171, %v1143
    %v1145 = vpop.f32.mrb[0].mxu0
    %v1146 = vpop.f32.mrb[0].mxu0
    %v1147 = vadd.f32 %v171, %v1146
    %v1148 = vpop.f32.mrb[0].mxu0
    %1149 = vmatprep.mubr.bf16.mxu0 0
    %1150 = vmatmul.mubr.bf16.gmra.mrb[0].mxu0 %v654
    %v1151 = vpop.f32.mrb[0].mxu0
    %v1152 = vadd.f32 %v171, %v1151
    %v1153 = vpop.f32.mrb[0].mxu0
    %v1154 = vpop.f32.mrb[0].mxu0
    %v1155 = vadd.f32 %v171, %v1154
    %v1156 = vpop.f32.mrb[0].mxu0
    %1157 = vmatprep.mubr.bf16.mxu0 0
    %1158 = vmatmul.mubr.bf16.gmra.mrb[0].mxu0 %v657
    %v1159 = vpop.f32.mrb[0].mxu0
    %v1160 = vadd.f32 %v171, %v1159
    %v1161 = vpop.f32.mrb[0].mxu0
    %v1162 = vpop.f32.mrb[0].mxu0
    %v1163 = vadd.f32 %v171, %v1162
    %v1164 = vpop.f32.mrb[0].mxu0
    %1165 = vmatprep.mubr.bf16.mxu0 0
    %1166 = vmatmul.mubr.bf16.gmra.mrb[0].mxu0 %v660
    %v1167 = vpop.f32.mrb[0].mxu0
    %v1168 = vadd.f32 %v171, %v1167
    %v1169 = vpop.f32.mrb[0].mxu0
    %v1170 = vpop.f32.mrb[0].mxu0
    %v1171 = vadd.f32 %v171, %v1170
    %v1172 = vpop.f32.mrb[0].mxu0
    %1173 = vmatprep.mubr.bf16.mxu0 0
    %1174 = vmatmul.mubr.bf16.gmra.mrb[0].mxu0 %v663
    %v1175 = vpop.f32.mrb[0].mxu0
    %v1176 = vadd.f32 %v171, %v1175
    %v1177 = vpop.f32.mrb[0].mxu0
    %v1178 = vpop.f32.mrb[0].mxu0
    %v1179 = vadd.f32 %v171, %v1178
    %v1180 = vpop.f32.mrb[0].mxu0
    %1181 = vmatprep.mubr.bf16.mxu0 0
    %1182 = vmatmul.mubr.bf16.gmra.mrb[0].mxu0 %v666
    %v1183 = vpop.f32.mrb[0].mxu0
    %v1184 = vadd.f32 %v171, %v1183
    %v1185 = vpop.f32.mrb[0].mxu0
    %v1186 = vpop.f32.mrb[0].mxu0
    %v1187 = vadd.f32 %v171, %v1186
    %v1188 = vpop.f32.mrb[0].mxu0
    %1189 = vmatprep.mubr.bf16.mxu0 0
    %1190 = vmatmul.mubr.bf16.gmra.mrb[0].mxu0 %v669
    %v1191 = vpop.f32.mrb[0].mxu0
    %v1192 = vadd.f32 %v171, %v1191
    %v1193 = vpop.f32.mrb[0].mxu0
    %v1194 = vpop.f32.mrb[0].mxu0
    %v1195 = vadd.f32 %v171, %v1194
    %v1196 = vpop.f32.mrb[0].mxu0
    %1197 = vmatprep.mubr.bf16.mxu0 0
    %1198 = vmatmul.mubr.bf16.gmra.mrb[0].mxu0 %v672
    %v1199 = vpop.f32.mrb[0].mxu0
    %v1200 = vadd.f32 %v171, %v1199
    %v1201 = vpop.f32.mrb[0].mxu0
    %v1202 = vpop.f32.mrb[0].mxu0
    %v1203 = vadd.f32 %v171, %v1202
    %v1204 = vpop.f32.mrb[0].mxu0
    %1205 = vmatprep.mubr.bf16.mxu0 0
    %1206 = vmatmul.mubr.bf16.gmra.mrb[0].mxu0 %v675
    %v1207 = vpop.f32.mrb[0].mxu0
    %v1208 = vadd.f32 %v171, %v1207
    %v1209 = vpop.f32.mrb[0].mxu0
    %v1210 = vpop.f32.mrb[0].mxu0
    %v1211 = vadd.f32 %v171, %v1210
    %v1212 = vpop.f32.mrb[0].mxu0
    %1213 = vmatprep.mubr.bf16.mxu0 0
    %1214 = vmatmul.mubr.bf16.gmra.mrb[0].mxu0 %v678
    %v1215 = vpop.f32.mrb[0].mxu0
    %v1216 = vadd.f32 %v171, %v1215
    %v1217 = vpop.f32.mrb[0].mxu0
    %v1218 = vpop.f32.mrb[0].mxu0
    %v1219 = vadd.f32 %v171, %v1218
    %v1220 = vpop.f32.mrb[0].mxu0
    %1221 = vmatprep.mubr.bf16.mxu0 0
    %1222 = vmatmul.mubr.bf16.gmra.mrb[0].mxu0 %v681
    %v1223 = vpop.f32.mrb[0].mxu0
    %v1224 = vadd.f32 %v171, %v1223
    %v1225 = vpop.f32.mrb[0].mxu0
    %v1226 = vpop.f32.mrb[0].mxu0
    %v1227 = vadd.f32 %v171, %v1226
    %v1228 = vpop.f32.mrb[0].mxu0
    %1229 = vmatprep.mubr.bf16.mxu0 0
    %1230 = vmatmul.mubr.bf16.gmra.mrb[0].mxu0 %v684
    %v1231 = vpop.f32.mrb[0].mxu0
    %v1232 = vadd.f32 %v171, %v1231
    %v1233 = vpop.f32.mrb[0].mxu0
    %v1234 = vpop.f32.mrb[0].mxu0
    %v1235 = vadd.f32 %v171, %v1234
    %v1236 = vpop.f32.mrb[0].mxu0
    %1237 = vdwg.mxu0
    %v1238 = vmax.f32 %v728, 0.0
    %v1239 = vmax.f32 %v731, 0.0
    %v1240 = vmax.f32 %v736, 0.0
    %v1241 = vmax.f32 %v739, 0.0
    %v1242 = vmax.f32 %v744, 0.0
    %v1243 = vmax.f32 %v747, 0.0
    %v1244 = vmax.f32 %v752, 0.0
    %v1245 = vmax.f32 %v755, 0.0
    %v1246 = vmax.f32 %v760, 0.0
    %v1247 = vmax.f32 %v763, 0.0
    %v1248 = vmax.f32 %v768, 0.0
    %v1249 = vmax.f32 %v771, 0.0
    %v1250 = vmax.f32 %v776, 0.0
    %v1251 = vmax.f32 %v779, 0.0
    %v1252 = vmax.f32 %v784, 0.0
    %v1253 = vmax.f32 %v787, 0.0
    %v1254 = vmax.f32 %v792, 0.0
    %v1255 = vmax.f32 %v795, 0.0
    %v1256 = vmax.f32 %v800, 0.0
    %v1257 = vmax.f32 %v803, 0.0
    %v1258 = vmax.f32 %v808, 0.0
    %v1259 = vmax.f32 %v811, 0.0
    %v1260 = vmax.f32 %v816, 0.0
    %v1261 = vmax.f32 %v819, 0.0
    %v1262 = vmax.f32 %v824, 0.0
    %v1263 = vmax.f32 %v827, 0.0
    %v1264 = vmax.f32 %v832, 0.0
    %v1265 = vmax.f32 %v835, 0.0
    %v1266 = vmax.f32 %v840, 0.0
    %v1267 = vmax.f32 %v843, 0.0
    %v1268 = vmax.f32 %v848, 0.0
    %v1269 = vmax.f32 %v851, 0.0
    %v1270 = vmax.f32 %v856, 0.0
    %v1271 = vmax.f32 %v859, 0.0
    %v1272 = vmax.f32 %v864, 0.0
    %v1273 = vmax.f32 %v867, 0.0
    %v1274 = vmax.f32 %v872, 0.0
    %v1275 = vmax.f32 %v875, 0.0
    %v1276 = vmax.f32 %v880, 0.0
    %v1277 = vmax.f32 %v883, 0.0
    %v1278 = vmax.f32 %v888, 0.0
    %v1279 = vmax.f32 %v891, 0.0
    %v1280 = vmax.f32 %v896, 0.0
    %v1281 = vmax.f32 %v899, 0.0
    %v1282 = vmax.f32 %v904, 0.0
    %v1283 = vmax.f32 %v907, 0.0
    %v1284 = vmax.f32 %v912, 0.0
    %v1285 = vmax.f32 %v915, 0.0
    %v1286 = vmax.f32 %v920, 0.0
    %v1287 = vmax.f32 %v923, 0.0
    %v1288 = vmax.f32 %v928, 0.0
    %v1289 = vmax.f32 %v931, 0.0
    %v1290 = vmax.f32 %v936, 0.0
    %v1291 = vmax.f32 %v939, 0.0
    %v1292 = vmax.f32 %v944, 0.0
    %v1293 = vmax.f32 %v947, 0.0
    %v1294 = vmax.f32 %v952, 0.0
    %v1295 = vmax.f32 %v955, 0.0
    %v1296 = vmax.f32 %v960, 0.0
    %v1297 = vmax.f32 %v963, 0.0
    %v1298 = vmax.f32 %v968, 0.0
    %v1299 = vmax.f32 %v971, 0.0
    %v1300 = vmax.f32 %v976, 0.0
    %v1301 = vmax.f32 %v979, 0.0
    %v1302 = vmax.f32 %v984, 0.0
    %v1303 = vmax.f32 %v987, 0.0
    %v1304 = vmax.f32 %v992, 0.0
    %v1305 = vmax.f32 %v995, 0.0
    %v1306 = vmax.f32 %v1000, 0.0
    %v1307 = vmax.f32 %v1003, 0.0
    %v1308 = vmax.f32 %v1008, 0.0
    %v1309 = vmax.f32 %v1011, 0.0
    %v1310 = vmax.f32 %v1016, 0.0
    %v1311 = vmax.f32 %v1019, 0.0
    %v1312 = vmax.f32 %v1024, 0.0
    %v1313 = vmax.f32 %v1027, 0.0
    %v1314 = vmax.f32 %v1032, 0.0
    %v1315 = vmax.f32 %v1035, 0.0
    %v1316 = vmax.f32 %v1040, 0.0
    %v1317 = vmax.f32 %v1043, 0.0
    %v1318 = vmax.f32 %v1048, 0.0
    %v1319 = vmax.f32 %v1051, 0.0
    %v1320 = vmax.f32 %v1056, 0.0
    %v1321 = vmax.f32 %v1059, 0.0
    %v1322 = vmax.f32 %v1064, 0.0
    %v1323 = vmax.f32 %v1067, 0.0
    %v1324 = vmax.f32 %v1072, 0.0
    %v1325 = vmax.f32 %v1075, 0.0
    %v1326 = vmax.f32 %v1080, 0.0
    %v1327 = vmax.f32 %v1083, 0.0
    %v1328 = vmax.f32 %v1088, 0.0
    %v1329 = vmax.f32 %v1091, 0.0
    %v1330 = vmax.f32 %v1096, 0.0
    %v1331 = vmax.f32 %v1099, 0.0
    %v1332 = vmax.f32 %v1104, 0.0
    %v1333 = vmax.f32 %v1107, 0.0
    %v1334 = vmax.f32 %v1112, 0.0
    %v1335 = vmax.f32 %v1115, 0.0
    %v1336 = vmax.f32 %v1120, 0.0
    %v1337 = vmax.f32 %v1123, 0.0
    %v1338 = vmax.f32 %v1128, 0.0
    %v1339 = vmax.f32 %v1131, 0.0
    %v1340 = vmax.f32 %v1136, 0.0
    %v1341 = vmax.f32 %v1139, 0.0
    %v1342 = vmax.f32 %v1144, 0.0
    %v1343 = vmax.f32 %v1147, 0.0
    %v1344 = vmax.f32 %v1152, 0.0
    %v1345 = vmax.f32 %v1155, 0.0
    %v1346 = vmax.f32 %v1160, 0.0
    %v1347 = vmax.f32 %v1163, 0.0
    %v1348 = vmax.f32 %v1168, 0.0
    %v1349 = vmax.f32 %v1171, 0.0
    %v1350 = vmax.f32 %v1176, 0.0
    %v1351 = vmax.f32 %v1179, 0.0
    %v1352 = vmax.f32 %v1184, 0.0
    %v1353 = vmax.f32 %v1187, 0.0
    %v1354 = vmax.f32 %v1192, 0.0
    %v1355 = vmax.f32 %v1195, 0.0
    %v1356 = vmax.f32 %v1200, 0.0
    %v1357 = vmax.f32 %v1203, 0.0
    %v1358 = vmax.f32 %v1208, 0.0
    %v1359 = vmax.f32 %v1211, 0.0
    %v1360 = vmax.f32 %v1216, 0.0
    %v1361 = vmax.f32 %v1219, 0.0
    %v1362 = vmax.f32 %v1224, 0.0
    %v1363 = vmax.f32 %v1227, 0.0
    %v1364 = vmax.f32 %v1232, 0.0
    %v1365 = vmax.f32 %v1235, 0.0
    %v1366 = vpack.c.bf16 %v1239, %v1238
    %v1367 = vpack.c.bf16 %v1241, %v1240
    %v1368 = vpack.c.bf16 %v1243, %v1242
    %v1369 = vpack.c.bf16 %v1245, %v1244
    %v1370 = vpack.c.bf16 %v1247, %v1246
    %v1371 = vpack.c.bf16 %v1249, %v1248
    %v1372 = vpack.c.bf16 %v1251, %v1250
    %v1373 = vpack.c.bf16 %v1253, %v1252
    %v1374 = vpack.c.bf16 %v1255, %v1254
    %v1375 = vpack.c.bf16 %v1257, %v1256
    %v1376 = vpack.c.bf16 %v1259, %v1258
    %v1377 = vpack.c.bf16 %v1261, %v1260
    %v1378 = vpack.c.bf16 %v1263, %v1262
    %v1379 = vpack.c.bf16 %v1265, %v1264
    %v1380 = vpack.c.bf16 %v1267, %v1266
    %v1381 = vpack.c.bf16 %v1269, %v1268
    %v1382 = vpack.c.bf16 %v1271, %v1270
    %v1383 = vpack.c.bf16 %v1273, %v1272
    %v1384 = vpack.c.bf16 %v1275, %v1274
    %v1385 = vpack.c.bf16 %v1277, %v1276
    %v1386 = vpack.c.bf16 %v1279, %v1278
    %v1387 = vpack.c.bf16 %v1281, %v1280
    %v1388 = vpack.c.bf16 %v1283, %v1282
    %v1389 = vpack.c.bf16 %v1285, %v1284
    %v1390 = vpack.c.bf16 %v1287, %v1286
    %v1391 = vpack.c.bf16 %v1289, %v1288
    %v1392 = vpack.c.bf16 %v1291, %v1290
    %v1393 = vpack.c.bf16 %v1293, %v1292
    %v1394 = vpack.c.bf16 %v1295, %v1294
    %v1395 = vpack.c.bf16 %v1297, %v1296
    %v1396 = vpack.c.bf16 %v1299, %v1298
    %v1397 = vpack.c.bf16 %v1301, %v1300
    %v1398 = vpack.c.bf16 %v1303, %v1302
    %v1399 = vpack.c.bf16 %v1305, %v1304
    %v1400 = vpack.c.bf16 %v1307, %v1306
    %v1401 = vpack.c.bf16 %v1309, %v1308
    %v1402 = vpack.c.bf16 %v1311, %v1310
    %v1403 = vpack.c.bf16 %v1313, %v1312
    %v1404 = vpack.c.bf16 %v1315, %v1314
    %v1405 = vpack.c.bf16 %v1317, %v1316
    %v1406 = vpack.c.bf16 %v1319, %v1318
    %v1407 = vpack.c.bf16 %v1321, %v1320
    %v1408 = vpack.c.bf16 %v1323, %v1322
    %v1409 = vpack.c.bf16 %v1325, %v1324
    %v1410 = vpack.c.bf16 %v1327, %v1326
    %v1411 = vpack.c.bf16 %v1329, %v1328
    %v1412 = vpack.c.bf16 %v1331, %v1330
    %v1413 = vpack.c.bf16 %v1333, %v1332
    %v1414 = vpack.c.bf16 %v1335, %v1334
    %v1415 = vpack.c.bf16 %v1337, %v1336
    %v1416 = vpack.c.bf16 %v1339, %v1338
    %v1417 = vpack.c.bf16 %v1341, %v1340
    %v1418 = vpack.c.bf16 %v1343, %v1342
    %v1419 = vpack.c.bf16 %v1345, %v1344
    %v1420 = vpack.c.bf16 %v1347, %v1346
    %v1421 = vpack.c.bf16 %v1349, %v1348
    %v1422 = vpack.c.bf16 %v1351, %v1350
    %v1423 = vpack.c.bf16 %v1353, %v1352
    %v1424 = vpack.c.bf16 %v1355, %v1354
    %v1425 = vpack.c.bf16 %v1357, %v1356
    %v1426 = vpack.c.bf16 %v1359, %v1358
    %v1427 = vpack.c.bf16 %v1361, %v1360
    %v1428 = vpack.c.bf16 %v1363, %v1362
    %v1429 = vpack.c.bf16 %v1365, %v1364
    %v1430 = vld [vmem:[%s3] sm:$0xf]
    %v1431 = vld [vmem:[%s3 + $0x4] sm:$0xf]
    %v1432 = vld [vmem:[%s4] sm:$0x1]
    %v1434 = vlaneseq
    %v1435 = vshrl.u32 %v1434, 7
    %v1436 = vsub.s32 0, %v1435
    %v1437 = vrot.slane %v1432, %v1436
    %v1441 = vunpack.c.l.b16 %v1430
    %v1442 = vunpack.c.l.b16 %v1431
    %v1443 = vpack.c.b16 %v1442, %v1441
    %vm1445 = vcmask 130048
    %v1447 = vsel %vm1445, %v1366, 0
    %v1450 = vsel %vm1445, %v1367, 0
    %v1453 = vsel %vm1445, %v1368, 0
    %v1456 = vsel %vm1445, %v1369, 0
    %v1459 = vsel %vm1445, %v1370, 0
    %v1462 = vsel %vm1445, %v1371, 0
    %v1465 = vsel %vm1445, %v1372, 0
    %v1468 = vsel %vm1445, %v1373, 0
    %v1471 = vsel %vm1445, %v1374, 0
    %v1474 = vsel %vm1445, %v1375, 0
    %v1477 = vsel %vm1445, %v1376, 0
    %v1480 = vsel %vm1445, %v1377, 0
    %v1483 = vsel %vm1445, %v1378, 0
    %v1486 = vsel %vm1445, %v1379, 0
    %v1489 = vsel %vm1445, %v1380, 0
    %v1492 = vsel %vm1445, %v1381, 0
    %v1495 = vsel %vm1445, %v1382, 0
    %v1498 = vsel %vm1445, %v1383, 0
    %v1501 = vsel %vm1445, %v1384, 0
    %v1504 = vsel %vm1445, %v1385, 0
    %v1507 = vsel %vm1445, %v1386, 0
    %v1510 = vsel %vm1445, %v1387, 0
    %v1513 = vsel %vm1445, %v1388, 0
    %v1516 = vsel %vm1445, %v1389, 0
    %v1519 = vsel %vm1445, %v1390, 0
    %v1522 = vsel %vm1445, %v1391, 0
    %v1525 = vsel %vm1445, %v1392, 0
    %v1528 = vsel %vm1445, %v1393, 0
    %v1531 = vsel %vm1445, %v1394, 0
    %v1534 = vsel %vm1445, %v1395, 0
    %v1537 = vsel %vm1445, %v1396, 0
    %v1540 = vsel %vm1445, %v1397, 0
    %v1543 = vsel %vm1445, %v1398, 0
    %v1546 = vsel %vm1445, %v1399, 0
    %v1549 = vsel %vm1445, %v1400, 0
    %v1552 = vsel %vm1445, %v1401, 0
    %v1555 = vsel %vm1445, %v1402, 0
    %v1558 = vsel %vm1445, %v1403, 0
    %v1561 = vsel %vm1445, %v1404, 0
    %v1564 = vsel %vm1445, %v1405, 0
    %v1567 = vsel %vm1445, %v1406, 0
    %v1570 = vsel %vm1445, %v1407, 0
    %v1573 = vsel %vm1445, %v1408, 0
    %v1576 = vsel %vm1445, %v1409, 0
    %v1579 = vsel %vm1445, %v1410, 0
    %v1582 = vsel %vm1445, %v1411, 0
    %v1585 = vsel %vm1445, %v1412, 0
    %v1588 = vsel %vm1445, %v1413, 0
    %v1591 = vsel %vm1445, %v1414, 0
    %v1594 = vsel %vm1445, %v1415, 0
    %v1597 = vsel %vm1445, %v1416, 0
    %v1600 = vsel %vm1445, %v1417, 0
    %v1603 = vsel %vm1445, %v1418, 0
    %v1606 = vsel %vm1445, %v1419, 0
    %v1609 = vsel %vm1445, %v1420, 0
    %v1612 = vsel %vm1445, %v1421, 0
    %v1615 = vsel %vm1445, %v1422, 0
    %v1618 = vsel %vm1445, %v1423, 0
    %v1621 = vsel %vm1445, %v1424, 0
    %v1624 = vsel %vm1445, %v1425, 0
    %v1627 = vsel %vm1445, %v1426, 0
    %v1630 = vsel %vm1445, %v1427, 0
    %v1633 = vsel %vm1445, %v1428, 0
    %v1636 = vsel %vm1445, %v1429, 0
    %1638 = vmatprep.subr.bf16.mxu0 0
    %1639 = vmatpush1.bf16.msra.mxu0 %v1443
    %1640 = vmatprep.subr.bf16.mxu0 0
    %1641 = vmatpush1.bf16.msra.mxu0 0
    %1642 = vmatprep.subr.bf16.mxu0 0
    %1643 = vmatpush1.bf16.msra.mxu0 0
    %1644 = vmatprep.subr.bf16.mxu0 0
    %1645 = vmatpush1.bf16.msra.mxu0 0
    %1646 = vmatprep.subr.bf16.mxu0 0
    %1647 = vmatpush1.bf16.msra.mxu0 0
    %1648 = vmatprep.subr.bf16.mxu0 0
    %1649 = vmatpush1.bf16.msra.mxu0 0
    %1650 = vmatprep.subr.bf16.mxu0 0
    %1651 = vmatpush1.bf16.msra.mxu0 0
    %1652 = vmatprep.subr.bf16.mxu0 0
    %1653 = vmatpush1.bf16.msra.mxu0 0
    %1654 = vmatprep.subr.bf16.mxu0 0
    %1655 = vmatpush1.bf16.msra.mxu0 0
    %1656 = vmatprep.subr.bf16.mxu0 0
    %1657 = vmatpush1.bf16.msra.mxu0 0
    %1658 = vmatprep.subr.bf16.mxu0 0
    %1659 = vmatpush1.bf16.msra.mxu0 0
    %1660 = vmatprep.subr.bf16.mxu0 0
    %1661 = vmatpush1.bf16.msra.mxu0 0
    %1662 = vmatprep.subr.bf16.mxu0 0
    %1663 = vmatpush1.bf16.msra.mxu0 0
    %1664 = vmatprep.subr.bf16.mxu0 0
    %1665 = vmatpush1.bf16.msra.mxu0 0
    %1666 = vmatprep.subr.bf16.mxu0 0
    %1667 = vmatpush1.bf16.msra.mxu0 0
    %1668 = vmatprep.subr.bf16.mxu0 0
    %1669 = vmatpush1.bf16.msra.mxu0 0
    %1670 = vmatprep.mubr.bf16.mxu0 0
    %1671 = vmatmul.mubr.bf16.gmra.mrb[0].mxu0 %v1447
    %v1672 = vpop.f32.mrb[0].mxu0
    %v1673 = vadd.f32 %v1437, %v1672
    %v1674 = vpop.f32.mrb[0].mxu0
    %v1675 = vpop.f32.mrb[0].mxu0
    %v1676 = vadd.f32 %v1437, %v1675
    %v1677 = vpop.f32.mrb[0].mxu0
    %1678 = vmatprep.mubr.bf16.mxu0 0
    %1679 = vmatmul.mubr.bf16.gmra.mrb[0].mxu0 %v1450
    %v1680 = vpop.f32.mrb[0].mxu0
    %v1681 = vadd.f32 %v1437, %v1680
    %v1682 = vpop.f32.mrb[0].mxu0
    %v1683 = vpop.f32.mrb[0].mxu0
    %v1684 = vadd.f32 %v1437, %v1683
    %v1685 = vpop.f32.mrb[0].mxu0
    %1686 = vmatprep.mubr.bf16.mxu0 0
    %1687 = vmatmul.mubr.bf16.gmra.mrb[0].mxu0 %v1453
    %v1688 = vpop.f32.mrb[0].mxu0
    %v1689 = vadd.f32 %v1437, %v1688
    %v1690 = vpop.f32.mrb[0].mxu0
    %v1691 = vpop.f32.mrb[0].mxu0
    %v1692 = vadd.f32 %v1437, %v1691
    %v1693 = vpop.f32.mrb[0].mxu0
    %1694 = vmatprep.mubr.bf16.mxu0 0
    %1695 = vmatmul.mubr.bf16.gmra.mrb[0].mxu0 %v1456
    %v1696 = vpop.f32.mrb[0].mxu0
    %v1697 = vadd.f32 %v1437, %v1696
    %v1698 = vpop.f32.mrb[0].mxu0
    %v1699 = vpop.f32.mrb[0].mxu0
    %v1700 = vadd.f32 %v1437, %v1699
    %v1701 = vpop.f32.mrb[0].mxu0
    %1702 = vmatprep.mubr.bf16.mxu0 0
    %1703 = vmatmul.mubr.bf16.gmra.mrb[0].mxu0 %v1459
    %v1704 = vpop.f32.mrb[0].mxu0
    %v1705 = vadd.f32 %v1437, %v1704
    %v1706 = vpop.f32.mrb[0].mxu0
    %v1707 = vpop.f32.mrb[0].mxu0
    %v1708 = vadd.f32 %v1437, %v1707
    %v1709 = vpop.f32.mrb[0].mxu0
    %1710 = vmatprep.mubr.bf16.mxu0 0
    %1711 = vmatmul.mubr.bf16.gmra.mrb[0].mxu0 %v1462
    %v1712 = vpop.f32.mrb[0].mxu0
    %v1713 = vadd.f32 %v1437, %v1712
    %v1714 = vpop.f32.mrb[0].mxu0
    %v1715 = vpop.f32.mrb[0].mxu0
    %v1716 = vadd.f32 %v1437, %v1715
    %v1717 = vpop.f32.mrb[0].mxu0
    %1718 = vmatprep.mubr.bf16.mxu0 0
    %1719 = vmatmul.mubr.bf16.gmra.mrb[0].mxu0 %v1465
    %v1720 = vpop.f32.mrb[0].mxu0
    %v1721 = vadd.f32 %v1437, %v1720
    %v1722 = vpop.f32.mrb[0].mxu0
    %v1723 = vpop.f32.mrb[0].mxu0
    %v1724 = vadd.f32 %v1437, %v1723
    %v1725 = vpop.f32.mrb[0].mxu0
    %1726 = vmatprep.mubr.bf16.mxu0 0
    %1727 = vmatmul.mubr.bf16.gmra.mrb[0].mxu0 %v1468
    %v1728 = vpop.f32.mrb[0].mxu0
    %v1729 = vadd.f32 %v1437, %v1728
    %v1730 = vpop.f32.mrb[0].mxu0
    %v1731 = vpop.f32.mrb[0].mxu0
    %v1732 = vadd.f32 %v1437, %v1731
    %v1733 = vpop.f32.mrb[0].mxu0
    %1734 = vmatprep.mubr.bf16.mxu0 0
    %1735 = vmatmul.mubr.bf16.gmra.mrb[0].mxu0 %v1471
    %v1736 = vpop.f32.mrb[0].mxu0
    %v1737 = vadd.f32 %v1437, %v1736
    %v1738 = vpop.f32.mrb[0].mxu0
    %v1739 = vpop.f32.mrb[0].mxu0
    %v1740 = vadd.f32 %v1437, %v1739
    %v1741 = vpop.f32.mrb[0].mxu0
    %1742 = vmatprep.mubr.bf16.mxu0 0
    %1743 = vmatmul.mubr.bf16.gmra.mrb[0].mxu0 %v1474
    %v1744 = vpop.f32.mrb[0].mxu0
    %v1745 = vadd.f32 %v1437, %v1744
    %v1746 = vpop.f32.mrb[0].mxu0
    %v1747 = vpop.f32.mrb[0].mxu0
    %v1748 = vadd.f32 %v1437, %v1747
    %v1749 = vpop.f32.mrb[0].mxu0
    %1750 = vmatprep.mubr.bf16.mxu0 0
    %1751 = vmatmul.mubr.bf16.gmra.mrb[0].mxu0 %v1477
    %v1752 = vpop.f32.mrb[0].mxu0
    %v1753 = vadd.f32 %v1437, %v1752
    %v1754 = vpop.f32.mrb[0].mxu0
    %v1755 = vpop.f32.mrb[0].mxu0
    %v1756 = vadd.f32 %v1437, %v1755
    %v1757 = vpop.f32.mrb[0].mxu0
    %1758 = vmatprep.mubr.bf16.mxu0 0
    %1759 = vmatmul.mubr.bf16.gmra.mrb[0].mxu0 %v1480
    %v1760 = vpop.f32.mrb[0].mxu0
    %v1761 = vadd.f32 %v1437, %v1760
    %v1762 = vpop.f32.mrb[0].mxu0
    %v1763 = vpop.f32.mrb[0].mxu0
    %v1764 = vadd.f32 %v1437, %v1763
    %v1765 = vpop.f32.mrb[0].mxu0
    %1766 = vmatprep.mubr.bf16.mxu0 0
    %1767 = vmatmul.mubr.bf16.gmra.mrb[0].mxu0 %v1483
    %v1768 = vpop.f32.mrb[0].mxu0
    %v1769 = vadd.f32 %v1437, %v1768
    %v1770 = vpop.f32.mrb[0].mxu0
    %v1771 = vpop.f32.mrb[0].mxu0
    %v1772 = vadd.f32 %v1437, %v1771
    %v1773 = vpop.f32.mrb[0].mxu0
    %1774 = vmatprep.mubr.bf16.mxu0 0
    %1775 = vmatmul.mubr.bf16.gmra.mrb[0].mxu0 %v1486
    %v1776 = vpop.f32.mrb[0].mxu0
    %v1777 = vadd.f32 %v1437, %v1776
    %v1778 = vpop.f32.mrb[0].mxu0
    %v1779 = vpop.f32.mrb[0].mxu0
    %v1780 = vadd.f32 %v1437, %v1779
    %v1781 = vpop.f32.mrb[0].mxu0
    %1782 = vmatprep.mubr.bf16.mxu0 0
    %1783 = vmatmul.mubr.bf16.gmra.mrb[0].mxu0 %v1489
    %v1784 = vpop.f32.mrb[0].mxu0
    %v1785 = vadd.f32 %v1437, %v1784
    %v1786 = vpop.f32.mrb[0].mxu0
    %v1787 = vpop.f32.mrb[0].mxu0
    %v1788 = vadd.f32 %v1437, %v1787
    %v1789 = vpop.f32.mrb[0].mxu0
    %1790 = vmatprep.mubr.bf16.mxu0 0
    %1791 = vmatmul.mubr.bf16.gmra.mrb[0].mxu0 %v1492
    %v1792 = vpop.f32.mrb[0].mxu0
    %v1793 = vadd.f32 %v1437, %v1792
    %v1794 = vpop.f32.mrb[0].mxu0
    %v1795 = vpop.f32.mrb[0].mxu0
    %v1796 = vadd.f32 %v1437, %v1795
    %v1797 = vpop.f32.mrb[0].mxu0
    %1798 = vmatprep.mubr.bf16.mxu0 0
    %1799 = vmatmul.mubr.bf16.gmra.mrb[0].mxu0 %v1495
    %v1800 = vpop.f32.mrb[0].mxu0
    %v1801 = vadd.f32 %v1437, %v1800
    %v1802 = vpop.f32.mrb[0].mxu0
    %v1803 = vpop.f32.mrb[0].mxu0
    %v1804 = vadd.f32 %v1437, %v1803
    %v1805 = vpop.f32.mrb[0].mxu0
    %1806 = vmatprep.mubr.bf16.mxu0 0
    %1807 = vmatmul.mubr.bf16.gmra.mrb[0].mxu0 %v1498
    %v1808 = vpop.f32.mrb[0].mxu0
    %v1809 = vadd.f32 %v1437, %v1808
    %v1810 = vpop.f32.mrb[0].mxu0
    %v1811 = vpop.f32.mrb[0].mxu0
    %v1812 = vadd.f32 %v1437, %v1811
    %v1813 = vpop.f32.mrb[0].mxu0
    %1814 = vmatprep.mubr.bf16.mxu0 0
    %1815 = vmatmul.mubr.bf16.gmra.mrb[0].mxu0 %v1501
    %v1816 = vpop.f32.mrb[0].mxu0
    %v1817 = vadd.f32 %v1437, %v1816
    %v1818 = vpop.f32.mrb[0].mxu0
    %v1819 = vpop.f32.mrb[0].mxu0
    %v1820 = vadd.f32 %v1437, %v1819
    %v1821 = vpop.f32.mrb[0].mxu0
    %1822 = vmatprep.mubr.bf16.mxu0 0
    %1823 = vmatmul.mubr.bf16.gmra.mrb[0].mxu0 %v1504
    %v1824 = vpop.f32.mrb[0].mxu0
    %v1825 = vadd.f32 %v1437, %v1824
    %v1826 = vpop.f32.mrb[0].mxu0
    %v1827 = vpop.f32.mrb[0].mxu0
    %v1828 = vadd.f32 %v1437, %v1827
    %v1829 = vpop.f32.mrb[0].mxu0
    %1830 = vmatprep.mubr.bf16.mxu0 0
    %1831 = vmatmul.mubr.bf16.gmra.mrb[0].mxu0 %v1507
    %v1832 = vpop.f32.mrb[0].mxu0
    %v1833 = vadd.f32 %v1437, %v1832
    %v1834 = vpop.f32.mrb[0].mxu0
    %v1835 = vpop.f32.mrb[0].mxu0
    %v1836 = vadd.f32 %v1437, %v1835
    %v1837 = vpop.f32.mrb[0].mxu0
    %1838 = vmatprep.mubr.bf16.mxu0 0
    %1839 = vmatmul.mubr.bf16.gmra.mrb[0].mxu0 %v1510
    %v1840 = vpop.f32.mrb[0].mxu0
    %v1841 = vadd.f32 %v1437, %v1840
    %v1842 = vpop.f32.mrb[0].mxu0
    %v1843 = vpop.f32.mrb[0].mxu0
    %v1844 = vadd.f32 %v1437, %v1843
    %v1845 = vpop.f32.mrb[0].mxu0
    %1846 = vmatprep.mubr.bf16.mxu0 0
    %1847 = vmatmul.mubr.bf16.gmra.mrb[0].mxu0 %v1513
    %v1848 = vpop.f32.mrb[0].mxu0
    %v1849 = vadd.f32 %v1437, %v1848
    %v1850 = vpop.f32.mrb[0].mxu0
    %v1851 = vpop.f32.mrb[0].mxu0
    %v1852 = vadd.f32 %v1437, %v1851
    %v1853 = vpop.f32.mrb[0].mxu0
    %1854 = vmatprep.mubr.bf16.mxu0 0
    %1855 = vmatmul.mubr.bf16.gmra.mrb[0].mxu0 %v1516
    %v1856 = vpop.f32.mrb[0].mxu0
    %v1857 = vadd.f32 %v1437, %v1856
    %v1858 = vpop.f32.mrb[0].mxu0
    %v1859 = vpop.f32.mrb[0].mxu0
    %v1860 = vadd.f32 %v1437, %v1859
    %v1861 = vpop.f32.mrb[0].mxu0
    %1862 = vmatprep.mubr.bf16.mxu0 0
    %1863 = vmatmul.mubr.bf16.gmra.mrb[0].mxu0 %v1519
    %v1864 = vpop.f32.mrb[0].mxu0
    %v1865 = vadd.f32 %v1437, %v1864
    %v1866 = vpop.f32.mrb[0].mxu0
    %v1867 = vpop.f32.mrb[0].mxu0
    %v1868 = vadd.f32 %v1437, %v1867
    %v1869 = vpop.f32.mrb[0].mxu0
    %1870 = vmatprep.mubr.bf16.mxu0 0
    %1871 = vmatmul.mubr.bf16.gmra.mrb[0].mxu0 %v1522
    %v1872 = vpop.f32.mrb[0].mxu0
    %v1873 = vadd.f32 %v1437, %v1872
    %v1874 = vpop.f32.mrb[0].mxu0
    %v1875 = vpop.f32.mrb[0].mxu0
    %v1876 = vadd.f32 %v1437, %v1875
    %v1877 = vpop.f32.mrb[0].mxu0
    %1878 = vmatprep.mubr.bf16.mxu0 0
    %1879 = vmatmul.mubr.bf16.gmra.mrb[0].mxu0 %v1525
    %v1880 = vpop.f32.mrb[0].mxu0
    %v1881 = vadd.f32 %v1437, %v1880
    %v1882 = vpop.f32.mrb[0].mxu0
    %v1883 = vpop.f32.mrb[0].mxu0
    %v1884 = vadd.f32 %v1437, %v1883
    %v1885 = vpop.f32.mrb[0].mxu0
    %1886 = vmatprep.mubr.bf16.mxu0 0
    %1887 = vmatmul.mubr.bf16.gmra.mrb[0].mxu0 %v1528
    %v1888 = vpop.f32.mrb[0].mxu0
    %v1889 = vadd.f32 %v1437, %v1888
    %v1890 = vpop.f32.mrb[0].mxu0
    %v1891 = vpop.f32.mrb[0].mxu0
    %v1892 = vadd.f32 %v1437, %v1891
    %v1893 = vpop.f32.mrb[0].mxu0
    %1894 = vmatprep.mubr.bf16.mxu0 0
    %1895 = vmatmul.mubr.bf16.gmra.mrb[0].mxu0 %v1531
    %v1896 = vpop.f32.mrb[0].mxu0
    %v1897 = vadd.f32 %v1437, %v1896
    %v1898 = vpop.f32.mrb[0].mxu0
    %v1899 = vpop.f32.mrb[0].mxu0
    %v1900 = vadd.f32 %v1437, %v1899
    %v1901 = vpop.f32.mrb[0].mxu0
    %1902 = vmatprep.mubr.bf16.mxu0 0
    %1903 = vmatmul.mubr.bf16.gmra.mrb[0].mxu0 %v1534
    %v1904 = vpop.f32.mrb[0].mxu0
    %v1905 = vadd.f32 %v1437, %v1904
    %v1906 = vpop.f32.mrb[0].mxu0
    %v1907 = vpop.f32.mrb[0].mxu0
    %v1908 = vadd.f32 %v1437, %v1907
    %v1909 = vpop.f32.mrb[0].mxu0
    %1910 = vmatprep.mubr.bf16.mxu0 0
    %1911 = vmatmul.mubr.bf16.gmra.mrb[0].mxu0 %v1537
    %v1912 = vpop.f32.mrb[0].mxu0
    %v1913 = vadd.f32 %v1437, %v1912
    %v1914 = vpop.f32.mrb[0].mxu0
    %v1915 = vpop.f32.mrb[0].mxu0
    %v1916 = vadd.f32 %v1437, %v1915
    %v1917 = vpop.f32.mrb[0].mxu0
    %1918 = vmatprep.mubr.bf16.mxu0 0
    %1919 = vmatmul.mubr.bf16.gmra.mrb[0].mxu0 %v1540
    %v1920 = vpop.f32.mrb[0].mxu0
    %v1921 = vadd.f32 %v1437, %v1920
    %v1922 = vpop.f32.mrb[0].mxu0
    %v1923 = vpop.f32.mrb[0].mxu0
    %v1924 = vadd.f32 %v1437, %v1923
    %v1925 = vpop.f32.mrb[0].mxu0
    %1926 = vmatprep.mubr.bf16.mxu0 0
    %1927 = vmatmul.mubr.bf16.gmra.mrb[0].mxu0 %v1543
    %v1928 = vpop.f32.mrb[0].mxu0
    %v1929 = vadd.f32 %v1437, %v1928
    %v1930 = vpop.f32.mrb[0].mxu0
    %v1931 = vpop.f32.mrb[0].mxu0
    %v1932 = vadd.f32 %v1437, %v1931
    %v1933 = vpop.f32.mrb[0].mxu0
    %1934 = vmatprep.mubr.bf16.mxu0 0
    %1935 = vmatmul.mubr.bf16.gmra.mrb[0].mxu0 %v1546
    %v1936 = vpop.f32.mrb[0].mxu0
    %v1937 = vadd.f32 %v1437, %v1936
    %v1938 = vpop.f32.mrb[0].mxu0
    %v1939 = vpop.f32.mrb[0].mxu0
    %v1940 = vadd.f32 %v1437, %v1939
    %v1941 = vpop.f32.mrb[0].mxu0
    %1942 = vmatprep.mubr.bf16.mxu0 0
    %1943 = vmatmul.mubr.bf16.gmra.mrb[0].mxu0 %v1549
    %v1944 = vpop.f32.mrb[0].mxu0
    %v1945 = vadd.f32 %v1437, %v1944
    %v1946 = vpop.f32.mrb[0].mxu0
    %v1947 = vpop.f32.mrb[0].mxu0
    %v1948 = vadd.f32 %v1437, %v1947
    %v1949 = vpop.f32.mrb[0].mxu0
    %1950 = vmatprep.mubr.bf16.mxu0 0
    %1951 = vmatmul.mubr.bf16.gmra.mrb[0].mxu0 %v1552
    %v1952 = vpop.f32.mrb[0].mxu0
    %v1953 = vadd.f32 %v1437, %v1952
    %v1954 = vpop.f32.mrb[0].mxu0
    %v1955 = vpop.f32.mrb[0].mxu0
    %v1956 = vadd.f32 %v1437, %v1955
    %v1957 = vpop.f32.mrb[0].mxu0
    %1958 = vmatprep.mubr.bf16.mxu0 0
    %1959 = vmatmul.mubr.bf16.gmra.mrb[0].mxu0 %v1555
    %v1960 = vpop.f32.mrb[0].mxu0
    %v1961 = vadd.f32 %v1437, %v1960
    %v1962 = vpop.f32.mrb[0].mxu0
    %v1963 = vpop.f32.mrb[0].mxu0
    %v1964 = vadd.f32 %v1437, %v1963
    %v1965 = vpop.f32.mrb[0].mxu0
    %1966 = vmatprep.mubr.bf16.mxu0 0
    %1967 = vmatmul.mubr.bf16.gmra.mrb[0].mxu0 %v1558
    %v1968 = vpop.f32.mrb[0].mxu0
    %v1969 = vadd.f32 %v1437, %v1968
    %v1970 = vpop.f32.mrb[0].mxu0
    %v1971 = vpop.f32.mrb[0].mxu0
    %v1972 = vadd.f32 %v1437, %v1971
    %v1973 = vpop.f32.mrb[0].mxu0
    %1974 = vmatprep.mubr.bf16.mxu0 0
    %1975 = vmatmul.mubr.bf16.gmra.mrb[0].mxu0 %v1561
    %v1976 = vpop.f32.mrb[0].mxu0
    %v1977 = vadd.f32 %v1437, %v1976
    %v1978 = vpop.f32.mrb[0].mxu0
    %v1979 = vpop.f32.mrb[0].mxu0
    %v1980 = vadd.f32 %v1437, %v1979
    %v1981 = vpop.f32.mrb[0].mxu0
    %1982 = vmatprep.mubr.bf16.mxu0 0
    %1983 = vmatmul.mubr.bf16.gmra.mrb[0].mxu0 %v1564
    %v1984 = vpop.f32.mrb[0].mxu0
    %v1985 = vadd.f32 %v1437, %v1984
    %v1986 = vpop.f32.mrb[0].mxu0
    %v1987 = vpop.f32.mrb[0].mxu0
    %v1988 = vadd.f32 %v1437, %v1987
    %v1989 = vpop.f32.mrb[0].mxu0
    %1990 = vmatprep.mubr.bf16.mxu0 0
    %1991 = vmatmul.mubr.bf16.gmra.mrb[0].mxu0 %v1567
    %v1992 = vpop.f32.mrb[0].mxu0
    %v1993 = vadd.f32 %v1437, %v1992
    %v1994 = vpop.f32.mrb[0].mxu0
    %v1995 = vpop.f32.mrb[0].mxu0
    %v1996 = vadd.f32 %v1437, %v1995
    %v1997 = vpop.f32.mrb[0].mxu0
    %1998 = vmatprep.mubr.bf16.mxu0 0
    %1999 = vmatmul.mubr.bf16.gmra.mrb[0].mxu0 %v1570
    %v2000 = vpop.f32.mrb[0].mxu0
    %v2001 = vadd.f32 %v1437, %v2000
    %v2002 = vpop.f32.mrb[0].mxu0
    %v2003 = vpop.f32.mrb[0].mxu0
    %v2004 = vadd.f32 %v1437, %v2003
    %v2005 = vpop.f32.mrb[0].mxu0
    %2006 = vmatprep.mubr.bf16.mxu0 0
    %2007 = vmatmul.mubr.bf16.gmra.mrb[0].mxu0 %v1573
    %v2008 = vpop.f32.mrb[0].mxu0
    %v2009 = vadd.f32 %v1437, %v2008
    %v2010 = vpop.f32.mrb[0].mxu0
    %v2011 = vpop.f32.mrb[0].mxu0
    %v2012 = vadd.f32 %v1437, %v2011
    %v2013 = vpop.f32.mrb[0].mxu0
    %2014 = vmatprep.mubr.bf16.mxu0 0
    %2015 = vmatmul.mubr.bf16.gmra.mrb[0].mxu0 %v1576
    %v2016 = vpop.f32.mrb[0].mxu0
    %v2017 = vadd.f32 %v1437, %v2016
    %v2018 = vpop.f32.mrb[0].mxu0
    %v2019 = vpop.f32.mrb[0].mxu0
    %v2020 = vadd.f32 %v1437, %v2019
    %v2021 = vpop.f32.mrb[0].mxu0
    %2022 = vmatprep.mubr.bf16.mxu0 0
    %2023 = vmatmul.mubr.bf16.gmra.mrb[0].mxu0 %v1579
    %v2024 = vpop.f32.mrb[0].mxu0
    %v2025 = vadd.f32 %v1437, %v2024
    %v2026 = vpop.f32.mrb[0].mxu0
    %v2027 = vpop.f32.mrb[0].mxu0
    %v2028 = vadd.f32 %v1437, %v2027
    %v2029 = vpop.f32.mrb[0].mxu0
    %2030 = vmatprep.mubr.bf16.mxu0 0
    %2031 = vmatmul.mubr.bf16.gmra.mrb[0].mxu0 %v1582
    %v2032 = vpop.f32.mrb[0].mxu0
    %v2033 = vadd.f32 %v1437, %v2032
    %v2034 = vpop.f32.mrb[0].mxu0
    %v2035 = vpop.f32.mrb[0].mxu0
    %v2036 = vadd.f32 %v1437, %v2035
    %v2037 = vpop.f32.mrb[0].mxu0
    %2038 = vmatprep.mubr.bf16.mxu0 0
    %2039 = vmatmul.mubr.bf16.gmra.mrb[0].mxu0 %v1585
    %v2040 = vpop.f32.mrb[0].mxu0
    %v2041 = vadd.f32 %v1437, %v2040
    %v2042 = vpop.f32.mrb[0].mxu0
    %v2043 = vpop.f32.mrb[0].mxu0
    %v2044 = vadd.f32 %v1437, %v2043
    %v2045 = vpop.f32.mrb[0].mxu0
    %2046 = vmatprep.mubr.bf16.mxu0 0
    %2047 = vmatmul.mubr.bf16.gmra.mrb[0].mxu0 %v1588
    %v2048 = vpop.f32.mrb[0].mxu0
    %v2049 = vadd.f32 %v1437, %v2048
    %v2050 = vpop.f32.mrb[0].mxu0
    %v2051 = vpop.f32.mrb[0].mxu0
    %v2052 = vadd.f32 %v1437, %v2051
    %v2053 = vpop.f32.mrb[0].mxu0
    %2054 = vmatprep.mubr.bf16.mxu0 0
    %2055 = vmatmul.mubr.bf16.gmra.mrb[0].mxu0 %v1591
    %v2056 = vpop.f32.mrb[0].mxu0
    %v2057 = vadd.f32 %v1437, %v2056
    %v2058 = vpop.f32.mrb[0].mxu0
    %v2059 = vpop.f32.mrb[0].mxu0
    %v2060 = vadd.f32 %v1437, %v2059
    %v2061 = vpop.f32.mrb[0].mxu0
    %2062 = vmatprep.mubr.bf16.mxu0 0
    %2063 = vmatmul.mubr.bf16.gmra.mrb[0].mxu0 %v1594
    %v2064 = vpop.f32.mrb[0].mxu0
    %v2065 = vadd.f32 %v1437, %v2064
    %v2066 = vpop.f32.mrb[0].mxu0
    %v2067 = vpop.f32.mrb[0].mxu0
    %v2068 = vadd.f32 %v1437, %v2067
    %v2069 = vpop.f32.mrb[0].mxu0
    %2070 = vmatprep.mubr.bf16.mxu0 0
    %2071 = vmatmul.mubr.bf16.gmra.mrb[0].mxu0 %v1597
    %v2072 = vpop.f32.mrb[0].mxu0
    %v2073 = vadd.f32 %v1437, %v2072
    %v2074 = vpop.f32.mrb[0].mxu0
    %v2075 = vpop.f32.mrb[0].mxu0
    %v2076 = vadd.f32 %v1437, %v2075
    %v2077 = vpop.f32.mrb[0].mxu0
    %2078 = vmatprep.mubr.bf16.mxu0 0
    %2079 = vmatmul.mubr.bf16.gmra.mrb[0].mxu0 %v1600
    %v2080 = vpop.f32.mrb[0].mxu0
    %v2081 = vadd.f32 %v1437, %v2080
    %v2082 = vpop.f32.mrb[0].mxu0
    %v2083 = vpop.f32.mrb[0].mxu0
    %v2084 = vadd.f32 %v1437, %v2083
    %v2085 = vpop.f32.mrb[0].mxu0
    %2086 = vmatprep.mubr.bf16.mxu0 0
    %2087 = vmatmul.mubr.bf16.gmra.mrb[0].mxu0 %v1603
    %v2088 = vpop.f32.mrb[0].mxu0
    %v2089 = vadd.f32 %v1437, %v2088
    %v2090 = vpop.f32.mrb[0].mxu0
    %v2091 = vpop.f32.mrb[0].mxu0
    %v2092 = vadd.f32 %v1437, %v2091
    %v2093 = vpop.f32.mrb[0].mxu0
    %2094 = vmatprep.mubr.bf16.mxu0 0
    %2095 = vmatmul.mubr.bf16.gmra.mrb[0].mxu0 %v1606
    %v2096 = vpop.f32.mrb[0].mxu0
    %v2097 = vadd.f32 %v1437, %v2096
    %v2098 = vpop.f32.mrb[0].mxu0
    %v2099 = vpop.f32.mrb[0].mxu0
    %v2100 = vadd.f32 %v1437, %v2099
    %v2101 = vpop.f32.mrb[0].mxu0
    %2102 = vmatprep.mubr.bf16.mxu0 0
    %2103 = vmatmul.mubr.bf16.gmra.mrb[0].mxu0 %v1609
    %v2104 = vpop.f32.mrb[0].mxu0
    %v2105 = vadd.f32 %v1437, %v2104
    %v2106 = vpop.f32.mrb[0].mxu0
    %v2107 = vpop.f32.mrb[0].mxu0
    %v2108 = vadd.f32 %v1437, %v2107
    %v2109 = vpop.f32.mrb[0].mxu0
    %2110 = vmatprep.mubr.bf16.mxu0 0
    %2111 = vmatmul.mubr.bf16.gmra.mrb[0].mxu0 %v1612
    %v2112 = vpop.f32.mrb[0].mxu0
    %v2113 = vadd.f32 %v1437, %v2112
    %v2114 = vpop.f32.mrb[0].mxu0
    %v2115 = vpop.f32.mrb[0].mxu0
    %v2116 = vadd.f32 %v1437, %v2115
    %v2117 = vpop.f32.mrb[0].mxu0
    %2118 = vmatprep.mubr.bf16.mxu0 0
    %2119 = vmatmul.mubr.bf16.gmra.mrb[0].mxu0 %v1615
    %v2120 = vpop.f32.mrb[0].mxu0
    %v2121 = vadd.f32 %v1437, %v2120
    %v2122 = vpop.f32.mrb[0].mxu0
    %v2123 = vpop.f32.mrb[0].mxu0
    %v2124 = vadd.f32 %v1437, %v2123
    %v2125 = vpop.f32.mrb[0].mxu0
    %2126 = vmatprep.mubr.bf16.mxu0 0
    %2127 = vmatmul.mubr.bf16.gmra.mrb[0].mxu0 %v1618
    %v2128 = vpop.f32.mrb[0].mxu0
    %v2129 = vadd.f32 %v1437, %v2128
    %v2130 = vpop.f32.mrb[0].mxu0
    %v2131 = vpop.f32.mrb[0].mxu0
    %v2132 = vadd.f32 %v1437, %v2131
    %v2133 = vpop.f32.mrb[0].mxu0
    %2134 = vmatprep.mubr.bf16.mxu0 0
    %2135 = vmatmul.mubr.bf16.gmra.mrb[0].mxu0 %v1621
    %v2136 = vpop.f32.mrb[0].mxu0
    %v2137 = vadd.f32 %v1437, %v2136
    %v2138 = vpop.f32.mrb[0].mxu0
    %v2139 = vpop.f32.mrb[0].mxu0
    %v2140 = vadd.f32 %v1437, %v2139
    %v2141 = vpop.f32.mrb[0].mxu0
    %2142 = vmatprep.mubr.bf16.mxu0 0
    %2143 = vmatmul.mubr.bf16.gmra.mrb[0].mxu0 %v1624
    %v2144 = vpop.f32.mrb[0].mxu0
    %v2145 = vadd.f32 %v1437, %v2144
    %v2146 = vpop.f32.mrb[0].mxu0
    %v2147 = vpop.f32.mrb[0].mxu0
    %v2148 = vadd.f32 %v1437, %v2147
    %v2149 = vpop.f32.mrb[0].mxu0
    %2150 = vmatprep.mubr.bf16.mxu0 0
    %2151 = vmatmul.mubr.bf16.gmra.mrb[0].mxu0 %v1627
    %v2152 = vpop.f32.mrb[0].mxu0
    %v2153 = vadd.f32 %v1437, %v2152
    %v2154 = vpop.f32.mrb[0].mxu0
    %v2155 = vpop.f32.mrb[0].mxu0
    %v2156 = vadd.f32 %v1437, %v2155
    %v2157 = vpop.f32.mrb[0].mxu0
    %2158 = vmatprep.mubr.bf16.mxu0 0
    %2159 = vmatmul.mubr.bf16.gmra.mrb[0].mxu0 %v1630
    %v2160 = vpop.f32.mrb[0].mxu0
    %v2161 = vadd.f32 %v1437, %v2160
    %v2162 = vpop.f32.mrb[0].mxu0
    %v2163 = vpop.f32.mrb[0].mxu0
    %v2164 = vadd.f32 %v1437, %v2163
    %v2165 = vpop.f32.mrb[0].mxu0
    %2166 = vmatprep.mubr.bf16.mxu0 0
    %2167 = vmatmul.mubr.bf16.gmra.mrb[0].mxu0 %v1633
    %v2168 = vpop.f32.mrb[0].mxu0
    %v2169 = vadd.f32 %v1437, %v2168
    %v2170 = vpop.f32.mrb[0].mxu0
    %v2171 = vpop.f32.mrb[0].mxu0
    %v2172 = vadd.f32 %v1437, %v2171
    %v2173 = vpop.f32.mrb[0].mxu0
    %2174 = vmatprep.mubr.bf16.mxu0 0
    %2175 = vmatmul.mubr.bf16.gmra.mrb[0].mxu0 %v1636
    %v2176 = vpop.f32.mrb[0].mxu0
    %v2177 = vadd.f32 %v1437, %v2176
    %v2178 = vpop.f32.mrb[0].mxu0
    %v2179 = vpop.f32.mrb[0].mxu0
    %v2180 = vadd.f32 %v1437, %v2179
    %v2181 = vpop.f32.mrb[0].mxu0
    %2182 = vdwg.mxu0
    %v2183 = vmax.f32 %v1673, 0.0
    %v2184 = vmax.f32 %v1676, 0.0
    %v2185 = vmax.f32 %v1681, 0.0
    %v2186 = vmax.f32 %v1684, 0.0
    %v2187 = vmax.f32 %v1689, 0.0
    %v2188 = vmax.f32 %v1692, 0.0
    %v2189 = vmax.f32 %v1697, 0.0
    %v2190 = vmax.f32 %v1700, 0.0
    %v2191 = vmax.f32 %v1705, 0.0
    %v2192 = vmax.f32 %v1708, 0.0
    %v2193 = vmax.f32 %v1713, 0.0
    %v2194 = vmax.f32 %v1716, 0.0
    %v2195 = vmax.f32 %v1721, 0.0
    %v2196 = vmax.f32 %v1724, 0.0
    %v2197 = vmax.f32 %v1729, 0.0
    %v2198 = vmax.f32 %v1732, 0.0
    %v2199 = vmax.f32 %v1737, 0.0
    %v2200 = vmax.f32 %v1740, 0.0
    %v2201 = vmax.f32 %v1745, 0.0
    %v2202 = vmax.f32 %v1748, 0.0
    %v2203 = vmax.f32 %v1753, 0.0
    %v2204 = vmax.f32 %v1756, 0.0
    %v2205 = vmax.f32 %v1761, 0.0
    %v2206 = vmax.f32 %v1764, 0.0
    %v2207 = vmax.f32 %v1769, 0.0
    %v2208 = vmax.f32 %v1772, 0.0
    %v2209 = vmax.f32 %v1777, 0.0
    %v2210 = vmax.f32 %v1780, 0.0
    %v2211 = vmax.f32 %v1785, 0.0
    %v2212 = vmax.f32 %v1788, 0.0
    %v2213 = vmax.f32 %v1793, 0.0
    %v2214 = vmax.f32 %v1796, 0.0
    %v2215 = vmax.f32 %v1801, 0.0
    %v2216 = vmax.f32 %v1804, 0.0
    %v2217 = vmax.f32 %v1809, 0.0
    %v2218 = vmax.f32 %v1812, 0.0
    %v2219 = vmax.f32 %v1817, 0.0
    %v2220 = vmax.f32 %v1820, 0.0
    %v2221 = vmax.f32 %v1825, 0.0
    %v2222 = vmax.f32 %v1828, 0.0
    %v2223 = vmax.f32 %v1833, 0.0
    %v2224 = vmax.f32 %v1836, 0.0
    %v2225 = vmax.f32 %v1841, 0.0
    %v2226 = vmax.f32 %v1844, 0.0
    %v2227 = vmax.f32 %v1849, 0.0
    %v2228 = vmax.f32 %v1852, 0.0
    %v2229 = vmax.f32 %v1857, 0.0
    %v2230 = vmax.f32 %v1860, 0.0
    %v2231 = vmax.f32 %v1865, 0.0
    %v2232 = vmax.f32 %v1868, 0.0
    %v2233 = vmax.f32 %v1873, 0.0
    %v2234 = vmax.f32 %v1876, 0.0
    %v2235 = vmax.f32 %v1881, 0.0
    %v2236 = vmax.f32 %v1884, 0.0
    %v2237 = vmax.f32 %v1889, 0.0
    %v2238 = vmax.f32 %v1892, 0.0
    %v2239 = vmax.f32 %v1897, 0.0
    %v2240 = vmax.f32 %v1900, 0.0
    %v2241 = vmax.f32 %v1905, 0.0
    %v2242 = vmax.f32 %v1908, 0.0
    %v2243 = vmax.f32 %v1913, 0.0
    %v2244 = vmax.f32 %v1916, 0.0
    %v2245 = vmax.f32 %v1921, 0.0
    %v2246 = vmax.f32 %v1924, 0.0
    %v2247 = vmax.f32 %v1929, 0.0
    %v2248 = vmax.f32 %v1932, 0.0
    %v2249 = vmax.f32 %v1937, 0.0
    %v2250 = vmax.f32 %v1940, 0.0
    %v2251 = vmax.f32 %v1945, 0.0
    %v2252 = vmax.f32 %v1948, 0.0
    %v2253 = vmax.f32 %v1953, 0.0
    %v2254 = vmax.f32 %v1956, 0.0
    %v2255 = vmax.f32 %v1961, 0.0
    %v2256 = vmax.f32 %v1964, 0.0
    %v2257 = vmax.f32 %v1969, 0.0
    %v2258 = vmax.f32 %v1972, 0.0
    %v2259 = vmax.f32 %v1977, 0.0
    %v2260 = vmax.f32 %v1980, 0.0
    %v2261 = vmax.f32 %v1985, 0.0
    %v2262 = vmax.f32 %v1988, 0.0
    %v2263 = vmax.f32 %v1993, 0.0
    %v2264 = vmax.f32 %v1996, 0.0
    %v2265 = vmax.f32 %v2001, 0.0
    %v2266 = vmax.f32 %v2004, 0.0
    %v2267 = vmax.f32 %v2009, 0.0
    %v2268 = vmax.f32 %v2012, 0.0
    %v2269 = vmax.f32 %v2017, 0.0
    %v2270 = vmax.f32 %v2020, 0.0
    %v2271 = vmax.f32 %v2025, 0.0
    %v2272 = vmax.f32 %v2028, 0.0
    %v2273 = vmax.f32 %v2033, 0.0
    %v2274 = vmax.f32 %v2036, 0.0
    %v2275 = vmax.f32 %v2041, 0.0
    %v2276 = vmax.f32 %v2044, 0.0
    %v2277 = vmax.f32 %v2049, 0.0
    %v2278 = vmax.f32 %v2052, 0.0
    %v2279 = vmax.f32 %v2057, 0.0
    %v2280 = vmax.f32 %v2060, 0.0
    %v2281 = vmax.f32 %v2065, 0.0
    %v2282 = vmax.f32 %v2068, 0.0
    %v2283 = vmax.f32 %v2073, 0.0
    %v2284 = vmax.f32 %v2076, 0.0
    %v2285 = vmax.f32 %v2081, 0.0
    %v2286 = vmax.f32 %v2084, 0.0
    %v2287 = vmax.f32 %v2089, 0.0
    %v2288 = vmax.f32 %v2092, 0.0
    %v2289 = vmax.f32 %v2097, 0.0
    %v2290 = vmax.f32 %v2100, 0.0
    %v2291 = vmax.f32 %v2105, 0.0
    %v2292 = vmax.f32 %v2108, 0.0
    %v2293 = vmax.f32 %v2113, 0.0
    %v2294 = vmax.f32 %v2116, 0.0
    %v2295 = vmax.f32 %v2121, 0.0
    %v2296 = vmax.f32 %v2124, 0.0
    %v2297 = vmax.f32 %v2129, 0.0
    %v2298 = vmax.f32 %v2132, 0.0
    %v2299 = vmax.f32 %v2137, 0.0
    %v2300 = vmax.f32 %v2140, 0.0
    %v2301 = vmax.f32 %v2145, 0.0
    %v2302 = vmax.f32 %v2148, 0.0
    %v2303 = vmax.f32 %v2153, 0.0
    %v2304 = vmax.f32 %v2156, 0.0
    %v2305 = vmax.f32 %v2161, 0.0
    %v2306 = vmax.f32 %v2164, 0.0
    %v2307 = vmax.f32 %v2169, 0.0
    %v2308 = vmax.f32 %v2172, 0.0
    %v2309 = vmax.f32 %v2177, 0.0
    %v2310 = vmax.f32 %v2180, 0.0
    %vm2311 = vcmask 261120
    %v2312 = vsel %vm2311, %v2183, -inf
    %v2313 = vrot.slane %v2312, 4
    %v2314 = vmax.f32 %v2312, %v2313
    %v2315 = vrot.slane %v2314, 2
    %v2316 = vmax.f32 %v2314, %v2315
    %v2317 = vrot.slane %v2316, 1
    %v2318 = vmax.f32 %v2316, %v2317
    %v2319 = vsel %vm2311, %v2184, -inf
    %v2320 = vrot.slane %v2319, 4
    %v2321 = vmax.f32 %v2319, %v2320
    %v2322 = vrot.slane %v2321, 2
    %v2323 = vmax.f32 %v2321, %v2322
    %v2324 = vrot.slane %v2323, 1
    %v2325 = vmax.f32 %v2323, %v2324
    %v2326 = vsel %vm2311, %v2185, -inf
    %v2327 = vrot.slane %v2326, 4
    %v2328 = vmax.f32 %v2326, %v2327
    %v2329 = vrot.slane %v2328, 2
    %v2330 = vmax.f32 %v2328, %v2329
    %v2331 = vrot.slane %v2330, 1
    %v2332 = vmax.f32 %v2330, %v2331
    %v2333 = vsel %vm2311, %v2186, -inf
    %v2334 = vrot.slane %v2333, 4
    %v2335 = vmax.f32 %v2333, %v2334
    %v2336 = vrot.slane %v2335, 2
    %v2337 = vmax.f32 %v2335, %v2336
    %v2338 = vrot.slane %v2337, 1
    %v2339 = vmax.f32 %v2337, %v2338
    %v2340 = vsel %vm2311, %v2187, -inf
    %v2341 = vrot.slane %v2340, 4
    %v2342 = vmax.f32 %v2340, %v2341
    %v2343 = vrot.slane %v2342, 2
    %v2344 = vmax.f32 %v2342, %v2343
    %v2345 = vrot.slane %v2344, 1
    %v2346 = vmax.f32 %v2344, %v2345
    %v2347 = vsel %vm2311, %v2188, -inf
    %v2348 = vrot.slane %v2347, 4
    %v2349 = vmax.f32 %v2347, %v2348
    %v2350 = vrot.slane %v2349, 2
    %v2351 = vmax.f32 %v2349, %v2350
    %v2352 = vrot.slane %v2351, 1
    %v2353 = vmax.f32 %v2351, %v2352
    %v2354 = vsel %vm2311, %v2189, -inf
    %v2355 = vrot.slane %v2354, 4
    %v2356 = vmax.f32 %v2354, %v2355
    %v2357 = vrot.slane %v2356, 2
    %v2358 = vmax.f32 %v2356, %v2357
    %v2359 = vrot.slane %v2358, 1
    %v2360 = vmax.f32 %v2358, %v2359
    %v2361 = vsel %vm2311, %v2190, -inf
    %v2362 = vrot.slane %v2361, 4
    %v2363 = vmax.f32 %v2361, %v2362
    %v2364 = vrot.slane %v2363, 2
    %v2365 = vmax.f32 %v2363, %v2364
    %v2366 = vrot.slane %v2365, 1
    %v2367 = vmax.f32 %v2365, %v2366
    %v2368 = vsel %vm2311, %v2191, -inf
    %v2369 = vrot.slane %v2368, 4
    %v2370 = vmax.f32 %v2368, %v2369
    %v2371 = vrot.slane %v2370, 2
    %v2372 = vmax.f32 %v2370, %v2371
    %v2373 = vrot.slane %v2372, 1
    %v2374 = vmax.f32 %v2372, %v2373
    %v2375 = vsel %vm2311, %v2192, -inf
    %v2376 = vrot.slane %v2375, 4
    %v2377 = vmax.f32 %v2375, %v2376
    %v2378 = vrot.slane %v2377, 2
    %v2379 = vmax.f32 %v2377, %v2378
    %v2380 = vrot.slane %v2379, 1
    %v2381 = vmax.f32 %v2379, %v2380
    %v2382 = vsel %vm2311, %v2193, -inf
    %v2383 = vrot.slane %v2382, 4
    %v2384 = vmax.f32 %v2382, %v2383
    %v2385 = vrot.slane %v2384, 2
    %v2386 = vmax.f32 %v2384, %v2385
    %v2387 = vrot.slane %v2386, 1
    %v2388 = vmax.f32 %v2386, %v2387
    %v2389 = vsel %vm2311, %v2194, -inf
    %v2390 = vrot.slane %v2389, 4
    %v2391 = vmax.f32 %v2389, %v2390
    %v2392 = vrot.slane %v2391, 2
    %v2393 = vmax.f32 %v2391, %v2392
    %v2394 = vrot.slane %v2393, 1
    %v2395 = vmax.f32 %v2393, %v2394
    %v2396 = vsel %vm2311, %v2195, -inf
    %v2397 = vrot.slane %v2396, 4
    %v2398 = vmax.f32 %v2396, %v2397
    %v2399 = vrot.slane %v2398, 2
    %v2400 = vmax.f32 %v2398, %v2399
    %v2401 = vrot.slane %v2400, 1
    %v2402 = vmax.f32 %v2400, %v2401
    %v2403 = vsel %vm2311, %v2196, -inf
    %v2404 = vrot.slane %v2403, 4
    %v2405 = vmax.f32 %v2403, %v2404
    %v2406 = vrot.slane %v2405, 2
    %v2407 = vmax.f32 %v2405, %v2406
    %v2408 = vrot.slane %v2407, 1
    %v2409 = vmax.f32 %v2407, %v2408
    %v2410 = vsel %vm2311, %v2197, -inf
    %v2411 = vrot.slane %v2410, 4
    %v2412 = vmax.f32 %v2410, %v2411
    %v2413 = vrot.slane %v2412, 2
    %v2414 = vmax.f32 %v2412, %v2413
    %v2415 = vrot.slane %v2414, 1
    %v2416 = vmax.f32 %v2414, %v2415
    %v2417 = vsel %vm2311, %v2198, -inf
    %v2418 = vrot.slane %v2417, 4
    %v2419 = vmax.f32 %v2417, %v2418
    %v2420 = vrot.slane %v2419, 2
    %v2421 = vmax.f32 %v2419, %v2420
    %v2422 = vrot.slane %v2421, 1
    %v2423 = vmax.f32 %v2421, %v2422
    %v2424 = vsel %vm2311, %v2199, -inf
    %v2425 = vrot.slane %v2424, 4
    %v2426 = vmax.f32 %v2424, %v2425
    %v2427 = vrot.slane %v2426, 2
    %v2428 = vmax.f32 %v2426, %v2427
    %v2429 = vrot.slane %v2428, 1
    %v2430 = vmax.f32 %v2428, %v2429
    %v2431 = vsel %vm2311, %v2200, -inf
    %v2432 = vrot.slane %v2431, 4
    %v2433 = vmax.f32 %v2431, %v2432
    %v2434 = vrot.slane %v2433, 2
    %v2435 = vmax.f32 %v2433, %v2434
    %v2436 = vrot.slane %v2435, 1
    %v2437 = vmax.f32 %v2435, %v2436
    %v2438 = vsel %vm2311, %v2201, -inf
    %v2439 = vrot.slane %v2438, 4
    %v2440 = vmax.f32 %v2438, %v2439
    %v2441 = vrot.slane %v2440, 2
    %v2442 = vmax.f32 %v2440, %v2441
    %v2443 = vrot.slane %v2442, 1
    %v2444 = vmax.f32 %v2442, %v2443
    %v2445 = vsel %vm2311, %v2202, -inf
    %v2446 = vrot.slane %v2445, 4
    %v2447 = vmax.f32 %v2445, %v2446
    %v2448 = vrot.slane %v2447, 2
    %v2449 = vmax.f32 %v2447, %v2448
    %v2450 = vrot.slane %v2449, 1
    %v2451 = vmax.f32 %v2449, %v2450
    %v2452 = vsel %vm2311, %v2203, -inf
    %v2453 = vrot.slane %v2452, 4
    %v2454 = vmax.f32 %v2452, %v2453
    %v2455 = vrot.slane %v2454, 2
    %v2456 = vmax.f32 %v2454, %v2455
    %v2457 = vrot.slane %v2456, 1
    %v2458 = vmax.f32 %v2456, %v2457
    %v2459 = vsel %vm2311, %v2204, -inf
    %v2460 = vrot.slane %v2459, 4
    %v2461 = vmax.f32 %v2459, %v2460
    %v2462 = vrot.slane %v2461, 2
    %v2463 = vmax.f32 %v2461, %v2462
    %v2464 = vrot.slane %v2463, 1
    %v2465 = vmax.f32 %v2463, %v2464
    %v2466 = vsel %vm2311, %v2205, -inf
    %v2467 = vrot.slane %v2466, 4
    %v2468 = vmax.f32 %v2466, %v2467
    %v2469 = vrot.slane %v2468, 2
    %v2470 = vmax.f32 %v2468, %v2469
    %v2471 = vrot.slane %v2470, 1
    %v2472 = vmax.f32 %v2470, %v2471
    %v2473 = vsel %vm2311, %v2206, -inf
    %v2474 = vrot.slane %v2473, 4
    %v2475 = vmax.f32 %v2473, %v2474
    %v2476 = vrot.slane %v2475, 2
    %v2477 = vmax.f32 %v2475, %v2476
    %v2478 = vrot.slane %v2477, 1
    %v2479 = vmax.f32 %v2477, %v2478
    %v2480 = vsel %vm2311, %v2207, -inf
    %v2481 = vrot.slane %v2480, 4
    %v2482 = vmax.f32 %v2480, %v2481
    %v2483 = vrot.slane %v2482, 2
    %v2484 = vmax.f32 %v2482, %v2483
    %v2485 = vrot.slane %v2484, 1
    %v2486 = vmax.f32 %v2484, %v2485
    %v2487 = vsel %vm2311, %v2208, -inf
    %v2488 = vrot.slane %v2487, 4
    %v2489 = vmax.f32 %v2487, %v2488
    %v2490 = vrot.slane %v2489, 2
    %v2491 = vmax.f32 %v2489, %v2490
    %v2492 = vrot.slane %v2491, 1
    %v2493 = vmax.f32 %v2491, %v2492
    %v2494 = vsel %vm2311, %v2209, -inf
    %v2495 = vrot.slane %v2494, 4
    %v2496 = vmax.f32 %v2494, %v2495
    %v2497 = vrot.slane %v2496, 2
    %v2498 = vmax.f32 %v2496, %v2497
    %v2499 = vrot.slane %v2498, 1
    %v2500 = vmax.f32 %v2498, %v2499
    %v2501 = vsel %vm2311, %v2210, -inf
    %v2502 = vrot.slane %v2501, 4
    %v2503 = vmax.f32 %v2501, %v2502
    %v2504 = vrot.slane %v2503, 2
    %v2505 = vmax.f32 %v2503, %v2504
    %v2506 = vrot.slane %v2505, 1
    %v2507 = vmax.f32 %v2505, %v2506
    %v2508 = vsel %vm2311, %v2211, -inf
    %v2509 = vrot.slane %v2508, 4
    %v2510 = vmax.f32 %v2508, %v2509
    %v2511 = vrot.slane %v2510, 2
    %v2512 = vmax.f32 %v2510, %v2511
    %v2513 = vrot.slane %v2512, 1
    %v2514 = vmax.f32 %v2512, %v2513
    %v2515 = vsel %vm2311, %v2212, -inf
    %v2516 = vrot.slane %v2515, 4
    %v2517 = vmax.f32 %v2515, %v2516
    %v2518 = vrot.slane %v2517, 2
    %v2519 = vmax.f32 %v2517, %v2518
    %v2520 = vrot.slane %v2519, 1
    %v2521 = vmax.f32 %v2519, %v2520
    %v2522 = vsel %vm2311, %v2213, -inf
    %v2523 = vrot.slane %v2522, 4
    %v2524 = vmax.f32 %v2522, %v2523
    %v2525 = vrot.slane %v2524, 2
    %v2526 = vmax.f32 %v2524, %v2525
    %v2527 = vrot.slane %v2526, 1
    %v2528 = vmax.f32 %v2526, %v2527
    %v2529 = vsel %vm2311, %v2214, -inf
    %v2530 = vrot.slane %v2529, 4
    %v2531 = vmax.f32 %v2529, %v2530
    %v2532 = vrot.slane %v2531, 2
    %v2533 = vmax.f32 %v2531, %v2532
    %v2534 = vrot.slane %v2533, 1
    %v2535 = vmax.f32 %v2533, %v2534
    %v2536 = vsel %vm2311, %v2215, -inf
    %v2537 = vrot.slane %v2536, 4
    %v2538 = vmax.f32 %v2536, %v2537
    %v2539 = vrot.slane %v2538, 2
    %v2540 = vmax.f32 %v2538, %v2539
    %v2541 = vrot.slane %v2540, 1
    %v2542 = vmax.f32 %v2540, %v2541
    %v2543 = vsel %vm2311, %v2216, -inf
    %v2544 = vrot.slane %v2543, 4
    %v2545 = vmax.f32 %v2543, %v2544
    %v2546 = vrot.slane %v2545, 2
    %v2547 = vmax.f32 %v2545, %v2546
    %v2548 = vrot.slane %v2547, 1
    %v2549 = vmax.f32 %v2547, %v2548
    %v2550 = vsel %vm2311, %v2217, -inf
    %v2551 = vrot.slane %v2550, 4
    %v2552 = vmax.f32 %v2550, %v2551
    %v2553 = vrot.slane %v2552, 2
    %v2554 = vmax.f32 %v2552, %v2553
    %v2555 = vrot.slane %v2554, 1
    %v2556 = vmax.f32 %v2554, %v2555
    %v2557 = vsel %vm2311, %v2218, -inf
    %v2558 = vrot.slane %v2557, 4
    %v2559 = vmax.f32 %v2557, %v2558
    %v2560 = vrot.slane %v2559, 2
    %v2561 = vmax.f32 %v2559, %v2560
    %v2562 = vrot.slane %v2561, 1
    %v2563 = vmax.f32 %v2561, %v2562
    %v2564 = vsel %vm2311, %v2219, -inf
    %v2565 = vrot.slane %v2564, 4
    %v2566 = vmax.f32 %v2564, %v2565
    %v2567 = vrot.slane %v2566, 2
    %v2568 = vmax.f32 %v2566, %v2567
    %v2569 = vrot.slane %v2568, 1
    %v2570 = vmax.f32 %v2568, %v2569
    %v2571 = vsel %vm2311, %v2220, -inf
    %v2572 = vrot.slane %v2571, 4
    %v2573 = vmax.f32 %v2571, %v2572
    %v2574 = vrot.slane %v2573, 2
    %v2575 = vmax.f32 %v2573, %v2574
    %v2576 = vrot.slane %v2575, 1
    %v2577 = vmax.f32 %v2575, %v2576
    %v2578 = vsel %vm2311, %v2221, -inf
    %v2579 = vrot.slane %v2578, 4
    %v2580 = vmax.f32 %v2578, %v2579
    %v2581 = vrot.slane %v2580, 2
    %v2582 = vmax.f32 %v2580, %v2581
    %v2583 = vrot.slane %v2582, 1
    %v2584 = vmax.f32 %v2582, %v2583
    %v2585 = vsel %vm2311, %v2222, -inf
    %v2586 = vrot.slane %v2585, 4
    %v2587 = vmax.f32 %v2585, %v2586
    %v2588 = vrot.slane %v2587, 2
    %v2589 = vmax.f32 %v2587, %v2588
    %v2590 = vrot.slane %v2589, 1
    %v2591 = vmax.f32 %v2589, %v2590
    %v2592 = vsel %vm2311, %v2223, -inf
    %v2593 = vrot.slane %v2592, 4
    %v2594 = vmax.f32 %v2592, %v2593
    %v2595 = vrot.slane %v2594, 2
    %v2596 = vmax.f32 %v2594, %v2595
    %v2597 = vrot.slane %v2596, 1
    %v2598 = vmax.f32 %v2596, %v2597
    %v2599 = vsel %vm2311, %v2224, -inf
    %v2600 = vrot.slane %v2599, 4
    %v2601 = vmax.f32 %v2599, %v2600
    %v2602 = vrot.slane %v2601, 2
    %v2603 = vmax.f32 %v2601, %v2602
    %v2604 = vrot.slane %v2603, 1
    %v2605 = vmax.f32 %v2603, %v2604
    %v2606 = vsel %vm2311, %v2225, -inf
    %v2607 = vrot.slane %v2606, 4
    %v2608 = vmax.f32 %v2606, %v2607
    %v2609 = vrot.slane %v2608, 2
    %v2610 = vmax.f32 %v2608, %v2609
    %v2611 = vrot.slane %v2610, 1
    %v2612 = vmax.f32 %v2610, %v2611
    %v2613 = vsel %vm2311, %v2226, -inf
    %v2614 = vrot.slane %v2613, 4
    %v2615 = vmax.f32 %v2613, %v2614
    %v2616 = vrot.slane %v2615, 2
    %v2617 = vmax.f32 %v2615, %v2616
    %v2618 = vrot.slane %v2617, 1
    %v2619 = vmax.f32 %v2617, %v2618
    %v2620 = vsel %vm2311, %v2227, -inf
    %v2621 = vrot.slane %v2620, 4
    %v2622 = vmax.f32 %v2620, %v2621
    %v2623 = vrot.slane %v2622, 2
    %v2624 = vmax.f32 %v2622, %v2623
    %v2625 = vrot.slane %v2624, 1
    %v2626 = vmax.f32 %v2624, %v2625
    %v2627 = vsel %vm2311, %v2228, -inf
    %v2628 = vrot.slane %v2627, 4
    %v2629 = vmax.f32 %v2627, %v2628
    %v2630 = vrot.slane %v2629, 2
    %v2631 = vmax.f32 %v2629, %v2630
    %v2632 = vrot.slane %v2631, 1
    %v2633 = vmax.f32 %v2631, %v2632
    %v2634 = vsel %vm2311, %v2229, -inf
    %v2635 = vrot.slane %v2634, 4
    %v2636 = vmax.f32 %v2634, %v2635
    %v2637 = vrot.slane %v2636, 2
    %v2638 = vmax.f32 %v2636, %v2637
    %v2639 = vrot.slane %v2638, 1
    %v2640 = vmax.f32 %v2638, %v2639
    %v2641 = vsel %vm2311, %v2230, -inf
    %v2642 = vrot.slane %v2641, 4
    %v2643 = vmax.f32 %v2641, %v2642
    %v2644 = vrot.slane %v2643, 2
    %v2645 = vmax.f32 %v2643, %v2644
    %v2646 = vrot.slane %v2645, 1
    %v2647 = vmax.f32 %v2645, %v2646
    %v2648 = vsel %vm2311, %v2231, -inf
    %v2649 = vrot.slane %v2648, 4
    %v2650 = vmax.f32 %v2648, %v2649
    %v2651 = vrot.slane %v2650, 2
    %v2652 = vmax.f32 %v2650, %v2651
    %v2653 = vrot.slane %v2652, 1
    %v2654 = vmax.f32 %v2652, %v2653
    %v2655 = vsel %vm2311, %v2232, -inf
    %v2656 = vrot.slane %v2655, 4
    %v2657 = vmax.f32 %v2655, %v2656
    %v2658 = vrot.slane %v2657, 2
    %v2659 = vmax.f32 %v2657, %v2658
    %v2660 = vrot.slane %v2659, 1
    %v2661 = vmax.f32 %v2659, %v2660
    %v2662 = vsel %vm2311, %v2233, -inf
    %v2663 = vrot.slane %v2662, 4
    %v2664 = vmax.f32 %v2662, %v2663
    %v2665 = vrot.slane %v2664, 2
    %v2666 = vmax.f32 %v2664, %v2665
    %v2667 = vrot.slane %v2666, 1
    %v2668 = vmax.f32 %v2666, %v2667
    %v2669 = vsel %vm2311, %v2234, -inf
    %v2670 = vrot.slane %v2669, 4
    %v2671 = vmax.f32 %v2669, %v2670
    %v2672 = vrot.slane %v2671, 2
    %v2673 = vmax.f32 %v2671, %v2672
    %v2674 = vrot.slane %v2673, 1
    %v2675 = vmax.f32 %v2673, %v2674
    %v2676 = vsel %vm2311, %v2235, -inf
    %v2677 = vrot.slane %v2676, 4
    %v2678 = vmax.f32 %v2676, %v2677
    %v2679 = vrot.slane %v2678, 2
    %v2680 = vmax.f32 %v2678, %v2679
    %v2681 = vrot.slane %v2680, 1
    %v2682 = vmax.f32 %v2680, %v2681
    %v2683 = vsel %vm2311, %v2236, -inf
    %v2684 = vrot.slane %v2683, 4
    %v2685 = vmax.f32 %v2683, %v2684
    %v2686 = vrot.slane %v2685, 2
    %v2687 = vmax.f32 %v2685, %v2686
    %v2688 = vrot.slane %v2687, 1
    %v2689 = vmax.f32 %v2687, %v2688
    %v2690 = vsel %vm2311, %v2237, -inf
    %v2691 = vrot.slane %v2690, 4
    %v2692 = vmax.f32 %v2690, %v2691
    %v2693 = vrot.slane %v2692, 2
    %v2694 = vmax.f32 %v2692, %v2693
    %v2695 = vrot.slane %v2694, 1
    %v2696 = vmax.f32 %v2694, %v2695
    %v2697 = vsel %vm2311, %v2238, -inf
    %v2698 = vrot.slane %v2697, 4
    %v2699 = vmax.f32 %v2697, %v2698
    %v2700 = vrot.slane %v2699, 2
    %v2701 = vmax.f32 %v2699, %v2700
    %v2702 = vrot.slane %v2701, 1
    %v2703 = vmax.f32 %v2701, %v2702
    %v2704 = vsel %vm2311, %v2239, -inf
    %v2705 = vrot.slane %v2704, 4
    %v2706 = vmax.f32 %v2704, %v2705
    %v2707 = vrot.slane %v2706, 2
    %v2708 = vmax.f32 %v2706, %v2707
    %v2709 = vrot.slane %v2708, 1
    %v2710 = vmax.f32 %v2708, %v2709
    %v2711 = vsel %vm2311, %v2240, -inf
    %v2712 = vrot.slane %v2711, 4
    %v2713 = vmax.f32 %v2711, %v2712
    %v2714 = vrot.slane %v2713, 2
    %v2715 = vmax.f32 %v2713, %v2714
    %v2716 = vrot.slane %v2715, 1
    %v2717 = vmax.f32 %v2715, %v2716
    %v2718 = vsel %vm2311, %v2241, -inf
    %v2719 = vrot.slane %v2718, 4
    %v2720 = vmax.f32 %v2718, %v2719
    %v2721 = vrot.slane %v2720, 2
    %v2722 = vmax.f32 %v2720, %v2721
    %v2723 = vrot.slane %v2722, 1
    %v2724 = vmax.f32 %v2722, %v2723
    %v2725 = vsel %vm2311, %v2242, -inf
    %v2726 = vrot.slane %v2725, 4
    %v2727 = vmax.f32 %v2725, %v2726
    %v2728 = vrot.slane %v2727, 2
    %v2729 = vmax.f32 %v2727, %v2728
    %v2730 = vrot.slane %v2729, 1
    %v2731 = vmax.f32 %v2729, %v2730
    %v2732 = vsel %vm2311, %v2243, -inf
    %v2733 = vrot.slane %v2732, 4
    %v2734 = vmax.f32 %v2732, %v2733
    %v2735 = vrot.slane %v2734, 2
    %v2736 = vmax.f32 %v2734, %v2735
    %v2737 = vrot.slane %v2736, 1
    %v2738 = vmax.f32 %v2736, %v2737
    %v2739 = vsel %vm2311, %v2244, -inf
    %v2740 = vrot.slane %v2739, 4
    %v2741 = vmax.f32 %v2739, %v2740
    %v2742 = vrot.slane %v2741, 2
    %v2743 = vmax.f32 %v2741, %v2742
    %v2744 = vrot.slane %v2743, 1
    %v2745 = vmax.f32 %v2743, %v2744
    %v2746 = vsel %vm2311, %v2245, -inf
    %v2747 = vrot.slane %v2746, 4
    %v2748 = vmax.f32 %v2746, %v2747
    %v2749 = vrot.slane %v2748, 2
    %v2750 = vmax.f32 %v2748, %v2749
    %v2751 = vrot.slane %v2750, 1
    %v2752 = vmax.f32 %v2750, %v2751
    %v2753 = vsel %vm2311, %v2246, -inf
    %v2754 = vrot.slane %v2753, 4
    %v2755 = vmax.f32 %v2753, %v2754
    %v2756 = vrot.slane %v2755, 2
    %v2757 = vmax.f32 %v2755, %v2756
    %v2758 = vrot.slane %v2757, 1
    %v2759 = vmax.f32 %v2757, %v2758
    %v2760 = vsel %vm2311, %v2247, -inf
    %v2761 = vrot.slane %v2760, 4
    %v2762 = vmax.f32 %v2760, %v2761
    %v2763 = vrot.slane %v2762, 2
    %v2764 = vmax.f32 %v2762, %v2763
    %v2765 = vrot.slane %v2764, 1
    %v2766 = vmax.f32 %v2764, %v2765
    %v2767 = vsel %vm2311, %v2248, -inf
    %v2768 = vrot.slane %v2767, 4
    %v2769 = vmax.f32 %v2767, %v2768
    %v2770 = vrot.slane %v2769, 2
    %v2771 = vmax.f32 %v2769, %v2770
    %v2772 = vrot.slane %v2771, 1
    %v2773 = vmax.f32 %v2771, %v2772
    %v2774 = vsel %vm2311, %v2249, -inf
    %v2775 = vrot.slane %v2774, 4
    %v2776 = vmax.f32 %v2774, %v2775
    %v2777 = vrot.slane %v2776, 2
    %v2778 = vmax.f32 %v2776, %v2777
    %v2779 = vrot.slane %v2778, 1
    %v2780 = vmax.f32 %v2778, %v2779
    %v2781 = vsel %vm2311, %v2250, -inf
    %v2782 = vrot.slane %v2781, 4
    %v2783 = vmax.f32 %v2781, %v2782
    %v2784 = vrot.slane %v2783, 2
    %v2785 = vmax.f32 %v2783, %v2784
    %v2786 = vrot.slane %v2785, 1
    %v2787 = vmax.f32 %v2785, %v2786
    %v2788 = vsel %vm2311, %v2251, -inf
    %v2789 = vrot.slane %v2788, 4
    %v2790 = vmax.f32 %v2788, %v2789
    %v2791 = vrot.slane %v2790, 2
    %v2792 = vmax.f32 %v2790, %v2791
    %v2793 = vrot.slane %v2792, 1
    %v2794 = vmax.f32 %v2792, %v2793
    %v2795 = vsel %vm2311, %v2252, -inf
    %v2796 = vrot.slane %v2795, 4
    %v2797 = vmax.f32 %v2795, %v2796
    %v2798 = vrot.slane %v2797, 2
    %v2799 = vmax.f32 %v2797, %v2798
    %v2800 = vrot.slane %v2799, 1
    %v2801 = vmax.f32 %v2799, %v2800
    %v2802 = vsel %vm2311, %v2253, -inf
    %v2803 = vrot.slane %v2802, 4
    %v2804 = vmax.f32 %v2802, %v2803
    %v2805 = vrot.slane %v2804, 2
    %v2806 = vmax.f32 %v2804, %v2805
    %v2807 = vrot.slane %v2806, 1
    %v2808 = vmax.f32 %v2806, %v2807
    %v2809 = vsel %vm2311, %v2254, -inf
    %v2810 = vrot.slane %v2809, 4
    %v2811 = vmax.f32 %v2809, %v2810
    %v2812 = vrot.slane %v2811, 2
    %v2813 = vmax.f32 %v2811, %v2812
    %v2814 = vrot.slane %v2813, 1
    %v2815 = vmax.f32 %v2813, %v2814
    %v2816 = vsel %vm2311, %v2255, -inf
    %v2817 = vrot.slane %v2816, 4
    %v2818 = vmax.f32 %v2816, %v2817
    %v2819 = vrot.slane %v2818, 2
    %v2820 = vmax.f32 %v2818, %v2819
    %v2821 = vrot.slane %v2820, 1
    %v2822 = vmax.f32 %v2820, %v2821
    %v2823 = vsel %vm2311, %v2256, -inf
    %v2824 = vrot.slane %v2823, 4
    %v2825 = vmax.f32 %v2823, %v2824
    %v2826 = vrot.slane %v2825, 2
    %v2827 = vmax.f32 %v2825, %v2826
    %v2828 = vrot.slane %v2827, 1
    %v2829 = vmax.f32 %v2827, %v2828
    %v2830 = vsel %vm2311, %v2257, -inf
    %v2831 = vrot.slane %v2830, 4
    %v2832 = vmax.f32 %v2830, %v2831
    %v2833 = vrot.slane %v2832, 2
    %v2834 = vmax.f32 %v2832, %v2833
    %v2835 = vrot.slane %v2834, 1
    %v2836 = vmax.f32 %v2834, %v2835
    %v2837 = vsel %vm2311, %v2258, -inf
    %v2838 = vrot.slane %v2837, 4
    %v2839 = vmax.f32 %v2837, %v2838
    %v2840 = vrot.slane %v2839, 2
    %v2841 = vmax.f32 %v2839, %v2840
    %v2842 = vrot.slane %v2841, 1
    %v2843 = vmax.f32 %v2841, %v2842
    %v2844 = vsel %vm2311, %v2259, -inf
    %v2845 = vrot.slane %v2844, 4
    %v2846 = vmax.f32 %v2844, %v2845
    %v2847 = vrot.slane %v2846, 2
    %v2848 = vmax.f32 %v2846, %v2847
    %v2849 = vrot.slane %v2848, 1
    %v2850 = vmax.f32 %v2848, %v2849
    %v2851 = vsel %vm2311, %v2260, -inf
    %v2852 = vrot.slane %v2851, 4
    %v2853 = vmax.f32 %v2851, %v2852
    %v2854 = vrot.slane %v2853, 2
    %v2855 = vmax.f32 %v2853, %v2854
    %v2856 = vrot.slane %v2855, 1
    %v2857 = vmax.f32 %v2855, %v2856
    %v2858 = vsel %vm2311, %v2261, -inf
    %v2859 = vrot.slane %v2858, 4
    %v2860 = vmax.f32 %v2858, %v2859
    %v2861 = vrot.slane %v2860, 2
    %v2862 = vmax.f32 %v2860, %v2861
    %v2863 = vrot.slane %v2862, 1
    %v2864 = vmax.f32 %v2862, %v2863
    %v2865 = vsel %vm2311, %v2262, -inf
    %v2866 = vrot.slane %v2865, 4
    %v2867 = vmax.f32 %v2865, %v2866
    %v2868 = vrot.slane %v2867, 2
    %v2869 = vmax.f32 %v2867, %v2868
    %v2870 = vrot.slane %v2869, 1
    %v2871 = vmax.f32 %v2869, %v2870
    %v2872 = vsel %vm2311, %v2263, -inf
    %v2873 = vrot.slane %v2872, 4
    %v2874 = vmax.f32 %v2872, %v2873
    %v2875 = vrot.slane %v2874, 2
    %v2876 = vmax.f32 %v2874, %v2875
    %v2877 = vrot.slane %v2876, 1
    %v2878 = vmax.f32 %v2876, %v2877
    %v2879 = vsel %vm2311, %v2264, -inf
    %v2880 = vrot.slane %v2879, 4
    %v2881 = vmax.f32 %v2879, %v2880
    %v2882 = vrot.slane %v2881, 2
    %v2883 = vmax.f32 %v2881, %v2882
    %v2884 = vrot.slane %v2883, 1
    %v2885 = vmax.f32 %v2883, %v2884
    %v2886 = vsel %vm2311, %v2265, -inf
    %v2887 = vrot.slane %v2886, 4
    %v2888 = vmax.f32 %v2886, %v2887
    %v2889 = vrot.slane %v2888, 2
    %v2890 = vmax.f32 %v2888, %v2889
    %v2891 = vrot.slane %v2890, 1
    %v2892 = vmax.f32 %v2890, %v2891
    %v2893 = vsel %vm2311, %v2266, -inf
    %v2894 = vrot.slane %v2893, 4
    %v2895 = vmax.f32 %v2893, %v2894
    %v2896 = vrot.slane %v2895, 2
    %v2897 = vmax.f32 %v2895, %v2896
    %v2898 = vrot.slane %v2897, 1
    %v2899 = vmax.f32 %v2897, %v2898
    %v2900 = vsel %vm2311, %v2267, -inf
    %v2901 = vrot.slane %v2900, 4
    %v2902 = vmax.f32 %v2900, %v2901
    %v2903 = vrot.slane %v2902, 2
    %v2904 = vmax.f32 %v2902, %v2903
    %v2905 = vrot.slane %v2904, 1
    %v2906 = vmax.f32 %v2904, %v2905
    %v2907 = vsel %vm2311, %v2268, -inf
    %v2908 = vrot.slane %v2907, 4
    %v2909 = vmax.f32 %v2907, %v2908
    %v2910 = vrot.slane %v2909, 2
    %v2911 = vmax.f32 %v2909, %v2910
    %v2912 = vrot.slane %v2911, 1
    %v2913 = vmax.f32 %v2911, %v2912
    %v2914 = vsel %vm2311, %v2269, -inf
    %v2915 = vrot.slane %v2914, 4
    %v2916 = vmax.f32 %v2914, %v2915
    %v2917 = vrot.slane %v2916, 2
    %v2918 = vmax.f32 %v2916, %v2917
    %v2919 = vrot.slane %v2918, 1
    %v2920 = vmax.f32 %v2918, %v2919
    %v2921 = vsel %vm2311, %v2270, -inf
    %v2922 = vrot.slane %v2921, 4
    %v2923 = vmax.f32 %v2921, %v2922
    %v2924 = vrot.slane %v2923, 2
    %v2925 = vmax.f32 %v2923, %v2924
    %v2926 = vrot.slane %v2925, 1
    %v2927 = vmax.f32 %v2925, %v2926
    %v2928 = vsel %vm2311, %v2271, -inf
    %v2929 = vrot.slane %v2928, 4
    %v2930 = vmax.f32 %v2928, %v2929
    %v2931 = vrot.slane %v2930, 2
    %v2932 = vmax.f32 %v2930, %v2931
    %v2933 = vrot.slane %v2932, 1
    %v2934 = vmax.f32 %v2932, %v2933
    %v2935 = vsel %vm2311, %v2272, -inf
    %v2936 = vrot.slane %v2935, 4
    %v2937 = vmax.f32 %v2935, %v2936
    %v2938 = vrot.slane %v2937, 2
    %v2939 = vmax.f32 %v2937, %v2938
    %v2940 = vrot.slane %v2939, 1
    %v2941 = vmax.f32 %v2939, %v2940
    %v2942 = vsel %vm2311, %v2273, -inf
    %v2943 = vrot.slane %v2942, 4
    %v2944 = vmax.f32 %v2942, %v2943
    %v2945 = vrot.slane %v2944, 2
    %v2946 = vmax.f32 %v2944, %v2945
    %v2947 = vrot.slane %v2946, 1
    %v2948 = vmax.f32 %v2946, %v2947
    %v2949 = vsel %vm2311, %v2274, -inf
    %v2950 = vrot.slane %v2949, 4
    %v2951 = vmax.f32 %v2949, %v2950
    %v2952 = vrot.slane %v2951, 2
    %v2953 = vmax.f32 %v2951, %v2952
    %v2954 = vrot.slane %v2953, 1
    %v2955 = vmax.f32 %v2953, %v2954
    %v2956 = vsel %vm2311, %v2275, -inf
    %v2957 = vrot.slane %v2956, 4
    %v2958 = vmax.f32 %v2956, %v2957
    %v2959 = vrot.slane %v2958, 2
    %v2960 = vmax.f32 %v2958, %v2959
    %v2961 = vrot.slane %v2960, 1
    %v2962 = vmax.f32 %v2960, %v2961
    %v2963 = vsel %vm2311, %v2276, -inf
    %v2964 = vrot.slane %v2963, 4
    %v2965 = vmax.f32 %v2963, %v2964
    %v2966 = vrot.slane %v2965, 2
    %v2967 = vmax.f32 %v2965, %v2966
    %v2968 = vrot.slane %v2967, 1
    %v2969 = vmax.f32 %v2967, %v2968
    %v2970 = vsel %vm2311, %v2277, -inf
    %v2971 = vrot.slane %v2970, 4
    %v2972 = vmax.f32 %v2970, %v2971
    %v2973 = vrot.slane %v2972, 2
    %v2974 = vmax.f32 %v2972, %v2973
    %v2975 = vrot.slane %v2974, 1
    %v2976 = vmax.f32 %v2974, %v2975
    %v2977 = vsel %vm2311, %v2278, -inf
    %v2978 = vrot.slane %v2977, 4
    %v2979 = vmax.f32 %v2977, %v2978
    %v2980 = vrot.slane %v2979, 2
    %v2981 = vmax.f32 %v2979, %v2980
    %v2982 = vrot.slane %v2981, 1
    %v2983 = vmax.f32 %v2981, %v2982
    %v2984 = vsel %vm2311, %v2279, -inf
    %v2985 = vrot.slane %v2984, 4
    %v2986 = vmax.f32 %v2984, %v2985
    %v2987 = vrot.slane %v2986, 2
    %v2988 = vmax.f32 %v2986, %v2987
    %v2989 = vrot.slane %v2988, 1
    %v2990 = vmax.f32 %v2988, %v2989
    %v2991 = vsel %vm2311, %v2280, -inf
    %v2992 = vrot.slane %v2991, 4
    %v2993 = vmax.f32 %v2991, %v2992
    %v2994 = vrot.slane %v2993, 2
    %v2995 = vmax.f32 %v2993, %v2994
    %v2996 = vrot.slane %v2995, 1
    %v2997 = vmax.f32 %v2995, %v2996
    %v2998 = vsel %vm2311, %v2281, -inf
    %v2999 = vrot.slane %v2998, 4
    %v3000 = vmax.f32 %v2998, %v2999
    %v3001 = vrot.slane %v3000, 2
    %v3002 = vmax.f32 %v3000, %v3001
    %v3003 = vrot.slane %v3002, 1
    %v3004 = vmax.f32 %v3002, %v3003
    %v3005 = vsel %vm2311, %v2282, -inf
    %v3006 = vrot.slane %v3005, 4
    %v3007 = vmax.f32 %v3005, %v3006
    %v3008 = vrot.slane %v3007, 2
    %v3009 = vmax.f32 %v3007, %v3008
    %v3010 = vrot.slane %v3009, 1
    %v3011 = vmax.f32 %v3009, %v3010
    %v3012 = vsel %vm2311, %v2283, -inf
    %v3013 = vrot.slane %v3012, 4
    %v3014 = vmax.f32 %v3012, %v3013
    %v3015 = vrot.slane %v3014, 2
    %v3016 = vmax.f32 %v3014, %v3015
    %v3017 = vrot.slane %v3016, 1
    %v3018 = vmax.f32 %v3016, %v3017
    %v3019 = vsel %vm2311, %v2284, -inf
    %v3020 = vrot.slane %v3019, 4
    %v3021 = vmax.f32 %v3019, %v3020
    %v3022 = vrot.slane %v3021, 2
    %v3023 = vmax.f32 %v3021, %v3022
    %v3024 = vrot.slane %v3023, 1
    %v3025 = vmax.f32 %v3023, %v3024
    %v3026 = vsel %vm2311, %v2285, -inf
    %v3027 = vrot.slane %v3026, 4
    %v3028 = vmax.f32 %v3026, %v3027
    %v3029 = vrot.slane %v3028, 2
    %v3030 = vmax.f32 %v3028, %v3029
    %v3031 = vrot.slane %v3030, 1
    %v3032 = vmax.f32 %v3030, %v3031
    %v3033 = vsel %vm2311, %v2286, -inf
    %v3034 = vrot.slane %v3033, 4
    %v3035 = vmax.f32 %v3033, %v3034
    %v3036 = vrot.slane %v3035, 2
    %v3037 = vmax.f32 %v3035, %v3036
    %v3038 = vrot.slane %v3037, 1
    %v3039 = vmax.f32 %v3037, %v3038
    %v3040 = vsel %vm2311, %v2287, -inf
    %v3041 = vrot.slane %v3040, 4
    %v3042 = vmax.f32 %v3040, %v3041
    %v3043 = vrot.slane %v3042, 2
    %v3044 = vmax.f32 %v3042, %v3043
    %v3045 = vrot.slane %v3044, 1
    %v3046 = vmax.f32 %v3044, %v3045
    %v3047 = vsel %vm2311, %v2288, -inf
    %v3048 = vrot.slane %v3047, 4
    %v3049 = vmax.f32 %v3047, %v3048
    %v3050 = vrot.slane %v3049, 2
    %v3051 = vmax.f32 %v3049, %v3050
    %v3052 = vrot.slane %v3051, 1
    %v3053 = vmax.f32 %v3051, %v3052
    %v3054 = vsel %vm2311, %v2289, -inf
    %v3055 = vrot.slane %v3054, 4
    %v3056 = vmax.f32 %v3054, %v3055
    %v3057 = vrot.slane %v3056, 2
    %v3058 = vmax.f32 %v3056, %v3057
    %v3059 = vrot.slane %v3058, 1
    %v3060 = vmax.f32 %v3058, %v3059
    %v3061 = vsel %vm2311, %v2290, -inf
    %v3062 = vrot.slane %v3061, 4
    %v3063 = vmax.f32 %v3061, %v3062
    %v3064 = vrot.slane %v3063, 2
    %v3065 = vmax.f32 %v3063, %v3064
    %v3066 = vrot.slane %v3065, 1
    %v3067 = vmax.f32 %v3065, %v3066
    %v3068 = vsel %vm2311, %v2291, -inf
    %v3069 = vrot.slane %v3068, 4
    %v3070 = vmax.f32 %v3068, %v3069
    %v3071 = vrot.slane %v3070, 2
    %v3072 = vmax.f32 %v3070, %v3071
    %v3073 = vrot.slane %v3072, 1
    %v3074 = vmax.f32 %v3072, %v3073
    %v3075 = vsel %vm2311, %v2292, -inf
    %v3076 = vrot.slane %v3075, 4
    %v3077 = vmax.f32 %v3075, %v3076
    %v3078 = vrot.slane %v3077, 2
    %v3079 = vmax.f32 %v3077, %v3078
    %v3080 = vrot.slane %v3079, 1
    %v3081 = vmax.f32 %v3079, %v3080
    %v3082 = vsel %vm2311, %v2293, -inf
    %v3083 = vrot.slane %v3082, 4
    %v3084 = vmax.f32 %v3082, %v3083
    %v3085 = vrot.slane %v3084, 2
    %v3086 = vmax.f32 %v3084, %v3085
    %v3087 = vrot.slane %v3086, 1
    %v3088 = vmax.f32 %v3086, %v3087
    %v3089 = vsel %vm2311, %v2294, -inf
    %v3090 = vrot.slane %v3089, 4
    %v3091 = vmax.f32 %v3089, %v3090
    %v3092 = vrot.slane %v3091, 2
    %v3093 = vmax.f32 %v3091, %v3092
    %v3094 = vrot.slane %v3093, 1
    %v3095 = vmax.f32 %v3093, %v3094
    %v3096 = vsel %vm2311, %v2295, -inf
    %v3097 = vrot.slane %v3096, 4
    %v3098 = vmax.f32 %v3096, %v3097
    %v3099 = vrot.slane %v3098, 2
    %v3100 = vmax.f32 %v3098, %v3099
    %v3101 = vrot.slane %v3100, 1
    %v3102 = vmax.f32 %v3100, %v3101
    %v3103 = vsel %vm2311, %v2296, -inf
    %v3104 = vrot.slane %v3103, 4
    %v3105 = vmax.f32 %v3103, %v3104
    %v3106 = vrot.slane %v3105, 2
    %v3107 = vmax.f32 %v3105, %v3106
    %v3108 = vrot.slane %v3107, 1
    %v3109 = vmax.f32 %v3107, %v3108
    %v3110 = vsel %vm2311, %v2297, -inf
    %v3111 = vrot.slane %v3110, 4
    %v3112 = vmax.f32 %v3110, %v3111
    %v3113 = vrot.slane %v3112, 2
    %v3114 = vmax.f32 %v3112, %v3113
    %v3115 = vrot.slane %v3114, 1
    %v3116 = vmax.f32 %v3114, %v3115
    %v3117 = vsel %vm2311, %v2298, -inf
    %v3118 = vrot.slane %v3117, 4
    %v3119 = vmax.f32 %v3117, %v3118
    %v3120 = vrot.slane %v3119, 2
    %v3121 = vmax.f32 %v3119, %v3120
    %v3122 = vrot.slane %v3121, 1
    %v3123 = vmax.f32 %v3121, %v3122
    %v3124 = vsel %vm2311, %v2299, -inf
    %v3125 = vrot.slane %v3124, 4
    %v3126 = vmax.f32 %v3124, %v3125
    %v3127 = vrot.slane %v3126, 2
    %v3128 = vmax.f32 %v3126, %v3127
    %v3129 = vrot.slane %v3128, 1
    %v3130 = vmax.f32 %v3128, %v3129
    %v3131 = vsel %vm2311, %v2300, -inf
    %v3132 = vrot.slane %v3131, 4
    %v3133 = vmax.f32 %v3131, %v3132
    %v3134 = vrot.slane %v3133, 2
    %v3135 = vmax.f32 %v3133, %v3134
    %v3136 = vrot.slane %v3135, 1
    %v3137 = vmax.f32 %v3135, %v3136
    %v3138 = vsel %vm2311, %v2301, -inf
    %v3139 = vrot.slane %v3138, 4
    %v3140 = vmax.f32 %v3138, %v3139
    %v3141 = vrot.slane %v3140, 2
    %v3142 = vmax.f32 %v3140, %v3141
    %v3143 = vrot.slane %v3142, 1
    %v3144 = vmax.f32 %v3142, %v3143
    %v3145 = vsel %vm2311, %v2302, -inf
    %v3146 = vrot.slane %v3145, 4
    %v3147 = vmax.f32 %v3145, %v3146
    %v3148 = vrot.slane %v3147, 2
    %v3149 = vmax.f32 %v3147, %v3148
    %v3150 = vrot.slane %v3149, 1
    %v3151 = vmax.f32 %v3149, %v3150
    %v3152 = vsel %vm2311, %v2303, -inf
    %v3153 = vrot.slane %v3152, 4
    %v3154 = vmax.f32 %v3152, %v3153
    %v3155 = vrot.slane %v3154, 2
    %v3156 = vmax.f32 %v3154, %v3155
    %v3157 = vrot.slane %v3156, 1
    %v3158 = vmax.f32 %v3156, %v3157
    %v3159 = vsel %vm2311, %v2304, -inf
    %v3160 = vrot.slane %v3159, 4
    %v3161 = vmax.f32 %v3159, %v3160
    %v3162 = vrot.slane %v3161, 2
    %v3163 = vmax.f32 %v3161, %v3162
    %v3164 = vrot.slane %v3163, 1
    %v3165 = vmax.f32 %v3163, %v3164
    %v3166 = vsel %vm2311, %v2305, -inf
    %v3167 = vrot.slane %v3166, 4
    %v3168 = vmax.f32 %v3166, %v3167
    %v3169 = vrot.slane %v3168, 2
    %v3170 = vmax.f32 %v3168, %v3169
    %v3171 = vrot.slane %v3170, 1
    %v3172 = vmax.f32 %v3170, %v3171
    %v3173 = vsel %vm2311, %v2306, -inf
    %v3174 = vrot.slane %v3173, 4
    %v3175 = vmax.f32 %v3173, %v3174
    %v3176 = vrot.slane %v3175, 2
    %v3177 = vmax.f32 %v3175, %v3176
    %v3178 = vrot.slane %v3177, 1
    %v3179 = vmax.f32 %v3177, %v3178
    %v3180 = vsel %vm2311, %v2307, -inf
    %v3181 = vrot.slane %v3180, 4
    %v3182 = vmax.f32 %v3180, %v3181
    %v3183 = vrot.slane %v3182, 2
    %v3184 = vmax.f32 %v3182, %v3183
    %v3185 = vrot.slane %v3184, 1
    %v3186 = vmax.f32 %v3184, %v3185
    %v3187 = vsel %vm2311, %v2308, -inf
    %v3188 = vrot.slane %v3187, 4
    %v3189 = vmax.f32 %v3187, %v3188
    %v3190 = vrot.slane %v3189, 2
    %v3191 = vmax.f32 %v3189, %v3190
    %v3192 = vrot.slane %v3191, 1
    %v3193 = vmax.f32 %v3191, %v3192
    %v3194 = vsel %vm2311, %v2309, -inf
    %v3195 = vrot.slane %v3194, 4
    %v3196 = vmax.f32 %v3194, %v3195
    %v3197 = vrot.slane %v3196, 2
    %v3198 = vmax.f32 %v3196, %v3197
    %v3199 = vrot.slane %v3198, 1
    %v3200 = vmax.f32 %v3198, %v3199
    %v3201 = vsel %vm2311, %v2310, -inf
    %v3202 = vrot.slane %v3201, 4
    %v3203 = vmax.f32 %v3201, %v3202
    %v3204 = vrot.slane %v3203, 2
    %v3205 = vmax.f32 %v3203, %v3204
    %v3206 = vrot.slane %v3205, 1
    %v3207 = vmax.f32 %v3205, %v3206
    %v3208 = vld [vmem:[%s5] sm:$0xf]
    %v3209 = vld [vmem:[%s5 + $0x4] sm:$0xf]
    %v3210 = vld [vmem:[%s5 + $0x8] sm:$0xf]
    %v3211 = vld [vmem:[%s5 + $0xc] sm:$0xf]
    %v3212 = vld [vmem:[%s5 + $0x10] sm:$0xf]
    %v3213 = vld [vmem:[%s5 + $0x14] sm:$0xf]
    %v3214 = vld [vmem:[%s5 + $0x18] sm:$0xf]
    %v3215 = vld [vmem:[%s5 + $0x1c] sm:$0xf]
    %v3216 = vld [vmem:[%s5 + $0x20] sm:$0xf]
    %v3217 = vld [vmem:[%s5 + $0x24] sm:$0xf]
    %v3218 = vld [vmem:[%s5 + $0x28] sm:$0xf]
    %v3219 = vld [vmem:[%s5 + $0x2c] sm:$0xf]
    %v3220 = vld [vmem:[%s5 + $0x30] sm:$0xf]
    %v3221 = vld [vmem:[%s5 + $0x34] sm:$0xf]
    %v3222 = vld [vmem:[%s5 + $0x38] sm:$0xf]
    %v3223 = vld [vmem:[%s5 + $0x3c] sm:$0xf]
    %v3224 = vld [vmem:[%s5 + $0x40] sm:$0xf]
    %v3225 = vld [vmem:[%s5 + $0x44] sm:$0xf]
    %v3226 = vld [vmem:[%s5 + $0x48] sm:$0xf]
    %v3227 = vld [vmem:[%s5 + $0x4c] sm:$0xf]
    %v3228 = vld [vmem:[%s5 + $0x50] sm:$0xf]
    %v3229 = vld [vmem:[%s5 + $0x54] sm:$0xf]
    %v3230 = vld [vmem:[%s5 + $0x58] sm:$0xf]
    %v3231 = vld [vmem:[%s5 + $0x5c] sm:$0xf]
    %v3232 = vld [vmem:[%s5 + $0x60] sm:$0xf]
    %v3233 = vld [vmem:[%s5 + $0x64] sm:$0xf]
    %v3234 = vld [vmem:[%s5 + $0x68] sm:$0xf]
    %v3235 = vld [vmem:[%s5 + $0x6c] sm:$0xf]
    %v3236 = vld [vmem:[%s5 + $0x70] sm:$0xf]
    %v3237 = vld [vmem:[%s5 + $0x74] sm:$0xf]
    %v3238 = vld [vmem:[%s5 + $0x78] sm:$0xf]
    %v3239 = vld [vmem:[%s5 + $0x7c] sm:$0xf]
    %v3240 = vld [vmem:[%s5 + $0x80] sm:$0xf]
    %v3241 = vld [vmem:[%s5 + $0x84] sm:$0xf]
    %v3242 = vld [vmem:[%s5 + $0x88] sm:$0xf]
    %v3243 = vld [vmem:[%s5 + $0x8c] sm:$0xf]
    %v3244 = vld [vmem:[%s5 + $0x90] sm:$0xf]
    %v3245 = vld [vmem:[%s5 + $0x94] sm:$0xf]
    %v3246 = vld [vmem:[%s5 + $0x98] sm:$0xf]
    %v3247 = vld [vmem:[%s5 + $0x9c] sm:$0xf]
    %v3248 = vld [vmem:[%s5 + $0xa0] sm:$0xf]
    %v3249 = vld [vmem:[%s5 + $0xa4] sm:$0xf]
    %v3250 = vld [vmem:[%s5 + $0xa8] sm:$0xf]
    %v3251 = vld [vmem:[%s5 + $0xac] sm:$0xf]
    %v3252 = vld [vmem:[%s5 + $0xb0] sm:$0xf]
    %v3253 = vld [vmem:[%s5 + $0xb4] sm:$0xf]
    %v3254 = vld [vmem:[%s5 + $0xb8] sm:$0xf]
    %v3255 = vld [vmem:[%s5 + $0xbc] sm:$0xf]
    %v3256 = vld [vmem:[%s5 + $0xc0] sm:$0xf]
    %v3257 = vld [vmem:[%s5 + $0xc4] sm:$0xf]
    %v3258 = vld [vmem:[%s5 + $0xc8] sm:$0xf]
    %v3259 = vld [vmem:[%s5 + $0xcc] sm:$0xf]
    %v3260 = vld [vmem:[%s5 + $0xd0] sm:$0xf]
    %v3261 = vld [vmem:[%s5 + $0xd4] sm:$0xf]
    %v3262 = vld [vmem:[%s5 + $0xd8] sm:$0xf]
    %v3263 = vld [vmem:[%s5 + $0xdc] sm:$0xf]
    %v3264 = vld [vmem:[%s5 + $0xe0] sm:$0xf]
    %v3265 = vld [vmem:[%s5 + $0xe4] sm:$0xf]
    %v3266 = vld [vmem:[%s5 + $0xe8] sm:$0xf]
    %v3267 = vld [vmem:[%s5 + $0xec] sm:$0xf]
    %v3268 = vld [vmem:[%s5 + $0xf0] sm:$0xf]
    %v3269 = vld [vmem:[%s5 + $0xf4] sm:$0xf]
    %v3270 = vld [vmem:[%s5 + $0xf8] sm:$0xf]
    %v3271 = vld [vmem:[%s5 + $0xfc] sm:$0xf]
    %v3272 = vld [vmem:[%s5 + $0x100] sm:$0xf]
    %v3273 = vld [vmem:[%s5 + $0x104] sm:$0xf]
    %v3274 = vld [vmem:[%s5 + $0x108] sm:$0xf]
    %v3275 = vld [vmem:[%s5 + $0x10c] sm:$0xf]
    %v3276 = vld [vmem:[%s5 + $0x110] sm:$0xf]
    %v3277 = vld [vmem:[%s5 + $0x114] sm:$0xf]
    %v3278 = vld [vmem:[%s5 + $0x118] sm:$0xf]
    %v3279 = vld [vmem:[%s5 + $0x11c] sm:$0xf]
    %v3280 = vld [vmem:[%s5 + $0x120] sm:$0xf]
    %v3281 = vld [vmem:[%s5 + $0x124] sm:$0xf]
    %v3282 = vld [vmem:[%s5 + $0x128] sm:$0xf]
    %v3283 = vld [vmem:[%s5 + $0x12c] sm:$0xf]
    %v3284 = vld [vmem:[%s5 + $0x130] sm:$0xf]
    %v3285 = vld [vmem:[%s5 + $0x134] sm:$0xf]
    %v3286 = vld [vmem:[%s5 + $0x138] sm:$0xf]
    %v3287 = vld [vmem:[%s5 + $0x13c] sm:$0xf]
    %v3288 = vld [vmem:[%s5 + $0x140] sm:$0xf]
    %v3289 = vld [vmem:[%s5 + $0x144] sm:$0xf]
    %v3290 = vld [vmem:[%s5 + $0x148] sm:$0xf]
    %v3291 = vld [vmem:[%s5 + $0x14c] sm:$0xf]
    %v3292 = vld [vmem:[%s5 + $0x150] sm:$0xf]
    %v3293 = vld [vmem:[%s5 + $0x154] sm:$0xf]
    %v3294 = vld [vmem:[%s5 + $0x158] sm:$0xf]
    %v3295 = vld [vmem:[%s5 + $0x15c] sm:$0xf]
    %v3296 = vld [vmem:[%s5 + $0x160] sm:$0xf]
    %v3297 = vld [vmem:[%s5 + $0x164] sm:$0xf]
    %v3298 = vld [vmem:[%s5 + $0x168] sm:$0xf]
    %v3299 = vld [vmem:[%s5 + $0x16c] sm:$0xf]
    %v3300 = vld [vmem:[%s5 + $0x170] sm:$0xf]
    %v3301 = vld [vmem:[%s5 + $0x174] sm:$0xf]
    %v3302 = vld [vmem:[%s5 + $0x178] sm:$0xf]
    %v3303 = vld [vmem:[%s5 + $0x17c] sm:$0xf]
    %v3304 = vld [vmem:[%s5 + $0x180] sm:$0xf]
    %v3305 = vld [vmem:[%s5 + $0x184] sm:$0xf]
    %v3306 = vld [vmem:[%s5 + $0x188] sm:$0xf]
    %v3307 = vld [vmem:[%s5 + $0x18c] sm:$0xf]
    %v3308 = vld [vmem:[%s5 + $0x190] sm:$0xf]
    %v3309 = vld [vmem:[%s5 + $0x194] sm:$0xf]
    %v3310 = vld [vmem:[%s5 + $0x198] sm:$0xf]
    %v3311 = vld [vmem:[%s5 + $0x19c] sm:$0xf]
    %v3312 = vld [vmem:[%s5 + $0x1a0] sm:$0xf]
    %v3313 = vld [vmem:[%s5 + $0x1a4] sm:$0xf]
    %v3314 = vld [vmem:[%s5 + $0x1a8] sm:$0xf]
    %v3315 = vld [vmem:[%s5 + $0x1ac] sm:$0xf]
    %v3316 = vld [vmem:[%s5 + $0x1b0] sm:$0xf]
    %v3317 = vld [vmem:[%s5 + $0x1b4] sm:$0xf]
    %v3318 = vld [vmem:[%s5 + $0x1b8] sm:$0xf]
    %v3319 = vld [vmem:[%s5 + $0x1bc] sm:$0xf]
    %v3320 = vld [vmem:[%s5 + $0x1c0] sm:$0xf]
    %v3321 = vld [vmem:[%s5 + $0x1c4] sm:$0xf]
    %v3322 = vld [vmem:[%s5 + $0x1c8] sm:$0xf]
    %v3323 = vld [vmem:[%s5 + $0x1cc] sm:$0xf]
    %v3324 = vld [vmem:[%s5 + $0x1d0] sm:$0xf]
    %v3325 = vld [vmem:[%s5 + $0x1d4] sm:$0xf]
    %v3326 = vld [vmem:[%s5 + $0x1d8] sm:$0xf]
    %v3327 = vld [vmem:[%s5 + $0x1dc] sm:$0xf]
    %v3328 = vld [vmem:[%s5 + $0x1e0] sm:$0xf]
    %v3329 = vld [vmem:[%s5 + $0x1e4] sm:$0xf]
    %v3330 = vld [vmem:[%s5 + $0x1e8] sm:$0xf]
    %v3331 = vld [vmem:[%s5 + $0x1ec] sm:$0xf]
    %v3332 = vld [vmem:[%s5 + $0x1f0] sm:$0xf]
    %v3333 = vld [vmem:[%s5 + $0x1f4] sm:$0xf]
    %v3334 = vld [vmem:[%s5 + $0x1f8] sm:$0xf]
    %v3335 = vld [vmem:[%s5 + $0x1fc] sm:$0xf]
    %v3336 = vld [vmem:[%s5 + $0x200] sm:$0xf]
    %v3337 = vld [vmem:[%s5 + $0x204] sm:$0xf]
    %v3338 = vld [vmem:[%s5 + $0x208] sm:$0xf]
    %v3339 = vld [vmem:[%s5 + $0x20c] sm:$0xf]
    %v3340 = vld [vmem:[%s5 + $0x210] sm:$0xf]
    %v3341 = vld [vmem:[%s5 + $0x214] sm:$0xf]
    %v3342 = vld [vmem:[%s5 + $0x218] sm:$0xf]
    %v3343 = vld [vmem:[%s5 + $0x21c] sm:$0xf]
    %v3344 = vld [vmem:[%s5 + $0x220] sm:$0xf]
    %v3345 = vld [vmem:[%s5 + $0x224] sm:$0xf]
    %v3346 = vld [vmem:[%s5 + $0x228] sm:$0xf]
    %v3347 = vld [vmem:[%s5 + $0x22c] sm:$0xf]
    %v3348 = vld [vmem:[%s5 + $0x230] sm:$0xf]
    %v3349 = vld [vmem:[%s5 + $0x234] sm:$0xf]
    %v3350 = vld [vmem:[%s5 + $0x238] sm:$0xf]
    %v3351 = vld [vmem:[%s5 + $0x23c] sm:$0xf]
    %v3352 = vld [vmem:[%s5 + $0x240] sm:$0xf]
    %v3353 = vld [vmem:[%s5 + $0x244] sm:$0xf]
    %v3354 = vld [vmem:[%s5 + $0x248] sm:$0xf]
    %v3355 = vld [vmem:[%s5 + $0x24c] sm:$0xf]
    %v3356 = vld [vmem:[%s5 + $0x250] sm:$0xf]
    %v3357 = vld [vmem:[%s5 + $0x254] sm:$0xf]
    %v3358 = vld [vmem:[%s5 + $0x258] sm:$0xf]
    %v3359 = vld [vmem:[%s5 + $0x25c] sm:$0xf]
    %v3360 = vld [vmem:[%s5 + $0x260] sm:$0xf]
    %v3361 = vld [vmem:[%s5 + $0x264] sm:$0xf]
    %v3362 = vld [vmem:[%s5 + $0x268] sm:$0xf]
    %v3363 = vld [vmem:[%s5 + $0x26c] sm:$0xf]
    %v3364 = vld [vmem:[%s5 + $0x270] sm:$0xf]
    %v3365 = vld [vmem:[%s5 + $0x274] sm:$0xf]
    %v3366 = vld [vmem:[%s5 + $0x278] sm:$0xf]
    %v3367 = vld [vmem:[%s5 + $0x27c] sm:$0xf]
    %v3368 = vld [vmem:[%s5 + $0x280] sm:$0xf]
    %v3369 = vld [vmem:[%s5 + $0x284] sm:$0xf]
    %v3370 = vld [vmem:[%s5 + $0x288] sm:$0xf]
    %v3371 = vld [vmem:[%s5 + $0x28c] sm:$0xf]
    %v3372 = vld [vmem:[%s5 + $0x290] sm:$0xf]
    %v3373 = vld [vmem:[%s5 + $0x294] sm:$0xf]
    %v3374 = vld [vmem:[%s5 + $0x298] sm:$0xf]
    %v3375 = vld [vmem:[%s5 + $0x29c] sm:$0xf]
    %v3376 = vld [vmem:[%s5 + $0x2a0] sm:$0xf]
    %v3377 = vld [vmem:[%s5 + $0x2a4] sm:$0xf]
    %v3378 = vld [vmem:[%s5 + $0x2a8] sm:$0xf]
    %v3379 = vld [vmem:[%s5 + $0x2ac] sm:$0xf]
    %v3380 = vld [vmem:[%s5 + $0x2b0] sm:$0xf]
    %v3381 = vld [vmem:[%s5 + $0x2b4] sm:$0xf]
    %v3382 = vld [vmem:[%s5 + $0x2b8] sm:$0xf]
    %v3383 = vld [vmem:[%s5 + $0x2bc] sm:$0xf]
    %v3384 = vld [vmem:[%s5 + $0x2c0] sm:$0xf]
    %v3385 = vld [vmem:[%s5 + $0x2c4] sm:$0xf]
    %v3386 = vld [vmem:[%s5 + $0x2c8] sm:$0xf]
    %v3387 = vld [vmem:[%s5 + $0x2cc] sm:$0xf]
    %v3388 = vld [vmem:[%s5 + $0x2d0] sm:$0xf]
    %v3389 = vld [vmem:[%s5 + $0x2d4] sm:$0xf]
    %v3390 = vld [vmem:[%s5 + $0x2d8] sm:$0xf]
    %v3391 = vld [vmem:[%s5 + $0x2dc] sm:$0xf]
    %v3392 = vld [vmem:[%s5 + $0x2e0] sm:$0xf]
    %v3393 = vld [vmem:[%s5 + $0x2e4] sm:$0xf]
    %v3394 = vld [vmem:[%s5 + $0x2e8] sm:$0xf]
    %v3395 = vld [vmem:[%s5 + $0x2ec] sm:$0xf]
    %v3396 = vld [vmem:[%s5 + $0x2f0] sm:$0xf]
    %v3397 = vld [vmem:[%s5 + $0x2f4] sm:$0xf]
    %v3398 = vld [vmem:[%s5 + $0x2f8] sm:$0xf]
    %v3399 = vld [vmem:[%s5 + $0x2fc] sm:$0xf]
    %v3400 = vld [vmem:[%s5 + $0x300] sm:$0xf]
    %v3401 = vld [vmem:[%s5 + $0x304] sm:$0xf]
    %v3402 = vld [vmem:[%s5 + $0x308] sm:$0xf]
    %v3403 = vld [vmem:[%s5 + $0x30c] sm:$0xf]
    %v3404 = vld [vmem:[%s5 + $0x310] sm:$0xf]
    %v3405 = vld [vmem:[%s5 + $0x314] sm:$0xf]
    %v3406 = vld [vmem:[%s5 + $0x318] sm:$0xf]
    %v3407 = vld [vmem:[%s5 + $0x31c] sm:$0xf]
    %v3408 = vld [vmem:[%s5 + $0x320] sm:$0xf]
    %v3409 = vld [vmem:[%s5 + $0x324] sm:$0xf]
    %v3410 = vld [vmem:[%s5 + $0x328] sm:$0xf]
    %v3411 = vld [vmem:[%s5 + $0x32c] sm:$0xf]
    %v3412 = vld [vmem:[%s5 + $0x330] sm:$0xf]
    %v3413 = vld [vmem:[%s5 + $0x334] sm:$0xf]
    %v3414 = vld [vmem:[%s5 + $0x338] sm:$0xf]
    %v3415 = vld [vmem:[%s5 + $0x33c] sm:$0xf]
    %v3416 = vld [vmem:[%s5 + $0x340] sm:$0xf]
    %v3417 = vld [vmem:[%s5 + $0x344] sm:$0xf]
    %v3418 = vld [vmem:[%s5 + $0x348] sm:$0xf]
    %v3419 = vld [vmem:[%s5 + $0x34c] sm:$0xf]
    %v3420 = vld [vmem:[%s5 + $0x350] sm:$0xf]
    %v3421 = vld [vmem:[%s5 + $0x354] sm:$0xf]
    %v3422 = vld [vmem:[%s5 + $0x358] sm:$0xf]
    %v3423 = vld [vmem:[%s5 + $0x35c] sm:$0xf]
    %v3424 = vld [vmem:[%s5 + $0x360] sm:$0xf]
    %v3425 = vld [vmem:[%s5 + $0x364] sm:$0xf]
    %v3426 = vld [vmem:[%s5 + $0x368] sm:$0xf]
    %v3427 = vld [vmem:[%s5 + $0x36c] sm:$0xf]
    %v3428 = vld [vmem:[%s5 + $0x370] sm:$0xf]
    %v3429 = vld [vmem:[%s5 + $0x374] sm:$0xf]
    %v3430 = vld [vmem:[%s5 + $0x378] sm:$0xf]
    %v3431 = vld [vmem:[%s5 + $0x37c] sm:$0xf]
    %v3432 = vld [vmem:[%s5 + $0x380] sm:$0xf]
    %v3433 = vld [vmem:[%s5 + $0x384] sm:$0xf]
    %v3434 = vld [vmem:[%s5 + $0x388] sm:$0xf]
    %v3435 = vld [vmem:[%s5 + $0x38c] sm:$0xf]
    %v3436 = vld [vmem:[%s5 + $0x390] sm:$0xf]
    %v3437 = vld [vmem:[%s5 + $0x394] sm:$0xf]
    %v3438 = vld [vmem:[%s5 + $0x398] sm:$0xf]
    %v3439 = vld [vmem:[%s5 + $0x39c] sm:$0xf]
    %v3440 = vld [vmem:[%s5 + $0x3a0] sm:$0xf]
    %v3441 = vld [vmem:[%s5 + $0x3a4] sm:$0xf]
    %v3442 = vld [vmem:[%s5 + $0x3a8] sm:$0xf]
    %v3443 = vld [vmem:[%s5 + $0x3ac] sm:$0xf]
    %v3444 = vld [vmem:[%s5 + $0x3b0] sm:$0xf]
    %v3445 = vld [vmem:[%s5 + $0x3b4] sm:$0xf]
    %v3446 = vld [vmem:[%s5 + $0x3b8] sm:$0xf]
    %v3447 = vld [vmem:[%s5 + $0x3bc] sm:$0xf]
    %v3448 = vld [vmem:[%s5 + $0x3c0] sm:$0xf]
    %v3449 = vld [vmem:[%s5 + $0x3c4] sm:$0xf]
    %v3450 = vld [vmem:[%s5 + $0x3c8] sm:$0xf]
    %v3451 = vld [vmem:[%s5 + $0x3cc] sm:$0xf]
    %v3452 = vld [vmem:[%s5 + $0x3d0] sm:$0xf]
    %v3453 = vld [vmem:[%s5 + $0x3d4] sm:$0xf]
    %v3454 = vld [vmem:[%s5 + $0x3d8] sm:$0xf]
    %v3455 = vld [vmem:[%s5 + $0x3dc] sm:$0xf]
    %v3456 = vld [vmem:[%s5 + $0x3e0] sm:$0xf]
    %v3457 = vld [vmem:[%s5 + $0x3e4] sm:$0xf]
    %v3458 = vld [vmem:[%s5 + $0x3e8] sm:$0xf]
    %v3459 = vld [vmem:[%s5 + $0x3ec] sm:$0xf]
    %v3460 = vld [vmem:[%s5 + $0x3f0] sm:$0xf]
    %v3461 = vld [vmem:[%s5 + $0x3f4] sm:$0xf]
    %v3462 = vld [vmem:[%s5 + $0x3f8] sm:$0xf]
    %v3463 = vld [vmem:[%s5 + $0x3fc] sm:$0xf]
    %v3464 = vld [vmem:[%s6] sm:$0xf]
    %v3465 = vld [vmem:[%s7] sm:$0x1]
    %v3467 = vlaneseq
    %v3468 = vshrl.u32 %v3467, 7
    %v3469 = vsub.s32 0, %v3468
    %v3470 = vrot.slane %v3465, %v3469
    %v3728 = vunpack.c.l.b16 %v3208
    %v3729 = vunpack.c.l.b16 %v3209
    %v3730 = vunpack.c.l.b16 %v3210
    %v3731 = vunpack.c.l.b16 %v3211
    %v3732 = vunpack.c.l.b16 %v3212
    %v3733 = vunpack.c.l.b16 %v3213
    %v3734 = vunpack.c.l.b16 %v3214
    %v3735 = vunpack.c.l.b16 %v3215
    %v3736 = vunpack.c.l.b16 %v3216
    %v3737 = vunpack.c.l.b16 %v3217
    %v3738 = vunpack.c.l.b16 %v3218
    %v3739 = vunpack.c.l.b16 %v3219
    %v3740 = vunpack.c.l.b16 %v3220
    %v3741 = vunpack.c.l.b16 %v3221
    %v3742 = vunpack.c.l.b16 %v3222
    %v3743 = vunpack.c.l.b16 %v3223
    %v3744 = vunpack.c.l.b16 %v3224
    %v3745 = vunpack.c.l.b16 %v3225
    %v3746 = vunpack.c.l.b16 %v3226
    %v3747 = vunpack.c.l.b16 %v3227
    %v3748 = vunpack.c.l.b16 %v3228
    %v3749 = vunpack.c.l.b16 %v3229
    %v3750 = vunpack.c.l.b16 %v3230
    %v3751 = vunpack.c.l.b16 %v3231
    %v3752 = vunpack.c.l.b16 %v3232
    %v3753 = vunpack.c.l.b16 %v3233
    %v3754 = vunpack.c.l.b16 %v3234
    %v3755 = vunpack.c.l.b16 %v3235
    %v3756 = vunpack.c.l.b16 %v3236
    %v3757 = vunpack.c.l.b16 %v3237
    %v3758 = vunpack.c.l.b16 %v3238
    %v3759 = vunpack.c.l.b16 %v3239
    %v3760 = vunpack.c.l.b16 %v3240
    %v3761 = vunpack.c.l.b16 %v3241
    %v3762 = vunpack.c.l.b16 %v3242
    %v3763 = vunpack.c.l.b16 %v3243
    %v3764 = vunpack.c.l.b16 %v3244
    %v3765 = vunpack.c.l.b16 %v3245
    %v3766 = vunpack.c.l.b16 %v3246
    %v3767 = vunpack.c.l.b16 %v3247
    %v3768 = vunpack.c.l.b16 %v3248
    %v3769 = vunpack.c.l.b16 %v3249
    %v3770 = vunpack.c.l.b16 %v3250
    %v3771 = vunpack.c.l.b16 %v3251
    %v3772 = vunpack.c.l.b16 %v3252
    %v3773 = vunpack.c.l.b16 %v3253
    %v3774 = vunpack.c.l.b16 %v3254
    %v3775 = vunpack.c.l.b16 %v3255
    %v3776 = vunpack.c.l.b16 %v3256
    %v3777 = vunpack.c.l.b16 %v3257
    %v3778 = vunpack.c.l.b16 %v3258
    %v3779 = vunpack.c.l.b16 %v3259
    %v3780 = vunpack.c.l.b16 %v3260
    %v3781 = vunpack.c.l.b16 %v3261
    %v3782 = vunpack.c.l.b16 %v3262
    %v3783 = vunpack.c.l.b16 %v3263
    %v3784 = vunpack.c.l.b16 %v3264
    %v3785 = vunpack.c.l.b16 %v3265
    %v3786 = vunpack.c.l.b16 %v3266
    %v3787 = vunpack.c.l.b16 %v3267
    %v3788 = vunpack.c.l.b16 %v3268
    %v3789 = vunpack.c.l.b16 %v3269
    %v3790 = vunpack.c.l.b16 %v3270
    %v3791 = vunpack.c.l.b16 %v3271
    %v3792 = vunpack.c.l.b16 %v3272
    %v3793 = vunpack.c.l.b16 %v3273
    %v3794 = vunpack.c.l.b16 %v3274
    %v3795 = vunpack.c.l.b16 %v3275
    %v3796 = vunpack.c.l.b16 %v3276
    %v3797 = vunpack.c.l.b16 %v3277
    %v3798 = vunpack.c.l.b16 %v3278
    %v3799 = vunpack.c.l.b16 %v3279
    %v3800 = vunpack.c.l.b16 %v3280
    %v3801 = vunpack.c.l.b16 %v3281
    %v3802 = vunpack.c.l.b16 %v3282
    %v3803 = vunpack.c.l.b16 %v3283
    %v3804 = vunpack.c.l.b16 %v3284
    %v3805 = vunpack.c.l.b16 %v3285
    %v3806 = vunpack.c.l.b16 %v3286
    %v3807 = vunpack.c.l.b16 %v3287
    %v3808 = vunpack.c.l.b16 %v3288
    %v3809 = vunpack.c.l.b16 %v3289
    %v3810 = vunpack.c.l.b16 %v3290
    %v3811 = vunpack.c.l.b16 %v3291
    %v3812 = vunpack.c.l.b16 %v3292
    %v3813 = vunpack.c.l.b16 %v3293
    %v3814 = vunpack.c.l.b16 %v3294
    %v3815 = vunpack.c.l.b16 %v3295
    %v3816 = vunpack.c.l.b16 %v3296
    %v3817 = vunpack.c.l.b16 %v3297
    %v3818 = vunpack.c.l.b16 %v3298
    %v3819 = vunpack.c.l.b16 %v3299
    %v3820 = vunpack.c.l.b16 %v3300
    %v3821 = vunpack.c.l.b16 %v3301
    %v3822 = vunpack.c.l.b16 %v3302
    %v3823 = vunpack.c.l.b16 %v3303
    %v3824 = vunpack.c.l.b16 %v3304
    %v3825 = vunpack.c.l.b16 %v3305
    %v3826 = vunpack.c.l.b16 %v3306
    %v3827 = vunpack.c.l.b16 %v3307
    %v3828 = vunpack.c.l.b16 %v3308
    %v3829 = vunpack.c.l.b16 %v3309
    %v3830 = vunpack.c.l.b16 %v3310
    %v3831 = vunpack.c.l.b16 %v3311
    %v3832 = vunpack.c.l.b16 %v3312
    %v3833 = vunpack.c.l.b16 %v3313
    %v3834 = vunpack.c.l.b16 %v3314
    %v3835 = vunpack.c.l.b16 %v3315
    %v3836 = vunpack.c.l.b16 %v3316
    %v3837 = vunpack.c.l.b16 %v3317
    %v3838 = vunpack.c.l.b16 %v3318
    %v3839 = vunpack.c.l.b16 %v3319
    %v3840 = vunpack.c.l.b16 %v3320
    %v3841 = vunpack.c.l.b16 %v3321
    %v3842 = vunpack.c.l.b16 %v3322
    %v3843 = vunpack.c.l.b16 %v3323
    %v3844 = vunpack.c.l.b16 %v3324
    %v3845 = vunpack.c.l.b16 %v3325
    %v3846 = vunpack.c.l.b16 %v3326
    %v3847 = vunpack.c.l.b16 %v3327
    %v3848 = vunpack.c.l.b16 %v3328
    %v3849 = vunpack.c.l.b16 %v3329
    %v3850 = vunpack.c.l.b16 %v3330
    %v3851 = vunpack.c.l.b16 %v3331
    %v3852 = vunpack.c.l.b16 %v3332
    %v3853 = vunpack.c.l.b16 %v3333
    %v3854 = vunpack.c.l.b16 %v3334
    %v3855 = vunpack.c.l.b16 %v3335
    %v3856 = vunpack.c.l.b16 %v3336
    %v3857 = vunpack.c.l.b16 %v3337
    %v3858 = vunpack.c.l.b16 %v3338
    %v3859 = vunpack.c.l.b16 %v3339
    %v3860 = vunpack.c.l.b16 %v3340
    %v3861 = vunpack.c.l.b16 %v3341
    %v3862 = vunpack.c.l.b16 %v3342
    %v3863 = vunpack.c.l.b16 %v3343
    %v3864 = vunpack.c.l.b16 %v3344
    %v3865 = vunpack.c.l.b16 %v3345
    %v3866 = vunpack.c.l.b16 %v3346
    %v3867 = vunpack.c.l.b16 %v3347
    %v3868 = vunpack.c.l.b16 %v3348
    %v3869 = vunpack.c.l.b16 %v3349
    %v3870 = vunpack.c.l.b16 %v3350
    %v3871 = vunpack.c.l.b16 %v3351
    %v3872 = vunpack.c.l.b16 %v3352
    %v3873 = vunpack.c.l.b16 %v3353
    %v3874 = vunpack.c.l.b16 %v3354
    %v3875 = vunpack.c.l.b16 %v3355
    %v3876 = vunpack.c.l.b16 %v3356
    %v3877 = vunpack.c.l.b16 %v3357
    %v3878 = vunpack.c.l.b16 %v3358
    %v3879 = vunpack.c.l.b16 %v3359
    %v3880 = vunpack.c.l.b16 %v3360
    %v3881 = vunpack.c.l.b16 %v3361
    %v3882 = vunpack.c.l.b16 %v3362
    %v3883 = vunpack.c.l.b16 %v3363
    %v3884 = vunpack.c.l.b16 %v3364
    %v3885 = vunpack.c.l.b16 %v3365
    %v3886 = vunpack.c.l.b16 %v3366
    %v3887 = vunpack.c.l.b16 %v3367
    %v3888 = vunpack.c.l.b16 %v3368
    %v3889 = vunpack.c.l.b16 %v3369
    %v3890 = vunpack.c.l.b16 %v3370
    %v3891 = vunpack.c.l.b16 %v3371
    %v3892 = vunpack.c.l.b16 %v3372
    %v3893 = vunpack.c.l.b16 %v3373
    %v3894 = vunpack.c.l.b16 %v3374
    %v3895 = vunpack.c.l.b16 %v3375
    %v3896 = vunpack.c.l.b16 %v3376
    %v3897 = vunpack.c.l.b16 %v3377
    %v3898 = vunpack.c.l.b16 %v3378
    %v3899 = vunpack.c.l.b16 %v3379
    %v3900 = vunpack.c.l.b16 %v3380
    %v3901 = vunpack.c.l.b16 %v3381
    %v3902 = vunpack.c.l.b16 %v3382
    %v3903 = vunpack.c.l.b16 %v3383
    %v3904 = vunpack.c.l.b16 %v3384
    %v3905 = vunpack.c.l.b16 %v3385
    %v3906 = vunpack.c.l.b16 %v3386
    %v3907 = vunpack.c.l.b16 %v3387
    %v3908 = vunpack.c.l.b16 %v3388
    %v3909 = vunpack.c.l.b16 %v3389
    %v3910 = vunpack.c.l.b16 %v3390
    %v3911 = vunpack.c.l.b16 %v3391
    %v3912 = vunpack.c.l.b16 %v3392
    %v3913 = vunpack.c.l.b16 %v3393
    %v3914 = vunpack.c.l.b16 %v3394
    %v3915 = vunpack.c.l.b16 %v3395
    %v3916 = vunpack.c.l.b16 %v3396
    %v3917 = vunpack.c.l.b16 %v3397
    %v3918 = vunpack.c.l.b16 %v3398
    %v3919 = vunpack.c.l.b16 %v3399
    %v3920 = vunpack.c.l.b16 %v3400
    %v3921 = vunpack.c.l.b16 %v3401
    %v3922 = vunpack.c.l.b16 %v3402
    %v3923 = vunpack.c.l.b16 %v3403
    %v3924 = vunpack.c.l.b16 %v3404
    %v3925 = vunpack.c.l.b16 %v3405
    %v3926 = vunpack.c.l.b16 %v3406
    %v3927 = vunpack.c.l.b16 %v3407
    %v3928 = vunpack.c.l.b16 %v3408
    %v3929 = vunpack.c.l.b16 %v3409
    %v3930 = vunpack.c.l.b16 %v3410
    %v3931 = vunpack.c.l.b16 %v3411
    %v3932 = vunpack.c.l.b16 %v3412
    %v3933 = vunpack.c.l.b16 %v3413
    %v3934 = vunpack.c.l.b16 %v3414
    %v3935 = vunpack.c.l.b16 %v3415
    %v3936 = vunpack.c.l.b16 %v3416
    %v3937 = vunpack.c.l.b16 %v3417
    %v3938 = vunpack.c.l.b16 %v3418
    %v3939 = vunpack.c.l.b16 %v3419
    %v3940 = vunpack.c.l.b16 %v3420
    %v3941 = vunpack.c.l.b16 %v3421
    %v3942 = vunpack.c.l.b16 %v3422
    %v3943 = vunpack.c.l.b16 %v3423
    %v3944 = vunpack.c.l.b16 %v3424
    %v3945 = vunpack.c.l.b16 %v3425
    %v3946 = vunpack.c.l.b16 %v3426
    %v3947 = vunpack.c.l.b16 %v3427
    %v3948 = vunpack.c.l.b16 %v3428
    %v3949 = vunpack.c.l.b16 %v3429
    %v3950 = vunpack.c.l.b16 %v3430
    %v3951 = vunpack.c.l.b16 %v3431
    %v3952 = vunpack.c.l.b16 %v3432
    %v3953 = vunpack.c.l.b16 %v3433
    %v3954 = vunpack.c.l.b16 %v3434
    %v3955 = vunpack.c.l.b16 %v3435
    %v3956 = vunpack.c.l.b16 %v3436
    %v3957 = vunpack.c.l.b16 %v3437
    %v3958 = vunpack.c.l.b16 %v3438
    %v3959 = vunpack.c.l.b16 %v3439
    %v3960 = vunpack.c.l.b16 %v3440
    %v3961 = vunpack.c.l.b16 %v3441
    %v3962 = vunpack.c.l.b16 %v3442
    %v3963 = vunpack.c.l.b16 %v3443
    %v3964 = vunpack.c.l.b16 %v3444
    %v3965 = vunpack.c.l.b16 %v3445
    %v3966 = vunpack.c.l.b16 %v3446
    %v3967 = vunpack.c.l.b16 %v3447
    %v3968 = vunpack.c.l.b16 %v3448
    %v3969 = vunpack.c.l.b16 %v3449
    %v3970 = vunpack.c.l.b16 %v3450
    %v3971 = vunpack.c.l.b16 %v3451
    %v3972 = vunpack.c.l.b16 %v3452
    %v3973 = vunpack.c.l.b16 %v3453
    %v3974 = vunpack.c.l.b16 %v3454
    %v3975 = vunpack.c.l.b16 %v3455
    %v3976 = vunpack.c.l.b16 %v3456
    %v3977 = vunpack.c.l.b16 %v3457
    %v3978 = vunpack.c.l.b16 %v3458
    %v3979 = vunpack.c.l.b16 %v3459
    %v3980 = vunpack.c.l.b16 %v3460
    %v3981 = vunpack.c.l.b16 %v3461
    %v3982 = vunpack.c.l.b16 %v3462
    %v3983 = vunpack.c.l.b16 %v3463
    %v3984 = vpack.c.b16 %v3729, %v3728
    %v3985 = vpack.c.b16 %v3731, %v3730
    %v3986 = vpack.c.b16 %v3733, %v3732
    %v3987 = vpack.c.b16 %v3735, %v3734
    %v3988 = vpack.c.b16 %v3737, %v3736
    %v3989 = vpack.c.b16 %v3739, %v3738
    %v3990 = vpack.c.b16 %v3741, %v3740
    %v3991 = vpack.c.b16 %v3743, %v3742
    %v3992 = vpack.c.b16 %v3745, %v3744
    %v3993 = vpack.c.b16 %v3747, %v3746
    %v3994 = vpack.c.b16 %v3749, %v3748
    %v3995 = vpack.c.b16 %v3751, %v3750
    %v3996 = vpack.c.b16 %v3753, %v3752
    %v3997 = vpack.c.b16 %v3755, %v3754
    %v3998 = vpack.c.b16 %v3757, %v3756
    %v3999 = vpack.c.b16 %v3759, %v3758
    %v4000 = vpack.c.b16 %v3761, %v3760
    %v4001 = vpack.c.b16 %v3763, %v3762
    %v4002 = vpack.c.b16 %v3765, %v3764
    %v4003 = vpack.c.b16 %v3767, %v3766
    %v4004 = vpack.c.b16 %v3769, %v3768
    %v4005 = vpack.c.b16 %v3771, %v3770
    %v4006 = vpack.c.b16 %v3773, %v3772
    %v4007 = vpack.c.b16 %v3775, %v3774
    %v4008 = vpack.c.b16 %v3777, %v3776
    %v4009 = vpack.c.b16 %v3779, %v3778
    %v4010 = vpack.c.b16 %v3781, %v3780
    %v4011 = vpack.c.b16 %v3783, %v3782
    %v4012 = vpack.c.b16 %v3785, %v3784
    %v4013 = vpack.c.b16 %v3787, %v3786
    %v4014 = vpack.c.b16 %v3789, %v3788
    %v4015 = vpack.c.b16 %v3791, %v3790
    %v4016 = vpack.c.b16 %v3793, %v3792
    %v4017 = vpack.c.b16 %v3795, %v3794
    %v4018 = vpack.c.b16 %v3797, %v3796
    %v4019 = vpack.c.b16 %v3799, %v3798
    %v4020 = vpack.c.b16 %v3801, %v3800
    %v4021 = vpack.c.b16 %v3803, %v3802
    %v4022 = vpack.c.b16 %v3805, %v3804
    %v4023 = vpack.c.b16 %v3807, %v3806
    %v4024 = vpack.c.b16 %v3809, %v3808
    %v4025 = vpack.c.b16 %v3811, %v3810
    %v4026 = vpack.c.b16 %v3813, %v3812
    %v4027 = vpack.c.b16 %v3815, %v3814
    %v4028 = vpack.c.b16 %v3817, %v3816
    %v4029 = vpack.c.b16 %v3819, %v3818
    %v4030 = vpack.c.b16 %v3821, %v3820
    %v4031 = vpack.c.b16 %v3823, %v3822
    %v4032 = vpack.c.b16 %v3825, %v3824
    %v4033 = vpack.c.b16 %v3827, %v3826
    %v4034 = vpack.c.b16 %v3829, %v3828
    %v4035 = vpack.c.b16 %v3831, %v3830
    %v4036 = vpack.c.b16 %v3833, %v3832
    %v4037 = vpack.c.b16 %v3835, %v3834
    %v4038 = vpack.c.b16 %v3837, %v3836
    %v4039 = vpack.c.b16 %v3839, %v3838
    %v4040 = vpack.c.b16 %v3841, %v3840
    %v4041 = vpack.c.b16 %v3843, %v3842
    %v4042 = vpack.c.b16 %v3845, %v3844
    %v4043 = vpack.c.b16 %v3847, %v3846
    %v4044 = vpack.c.b16 %v3849, %v3848
    %v4045 = vpack.c.b16 %v3851, %v3850
    %v4046 = vpack.c.b16 %v3853, %v3852
    %v4047 = vpack.c.b16 %v3855, %v3854
    %v4048 = vpack.c.b16 %v3857, %v3856
    %v4049 = vpack.c.b16 %v3859, %v3858
    %v4050 = vpack.c.b16 %v3861, %v3860
    %v4051 = vpack.c.b16 %v3863, %v3862
    %v4052 = vpack.c.b16 %v3865, %v3864
    %v4053 = vpack.c.b16 %v3867, %v3866
    %v4054 = vpack.c.b16 %v3869, %v3868
    %v4055 = vpack.c.b16 %v3871, %v3870
    %v4056 = vpack.c.b16 %v3873, %v3872
    %v4057 = vpack.c.b16 %v3875, %v3874
    %v4058 = vpack.c.b16 %v3877, %v3876
    %v4059 = vpack.c.b16 %v3879, %v3878
    %v4060 = vpack.c.b16 %v3881, %v3880
    %v4061 = vpack.c.b16 %v3883, %v3882
    %v4062 = vpack.c.b16 %v3885, %v3884
    %v4063 = vpack.c.b16 %v3887, %v3886
    %v4064 = vpack.c.b16 %v3889, %v3888
    %v4065 = vpack.c.b16 %v3891, %v3890
    %v4066 = vpack.c.b16 %v3893, %v3892
    %v4067 = vpack.c.b16 %v3895, %v3894
    %v4068 = vpack.c.b16 %v3897, %v3896
    %v4069 = vpack.c.b16 %v3899, %v3898
    %v4070 = vpack.c.b16 %v3901, %v3900
    %v4071 = vpack.c.b16 %v3903, %v3902
    %v4072 = vpack.c.b16 %v3905, %v3904
    %v4073 = vpack.c.b16 %v3907, %v3906
    %v4074 = vpack.c.b16 %v3909, %v3908
    %v4075 = vpack.c.b16 %v3911, %v3910
    %v4076 = vpack.c.b16 %v3913, %v3912
    %v4077 = vpack.c.b16 %v3915, %v3914
    %v4078 = vpack.c.b16 %v3917, %v3916
    %v4079 = vpack.c.b16 %v3919, %v3918
    %v4080 = vpack.c.b16 %v3921, %v3920
    %v4081 = vpack.c.b16 %v3923, %v3922
    %v4082 = vpack.c.b16 %v3925, %v3924
    %v4083 = vpack.c.b16 %v3927, %v3926
    %v4084 = vpack.c.b16 %v3929, %v3928
    %v4085 = vpack.c.b16 %v3931, %v3930
    %v4086 = vpack.c.b16 %v3933, %v3932
    %v4087 = vpack.c.b16 %v3935, %v3934
    %v4088 = vpack.c.b16 %v3937, %v3936
    %v4089 = vpack.c.b16 %v3939, %v3938
    %v4090 = vpack.c.b16 %v3941, %v3940
    %v4091 = vpack.c.b16 %v3943, %v3942
    %v4092 = vpack.c.b16 %v3945, %v3944
    %v4093 = vpack.c.b16 %v3947, %v3946
    %v4094 = vpack.c.b16 %v3949, %v3948
    %v4095 = vpack.c.b16 %v3951, %v3950
    %v4096 = vpack.c.b16 %v3953, %v3952
    %v4097 = vpack.c.b16 %v3955, %v3954
    %v4098 = vpack.c.b16 %v3957, %v3956
    %v4099 = vpack.c.b16 %v3959, %v3958
    %v4100 = vpack.c.b16 %v3961, %v3960
    %v4101 = vpack.c.b16 %v3963, %v3962
    %v4102 = vpack.c.b16 %v3965, %v3964
    %v4103 = vpack.c.b16 %v3967, %v3966
    %v4104 = vpack.c.b16 %v3969, %v3968
    %v4105 = vpack.c.b16 %v3971, %v3970
    %v4106 = vpack.c.b16 %v3973, %v3972
    %v4107 = vpack.c.b16 %v3975, %v3974
    %v4108 = vpack.c.b16 %v3977, %v3976
    %v4109 = vpack.c.b16 %v3979, %v3978
    %v4110 = vpack.c.b16 %v3981, %v3980
    %v4111 = vpack.c.b16 %v3983, %v3982
    %v4113 = vsel %vm493, %v3984, 0
    %v4116 = vsel %vm493, %v3985, 0
    %v4119 = vsel %vm493, %v3986, 0
    %v4122 = vsel %vm493, %v3987, 0
    %v4125 = vsel %vm493, %v3988, 0
    %v4128 = vsel %vm493, %v3989, 0
    %v4131 = vsel %vm493, %v3990, 0
    %v4134 = vsel %vm493, %v3991, 0
    %v4137 = vsel %vm493, %v3992, 0
    %v4140 = vsel %vm493, %v3993, 0
    %v4143 = vsel %vm493, %v3994, 0
    %v4146 = vsel %vm493, %v3995, 0
    %v4149 = vsel %vm493, %v3996, 0
    %v4152 = vsel %vm493, %v3997, 0
    %v4155 = vsel %vm493, %v3998, 0
    %v4158 = vsel %vm493, %v3999, 0
    %v4161 = vsel %vm493, %v4000, 0
    %v4164 = vsel %vm493, %v4001, 0
    %v4167 = vsel %vm493, %v4002, 0
    %v4170 = vsel %vm493, %v4003, 0
    %v4173 = vsel %vm493, %v4004, 0
    %v4176 = vsel %vm493, %v4005, 0
    %v4179 = vsel %vm493, %v4006, 0
    %v4182 = vsel %vm493, %v4007, 0
    %v4185 = vsel %vm493, %v4008, 0
    %v4188 = vsel %vm493, %v4009, 0
    %v4191 = vsel %vm493, %v4010, 0
    %v4194 = vsel %vm493, %v4011, 0
    %v4197 = vsel %vm493, %v4012, 0
    %v4200 = vsel %vm493, %v4013, 0
    %v4203 = vsel %vm493, %v4014, 0
    %v4206 = vsel %vm493, %v4015, 0
    %v4209 = vsel %vm493, %v4016, 0
    %v4212 = vsel %vm493, %v4017, 0
    %v4215 = vsel %vm493, %v4018, 0
    %v4218 = vsel %vm493, %v4019, 0
    %v4221 = vsel %vm493, %v4020, 0
    %v4224 = vsel %vm493, %v4021, 0
    %v4227 = vsel %vm493, %v4022, 0
    %v4230 = vsel %vm493, %v4023, 0
    %v4233 = vsel %vm493, %v4024, 0
    %v4236 = vsel %vm493, %v4025, 0
    %v4239 = vsel %vm493, %v4026, 0
    %v4242 = vsel %vm493, %v4027, 0
    %v4245 = vsel %vm493, %v4028, 0
    %v4248 = vsel %vm493, %v4029, 0
    %v4251 = vsel %vm493, %v4030, 0
    %v4254 = vsel %vm493, %v4031, 0
    %v4257 = vsel %vm493, %v4032, 0
    %v4260 = vsel %vm493, %v4033, 0
    %v4263 = vsel %vm493, %v4034, 0
    %v4266 = vsel %vm493, %v4035, 0
    %v4269 = vsel %vm493, %v4036, 0
    %v4272 = vsel %vm493, %v4037, 0
    %v4275 = vsel %vm493, %v4038, 0
    %v4278 = vsel %vm493, %v4039, 0
    %v4281 = vsel %vm493, %v4040, 0
    %v4284 = vsel %vm493, %v4041, 0
    %v4287 = vsel %vm493, %v4042, 0
    %v4290 = vsel %vm493, %v4043, 0
    %v4293 = vsel %vm493, %v4044, 0
    %v4296 = vsel %vm493, %v4045, 0
    %v4299 = vsel %vm493, %v4046, 0
    %v4302 = vsel %vm493, %v4047, 0
    %v4305 = vsel %vm493, %v4048, 0
    %v4308 = vsel %vm493, %v4049, 0
    %v4311 = vsel %vm493, %v4050, 0
    %v4314 = vsel %vm493, %v4051, 0
    %v4317 = vsel %vm493, %v4052, 0
    %v4320 = vsel %vm493, %v4053, 0
    %v4323 = vsel %vm493, %v4054, 0
    %v4326 = vsel %vm493, %v4055, 0
    %v4329 = vsel %vm493, %v4056, 0
    %v4332 = vsel %vm493, %v4057, 0
    %v4335 = vsel %vm493, %v4058, 0
    %v4338 = vsel %vm493, %v4059, 0
    %v4341 = vsel %vm493, %v4060, 0
    %v4344 = vsel %vm493, %v4061, 0
    %v4347 = vsel %vm493, %v4062, 0
    %v4350 = vsel %vm493, %v4063, 0
    %v4353 = vsel %vm493, %v4064, 0
    %v4356 = vsel %vm493, %v4065, 0
    %v4359 = vsel %vm493, %v4066, 0
    %v4362 = vsel %vm493, %v4067, 0
    %v4365 = vsel %vm493, %v4068, 0
    %v4368 = vsel %vm493, %v4069, 0
    %v4371 = vsel %vm493, %v4070, 0
    %v4374 = vsel %vm493, %v4071, 0
    %v4377 = vsel %vm493, %v4072, 0
    %v4380 = vsel %vm493, %v4073, 0
    %v4383 = vsel %vm493, %v4074, 0
    %v4386 = vsel %vm493, %v4075, 0
    %v4389 = vsel %vm493, %v4076, 0
    %v4392 = vsel %vm493, %v4077, 0
    %v4395 = vsel %vm493, %v4078, 0
    %v4398 = vsel %vm493, %v4079, 0
    %v4401 = vsel %vm493, %v4080, 0
    %v4404 = vsel %vm493, %v4081, 0
    %v4407 = vsel %vm493, %v4082, 0
    %v4410 = vsel %vm493, %v4083, 0
    %v4413 = vsel %vm493, %v4084, 0
    %v4416 = vsel %vm493, %v4085, 0
    %v4419 = vsel %vm493, %v4086, 0
    %v4422 = vsel %vm493, %v4087, 0
    %v4425 = vsel %vm493, %v4088, 0
    %v4428 = vsel %vm493, %v4089, 0
    %v4431 = vsel %vm493, %v4090, 0
    %v4434 = vsel %vm493, %v4091, 0
    %v4437 = vsel %vm493, %v4092, 0
    %v4440 = vsel %vm493, %v4093, 0
    %v4443 = vsel %vm493, %v4094, 0
    %v4446 = vsel %vm493, %v4095, 0
    %v4449 = vsel %vm493, %v4096, 0
    %v4452 = vsel %vm493, %v4097, 0
    %v4455 = vsel %vm493, %v4098, 0
    %v4458 = vsel %vm493, %v4099, 0
    %v4461 = vsel %vm493, %v4100, 0
    %v4464 = vsel %vm493, %v4101, 0
    %v4467 = vsel %vm493, %v4102, 0
    %v4470 = vsel %vm493, %v4103, 0
    %v4473 = vsel %vm493, %v4104, 0
    %v4476 = vsel %vm493, %v4105, 0
    %v4479 = vsel %vm493, %v4106, 0
    %v4482 = vsel %vm493, %v4107, 0
    %v4485 = vsel %vm493, %v4108, 0
    %v4488 = vsel %vm493, %v4109, 0
    %v4491 = vsel %vm493, %v4110, 0
    %v4494 = vsel %vm493, %v4111, 0
    %v4497 = vand.u32 %v3464, %v689
    %4499 = vmatprep.subr.bf16.mxu0 0
    %4500 = vmatpush1.bf16.msra.mxu0 %v4497
    %4501 = vmatprep.subr.bf16.mxu0 0
    %4502 = vmatpush1.bf16.msra.mxu0 0
    %4503 = vmatprep.subr.bf16.mxu0 0
    %4504 = vmatpush1.bf16.msra.mxu0 0
    %4505 = vmatprep.subr.bf16.mxu0 0
    %4506 = vmatpush1.bf16.msra.mxu0 0
    %4507 = vmatprep.subr.bf16.mxu0 0
    %4508 = vmatpush1.bf16.msra.mxu0 0
    %4509 = vmatprep.subr.bf16.mxu0 0
    %4510 = vmatpush1.bf16.msra.mxu0 0
    %4511 = vmatprep.subr.bf16.mxu0 0
    %4512 = vmatpush1.bf16.msra.mxu0 0
    %4513 = vmatprep.subr.bf16.mxu0 0
    %4514 = vmatpush1.bf16.msra.mxu0 0
    %4515 = vmatprep.subr.bf16.mxu0 0
    %4516 = vmatpush1.bf16.msra.mxu0 0
    %4517 = vmatprep.subr.bf16.mxu0 0
    %4518 = vmatpush1.bf16.msra.mxu0 0
    %4519 = vmatprep.subr.bf16.mxu0 0
    %4520 = vmatpush1.bf16.msra.mxu0 0
    %4521 = vmatprep.subr.bf16.mxu0 0
    %4522 = vmatpush1.bf16.msra.mxu0 0
    %4523 = vmatprep.subr.bf16.mxu0 0
    %4524 = vmatpush1.bf16.msra.mxu0 0
    %4525 = vmatprep.subr.bf16.mxu0 0
    %4526 = vmatpush1.bf16.msra.mxu0 0
    %4527 = vmatprep.subr.bf16.mxu0 0
    %4528 = vmatpush1.bf16.msra.mxu0 0
    %4529 = vmatprep.subr.bf16.mxu0 0
    %4530 = vmatpush1.bf16.msra.mxu0 0
    %4531 = vmatprep.mubr.bf16.mxu0 0
    %4532 = vmatmul.mubr.bf16.gmra.mrb[0].mxu0 %v4113
    %v4533 = vpop.f32.mrb[0].mxu0
    %v4534 = vadd.f32 %v3470, %v4533
    %v4535 = vpop.f32.mrb[0].mxu0
    %v4536 = vpop.f32.mrb[0].mxu0
    %v4537 = vadd.f32 %v3470, %v4536
    %v4538 = vpop.f32.mrb[0].mxu0
    %4539 = vmatprep.mubr.bf16.mxu0 0
    %4540 = vmatmul.mubr.bf16.gmra.mrb[0].mxu0 %v4116
    %v4541 = vpop.f32.mrb[0].mxu0
    %v4542 = vadd.f32 %v3470, %v4541
    %v4543 = vpop.f32.mrb[0].mxu0
    %v4544 = vpop.f32.mrb[0].mxu0
    %v4545 = vadd.f32 %v3470, %v4544
    %v4546 = vpop.f32.mrb[0].mxu0
    %4547 = vmatprep.mubr.bf16.mxu0 0
    %4548 = vmatmul.mubr.bf16.gmra.mrb[0].mxu0 %v4119
    %v4549 = vpop.f32.mrb[0].mxu0
    %v4550 = vadd.f32 %v3470, %v4549
    %v4551 = vpop.f32.mrb[0].mxu0
    %v4552 = vpop.f32.mrb[0].mxu0
    %v4553 = vadd.f32 %v3470, %v4552
    %v4554 = vpop.f32.mrb[0].mxu0
    %4555 = vmatprep.mubr.bf16.mxu0 0
    %4556 = vmatmul.mubr.bf16.gmra.mrb[0].mxu0 %v4122
    %v4557 = vpop.f32.mrb[0].mxu0
    %v4558 = vadd.f32 %v3470, %v4557
    %v4559 = vpop.f32.mrb[0].mxu0
    %v4560 = vpop.f32.mrb[0].mxu0
    %v4561 = vadd.f32 %v3470, %v4560
    %v4562 = vpop.f32.mrb[0].mxu0
    %4563 = vmatprep.mubr.bf16.mxu0 0
    %4564 = vmatmul.mubr.bf16.gmra.mrb[0].mxu0 %v4125
    %v4565 = vpop.f32.mrb[0].mxu0
    %v4566 = vadd.f32 %v3470, %v4565
    %v4567 = vpop.f32.mrb[0].mxu0
    %v4568 = vpop.f32.mrb[0].mxu0
    %v4569 = vadd.f32 %v3470, %v4568
    %v4570 = vpop.f32.mrb[0].mxu0
    %4571 = vmatprep.mubr.bf16.mxu0 0
    %4572 = vmatmul.mubr.bf16.gmra.mrb[0].mxu0 %v4128
    %v4573 = vpop.f32.mrb[0].mxu0
    %v4574 = vadd.f32 %v3470, %v4573
    %v4575 = vpop.f32.mrb[0].mxu0
    %v4576 = vpop.f32.mrb[0].mxu0
    %v4577 = vadd.f32 %v3470, %v4576
    %v4578 = vpop.f32.mrb[0].mxu0
    %4579 = vmatprep.mubr.bf16.mxu0 0
    %4580 = vmatmul.mubr.bf16.gmra.mrb[0].mxu0 %v4131
    %v4581 = vpop.f32.mrb[0].mxu0
    %v4582 = vadd.f32 %v3470, %v4581
    %v4583 = vpop.f32.mrb[0].mxu0
    %v4584 = vpop.f32.mrb[0].mxu0
    %v4585 = vadd.f32 %v3470, %v4584
    %v4586 = vpop.f32.mrb[0].mxu0
    %4587 = vmatprep.mubr.bf16.mxu0 0
    %4588 = vmatmul.mubr.bf16.gmra.mrb[0].mxu0 %v4134
    %v4589 = vpop.f32.mrb[0].mxu0
    %v4590 = vadd.f32 %v3470, %v4589
    %v4591 = vpop.f32.mrb[0].mxu0
    %v4592 = vpop.f32.mrb[0].mxu0
    %v4593 = vadd.f32 %v3470, %v4592
    %v4594 = vpop.f32.mrb[0].mxu0
    %4595 = vmatprep.mubr.bf16.mxu0 0
    %4596 = vmatmul.mubr.bf16.gmra.mrb[0].mxu0 %v4137
    %v4597 = vpop.f32.mrb[0].mxu0
    %v4598 = vadd.f32 %v3470, %v4597
    %v4599 = vpop.f32.mrb[0].mxu0
    %v4600 = vpop.f32.mrb[0].mxu0
    %v4601 = vadd.f32 %v3470, %v4600
    %v4602 = vpop.f32.mrb[0].mxu0
    %4603 = vmatprep.mubr.bf16.mxu0 0
    %4604 = vmatmul.mubr.bf16.gmra.mrb[0].mxu0 %v4140
    %v4605 = vpop.f32.mrb[0].mxu0
    %v4606 = vadd.f32 %v3470, %v4605
    %v4607 = vpop.f32.mrb[0].mxu0
    %v4608 = vpop.f32.mrb[0].mxu0
    %v4609 = vadd.f32 %v3470, %v4608
    %v4610 = vpop.f32.mrb[0].mxu0
    %4611 = vmatprep.mubr.bf16.mxu0 0
    %4612 = vmatmul.mubr.bf16.gmra.mrb[0].mxu0 %v4143
    %v4613 = vpop.f32.mrb[0].mxu0
    %v4614 = vadd.f32 %v3470, %v4613
    %v4615 = vpop.f32.mrb[0].mxu0
    %v4616 = vpop.f32.mrb[0].mxu0
    %v4617 = vadd.f32 %v3470, %v4616
    %v4618 = vpop.f32.mrb[0].mxu0
    %4619 = vmatprep.mubr.bf16.mxu0 0
    %4620 = vmatmul.mubr.bf16.gmra.mrb[0].mxu0 %v4146
    %v4621 = vpop.f32.mrb[0].mxu0
    %v4622 = vadd.f32 %v3470, %v4621
    %v4623 = vpop.f32.mrb[0].mxu0
    %v4624 = vpop.f32.mrb[0].mxu0
    %v4625 = vadd.f32 %v3470, %v4624
    %v4626 = vpop.f32.mrb[0].mxu0
    %4627 = vmatprep.mubr.bf16.mxu0 0
    %4628 = vmatmul.mubr.bf16.gmra.mrb[0].mxu0 %v4149
    %v4629 = vpop.f32.mrb[0].mxu0
    %v4630 = vadd.f32 %v3470, %v4629
    %v4631 = vpop.f32.mrb[0].mxu0
    %v4632 = vpop.f32.mrb[0].mxu0
    %v4633 = vadd.f32 %v3470, %v4632
    %v4634 = vpop.f32.mrb[0].mxu0
    %4635 = vmatprep.mubr.bf16.mxu0 0
    %4636 = vmatmul.mubr.bf16.gmra.mrb[0].mxu0 %v4152
    %v4637 = vpop.f32.mrb[0].mxu0
    %v4638 = vadd.f32 %v3470, %v4637
    %v4639 = vpop.f32.mrb[0].mxu0
    %v4640 = vpop.f32.mrb[0].mxu0
    %v4641 = vadd.f32 %v3470, %v4640
    %v4642 = vpop.f32.mrb[0].mxu0
    %4643 = vmatprep.mubr.bf16.mxu0 0
    %4644 = vmatmul.mubr.bf16.gmra.mrb[0].mxu0 %v4155
    %v4645 = vpop.f32.mrb[0].mxu0
    %v4646 = vadd.f32 %v3470, %v4645
    %v4647 = vpop.f32.mrb[0].mxu0
    %v4648 = vpop.f32.mrb[0].mxu0
    %v4649 = vadd.f32 %v3470, %v4648
    %v4650 = vpop.f32.mrb[0].mxu0
    %4651 = vmatprep.mubr.bf16.mxu0 0
    %4652 = vmatmul.mubr.bf16.gmra.mrb[0].mxu0 %v4158
    %v4653 = vpop.f32.mrb[0].mxu0
    %v4654 = vadd.f32 %v3470, %v4653
    %v4655 = vpop.f32.mrb[0].mxu0
    %v4656 = vpop.f32.mrb[0].mxu0
    %v4657 = vadd.f32 %v3470, %v4656
    %v4658 = vpop.f32.mrb[0].mxu0
    %4659 = vmatprep.mubr.bf16.mxu0 0
    %4660 = vmatmul.mubr.bf16.gmra.mrb[0].mxu0 %v4161
    %v4661 = vpop.f32.mrb[0].mxu0
    %v4662 = vadd.f32 %v3470, %v4661
    %v4663 = vpop.f32.mrb[0].mxu0
    %v4664 = vpop.f32.mrb[0].mxu0
    %v4665 = vadd.f32 %v3470, %v4664
    %v4666 = vpop.f32.mrb[0].mxu0
    %4667 = vmatprep.mubr.bf16.mxu0 0
    %4668 = vmatmul.mubr.bf16.gmra.mrb[0].mxu0 %v4164
    %v4669 = vpop.f32.mrb[0].mxu0
    %v4670 = vadd.f32 %v3470, %v4669
    %v4671 = vpop.f32.mrb[0].mxu0
    %v4672 = vpop.f32.mrb[0].mxu0
    %v4673 = vadd.f32 %v3470, %v4672
    %v4674 = vpop.f32.mrb[0].mxu0
    %4675 = vmatprep.mubr.bf16.mxu0 0
    %4676 = vmatmul.mubr.bf16.gmra.mrb[0].mxu0 %v4167
    %v4677 = vpop.f32.mrb[0].mxu0
    %v4678 = vadd.f32 %v3470, %v4677
    %v4679 = vpop.f32.mrb[0].mxu0
    %v4680 = vpop.f32.mrb[0].mxu0
    %v4681 = vadd.f32 %v3470, %v4680
    %v4682 = vpop.f32.mrb[0].mxu0
    %4683 = vmatprep.mubr.bf16.mxu0 0
    %4684 = vmatmul.mubr.bf16.gmra.mrb[0].mxu0 %v4170
    %v4685 = vpop.f32.mrb[0].mxu0
    %v4686 = vadd.f32 %v3470, %v4685
    %v4687 = vpop.f32.mrb[0].mxu0
    %v4688 = vpop.f32.mrb[0].mxu0
    %v4689 = vadd.f32 %v3470, %v4688
    %v4690 = vpop.f32.mrb[0].mxu0
    %4691 = vmatprep.mubr.bf16.mxu0 0
    %4692 = vmatmul.mubr.bf16.gmra.mrb[0].mxu0 %v4173
    %v4693 = vpop.f32.mrb[0].mxu0
    %v4694 = vadd.f32 %v3470, %v4693
    %v4695 = vpop.f32.mrb[0].mxu0
    %v4696 = vpop.f32.mrb[0].mxu0
    %v4697 = vadd.f32 %v3470, %v4696
    %v4698 = vpop.f32.mrb[0].mxu0
    %4699 = vmatprep.mubr.bf16.mxu0 0
    %4700 = vmatmul.mubr.bf16.gmra.mrb[0].mxu0 %v4176
    %v4701 = vpop.f32.mrb[0].mxu0
    %v4702 = vadd.f32 %v3470, %v4701
    %v4703 = vpop.f32.mrb[0].mxu0
    %v4704 = vpop.f32.mrb[0].mxu0
    %v4705 = vadd.f32 %v3470, %v4704
    %v4706 = vpop.f32.mrb[0].mxu0
    %4707 = vmatprep.mubr.bf16.mxu0 0
    %4708 = vmatmul.mubr.bf16.gmra.mrb[0].mxu0 %v4179
    %v4709 = vpop.f32.mrb[0].mxu0
    %v4710 = vadd.f32 %v3470, %v4709
    %v4711 = vpop.f32.mrb[0].mxu0
    %v4712 = vpop.f32.mrb[0].mxu0
    %v4713 = vadd.f32 %v3470, %v4712
    %v4714 = vpop.f32.mrb[0].mxu0
    %4715 = vmatprep.mubr.bf16.mxu0 0
    %4716 = vmatmul.mubr.bf16.gmra.mrb[0].mxu0 %v4182
    %v4717 = vpop.f32.mrb[0].mxu0
    %v4718 = vadd.f32 %v3470, %v4717
    %v4719 = vpop.f32.mrb[0].mxu0
    %v4720 = vpop.f32.mrb[0].mxu0
    %v4721 = vadd.f32 %v3470, %v4720
    %v4722 = vpop.f32.mrb[0].mxu0
    %4723 = vmatprep.mubr.bf16.mxu0 0
    %4724 = vmatmul.mubr.bf16.gmra.mrb[0].mxu0 %v4185
    %v4725 = vpop.f32.mrb[0].mxu0
    %v4726 = vadd.f32 %v3470, %v4725
    %v4727 = vpop.f32.mrb[0].mxu0
    %v4728 = vpop.f32.mrb[0].mxu0
    %v4729 = vadd.f32 %v3470, %v4728
    %v4730 = vpop.f32.mrb[0].mxu0
    %4731 = vmatprep.mubr.bf16.mxu0 0
    %4732 = vmatmul.mubr.bf16.gmra.mrb[0].mxu0 %v4188
    %v4733 = vpop.f32.mrb[0].mxu0
    %v4734 = vadd.f32 %v3470, %v4733
    %v4735 = vpop.f32.mrb[0].mxu0
    %v4736 = vpop.f32.mrb[0].mxu0
    %v4737 = vadd.f32 %v3470, %v4736
    %v4738 = vpop.f32.mrb[0].mxu0
    %4739 = vmatprep.mubr.bf16.mxu0 0
    %4740 = vmatmul.mubr.bf16.gmra.mrb[0].mxu0 %v4191
    %v4741 = vpop.f32.mrb[0].mxu0
    %v4742 = vadd.f32 %v3470, %v4741
    %v4743 = vpop.f32.mrb[0].mxu0
    %v4744 = vpop.f32.mrb[0].mxu0
    %v4745 = vadd.f32 %v3470, %v4744
    %v4746 = vpop.f32.mrb[0].mxu0
    %4747 = vmatprep.mubr.bf16.mxu0 0
    %4748 = vmatmul.mubr.bf16.gmra.mrb[0].mxu0 %v4194
    %v4749 = vpop.f32.mrb[0].mxu0
    %v4750 = vadd.f32 %v3470, %v4749
    %v4751 = vpop.f32.mrb[0].mxu0
    %v4752 = vpop.f32.mrb[0].mxu0
    %v4753 = vadd.f32 %v3470, %v4752
    %v4754 = vpop.f32.mrb[0].mxu0
    %4755 = vmatprep.mubr.bf16.mxu0 0
    %4756 = vmatmul.mubr.bf16.gmra.mrb[0].mxu0 %v4197
    %v4757 = vpop.f32.mrb[0].mxu0
    %v4758 = vadd.f32 %v3470, %v4757
    %v4759 = vpop.f32.mrb[0].mxu0
    %v4760 = vpop.f32.mrb[0].mxu0
    %v4761 = vadd.f32 %v3470, %v4760
    %v4762 = vpop.f32.mrb[0].mxu0
    %4763 = vmatprep.mubr.bf16.mxu0 0
    %4764 = vmatmul.mubr.bf16.gmra.mrb[0].mxu0 %v4200
    %v4765 = vpop.f32.mrb[0].mxu0
    %v4766 = vadd.f32 %v3470, %v4765
    %v4767 = vpop.f32.mrb[0].mxu0
    %v4768 = vpop.f32.mrb[0].mxu0
    %v4769 = vadd.f32 %v3470, %v4768
    %v4770 = vpop.f32.mrb[0].mxu0
    %4771 = vmatprep.mubr.bf16.mxu0 0
    %4772 = vmatmul.mubr.bf16.gmra.mrb[0].mxu0 %v4203
    %v4773 = vpop.f32.mrb[0].mxu0
    %v4774 = vadd.f32 %v3470, %v4773
    %v4775 = vpop.f32.mrb[0].mxu0
    %v4776 = vpop.f32.mrb[0].mxu0
    %v4777 = vadd.f32 %v3470, %v4776
    %v4778 = vpop.f32.mrb[0].mxu0
    %4779 = vmatprep.mubr.bf16.mxu0 0
    %4780 = vmatmul.mubr.bf16.gmra.mrb[0].mxu0 %v4206
    %v4781 = vpop.f32.mrb[0].mxu0
    %v4782 = vadd.f32 %v3470, %v4781
    %v4783 = vpop.f32.mrb[0].mxu0
    %v4784 = vpop.f32.mrb[0].mxu0
    %v4785 = vadd.f32 %v3470, %v4784
    %v4786 = vpop.f32.mrb[0].mxu0
    %4787 = vmatprep.mubr.bf16.mxu0 0
    %4788 = vmatmul.mubr.bf16.gmra.mrb[0].mxu0 %v4209
    %v4789 = vpop.f32.mrb[0].mxu0
    %v4790 = vadd.f32 %v3470, %v4789
    %v4791 = vpop.f32.mrb[0].mxu0
    %v4792 = vpop.f32.mrb[0].mxu0
    %v4793 = vadd.f32 %v3470, %v4792
    %v4794 = vpop.f32.mrb[0].mxu0
    %4795 = vmatprep.mubr.bf16.mxu0 0
    %4796 = vmatmul.mubr.bf16.gmra.mrb[0].mxu0 %v4212
    %v4797 = vpop.f32.mrb[0].mxu0
    %v4798 = vadd.f32 %v3470, %v4797
    %v4799 = vpop.f32.mrb[0].mxu0
    %v4800 = vpop.f32.mrb[0].mxu0
    %v4801 = vadd.f32 %v3470, %v4800
    %v4802 = vpop.f32.mrb[0].mxu0
    %4803 = vmatprep.mubr.bf16.mxu0 0
    %4804 = vmatmul.mubr.bf16.gmra.mrb[0].mxu0 %v4215
    %v4805 = vpop.f32.mrb[0].mxu0
    %v4806 = vadd.f32 %v3470, %v4805
    %v4807 = vpop.f32.mrb[0].mxu0
    %v4808 = vpop.f32.mrb[0].mxu0
    %v4809 = vadd.f32 %v3470, %v4808
    %v4810 = vpop.f32.mrb[0].mxu0
    %4811 = vmatprep.mubr.bf16.mxu0 0
    %4812 = vmatmul.mubr.bf16.gmra.mrb[0].mxu0 %v4218
    %v4813 = vpop.f32.mrb[0].mxu0
    %v4814 = vadd.f32 %v3470, %v4813
    %v4815 = vpop.f32.mrb[0].mxu0
    %v4816 = vpop.f32.mrb[0].mxu0
    %v4817 = vadd.f32 %v3470, %v4816
    %v4818 = vpop.f32.mrb[0].mxu0
    %4819 = vmatprep.mubr.bf16.mxu0 0
    %4820 = vmatmul.mubr.bf16.gmra.mrb[0].mxu0 %v4221
    %v4821 = vpop.f32.mrb[0].mxu0
    %v4822 = vadd.f32 %v3470, %v4821
    %v4823 = vpop.f32.mrb[0].mxu0
    %v4824 = vpop.f32.mrb[0].mxu0
    %v4825 = vadd.f32 %v3470, %v4824
    %v4826 = vpop.f32.mrb[0].mxu0
    %4827 = vmatprep.mubr.bf16.mxu0 0
    %4828 = vmatmul.mubr.bf16.gmra.mrb[0].mxu0 %v4224
    %v4829 = vpop.f32.mrb[0].mxu0
    %v4830 = vadd.f32 %v3470, %v4829
    %v4831 = vpop.f32.mrb[0].mxu0
    %v4832 = vpop.f32.mrb[0].mxu0
    %v4833 = vadd.f32 %v3470, %v4832
    %v4834 = vpop.f32.mrb[0].mxu0
    %4835 = vmatprep.mubr.bf16.mxu0 0
    %4836 = vmatmul.mubr.bf16.gmra.mrb[0].mxu0 %v4227
    %v4837 = vpop.f32.mrb[0].mxu0
    %v4838 = vadd.f32 %v3470, %v4837
    %v4839 = vpop.f32.mrb[0].mxu0
    %v4840 = vpop.f32.mrb[0].mxu0
    %v4841 = vadd.f32 %v3470, %v4840
    %v4842 = vpop.f32.mrb[0].mxu0
    %4843 = vmatprep.mubr.bf16.mxu0 0
    %4844 = vmatmul.mubr.bf16.gmra.mrb[0].mxu0 %v4230
    %v4845 = vpop.f32.mrb[0].mxu0
    %v4846 = vadd.f32 %v3470, %v4845
    %v4847 = vpop.f32.mrb[0].mxu0
    %v4848 = vpop.f32.mrb[0].mxu0
    %v4849 = vadd.f32 %v3470, %v4848
    %v4850 = vpop.f32.mrb[0].mxu0
    %4851 = vmatprep.mubr.bf16.mxu0 0
    %4852 = vmatmul.mubr.bf16.gmra.mrb[0].mxu0 %v4233
    %v4853 = vpop.f32.mrb[0].mxu0
    %v4854 = vadd.f32 %v3470, %v4853
    %v4855 = vpop.f32.mrb[0].mxu0
    %v4856 = vpop.f32.mrb[0].mxu0
    %v4857 = vadd.f32 %v3470, %v4856
    %v4858 = vpop.f32.mrb[0].mxu0
    %4859 = vmatprep.mubr.bf16.mxu0 0
    %4860 = vmatmul.mubr.bf16.gmra.mrb[0].mxu0 %v4236
    %v4861 = vpop.f32.mrb[0].mxu0
    %v4862 = vadd.f32 %v3470, %v4861
    %v4863 = vpop.f32.mrb[0].mxu0
    %v4864 = vpop.f32.mrb[0].mxu0
    %v4865 = vadd.f32 %v3470, %v4864
    %v4866 = vpop.f32.mrb[0].mxu0
    %4867 = vmatprep.mubr.bf16.mxu0 0
    %4868 = vmatmul.mubr.bf16.gmra.mrb[0].mxu0 %v4239
    %v4869 = vpop.f32.mrb[0].mxu0
    %v4870 = vadd.f32 %v3470, %v4869
    %v4871 = vpop.f32.mrb[0].mxu0
    %v4872 = vpop.f32.mrb[0].mxu0
    %v4873 = vadd.f32 %v3470, %v4872
    %v4874 = vpop.f32.mrb[0].mxu0
    %4875 = vmatprep.mubr.bf16.mxu0 0
    %4876 = vmatmul.mubr.bf16.gmra.mrb[0].mxu0 %v4242
    %v4877 = vpop.f32.mrb[0].mxu0
    %v4878 = vadd.f32 %v3470, %v4877
    %v4879 = vpop.f32.mrb[0].mxu0
    %v4880 = vpop.f32.mrb[0].mxu0
    %v4881 = vadd.f32 %v3470, %v4880
    %v4882 = vpop.f32.mrb[0].mxu0
    %4883 = vmatprep.mubr.bf16.mxu0 0
    %4884 = vmatmul.mubr.bf16.gmra.mrb[0].mxu0 %v4245
    %v4885 = vpop.f32.mrb[0].mxu0
    %v4886 = vadd.f32 %v3470, %v4885
    %v4887 = vpop.f32.mrb[0].mxu0
    %v4888 = vpop.f32.mrb[0].mxu0
    %v4889 = vadd.f32 %v3470, %v4888
    %v4890 = vpop.f32.mrb[0].mxu0
    %4891 = vmatprep.mubr.bf16.mxu0 0
    %4892 = vmatmul.mubr.bf16.gmra.mrb[0].mxu0 %v4248
    %v4893 = vpop.f32.mrb[0].mxu0
    %v4894 = vadd.f32 %v3470, %v4893
    %v4895 = vpop.f32.mrb[0].mxu0
    %v4896 = vpop.f32.mrb[0].mxu0
    %v4897 = vadd.f32 %v3470, %v4896
    %v4898 = vpop.f32.mrb[0].mxu0
    %4899 = vmatprep.mubr.bf16.mxu0 0
    %4900 = vmatmul.mubr.bf16.gmra.mrb[0].mxu0 %v4251
    %v4901 = vpop.f32.mrb[0].mxu0
    %v4902 = vadd.f32 %v3470, %v4901
    %v4903 = vpop.f32.mrb[0].mxu0
    %v4904 = vpop.f32.mrb[0].mxu0
    %v4905 = vadd.f32 %v3470, %v4904
    %v4906 = vpop.f32.mrb[0].mxu0
    %4907 = vmatprep.mubr.bf16.mxu0 0
    %4908 = vmatmul.mubr.bf16.gmra.mrb[0].mxu0 %v4254
    %v4909 = vpop.f32.mrb[0].mxu0
    %v4910 = vadd.f32 %v3470, %v4909
    %v4911 = vpop.f32.mrb[0].mxu0
    %v4912 = vpop.f32.mrb[0].mxu0
    %v4913 = vadd.f32 %v3470, %v4912
    %v4914 = vpop.f32.mrb[0].mxu0
    %4915 = vmatprep.mubr.bf16.mxu0 0
    %4916 = vmatmul.mubr.bf16.gmra.mrb[0].mxu0 %v4257
    %v4917 = vpop.f32.mrb[0].mxu0
    %v4918 = vadd.f32 %v3470, %v4917
    %v4919 = vpop.f32.mrb[0].mxu0
    %v4920 = vpop.f32.mrb[0].mxu0
    %v4921 = vadd.f32 %v3470, %v4920
    %v4922 = vpop.f32.mrb[0].mxu0
    %4923 = vmatprep.mubr.bf16.mxu0 0
    %4924 = vmatmul.mubr.bf16.gmra.mrb[0].mxu0 %v4260
    %v4925 = vpop.f32.mrb[0].mxu0
    %v4926 = vadd.f32 %v3470, %v4925
    %v4927 = vpop.f32.mrb[0].mxu0
    %v4928 = vpop.f32.mrb[0].mxu0
    %v4929 = vadd.f32 %v3470, %v4928
    %v4930 = vpop.f32.mrb[0].mxu0
    %4931 = vmatprep.mubr.bf16.mxu0 0
    %4932 = vmatmul.mubr.bf16.gmra.mrb[0].mxu0 %v4263
    %v4933 = vpop.f32.mrb[0].mxu0
    %v4934 = vadd.f32 %v3470, %v4933
    %v4935 = vpop.f32.mrb[0].mxu0
    %v4936 = vpop.f32.mrb[0].mxu0
    %v4937 = vadd.f32 %v3470, %v4936
    %v4938 = vpop.f32.mrb[0].mxu0
    %4939 = vmatprep.mubr.bf16.mxu0 0
    %4940 = vmatmul.mubr.bf16.gmra.mrb[0].mxu0 %v4266
    %v4941 = vpop.f32.mrb[0].mxu0
    %v4942 = vadd.f32 %v3470, %v4941
    %v4943 = vpop.f32.mrb[0].mxu0
    %v4944 = vpop.f32.mrb[0].mxu0
    %v4945 = vadd.f32 %v3470, %v4944
    %v4946 = vpop.f32.mrb[0].mxu0
    %4947 = vmatprep.mubr.bf16.mxu0 0
    %4948 = vmatmul.mubr.bf16.gmra.mrb[0].mxu0 %v4269
    %v4949 = vpop.f32.mrb[0].mxu0
    %v4950 = vadd.f32 %v3470, %v4949
    %v4951 = vpop.f32.mrb[0].mxu0
    %v4952 = vpop.f32.mrb[0].mxu0
    %v4953 = vadd.f32 %v3470, %v4952
    %v4954 = vpop.f32.mrb[0].mxu0
    %4955 = vmatprep.mubr.bf16.mxu0 0
    %4956 = vmatmul.mubr.bf16.gmra.mrb[0].mxu0 %v4272
    %v4957 = vpop.f32.mrb[0].mxu0
    %v4958 = vadd.f32 %v3470, %v4957
    %v4959 = vpop.f32.mrb[0].mxu0
    %v4960 = vpop.f32.mrb[0].mxu0
    %v4961 = vadd.f32 %v3470, %v4960
    %v4962 = vpop.f32.mrb[0].mxu0
    %4963 = vmatprep.mubr.bf16.mxu0 0
    %4964 = vmatmul.mubr.bf16.gmra.mrb[0].mxu0 %v4275
    %v4965 = vpop.f32.mrb[0].mxu0
    %v4966 = vadd.f32 %v3470, %v4965
    %v4967 = vpop.f32.mrb[0].mxu0
    %v4968 = vpop.f32.mrb[0].mxu0
    %v4969 = vadd.f32 %v3470, %v4968
    %v4970 = vpop.f32.mrb[0].mxu0
    %4971 = vmatprep.mubr.bf16.mxu0 0
    %4972 = vmatmul.mubr.bf16.gmra.mrb[0].mxu0 %v4278
    %v4973 = vpop.f32.mrb[0].mxu0
    %v4974 = vadd.f32 %v3470, %v4973
    %v4975 = vpop.f32.mrb[0].mxu0
    %v4976 = vpop.f32.mrb[0].mxu0
    %v4977 = vadd.f32 %v3470, %v4976
    %v4978 = vpop.f32.mrb[0].mxu0
    %4979 = vmatprep.mubr.bf16.mxu0 0
    %4980 = vmatmul.mubr.bf16.gmra.mrb[0].mxu0 %v4281
    %v4981 = vpop.f32.mrb[0].mxu0
    %v4982 = vadd.f32 %v3470, %v4981
    %v4983 = vpop.f32.mrb[0].mxu0
    %v4984 = vpop.f32.mrb[0].mxu0
    %v4985 = vadd.f32 %v3470, %v4984
    %v4986 = vpop.f32.mrb[0].mxu0
    %4987 = vmatprep.mubr.bf16.mxu0 0
    %4988 = vmatmul.mubr.bf16.gmra.mrb[0].mxu0 %v4284
    %v4989 = vpop.f32.mrb[0].mxu0
    %v4990 = vadd.f32 %v3470, %v4989
    %v4991 = vpop.f32.mrb[0].mxu0
    %v4992 = vpop.f32.mrb[0].mxu0
    %v4993 = vadd.f32 %v3470, %v4992
    %v4994 = vpop.f32.mrb[0].mxu0
    %4995 = vmatprep.mubr.bf16.mxu0 0
    %4996 = vmatmul.mubr.bf16.gmra.mrb[0].mxu0 %v4287
    %v4997 = vpop.f32.mrb[0].mxu0
    %v4998 = vadd.f32 %v3470, %v4997
    %v4999 = vpop.f32.mrb[0].mxu0
    %v5000 = vpop.f32.mrb[0].mxu0
    %v5001 = vadd.f32 %v3470, %v5000
    %v5002 = vpop.f32.mrb[0].mxu0
    %5003 = vmatprep.mubr.bf16.mxu0 0
    %5004 = vmatmul.mubr.bf16.gmra.mrb[0].mxu0 %v4290
    %v5005 = vpop.f32.mrb[0].mxu0
    %v5006 = vadd.f32 %v3470, %v5005
    %v5007 = vpop.f32.mrb[0].mxu0
    %v5008 = vpop.f32.mrb[0].mxu0
    %v5009 = vadd.f32 %v3470, %v5008
    %v5010 = vpop.f32.mrb[0].mxu0
    %5011 = vmatprep.mubr.bf16.mxu0 0
    %5012 = vmatmul.mubr.bf16.gmra.mrb[0].mxu0 %v4293
    %v5013 = vpop.f32.mrb[0].mxu0
    %v5014 = vadd.f32 %v3470, %v5013
    %v5015 = vpop.f32.mrb[0].mxu0
    %v5016 = vpop.f32.mrb[0].mxu0
    %v5017 = vadd.f32 %v3470, %v5016
    %v5018 = vpop.f32.mrb[0].mxu0
    %5019 = vmatprep.mubr.bf16.mxu0 0
    %5020 = vmatmul.mubr.bf16.gmra.mrb[0].mxu0 %v4296
    %v5021 = vpop.f32.mrb[0].mxu0
    %v5022 = vadd.f32 %v3470, %v5021
    %v5023 = vpop.f32.mrb[0].mxu0
    %v5024 = vpop.f32.mrb[0].mxu0
    %v5025 = vadd.f32 %v3470, %v5024
    %v5026 = vpop.f32.mrb[0].mxu0
    %5027 = vmatprep.mubr.bf16.mxu0 0
    %5028 = vmatmul.mubr.bf16.gmra.mrb[0].mxu0 %v4299
    %v5029 = vpop.f32.mrb[0].mxu0
    %v5030 = vadd.f32 %v3470, %v5029
    %v5031 = vpop.f32.mrb[0].mxu0
    %v5032 = vpop.f32.mrb[0].mxu0
    %v5033 = vadd.f32 %v3470, %v5032
    %v5034 = vpop.f32.mrb[0].mxu0
    %5035 = vmatprep.mubr.bf16.mxu0 0
    %5036 = vmatmul.mubr.bf16.gmra.mrb[0].mxu0 %v4302
    %v5037 = vpop.f32.mrb[0].mxu0
    %v5038 = vadd.f32 %v3470, %v5037
    %v5039 = vpop.f32.mrb[0].mxu0
    %v5040 = vpop.f32.mrb[0].mxu0
    %v5041 = vadd.f32 %v3470, %v5040
    %v5042 = vpop.f32.mrb[0].mxu0
    %5043 = vmatprep.mubr.bf16.mxu0 0
    %5044 = vmatmul.mubr.bf16.gmra.mrb[0].mxu0 %v4305
    %v5045 = vpop.f32.mrb[0].mxu0
    %v5046 = vadd.f32 %v3470, %v5045
    %v5047 = vpop.f32.mrb[0].mxu0
    %v5048 = vpop.f32.mrb[0].mxu0
    %v5049 = vadd.f32 %v3470, %v5048
    %v5050 = vpop.f32.mrb[0].mxu0
    %5051 = vmatprep.mubr.bf16.mxu0 0
    %5052 = vmatmul.mubr.bf16.gmra.mrb[0].mxu0 %v4308
    %v5053 = vpop.f32.mrb[0].mxu0
    %v5054 = vadd.f32 %v3470, %v5053
    %v5055 = vpop.f32.mrb[0].mxu0
    %v5056 = vpop.f32.mrb[0].mxu0
    %v5057 = vadd.f32 %v3470, %v5056
    %v5058 = vpop.f32.mrb[0].mxu0
    %5059 = vmatprep.mubr.bf16.mxu0 0
    %5060 = vmatmul.mubr.bf16.gmra.mrb[0].mxu0 %v4311
    %v5061 = vpop.f32.mrb[0].mxu0
    %v5062 = vadd.f32 %v3470, %v5061
    %v5063 = vpop.f32.mrb[0].mxu0
    %v5064 = vpop.f32.mrb[0].mxu0
    %v5065 = vadd.f32 %v3470, %v5064
    %v5066 = vpop.f32.mrb[0].mxu0
    %5067 = vmatprep.mubr.bf16.mxu0 0
    %5068 = vmatmul.mubr.bf16.gmra.mrb[0].mxu0 %v4314
    %v5069 = vpop.f32.mrb[0].mxu0
    %v5070 = vadd.f32 %v3470, %v5069
    %v5071 = vpop.f32.mrb[0].mxu0
    %v5072 = vpop.f32.mrb[0].mxu0
    %v5073 = vadd.f32 %v3470, %v5072
    %v5074 = vpop.f32.mrb[0].mxu0
    %5075 = vmatprep.mubr.bf16.mxu0 0
    %5076 = vmatmul.mubr.bf16.gmra.mrb[0].mxu0 %v4317
    %v5077 = vpop.f32.mrb[0].mxu0
    %v5078 = vadd.f32 %v3470, %v5077
    %v5079 = vpop.f32.mrb[0].mxu0
    %v5080 = vpop.f32.mrb[0].mxu0
    %v5081 = vadd.f32 %v3470, %v5080
    %v5082 = vpop.f32.mrb[0].mxu0
    %5083 = vmatprep.mubr.bf16.mxu0 0
    %5084 = vmatmul.mubr.bf16.gmra.mrb[0].mxu0 %v4320
    %v5085 = vpop.f32.mrb[0].mxu0
    %v5086 = vadd.f32 %v3470, %v5085
    %v5087 = vpop.f32.mrb[0].mxu0
    %v5088 = vpop.f32.mrb[0].mxu0
    %v5089 = vadd.f32 %v3470, %v5088
    %v5090 = vpop.f32.mrb[0].mxu0
    %5091 = vmatprep.mubr.bf16.mxu0 0
    %5092 = vmatmul.mubr.bf16.gmra.mrb[0].mxu0 %v4323
    %v5093 = vpop.f32.mrb[0].mxu0
    %v5094 = vadd.f32 %v3470, %v5093
    %v5095 = vpop.f32.mrb[0].mxu0
    %v5096 = vpop.f32.mrb[0].mxu0
    %v5097 = vadd.f32 %v3470, %v5096
    %v5098 = vpop.f32.mrb[0].mxu0
    %5099 = vmatprep.mubr.bf16.mxu0 0
    %5100 = vmatmul.mubr.bf16.gmra.mrb[0].mxu0 %v4326
    %v5101 = vpop.f32.mrb[0].mxu0
    %v5102 = vadd.f32 %v3470, %v5101
    %v5103 = vpop.f32.mrb[0].mxu0
    %v5104 = vpop.f32.mrb[0].mxu0
    %v5105 = vadd.f32 %v3470, %v5104
    %v5106 = vpop.f32.mrb[0].mxu0
    %5107 = vmatprep.mubr.bf16.mxu0 0
    %5108 = vmatmul.mubr.bf16.gmra.mrb[0].mxu0 %v4329
    %v5109 = vpop.f32.mrb[0].mxu0
    %v5110 = vadd.f32 %v3470, %v5109
    %v5111 = vpop.f32.mrb[0].mxu0
    %v5112 = vpop.f32.mrb[0].mxu0
    %v5113 = vadd.f32 %v3470, %v5112
    %v5114 = vpop.f32.mrb[0].mxu0
    %5115 = vmatprep.mubr.bf16.mxu0 0
    %5116 = vmatmul.mubr.bf16.gmra.mrb[0].mxu0 %v4332
    %v5117 = vpop.f32.mrb[0].mxu0
    %v5118 = vadd.f32 %v3470, %v5117
    %v5119 = vpop.f32.mrb[0].mxu0
    %v5120 = vpop.f32.mrb[0].mxu0
    %v5121 = vadd.f32 %v3470, %v5120
    %v5122 = vpop.f32.mrb[0].mxu0
    %5123 = vmatprep.mubr.bf16.mxu0 0
    %5124 = vmatmul.mubr.bf16.gmra.mrb[0].mxu0 %v4335
    %v5125 = vpop.f32.mrb[0].mxu0
    %v5126 = vadd.f32 %v3470, %v5125
    %v5127 = vpop.f32.mrb[0].mxu0
    %v5128 = vpop.f32.mrb[0].mxu0
    %v5129 = vadd.f32 %v3470, %v5128
    %v5130 = vpop.f32.mrb[0].mxu0
    %5131 = vmatprep.mubr.bf16.mxu0 0
    %5132 = vmatmul.mubr.bf16.gmra.mrb[0].mxu0 %v4338
    %v5133 = vpop.f32.mrb[0].mxu0
    %v5134 = vadd.f32 %v3470, %v5133
    %v5135 = vpop.f32.mrb[0].mxu0
    %v5136 = vpop.f32.mrb[0].mxu0
    %v5137 = vadd.f32 %v3470, %v5136
    %v5138 = vpop.f32.mrb[0].mxu0
    %5139 = vmatprep.mubr.bf16.mxu0 0
    %5140 = vmatmul.mubr.bf16.gmra.mrb[0].mxu0 %v4341
    %v5141 = vpop.f32.mrb[0].mxu0
    %v5142 = vadd.f32 %v3470, %v5141
    %v5143 = vpop.f32.mrb[0].mxu0
    %v5144 = vpop.f32.mrb[0].mxu0
    %v5145 = vadd.f32 %v3470, %v5144
    %v5146 = vpop.f32.mrb[0].mxu0
    %5147 = vmatprep.mubr.bf16.mxu0 0
    %5148 = vmatmul.mubr.bf16.gmra.mrb[0].mxu0 %v4344
    %v5149 = vpop.f32.mrb[0].mxu0
    %v5150 = vadd.f32 %v3470, %v5149
    %v5151 = vpop.f32.mrb[0].mxu0
    %v5152 = vpop.f32.mrb[0].mxu0
    %v5153 = vadd.f32 %v3470, %v5152
    %v5154 = vpop.f32.mrb[0].mxu0
    %5155 = vmatprep.mubr.bf16.mxu0 0
    %5156 = vmatmul.mubr.bf16.gmra.mrb[0].mxu0 %v4347
    %v5157 = vpop.f32.mrb[0].mxu0
    %v5158 = vadd.f32 %v3470, %v5157
    %v5159 = vpop.f32.mrb[0].mxu0
    %v5160 = vpop.f32.mrb[0].mxu0
    %v5161 = vadd.f32 %v3470, %v5160
    %v5162 = vpop.f32.mrb[0].mxu0
    %5163 = vmatprep.mubr.bf16.mxu0 0
    %5164 = vmatmul.mubr.bf16.gmra.mrb[0].mxu0 %v4350
    %v5165 = vpop.f32.mrb[0].mxu0
    %v5166 = vadd.f32 %v3470, %v5165
    %v5167 = vpop.f32.mrb[0].mxu0
    %v5168 = vpop.f32.mrb[0].mxu0
    %v5169 = vadd.f32 %v3470, %v5168
    %v5170 = vpop.f32.mrb[0].mxu0
    %5171 = vmatprep.mubr.bf16.mxu0 0
    %5172 = vmatmul.mubr.bf16.gmra.mrb[0].mxu0 %v4353
    %v5173 = vpop.f32.mrb[0].mxu0
    %v5174 = vadd.f32 %v3470, %v5173
    %v5175 = vpop.f32.mrb[0].mxu0
    %v5176 = vpop.f32.mrb[0].mxu0
    %v5177 = vadd.f32 %v3470, %v5176
    %v5178 = vpop.f32.mrb[0].mxu0
    %5179 = vmatprep.mubr.bf16.mxu0 0
    %5180 = vmatmul.mubr.bf16.gmra.mrb[0].mxu0 %v4356
    %v5181 = vpop.f32.mrb[0].mxu0
    %v5182 = vadd.f32 %v3470, %v5181
    %v5183 = vpop.f32.mrb[0].mxu0
    %v5184 = vpop.f32.mrb[0].mxu0
    %v5185 = vadd.f32 %v3470, %v5184
    %v5186 = vpop.f32.mrb[0].mxu0
    %5187 = vmatprep.mubr.bf16.mxu0 0
    %5188 = vmatmul.mubr.bf16.gmra.mrb[0].mxu0 %v4359
    %v5189 = vpop.f32.mrb[0].mxu0
    %v5190 = vadd.f32 %v3470, %v5189
    %v5191 = vpop.f32.mrb[0].mxu0
    %v5192 = vpop.f32.mrb[0].mxu0
    %v5193 = vadd.f32 %v3470, %v5192
    %v5194 = vpop.f32.mrb[0].mxu0
    %5195 = vmatprep.mubr.bf16.mxu0 0
    %5196 = vmatmul.mubr.bf16.gmra.mrb[0].mxu0 %v4362
    %v5197 = vpop.f32.mrb[0].mxu0
    %v5198 = vadd.f32 %v3470, %v5197
    %v5199 = vpop.f32.mrb[0].mxu0
    %v5200 = vpop.f32.mrb[0].mxu0
    %v5201 = vadd.f32 %v3470, %v5200
    %v5202 = vpop.f32.mrb[0].mxu0
    %5203 = vmatprep.mubr.bf16.mxu0 0
    %5204 = vmatmul.mubr.bf16.gmra.mrb[0].mxu0 %v4365
    %v5205 = vpop.f32.mrb[0].mxu0
    %v5206 = vadd.f32 %v3470, %v5205
    %v5207 = vpop.f32.mrb[0].mxu0
    %v5208 = vpop.f32.mrb[0].mxu0
    %v5209 = vadd.f32 %v3470, %v5208
    %v5210 = vpop.f32.mrb[0].mxu0
    %5211 = vmatprep.mubr.bf16.mxu0 0
    %5212 = vmatmul.mubr.bf16.gmra.mrb[0].mxu0 %v4368
    %v5213 = vpop.f32.mrb[0].mxu0
    %v5214 = vadd.f32 %v3470, %v5213
    %v5215 = vpop.f32.mrb[0].mxu0
    %v5216 = vpop.f32.mrb[0].mxu0
    %v5217 = vadd.f32 %v3470, %v5216
    %v5218 = vpop.f32.mrb[0].mxu0
    %5219 = vmatprep.mubr.bf16.mxu0 0
    %5220 = vmatmul.mubr.bf16.gmra.mrb[0].mxu0 %v4371
    %v5221 = vpop.f32.mrb[0].mxu0
    %v5222 = vadd.f32 %v3470, %v5221
    %v5223 = vpop.f32.mrb[0].mxu0
    %v5224 = vpop.f32.mrb[0].mxu0
    %v5225 = vadd.f32 %v3470, %v5224
    %v5226 = vpop.f32.mrb[0].mxu0
    %5227 = vmatprep.mubr.bf16.mxu0 0
    %5228 = vmatmul.mubr.bf16.gmra.mrb[0].mxu0 %v4374
    %v5229 = vpop.f32.mrb[0].mxu0
    %v5230 = vadd.f32 %v3470, %v5229
    %v5231 = vpop.f32.mrb[0].mxu0
    %v5232 = vpop.f32.mrb[0].mxu0
    %v5233 = vadd.f32 %v3470, %v5232
    %v5234 = vpop.f32.mrb[0].mxu0
    %5235 = vmatprep.mubr.bf16.mxu0 0
    %5236 = vmatmul.mubr.bf16.gmra.mrb[0].mxu0 %v4377
    %v5237 = vpop.f32.mrb[0].mxu0
    %v5238 = vadd.f32 %v3470, %v5237
    %v5239 = vpop.f32.mrb[0].mxu0
    %v5240 = vpop.f32.mrb[0].mxu0
    %v5241 = vadd.f32 %v3470, %v5240
    %v5242 = vpop.f32.mrb[0].mxu0
    %5243 = vmatprep.mubr.bf16.mxu0 0
    %5244 = vmatmul.mubr.bf16.gmra.mrb[0].mxu0 %v4380
    %v5245 = vpop.f32.mrb[0].mxu0
    %v5246 = vadd.f32 %v3470, %v5245
    %v5247 = vpop.f32.mrb[0].mxu0
    %v5248 = vpop.f32.mrb[0].mxu0
    %v5249 = vadd.f32 %v3470, %v5248
    %v5250 = vpop.f32.mrb[0].mxu0
    %5251 = vmatprep.mubr.bf16.mxu0 0
    %5252 = vmatmul.mubr.bf16.gmra.mrb[0].mxu0 %v4383
    %v5253 = vpop.f32.mrb[0].mxu0
    %v5254 = vadd.f32 %v3470, %v5253
    %v5255 = vpop.f32.mrb[0].mxu0
    %v5256 = vpop.f32.mrb[0].mxu0
    %v5257 = vadd.f32 %v3470, %v5256
    %v5258 = vpop.f32.mrb[0].mxu0
    %5259 = vmatprep.mubr.bf16.mxu0 0
    %5260 = vmatmul.mubr.bf16.gmra.mrb[0].mxu0 %v4386
    %v5261 = vpop.f32.mrb[0].mxu0
    %v5262 = vadd.f32 %v3470, %v5261
    %v5263 = vpop.f32.mrb[0].mxu0
    %v5264 = vpop.f32.mrb[0].mxu0
    %v5265 = vadd.f32 %v3470, %v5264
    %v5266 = vpop.f32.mrb[0].mxu0
    %5267 = vmatprep.mubr.bf16.mxu0 0
    %5268 = vmatmul.mubr.bf16.gmra.mrb[0].mxu0 %v4389
    %v5269 = vpop.f32.mrb[0].mxu0
    %v5270 = vadd.f32 %v3470, %v5269
    %v5271 = vpop.f32.mrb[0].mxu0
    %v5272 = vpop.f32.mrb[0].mxu0
    %v5273 = vadd.f32 %v3470, %v5272
    %v5274 = vpop.f32.mrb[0].mxu0
    %5275 = vmatprep.mubr.bf16.mxu0 0
    %5276 = vmatmul.mubr.bf16.gmra.mrb[0].mxu0 %v4392
    %v5277 = vpop.f32.mrb[0].mxu0
    %v5278 = vadd.f32 %v3470, %v5277
    %v5279 = vpop.f32.mrb[0].mxu0
    %v5280 = vpop.f32.mrb[0].mxu0
    %v5281 = vadd.f32 %v3470, %v5280
    %v5282 = vpop.f32.mrb[0].mxu0
    %5283 = vmatprep.mubr.bf16.mxu0 0
    %5284 = vmatmul.mubr.bf16.gmra.mrb[0].mxu0 %v4395
    %v5285 = vpop.f32.mrb[0].mxu0
    %v5286 = vadd.f32 %v3470, %v5285
    %v5287 = vpop.f32.mrb[0].mxu0
    %v5288 = vpop.f32.mrb[0].mxu0
    %v5289 = vadd.f32 %v3470, %v5288
    %v5290 = vpop.f32.mrb[0].mxu0
    %5291 = vmatprep.mubr.bf16.mxu0 0
    %5292 = vmatmul.mubr.bf16.gmra.mrb[0].mxu0 %v4398
    %v5293 = vpop.f32.mrb[0].mxu0
    %v5294 = vadd.f32 %v3470, %v5293
    %v5295 = vpop.f32.mrb[0].mxu0
    %v5296 = vpop.f32.mrb[0].mxu0
    %v5297 = vadd.f32 %v3470, %v5296
    %v5298 = vpop.f32.mrb[0].mxu0
    %5299 = vmatprep.mubr.bf16.mxu0 0
    %5300 = vmatmul.mubr.bf16.gmra.mrb[0].mxu0 %v4401
    %v5301 = vpop.f32.mrb[0].mxu0
    %v5302 = vadd.f32 %v3470, %v5301
    %v5303 = vpop.f32.mrb[0].mxu0
    %v5304 = vpop.f32.mrb[0].mxu0
    %v5305 = vadd.f32 %v3470, %v5304
    %v5306 = vpop.f32.mrb[0].mxu0
    %5307 = vmatprep.mubr.bf16.mxu0 0
    %5308 = vmatmul.mubr.bf16.gmra.mrb[0].mxu0 %v4404
    %v5309 = vpop.f32.mrb[0].mxu0
    %v5310 = vadd.f32 %v3470, %v5309
    %v5311 = vpop.f32.mrb[0].mxu0
    %v5312 = vpop.f32.mrb[0].mxu0
    %v5313 = vadd.f32 %v3470, %v5312
    %v5314 = vpop.f32.mrb[0].mxu0
    %5315 = vmatprep.mubr.bf16.mxu0 0
    %5316 = vmatmul.mubr.bf16.gmra.mrb[0].mxu0 %v4407
    %v5317 = vpop.f32.mrb[0].mxu0
    %v5318 = vadd.f32 %v3470, %v5317
    %v5319 = vpop.f32.mrb[0].mxu0
    %v5320 = vpop.f32.mrb[0].mxu0
    %v5321 = vadd.f32 %v3470, %v5320
    %v5322 = vpop.f32.mrb[0].mxu0
    %5323 = vmatprep.mubr.bf16.mxu0 0
    %5324 = vmatmul.mubr.bf16.gmra.mrb[0].mxu0 %v4410
    %v5325 = vpop.f32.mrb[0].mxu0
    %v5326 = vadd.f32 %v3470, %v5325
    %v5327 = vpop.f32.mrb[0].mxu0
    %v5328 = vpop.f32.mrb[0].mxu0
    %v5329 = vadd.f32 %v3470, %v5328
    %v5330 = vpop.f32.mrb[0].mxu0
    %5331 = vmatprep.mubr.bf16.mxu0 0
    %5332 = vmatmul.mubr.bf16.gmra.mrb[0].mxu0 %v4413
    %v5333 = vpop.f32.mrb[0].mxu0
    %v5334 = vadd.f32 %v3470, %v5333
    %v5335 = vpop.f32.mrb[0].mxu0
    %v5336 = vpop.f32.mrb[0].mxu0
    %v5337 = vadd.f32 %v3470, %v5336
    %v5338 = vpop.f32.mrb[0].mxu0
    %5339 = vmatprep.mubr.bf16.mxu0 0
    %5340 = vmatmul.mubr.bf16.gmra.mrb[0].mxu0 %v4416
    %v5341 = vpop.f32.mrb[0].mxu0
    %v5342 = vadd.f32 %v3470, %v5341
    %v5343 = vpop.f32.mrb[0].mxu0
    %v5344 = vpop.f32.mrb[0].mxu0
    %v5345 = vadd.f32 %v3470, %v5344
    %v5346 = vpop.f32.mrb[0].mxu0
    %5347 = vmatprep.mubr.bf16.mxu0 0
    %5348 = vmatmul.mubr.bf16.gmra.mrb[0].mxu0 %v4419
    %v5349 = vpop.f32.mrb[0].mxu0
    %v5350 = vadd.f32 %v3470, %v5349
    %v5351 = vpop.f32.mrb[0].mxu0
    %v5352 = vpop.f32.mrb[0].mxu0
    %v5353 = vadd.f32 %v3470, %v5352
    %v5354 = vpop.f32.mrb[0].mxu0
    %5355 = vmatprep.mubr.bf16.mxu0 0
    %5356 = vmatmul.mubr.bf16.gmra.mrb[0].mxu0 %v4422
    %v5357 = vpop.f32.mrb[0].mxu0
    %v5358 = vadd.f32 %v3470, %v5357
    %v5359 = vpop.f32.mrb[0].mxu0
    %v5360 = vpop.f32.mrb[0].mxu0
    %v5361 = vadd.f32 %v3470, %v5360
    %v5362 = vpop.f32.mrb[0].mxu0
    %5363 = vmatprep.mubr.bf16.mxu0 0
    %5364 = vmatmul.mubr.bf16.gmra.mrb[0].mxu0 %v4425
    %v5365 = vpop.f32.mrb[0].mxu0
    %v5366 = vadd.f32 %v3470, %v5365
    %v5367 = vpop.f32.mrb[0].mxu0
    %v5368 = vpop.f32.mrb[0].mxu0
    %v5369 = vadd.f32 %v3470, %v5368
    %v5370 = vpop.f32.mrb[0].mxu0
    %5371 = vmatprep.mubr.bf16.mxu0 0
    %5372 = vmatmul.mubr.bf16.gmra.mrb[0].mxu0 %v4428
    %v5373 = vpop.f32.mrb[0].mxu0
    %v5374 = vadd.f32 %v3470, %v5373
    %v5375 = vpop.f32.mrb[0].mxu0
    %v5376 = vpop.f32.mrb[0].mxu0
    %v5377 = vadd.f32 %v3470, %v5376
    %v5378 = vpop.f32.mrb[0].mxu0
    %5379 = vmatprep.mubr.bf16.mxu0 0
    %5380 = vmatmul.mubr.bf16.gmra.mrb[0].mxu0 %v4431
    %v5381 = vpop.f32.mrb[0].mxu0
    %v5382 = vadd.f32 %v3470, %v5381
    %v5383 = vpop.f32.mrb[0].mxu0
    %v5384 = vpop.f32.mrb[0].mxu0
    %v5385 = vadd.f32 %v3470, %v5384
    %v5386 = vpop.f32.mrb[0].mxu0
    %5387 = vmatprep.mubr.bf16.mxu0 0
    %5388 = vmatmul.mubr.bf16.gmra.mrb[0].mxu0 %v4434
    %v5389 = vpop.f32.mrb[0].mxu0
    %v5390 = vadd.f32 %v3470, %v5389
    %v5391 = vpop.f32.mrb[0].mxu0
    %v5392 = vpop.f32.mrb[0].mxu0
    %v5393 = vadd.f32 %v3470, %v5392
    %v5394 = vpop.f32.mrb[0].mxu0
    %5395 = vmatprep.mubr.bf16.mxu0 0
    %5396 = vmatmul.mubr.bf16.gmra.mrb[0].mxu0 %v4437
    %v5397 = vpop.f32.mrb[0].mxu0
    %v5398 = vadd.f32 %v3470, %v5397
    %v5399 = vpop.f32.mrb[0].mxu0
    %v5400 = vpop.f32.mrb[0].mxu0
    %v5401 = vadd.f32 %v3470, %v5400
    %v5402 = vpop.f32.mrb[0].mxu0
    %5403 = vmatprep.mubr.bf16.mxu0 0
    %5404 = vmatmul.mubr.bf16.gmra.mrb[0].mxu0 %v4440
    %v5405 = vpop.f32.mrb[0].mxu0
    %v5406 = vadd.f32 %v3470, %v5405
    %v5407 = vpop.f32.mrb[0].mxu0
    %v5408 = vpop.f32.mrb[0].mxu0
    %v5409 = vadd.f32 %v3470, %v5408
    %v5410 = vpop.f32.mrb[0].mxu0
    %5411 = vmatprep.mubr.bf16.mxu0 0
    %5412 = vmatmul.mubr.bf16.gmra.mrb[0].mxu0 %v4443
    %v5413 = vpop.f32.mrb[0].mxu0
    %v5414 = vadd.f32 %v3470, %v5413
    %v5415 = vpop.f32.mrb[0].mxu0
    %v5416 = vpop.f32.mrb[0].mxu0
    %v5417 = vadd.f32 %v3470, %v5416
    %v5418 = vpop.f32.mrb[0].mxu0
    %5419 = vmatprep.mubr.bf16.mxu0 0
    %5420 = vmatmul.mubr.bf16.gmra.mrb[0].mxu0 %v4446
    %v5421 = vpop.f32.mrb[0].mxu0
    %v5422 = vadd.f32 %v3470, %v5421
    %v5423 = vpop.f32.mrb[0].mxu0
    %v5424 = vpop.f32.mrb[0].mxu0
    %v5425 = vadd.f32 %v3470, %v5424
    %v5426 = vpop.f32.mrb[0].mxu0
    %5427 = vmatprep.mubr.bf16.mxu0 0
    %5428 = vmatmul.mubr.bf16.gmra.mrb[0].mxu0 %v4449
    %v5429 = vpop.f32.mrb[0].mxu0
    %v5430 = vadd.f32 %v3470, %v5429
    %v5431 = vpop.f32.mrb[0].mxu0
    %v5432 = vpop.f32.mrb[0].mxu0
    %v5433 = vadd.f32 %v3470, %v5432
    %v5434 = vpop.f32.mrb[0].mxu0
    %5435 = vmatprep.mubr.bf16.mxu0 0
    %5436 = vmatmul.mubr.bf16.gmra.mrb[0].mxu0 %v4452
    %v5437 = vpop.f32.mrb[0].mxu0
    %v5438 = vadd.f32 %v3470, %v5437
    %v5439 = vpop.f32.mrb[0].mxu0
    %v5440 = vpop.f32.mrb[0].mxu0
    %v5441 = vadd.f32 %v3470, %v5440
    %v5442 = vpop.f32.mrb[0].mxu0
    %5443 = vmatprep.mubr.bf16.mxu0 0
    %5444 = vmatmul.mubr.bf16.gmra.mrb[0].mxu0 %v4455
    %v5445 = vpop.f32.mrb[0].mxu0
    %v5446 = vadd.f32 %v3470, %v5445
    %v5447 = vpop.f32.mrb[0].mxu0
    %v5448 = vpop.f32.mrb[0].mxu0
    %v5449 = vadd.f32 %v3470, %v5448
    %v5450 = vpop.f32.mrb[0].mxu0
    %5451 = vmatprep.mubr.bf16.mxu0 0
    %5452 = vmatmul.mubr.bf16.gmra.mrb[0].mxu0 %v4458
    %v5453 = vpop.f32.mrb[0].mxu0
    %v5454 = vadd.f32 %v3470, %v5453
    %v5455 = vpop.f32.mrb[0].mxu0
    %v5456 = vpop.f32.mrb[0].mxu0
    %v5457 = vadd.f32 %v3470, %v5456
    %v5458 = vpop.f32.mrb[0].mxu0
    %5459 = vmatprep.mubr.bf16.mxu0 0
    %5460 = vmatmul.mubr.bf16.gmra.mrb[0].mxu0 %v4461
    %v5461 = vpop.f32.mrb[0].mxu0
    %v5462 = vadd.f32 %v3470, %v5461
    %v5463 = vpop.f32.mrb[0].mxu0
    %v5464 = vpop.f32.mrb[0].mxu0
    %v5465 = vadd.f32 %v3470, %v5464
    %v5466 = vpop.f32.mrb[0].mxu0
    %5467 = vmatprep.mubr.bf16.mxu0 0
    %5468 = vmatmul.mubr.bf16.gmra.mrb[0].mxu0 %v4464
    %v5469 = vpop.f32.mrb[0].mxu0
    %v5470 = vadd.f32 %v3470, %v5469
    %v5471 = vpop.f32.mrb[0].mxu0
    %v5472 = vpop.f32.mrb[0].mxu0
    %v5473 = vadd.f32 %v3470, %v5472
    %v5474 = vpop.f32.mrb[0].mxu0
    %5475 = vmatprep.mubr.bf16.mxu0 0
    %5476 = vmatmul.mubr.bf16.gmra.mrb[0].mxu0 %v4467
    %v5477 = vpop.f32.mrb[0].mxu0
    %v5478 = vadd.f32 %v3470, %v5477
    %v5479 = vpop.f32.mrb[0].mxu0
    %v5480 = vpop.f32.mrb[0].mxu0
    %v5481 = vadd.f32 %v3470, %v5480
    %v5482 = vpop.f32.mrb[0].mxu0
    %5483 = vmatprep.mubr.bf16.mxu0 0
    %5484 = vmatmul.mubr.bf16.gmra.mrb[0].mxu0 %v4470
    %v5485 = vpop.f32.mrb[0].mxu0
    %v5486 = vadd.f32 %v3470, %v5485
    %v5487 = vpop.f32.mrb[0].mxu0
    %v5488 = vpop.f32.mrb[0].mxu0
    %v5489 = vadd.f32 %v3470, %v5488
    %v5490 = vpop.f32.mrb[0].mxu0
    %5491 = vmatprep.mubr.bf16.mxu0 0
    %5492 = vmatmul.mubr.bf16.gmra.mrb[0].mxu0 %v4473
    %v5493 = vpop.f32.mrb[0].mxu0
    %v5494 = vadd.f32 %v3470, %v5493
    %v5495 = vpop.f32.mrb[0].mxu0
    %v5496 = vpop.f32.mrb[0].mxu0
    %v5497 = vadd.f32 %v3470, %v5496
    %v5498 = vpop.f32.mrb[0].mxu0
    %5499 = vmatprep.mubr.bf16.mxu0 0
    %5500 = vmatmul.mubr.bf16.gmra.mrb[0].mxu0 %v4476
    %v5501 = vpop.f32.mrb[0].mxu0
    %v5502 = vadd.f32 %v3470, %v5501
    %v5503 = vpop.f32.mrb[0].mxu0
    %v5504 = vpop.f32.mrb[0].mxu0
    %v5505 = vadd.f32 %v3470, %v5504
    %v5506 = vpop.f32.mrb[0].mxu0
    %5507 = vmatprep.mubr.bf16.mxu0 0
    %5508 = vmatmul.mubr.bf16.gmra.mrb[0].mxu0 %v4479
    %v5509 = vpop.f32.mrb[0].mxu0
    %v5510 = vadd.f32 %v3470, %v5509
    %v5511 = vpop.f32.mrb[0].mxu0
    %v5512 = vpop.f32.mrb[0].mxu0
    %v5513 = vadd.f32 %v3470, %v5512
    %v5514 = vpop.f32.mrb[0].mxu0
    %5515 = vmatprep.mubr.bf16.mxu0 0
    %5516 = vmatmul.mubr.bf16.gmra.mrb[0].mxu0 %v4482
    %v5517 = vpop.f32.mrb[0].mxu0
    %v5518 = vadd.f32 %v3470, %v5517
    %v5519 = vpop.f32.mrb[0].mxu0
    %v5520 = vpop.f32.mrb[0].mxu0
    %v5521 = vadd.f32 %v3470, %v5520
    %v5522 = vpop.f32.mrb[0].mxu0
    %5523 = vmatprep.mubr.bf16.mxu0 0
    %5524 = vmatmul.mubr.bf16.gmra.mrb[0].mxu0 %v4485
    %v5525 = vpop.f32.mrb[0].mxu0
    %v5526 = vadd.f32 %v3470, %v5525
    %v5527 = vpop.f32.mrb[0].mxu0
    %v5528 = vpop.f32.mrb[0].mxu0
    %v5529 = vadd.f32 %v3470, %v5528
    %v5530 = vpop.f32.mrb[0].mxu0
    %5531 = vmatprep.mubr.bf16.mxu0 0
    %5532 = vmatmul.mubr.bf16.gmra.mrb[0].mxu0 %v4488
    %v5533 = vpop.f32.mrb[0].mxu0
    %v5534 = vadd.f32 %v3470, %v5533
    %v5535 = vpop.f32.mrb[0].mxu0
    %v5536 = vpop.f32.mrb[0].mxu0
    %v5537 = vadd.f32 %v3470, %v5536
    %v5538 = vpop.f32.mrb[0].mxu0
    %5539 = vmatprep.mubr.bf16.mxu0 0
    %5540 = vmatmul.mubr.bf16.gmra.mrb[0].mxu0 %v4491
    %v5541 = vpop.f32.mrb[0].mxu0
    %v5542 = vadd.f32 %v3470, %v5541
    %v5543 = vpop.f32.mrb[0].mxu0
    %v5544 = vpop.f32.mrb[0].mxu0
    %v5545 = vadd.f32 %v3470, %v5544
    %v5546 = vpop.f32.mrb[0].mxu0
    %5547 = vmatprep.mubr.bf16.mxu0 0
    %5548 = vmatmul.mubr.bf16.gmra.mrb[0].mxu0 %v4494
    %v5549 = vpop.f32.mrb[0].mxu0
    %v5550 = vadd.f32 %v3470, %v5549
    %v5551 = vpop.f32.mrb[0].mxu0
    %v5552 = vpop.f32.mrb[0].mxu0
    %v5553 = vadd.f32 %v3470, %v5552
    %v5554 = vpop.f32.mrb[0].mxu0
    %5555 = vdwg.mxu0
    %v5556 = vmax.f32 %v4534, 0.0
    %v5557 = vmax.f32 %v4537, 0.0
    %v5558 = vmax.f32 %v4542, 0.0
    %v5559 = vmax.f32 %v4545, 0.0
    %v5560 = vmax.f32 %v4550, 0.0
    %v5561 = vmax.f32 %v4553, 0.0
    %v5562 = vmax.f32 %v4558, 0.0
    %v5563 = vmax.f32 %v4561, 0.0
    %v5564 = vmax.f32 %v4566, 0.0
    %v5565 = vmax.f32 %v4569, 0.0
    %v5566 = vmax.f32 %v4574, 0.0
    %v5567 = vmax.f32 %v4577, 0.0
    %v5568 = vmax.f32 %v4582, 0.0
    %v5569 = vmax.f32 %v4585, 0.0
    %v5570 = vmax.f32 %v4590, 0.0
    %v5571 = vmax.f32 %v4593, 0.0
    %v5572 = vmax.f32 %v4598, 0.0
    %v5573 = vmax.f32 %v4601, 0.0
    %v5574 = vmax.f32 %v4606, 0.0
    %v5575 = vmax.f32 %v4609, 0.0
    %v5576 = vmax.f32 %v4614, 0.0
    %v5577 = vmax.f32 %v4617, 0.0
    %v5578 = vmax.f32 %v4622, 0.0
    %v5579 = vmax.f32 %v4625, 0.0
    %v5580 = vmax.f32 %v4630, 0.0
    %v5581 = vmax.f32 %v4633, 0.0
    %v5582 = vmax.f32 %v4638, 0.0
    %v5583 = vmax.f32 %v4641, 0.0
    %v5584 = vmax.f32 %v4646, 0.0
    %v5585 = vmax.f32 %v4649, 0.0
    %v5586 = vmax.f32 %v4654, 0.0
    %v5587 = vmax.f32 %v4657, 0.0
    %v5588 = vmax.f32 %v4662, 0.0
    %v5589 = vmax.f32 %v4665, 0.0
    %v5590 = vmax.f32 %v4670, 0.0
    %v5591 = vmax.f32 %v4673, 0.0
    %v5592 = vmax.f32 %v4678, 0.0
    %v5593 = vmax.f32 %v4681, 0.0
    %v5594 = vmax.f32 %v4686, 0.0
    %v5595 = vmax.f32 %v4689, 0.0
    %v5596 = vmax.f32 %v4694, 0.0
    %v5597 = vmax.f32 %v4697, 0.0
    %v5598 = vmax.f32 %v4702, 0.0
    %v5599 = vmax.f32 %v4705, 0.0
    %v5600 = vmax.f32 %v4710, 0.0
    %v5601 = vmax.f32 %v4713, 0.0
    %v5602 = vmax.f32 %v4718, 0.0
    %v5603 = vmax.f32 %v4721, 0.0
    %v5604 = vmax.f32 %v4726, 0.0
    %v5605 = vmax.f32 %v4729, 0.0
    %v5606 = vmax.f32 %v4734, 0.0
    %v5607 = vmax.f32 %v4737, 0.0
    %v5608 = vmax.f32 %v4742, 0.0
    %v5609 = vmax.f32 %v4745, 0.0
    %v5610 = vmax.f32 %v4750, 0.0
    %v5611 = vmax.f32 %v4753, 0.0
    %v5612 = vmax.f32 %v4758, 0.0
    %v5613 = vmax.f32 %v4761, 0.0
    %v5614 = vmax.f32 %v4766, 0.0
    %v5615 = vmax.f32 %v4769, 0.0
    %v5616 = vmax.f32 %v4774, 0.0
    %v5617 = vmax.f32 %v4777, 0.0
    %v5618 = vmax.f32 %v4782, 0.0
    %v5619 = vmax.f32 %v4785, 0.0
    %v5620 = vmax.f32 %v4790, 0.0
    %v5621 = vmax.f32 %v4793, 0.0
    %v5622 = vmax.f32 %v4798, 0.0
    %v5623 = vmax.f32 %v4801, 0.0
    %v5624 = vmax.f32 %v4806, 0.0
    %v5625 = vmax.f32 %v4809, 0.0
    %v5626 = vmax.f32 %v4814, 0.0
    %v5627 = vmax.f32 %v4817, 0.0
    %v5628 = vmax.f32 %v4822, 0.0
    %v5629 = vmax.f32 %v4825, 0.0
    %v5630 = vmax.f32 %v4830, 0.0
    %v5631 = vmax.f32 %v4833, 0.0
    %v5632 = vmax.f32 %v4838, 0.0
    %v5633 = vmax.f32 %v4841, 0.0
    %v5634 = vmax.f32 %v4846, 0.0
    %v5635 = vmax.f32 %v4849, 0.0
    %v5636 = vmax.f32 %v4854, 0.0
    %v5637 = vmax.f32 %v4857, 0.0
    %v5638 = vmax.f32 %v4862, 0.0
    %v5639 = vmax.f32 %v4865, 0.0
    %v5640 = vmax.f32 %v4870, 0.0
    %v5641 = vmax.f32 %v4873, 0.0
    %v5642 = vmax.f32 %v4878, 0.0
    %v5643 = vmax.f32 %v4881, 0.0
    %v5644 = vmax.f32 %v4886, 0.0
    %v5645 = vmax.f32 %v4889, 0.0
    %v5646 = vmax.f32 %v4894, 0.0
    %v5647 = vmax.f32 %v4897, 0.0
    %v5648 = vmax.f32 %v4902, 0.0
    %v5649 = vmax.f32 %v4905, 0.0
    %v5650 = vmax.f32 %v4910, 0.0
    %v5651 = vmax.f32 %v4913, 0.0
    %v5652 = vmax.f32 %v4918, 0.0
    %v5653 = vmax.f32 %v4921, 0.0
    %v5654 = vmax.f32 %v4926, 0.0
    %v5655 = vmax.f32 %v4929, 0.0
    %v5656 = vmax.f32 %v4934, 0.0
    %v5657 = vmax.f32 %v4937, 0.0
    %v5658 = vmax.f32 %v4942, 0.0
    %v5659 = vmax.f32 %v4945, 0.0
    %v5660 = vmax.f32 %v4950, 0.0
    %v5661 = vmax.f32 %v4953, 0.0
    %v5662 = vmax.f32 %v4958, 0.0
    %v5663 = vmax.f32 %v4961, 0.0
    %v5664 = vmax.f32 %v4966, 0.0
    %v5665 = vmax.f32 %v4969, 0.0
    %v5666 = vmax.f32 %v4974, 0.0
    %v5667 = vmax.f32 %v4977, 0.0
    %v5668 = vmax.f32 %v4982, 0.0
    %v5669 = vmax.f32 %v4985, 0.0
    %v5670 = vmax.f32 %v4990, 0.0
    %v5671 = vmax.f32 %v4993, 0.0
    %v5672 = vmax.f32 %v4998, 0.0
    %v5673 = vmax.f32 %v5001, 0.0
    %v5674 = vmax.f32 %v5006, 0.0
    %v5675 = vmax.f32 %v5009, 0.0
    %v5676 = vmax.f32 %v5014, 0.0
    %v5677 = vmax.f32 %v5017, 0.0
    %v5678 = vmax.f32 %v5022, 0.0
    %v5679 = vmax.f32 %v5025, 0.0
    %v5680 = vmax.f32 %v5030, 0.0
    %v5681 = vmax.f32 %v5033, 0.0
    %v5682 = vmax.f32 %v5038, 0.0
    %v5683 = vmax.f32 %v5041, 0.0
    %v5684 = vmax.f32 %v5046, 0.0
    %v5685 = vmax.f32 %v5049, 0.0
    %v5686 = vmax.f32 %v5054, 0.0
    %v5687 = vmax.f32 %v5057, 0.0
    %v5688 = vmax.f32 %v5062, 0.0
    %v5689 = vmax.f32 %v5065, 0.0
    %v5690 = vmax.f32 %v5070, 0.0
    %v5691 = vmax.f32 %v5073, 0.0
    %v5692 = vmax.f32 %v5078, 0.0
    %v5693 = vmax.f32 %v5081, 0.0
    %v5694 = vmax.f32 %v5086, 0.0
    %v5695 = vmax.f32 %v5089, 0.0
    %v5696 = vmax.f32 %v5094, 0.0
    %v5697 = vmax.f32 %v5097, 0.0
    %v5698 = vmax.f32 %v5102, 0.0
    %v5699 = vmax.f32 %v5105, 0.0
    %v5700 = vmax.f32 %v5110, 0.0
    %v5701 = vmax.f32 %v5113, 0.0
    %v5702 = vmax.f32 %v5118, 0.0
    %v5703 = vmax.f32 %v5121, 0.0
    %v5704 = vmax.f32 %v5126, 0.0
    %v5705 = vmax.f32 %v5129, 0.0
    %v5706 = vmax.f32 %v5134, 0.0
    %v5707 = vmax.f32 %v5137, 0.0
    %v5708 = vmax.f32 %v5142, 0.0
    %v5709 = vmax.f32 %v5145, 0.0
    %v5710 = vmax.f32 %v5150, 0.0
    %v5711 = vmax.f32 %v5153, 0.0
    %v5712 = vmax.f32 %v5158, 0.0
    %v5713 = vmax.f32 %v5161, 0.0
    %v5714 = vmax.f32 %v5166, 0.0
    %v5715 = vmax.f32 %v5169, 0.0
    %v5716 = vmax.f32 %v5174, 0.0
    %v5717 = vmax.f32 %v5177, 0.0
    %v5718 = vmax.f32 %v5182, 0.0
    %v5719 = vmax.f32 %v5185, 0.0
    %v5720 = vmax.f32 %v5190, 0.0
    %v5721 = vmax.f32 %v5193, 0.0
    %v5722 = vmax.f32 %v5198, 0.0
    %v5723 = vmax.f32 %v5201, 0.0
    %v5724 = vmax.f32 %v5206, 0.0
    %v5725 = vmax.f32 %v5209, 0.0
    %v5726 = vmax.f32 %v5214, 0.0
    %v5727 = vmax.f32 %v5217, 0.0
    %v5728 = vmax.f32 %v5222, 0.0
    %v5729 = vmax.f32 %v5225, 0.0
    %v5730 = vmax.f32 %v5230, 0.0
    %v5731 = vmax.f32 %v5233, 0.0
    %v5732 = vmax.f32 %v5238, 0.0
    %v5733 = vmax.f32 %v5241, 0.0
    %v5734 = vmax.f32 %v5246, 0.0
    %v5735 = vmax.f32 %v5249, 0.0
    %v5736 = vmax.f32 %v5254, 0.0
    %v5737 = vmax.f32 %v5257, 0.0
    %v5738 = vmax.f32 %v5262, 0.0
    %v5739 = vmax.f32 %v5265, 0.0
    %v5740 = vmax.f32 %v5270, 0.0
    %v5741 = vmax.f32 %v5273, 0.0
    %v5742 = vmax.f32 %v5278, 0.0
    %v5743 = vmax.f32 %v5281, 0.0
    %v5744 = vmax.f32 %v5286, 0.0
    %v5745 = vmax.f32 %v5289, 0.0
    %v5746 = vmax.f32 %v5294, 0.0
    %v5747 = vmax.f32 %v5297, 0.0
    %v5748 = vmax.f32 %v5302, 0.0
    %v5749 = vmax.f32 %v5305, 0.0
    %v5750 = vmax.f32 %v5310, 0.0
    %v5751 = vmax.f32 %v5313, 0.0
    %v5752 = vmax.f32 %v5318, 0.0
    %v5753 = vmax.f32 %v5321, 0.0
    %v5754 = vmax.f32 %v5326, 0.0
    %v5755 = vmax.f32 %v5329, 0.0
    %v5756 = vmax.f32 %v5334, 0.0
    %v5757 = vmax.f32 %v5337, 0.0
    %v5758 = vmax.f32 %v5342, 0.0
    %v5759 = vmax.f32 %v5345, 0.0
    %v5760 = vmax.f32 %v5350, 0.0
    %v5761 = vmax.f32 %v5353, 0.0
    %v5762 = vmax.f32 %v5358, 0.0
    %v5763 = vmax.f32 %v5361, 0.0
    %v5764 = vmax.f32 %v5366, 0.0
    %v5765 = vmax.f32 %v5369, 0.0
    %v5766 = vmax.f32 %v5374, 0.0
    %v5767 = vmax.f32 %v5377, 0.0
    %v5768 = vmax.f32 %v5382, 0.0
    %v5769 = vmax.f32 %v5385, 0.0
    %v5770 = vmax.f32 %v5390, 0.0
    %v5771 = vmax.f32 %v5393, 0.0
    %v5772 = vmax.f32 %v5398, 0.0
    %v5773 = vmax.f32 %v5401, 0.0
    %v5774 = vmax.f32 %v5406, 0.0
    %v5775 = vmax.f32 %v5409, 0.0
    %v5776 = vmax.f32 %v5414, 0.0
    %v5777 = vmax.f32 %v5417, 0.0
    %v5778 = vmax.f32 %v5422, 0.0
    %v5779 = vmax.f32 %v5425, 0.0
    %v5780 = vmax.f32 %v5430, 0.0
    %v5781 = vmax.f32 %v5433, 0.0
    %v5782 = vmax.f32 %v5438, 0.0
    %v5783 = vmax.f32 %v5441, 0.0
    %v5784 = vmax.f32 %v5446, 0.0
    %v5785 = vmax.f32 %v5449, 0.0
    %v5786 = vmax.f32 %v5454, 0.0
    %v5787 = vmax.f32 %v5457, 0.0
    %v5788 = vmax.f32 %v5462, 0.0
    %v5789 = vmax.f32 %v5465, 0.0
    %v5790 = vmax.f32 %v5470, 0.0
    %v5791 = vmax.f32 %v5473, 0.0
    %v5792 = vmax.f32 %v5478, 0.0
    %v5793 = vmax.f32 %v5481, 0.0
    %v5794 = vmax.f32 %v5486, 0.0
    %v5795 = vmax.f32 %v5489, 0.0
    %v5796 = vmax.f32 %v5494, 0.0
    %v5797 = vmax.f32 %v5497, 0.0
    %v5798 = vmax.f32 %v5502, 0.0
    %v5799 = vmax.f32 %v5505, 0.0
    %v5800 = vmax.f32 %v5510, 0.0
    %v5801 = vmax.f32 %v5513, 0.0
    %v5802 = vmax.f32 %v5518, 0.0
    %v5803 = vmax.f32 %v5521, 0.0
    %v5804 = vmax.f32 %v5526, 0.0
    %v5805 = vmax.f32 %v5529, 0.0
    %v5806 = vmax.f32 %v5534, 0.0
    %v5807 = vmax.f32 %v5537, 0.0
    %v5808 = vmax.f32 %v5542, 0.0
    %v5809 = vmax.f32 %v5545, 0.0
    %v5810 = vmax.f32 %v5550, 0.0
    %v5811 = vmax.f32 %v5553, 0.0
    %v5812 = vpack.c.bf16 %v5557, %v5556
    %v5813 = vpack.c.bf16 %v5559, %v5558
    %v5814 = vpack.c.bf16 %v5561, %v5560
    %v5815 = vpack.c.bf16 %v5563, %v5562
    %v5816 = vpack.c.bf16 %v5565, %v5564
    %v5817 = vpack.c.bf16 %v5567, %v5566
    %v5818 = vpack.c.bf16 %v5569, %v5568
    %v5819 = vpack.c.bf16 %v5571, %v5570
    %v5820 = vpack.c.bf16 %v5573, %v5572
    %v5821 = vpack.c.bf16 %v5575, %v5574
    %v5822 = vpack.c.bf16 %v5577, %v5576
    %v5823 = vpack.c.bf16 %v5579, %v5578
    %v5824 = vpack.c.bf16 %v5581, %v5580
    %v5825 = vpack.c.bf16 %v5583, %v5582
    %v5826 = vpack.c.bf16 %v5585, %v5584
    %v5827 = vpack.c.bf16 %v5587, %v5586
    %v5828 = vpack.c.bf16 %v5589, %v5588
    %v5829 = vpack.c.bf16 %v5591, %v5590
    %v5830 = vpack.c.bf16 %v5593, %v5592
    %v5831 = vpack.c.bf16 %v5595, %v5594
    %v5832 = vpack.c.bf16 %v5597, %v5596
    %v5833 = vpack.c.bf16 %v5599, %v5598
    %v5834 = vpack.c.bf16 %v5601, %v5600
    %v5835 = vpack.c.bf16 %v5603, %v5602
    %v5836 = vpack.c.bf16 %v5605, %v5604
    %v5837 = vpack.c.bf16 %v5607, %v5606
    %v5838 = vpack.c.bf16 %v5609, %v5608
    %v5839 = vpack.c.bf16 %v5611, %v5610
    %v5840 = vpack.c.bf16 %v5613, %v5612
    %v5841 = vpack.c.bf16 %v5615, %v5614
    %v5842 = vpack.c.bf16 %v5617, %v5616
    %v5843 = vpack.c.bf16 %v5619, %v5618
    %v5844 = vpack.c.bf16 %v5621, %v5620
    %v5845 = vpack.c.bf16 %v5623, %v5622
    %v5846 = vpack.c.bf16 %v5625, %v5624
    %v5847 = vpack.c.bf16 %v5627, %v5626
    %v5848 = vpack.c.bf16 %v5629, %v5628
    %v5849 = vpack.c.bf16 %v5631, %v5630
    %v5850 = vpack.c.bf16 %v5633, %v5632
    %v5851 = vpack.c.bf16 %v5635, %v5634
    %v5852 = vpack.c.bf16 %v5637, %v5636
    %v5853 = vpack.c.bf16 %v5639, %v5638
    %v5854 = vpack.c.bf16 %v5641, %v5640
    %v5855 = vpack.c.bf16 %v5643, %v5642
    %v5856 = vpack.c.bf16 %v5645, %v5644
    %v5857 = vpack.c.bf16 %v5647, %v5646
    %v5858 = vpack.c.bf16 %v5649, %v5648
    %v5859 = vpack.c.bf16 %v5651, %v5650
    %v5860 = vpack.c.bf16 %v5653, %v5652
    %v5861 = vpack.c.bf16 %v5655, %v5654
    %v5862 = vpack.c.bf16 %v5657, %v5656
    %v5863 = vpack.c.bf16 %v5659, %v5658
    %v5864 = vpack.c.bf16 %v5661, %v5660
    %v5865 = vpack.c.bf16 %v5663, %v5662
    %v5866 = vpack.c.bf16 %v5665, %v5664
    %v5867 = vpack.c.bf16 %v5667, %v5666
    %v5868 = vpack.c.bf16 %v5669, %v5668
    %v5869 = vpack.c.bf16 %v5671, %v5670
    %v5870 = vpack.c.bf16 %v5673, %v5672
    %v5871 = vpack.c.bf16 %v5675, %v5674
    %v5872 = vpack.c.bf16 %v5677, %v5676
    %v5873 = vpack.c.bf16 %v5679, %v5678
    %v5874 = vpack.c.bf16 %v5681, %v5680
    %v5875 = vpack.c.bf16 %v5683, %v5682
    %v5876 = vpack.c.bf16 %v5685, %v5684
    %v5877 = vpack.c.bf16 %v5687, %v5686
    %v5878 = vpack.c.bf16 %v5689, %v5688
    %v5879 = vpack.c.bf16 %v5691, %v5690
    %v5880 = vpack.c.bf16 %v5693, %v5692
    %v5881 = vpack.c.bf16 %v5695, %v5694
    %v5882 = vpack.c.bf16 %v5697, %v5696
    %v5883 = vpack.c.bf16 %v5699, %v5698
    %v5884 = vpack.c.bf16 %v5701, %v5700
    %v5885 = vpack.c.bf16 %v5703, %v5702
    %v5886 = vpack.c.bf16 %v5705, %v5704
    %v5887 = vpack.c.bf16 %v5707, %v5706
    %v5888 = vpack.c.bf16 %v5709, %v5708
    %v5889 = vpack.c.bf16 %v5711, %v5710
    %v5890 = vpack.c.bf16 %v5713, %v5712
    %v5891 = vpack.c.bf16 %v5715, %v5714
    %v5892 = vpack.c.bf16 %v5717, %v5716
    %v5893 = vpack.c.bf16 %v5719, %v5718
    %v5894 = vpack.c.bf16 %v5721, %v5720
    %v5895 = vpack.c.bf16 %v5723, %v5722
    %v5896 = vpack.c.bf16 %v5725, %v5724
    %v5897 = vpack.c.bf16 %v5727, %v5726
    %v5898 = vpack.c.bf16 %v5729, %v5728
    %v5899 = vpack.c.bf16 %v5731, %v5730
    %v5900 = vpack.c.bf16 %v5733, %v5732
    %v5901 = vpack.c.bf16 %v5735, %v5734
    %v5902 = vpack.c.bf16 %v5737, %v5736
    %v5903 = vpack.c.bf16 %v5739, %v5738
    %v5904 = vpack.c.bf16 %v5741, %v5740
    %v5905 = vpack.c.bf16 %v5743, %v5742
    %v5906 = vpack.c.bf16 %v5745, %v5744
    %v5907 = vpack.c.bf16 %v5747, %v5746
    %v5908 = vpack.c.bf16 %v5749, %v5748
    %v5909 = vpack.c.bf16 %v5751, %v5750
    %v5910 = vpack.c.bf16 %v5753, %v5752
    %v5911 = vpack.c.bf16 %v5755, %v5754
    %v5912 = vpack.c.bf16 %v5757, %v5756
    %v5913 = vpack.c.bf16 %v5759, %v5758
    %v5914 = vpack.c.bf16 %v5761, %v5760
    %v5915 = vpack.c.bf16 %v5763, %v5762
    %v5916 = vpack.c.bf16 %v5765, %v5764
    %v5917 = vpack.c.bf16 %v5767, %v5766
    %v5918 = vpack.c.bf16 %v5769, %v5768
    %v5919 = vpack.c.bf16 %v5771, %v5770
    %v5920 = vpack.c.bf16 %v5773, %v5772
    %v5921 = vpack.c.bf16 %v5775, %v5774
    %v5922 = vpack.c.bf16 %v5777, %v5776
    %v5923 = vpack.c.bf16 %v5779, %v5778
    %v5924 = vpack.c.bf16 %v5781, %v5780
    %v5925 = vpack.c.bf16 %v5783, %v5782
    %v5926 = vpack.c.bf16 %v5785, %v5784
    %v5927 = vpack.c.bf16 %v5787, %v5786
    %v5928 = vpack.c.bf16 %v5789, %v5788
    %v5929 = vpack.c.bf16 %v5791, %v5790
    %v5930 = vpack.c.bf16 %v5793, %v5792
    %v5931 = vpack.c.bf16 %v5795, %v5794
    %v5932 = vpack.c.bf16 %v5797, %v5796
    %v5933 = vpack.c.bf16 %v5799, %v5798
    %v5934 = vpack.c.bf16 %v5801, %v5800
    %v5935 = vpack.c.bf16 %v5803, %v5802
    %v5936 = vpack.c.bf16 %v5805, %v5804
    %v5937 = vpack.c.bf16 %v5807, %v5806
    %v5938 = vpack.c.bf16 %v5809, %v5808
    %v5939 = vpack.c.bf16 %v5811, %v5810
    %v5940 = vld [vmem:[%s8] sm:$0xf]
    %v5941 = vld [vmem:[%s8 + $0x4] sm:$0xf]
    %v5942 = vld [vmem:[%s9] sm:$0x1]
    %v5944 = vlaneseq
    %v5945 = vshrl.u32 %v5944, 7
    %v5946 = vsub.s32 0, %v5945
    %v5947 = vrot.slane %v5942, %v5946
    %v5951 = vunpack.c.l.b16 %v5940
    %v5952 = vunpack.c.l.b16 %v5941
    %v5953 = vpack.c.b16 %v5952, %v5951
    %v5956 = vsel %vm1445, %v5812, 0
    %v5959 = vsel %vm1445, %v5813, 0
    %v5962 = vsel %vm1445, %v5814, 0
    %v5965 = vsel %vm1445, %v5815, 0
    %v5968 = vsel %vm1445, %v5816, 0
    %v5971 = vsel %vm1445, %v5817, 0
    %v5974 = vsel %vm1445, %v5818, 0
    %v5977 = vsel %vm1445, %v5819, 0
    %v5980 = vsel %vm1445, %v5820, 0
    %v5983 = vsel %vm1445, %v5821, 0
    %v5986 = vsel %vm1445, %v5822, 0
    %v5989 = vsel %vm1445, %v5823, 0
    %v5992 = vsel %vm1445, %v5824, 0
    %v5995 = vsel %vm1445, %v5825, 0
    %v5998 = vsel %vm1445, %v5826, 0
    %v6001 = vsel %vm1445, %v5827, 0
    %v6004 = vsel %vm1445, %v5828, 0
    %v6007 = vsel %vm1445, %v5829, 0
    %v6010 = vsel %vm1445, %v5830, 0
    %v6013 = vsel %vm1445, %v5831, 0
    %v6016 = vsel %vm1445, %v5832, 0
    %v6019 = vsel %vm1445, %v5833, 0
    %v6022 = vsel %vm1445, %v5834, 0
    %v6025 = vsel %vm1445, %v5835, 0
    %v6028 = vsel %vm1445, %v5836, 0
    %v6031 = vsel %vm1445, %v5837, 0
    %v6034 = vsel %vm1445, %v5838, 0
    %v6037 = vsel %vm1445, %v5839, 0
    %v6040 = vsel %vm1445, %v5840, 0
    %v6043 = vsel %vm1445, %v5841, 0
    %v6046 = vsel %vm1445, %v5842, 0
    %v6049 = vsel %vm1445, %v5843, 0
    %v6052 = vsel %vm1445, %v5844, 0
    %v6055 = vsel %vm1445, %v5845, 0
    %v6058 = vsel %vm1445, %v5846, 0
    %v6061 = vsel %vm1445, %v5847, 0
    %v6064 = vsel %vm1445, %v5848, 0
    %v6067 = vsel %vm1445, %v5849, 0
    %v6070 = vsel %vm1445, %v5850, 0
    %v6073 = vsel %vm1445, %v5851, 0
    %v6076 = vsel %vm1445, %v5852, 0
    %v6079 = vsel %vm1445, %v5853, 0
    %v6082 = vsel %vm1445, %v5854, 0
    %v6085 = vsel %vm1445, %v5855, 0
    %v6088 = vsel %vm1445, %v5856, 0
    %v6091 = vsel %vm1445, %v5857, 0
    %v6094 = vsel %vm1445, %v5858, 0
    %v6097 = vsel %vm1445, %v5859, 0
    %v6100 = vsel %vm1445, %v5860, 0
    %v6103 = vsel %vm1445, %v5861, 0
    %v6106 = vsel %vm1445, %v5862, 0
    %v6109 = vsel %vm1445, %v5863, 0
    %v6112 = vsel %vm1445, %v5864, 0
    %v6115 = vsel %vm1445, %v5865, 0
    %v6118 = vsel %vm1445, %v5866, 0
    %v6121 = vsel %vm1445, %v5867, 0
    %v6124 = vsel %vm1445, %v5868, 0
    %v6127 = vsel %vm1445, %v5869, 0
    %v6130 = vsel %vm1445, %v5870, 0
    %v6133 = vsel %vm1445, %v5871, 0
    %v6136 = vsel %vm1445, %v5872, 0
    %v6139 = vsel %vm1445, %v5873, 0
    %v6142 = vsel %vm1445, %v5874, 0
    %v6145 = vsel %vm1445, %v5875, 0
    %v6148 = vsel %vm1445, %v5876, 0
    %v6151 = vsel %vm1445, %v5877, 0
    %v6154 = vsel %vm1445, %v5878, 0
    %v6157 = vsel %vm1445, %v5879, 0
    %v6160 = vsel %vm1445, %v5880, 0
    %v6163 = vsel %vm1445, %v5881, 0
    %v6166 = vsel %vm1445, %v5882, 0
    %v6169 = vsel %vm1445, %v5883, 0
    %v6172 = vsel %vm1445, %v5884, 0
    %v6175 = vsel %vm1445, %v5885, 0
    %v6178 = vsel %vm1445, %v5886, 0
    %v6181 = vsel %vm1445, %v5887, 0
    %v6184 = vsel %vm1445, %v5888, 0
    %v6187 = vsel %vm1445, %v5889, 0
    %v6190 = vsel %vm1445, %v5890, 0
    %v6193 = vsel %vm1445, %v5891, 0
    %v6196 = vsel %vm1445, %v5892, 0
    %v6199 = vsel %vm1445, %v5893, 0
    %v6202 = vsel %vm1445, %v5894, 0
    %v6205 = vsel %vm1445, %v5895, 0
    %v6208 = vsel %vm1445, %v5896, 0
    %v6211 = vsel %vm1445, %v5897, 0
    %v6214 = vsel %vm1445, %v5898, 0
    %v6217 = vsel %vm1445, %v5899, 0
    %v6220 = vsel %vm1445, %v5900, 0
    %v6223 = vsel %vm1445, %v5901, 0
    %v6226 = vsel %vm1445, %v5902, 0
    %v6229 = vsel %vm1445, %v5903, 0
    %v6232 = vsel %vm1445, %v5904, 0
    %v6235 = vsel %vm1445, %v5905, 0
    %v6238 = vsel %vm1445, %v5906, 0
    %v6241 = vsel %vm1445, %v5907, 0
    %v6244 = vsel %vm1445, %v5908, 0
    %v6247 = vsel %vm1445, %v5909, 0
    %v6250 = vsel %vm1445, %v5910, 0
    %v6253 = vsel %vm1445, %v5911, 0
    %v6256 = vsel %vm1445, %v5912, 0
    %v6259 = vsel %vm1445, %v5913, 0
    %v6262 = vsel %vm1445, %v5914, 0
    %v6265 = vsel %vm1445, %v5915, 0
    %v6268 = vsel %vm1445, %v5916, 0
    %v6271 = vsel %vm1445, %v5917, 0
    %v6274 = vsel %vm1445, %v5918, 0
    %v6277 = vsel %vm1445, %v5919, 0
    %v6280 = vsel %vm1445, %v5920, 0
    %v6283 = vsel %vm1445, %v5921, 0
    %v6286 = vsel %vm1445, %v5922, 0
    %v6289 = vsel %vm1445, %v5923, 0
    %v6292 = vsel %vm1445, %v5924, 0
    %v6295 = vsel %vm1445, %v5925, 0
    %v6298 = vsel %vm1445, %v5926, 0
    %v6301 = vsel %vm1445, %v5927, 0
    %v6304 = vsel %vm1445, %v5928, 0
    %v6307 = vsel %vm1445, %v5929, 0
    %v6310 = vsel %vm1445, %v5930, 0
    %v6313 = vsel %vm1445, %v5931, 0
    %v6316 = vsel %vm1445, %v5932, 0
    %v6319 = vsel %vm1445, %v5933, 0
    %v6322 = vsel %vm1445, %v5934, 0
    %v6325 = vsel %vm1445, %v5935, 0
    %v6328 = vsel %vm1445, %v5936, 0
    %v6331 = vsel %vm1445, %v5937, 0
    %v6334 = vsel %vm1445, %v5938, 0
    %v6337 = vsel %vm1445, %v5939, 0
    %6339 = vmatprep.subr.bf16.mxu0 0
    %6340 = vmatpush1.bf16.msra.mxu0 %v5953
    %6341 = vmatprep.subr.bf16.mxu0 0
    %6342 = vmatpush1.bf16.msra.mxu0 0
    %6343 = vmatprep.subr.bf16.mxu0 0
    %6344 = vmatpush1.bf16.msra.mxu0 0
    %6345 = vmatprep.subr.bf16.mxu0 0
    %6346 = vmatpush1.bf16.msra.mxu0 0
    %6347 = vmatprep.subr.bf16.mxu0 0
    %6348 = vmatpush1.bf16.msra.mxu0 0
    %6349 = vmatprep.subr.bf16.mxu0 0
    %6350 = vmatpush1.bf16.msra.mxu0 0
    %6351 = vmatprep.subr.bf16.mxu0 0
    %6352 = vmatpush1.bf16.msra.mxu0 0
    %6353 = vmatprep.subr.bf16.mxu0 0
    %6354 = vmatpush1.bf16.msra.mxu0 0
    %6355 = vmatprep.subr.bf16.mxu0 0
    %6356 = vmatpush1.bf16.msra.mxu0 0
    %6357 = vmatprep.subr.bf16.mxu0 0
    %6358 = vmatpush1.bf16.msra.mxu0 0
    %6359 = vmatprep.subr.bf16.mxu0 0
    %6360 = vmatpush1.bf16.msra.mxu0 0
    %6361 = vmatprep.subr.bf16.mxu0 0
    %6362 = vmatpush1.bf16.msra.mxu0 0
    %6363 = vmatprep.subr.bf16.mxu0 0
    %6364 = vmatpush1.bf16.msra.mxu0 0
    %6365 = vmatprep.subr.bf16.mxu0 0
    %6366 = vmatpush1.bf16.msra.mxu0 0
    %6367 = vmatprep.subr.bf16.mxu0 0
    %6368 = vmatpush1.bf16.msra.mxu0 0
    %6369 = vmatprep.subr.bf16.mxu0 0
    %6370 = vmatpush1.bf16.msra.mxu0 0
    %6371 = vmatprep.mubr.bf16.mxu0 0
    %6372 = vmatmul.mubr.bf16.gmra.mrb[0].mxu0 %v5956
    %v6373 = vpop.f32.mrb[0].mxu0
    %v6374 = vadd.f32 %v5947, %v6373
    %v6375 = vpop.f32.mrb[0].mxu0
    %v6376 = vpop.f32.mrb[0].mxu0
    %v6377 = vadd.f32 %v5947, %v6376
    %v6378 = vpop.f32.mrb[0].mxu0
    %6379 = vmatprep.mubr.bf16.mxu0 0
    %6380 = vmatmul.mubr.bf16.gmra.mrb[0].mxu0 %v5959
    %v6381 = vpop.f32.mrb[0].mxu0
    %v6382 = vadd.f32 %v5947, %v6381
    %v6383 = vpop.f32.mrb[0].mxu0
    %v6384 = vpop.f32.mrb[0].mxu0
    %v6385 = vadd.f32 %v5947, %v6384
    %v6386 = vpop.f32.mrb[0].mxu0
    %6387 = vmatprep.mubr.bf16.mxu0 0
    %6388 = vmatmul.mubr.bf16.gmra.mrb[0].mxu0 %v5962
    %v6389 = vpop.f32.mrb[0].mxu0
    %v6390 = vadd.f32 %v5947, %v6389
    %v6391 = vpop.f32.mrb[0].mxu0
    %v6392 = vpop.f32.mrb[0].mxu0
    %v6393 = vadd.f32 %v5947, %v6392
    %v6394 = vpop.f32.mrb[0].mxu0
    %6395 = vmatprep.mubr.bf16.mxu0 0
    %6396 = vmatmul.mubr.bf16.gmra.mrb[0].mxu0 %v5965
    %v6397 = vpop.f32.mrb[0].mxu0
    %v6398 = vadd.f32 %v5947, %v6397
    %v6399 = vpop.f32.mrb[0].mxu0
    %v6400 = vpop.f32.mrb[0].mxu0
    %v6401 = vadd.f32 %v5947, %v6400
    %v6402 = vpop.f32.mrb[0].mxu0
    %6403 = vmatprep.mubr.bf16.mxu0 0
    %6404 = vmatmul.mubr.bf16.gmra.mrb[0].mxu0 %v5968
    %v6405 = vpop.f32.mrb[0].mxu0
    %v6406 = vadd.f32 %v5947, %v6405
    %v6407 = vpop.f32.mrb[0].mxu0
    %v6408 = vpop.f32.mrb[0].mxu0
    %v6409 = vadd.f32 %v5947, %v6408
    %v6410 = vpop.f32.mrb[0].mxu0
    %6411 = vmatprep.mubr.bf16.mxu0 0
    %6412 = vmatmul.mubr.bf16.gmra.mrb[0].mxu0 %v5971
    %v6413 = vpop.f32.mrb[0].mxu0
    %v6414 = vadd.f32 %v5947, %v6413
    %v6415 = vpop.f32.mrb[0].mxu0
    %v6416 = vpop.f32.mrb[0].mxu0
    %v6417 = vadd.f32 %v5947, %v6416
    %v6418 = vpop.f32.mrb[0].mxu0
    %6419 = vmatprep.mubr.bf16.mxu0 0
    %6420 = vmatmul.mubr.bf16.gmra.mrb[0].mxu0 %v5974
    %v6421 = vpop.f32.mrb[0].mxu0
    %v6422 = vadd.f32 %v5947, %v6421
    %v6423 = vpop.f32.mrb[0].mxu0
    %v6424 = vpop.f32.mrb[0].mxu0
    %v6425 = vadd.f32 %v5947, %v6424
    %v6426 = vpop.f32.mrb[0].mxu0
    %6427 = vmatprep.mubr.bf16.mxu0 0
    %6428 = vmatmul.mubr.bf16.gmra.mrb[0].mxu0 %v5977
    %v6429 = vpop.f32.mrb[0].mxu0
    %v6430 = vadd.f32 %v5947, %v6429
    %v6431 = vpop.f32.mrb[0].mxu0
    %v6432 = vpop.f32.mrb[0].mxu0
    %v6433 = vadd.f32 %v5947, %v6432
    %v6434 = vpop.f32.mrb[0].mxu0
    %6435 = vmatprep.mubr.bf16.mxu0 0
    %6436 = vmatmul.mubr.bf16.gmra.mrb[0].mxu0 %v5980
    %v6437 = vpop.f32.mrb[0].mxu0
    %v6438 = vadd.f32 %v5947, %v6437
    %v6439 = vpop.f32.mrb[0].mxu0
    %v6440 = vpop.f32.mrb[0].mxu0
    %v6441 = vadd.f32 %v5947, %v6440
    %v6442 = vpop.f32.mrb[0].mxu0
    %6443 = vmatprep.mubr.bf16.mxu0 0
    %6444 = vmatmul.mubr.bf16.gmra.mrb[0].mxu0 %v5983
    %v6445 = vpop.f32.mrb[0].mxu0
    %v6446 = vadd.f32 %v5947, %v6445
    %v6447 = vpop.f32.mrb[0].mxu0
    %v6448 = vpop.f32.mrb[0].mxu0
    %v6449 = vadd.f32 %v5947, %v6448
    %v6450 = vpop.f32.mrb[0].mxu0
    %6451 = vmatprep.mubr.bf16.mxu0 0
    %6452 = vmatmul.mubr.bf16.gmra.mrb[0].mxu0 %v5986
    %v6453 = vpop.f32.mrb[0].mxu0
    %v6454 = vadd.f32 %v5947, %v6453
    %v6455 = vpop.f32.mrb[0].mxu0
    %v6456 = vpop.f32.mrb[0].mxu0
    %v6457 = vadd.f32 %v5947, %v6456
    %v6458 = vpop.f32.mrb[0].mxu0
    %6459 = vmatprep.mubr.bf16.mxu0 0
    %6460 = vmatmul.mubr.bf16.gmra.mrb[0].mxu0 %v5989
    %v6461 = vpop.f32.mrb[0].mxu0
    %v6462 = vadd.f32 %v5947, %v6461
    %v6463 = vpop.f32.mrb[0].mxu0
    %v6464 = vpop.f32.mrb[0].mxu0
    %v6465 = vadd.f32 %v5947, %v6464
    %v6466 = vpop.f32.mrb[0].mxu0
    %6467 = vmatprep.mubr.bf16.mxu0 0
    %6468 = vmatmul.mubr.bf16.gmra.mrb[0].mxu0 %v5992
    %v6469 = vpop.f32.mrb[0].mxu0
    %v6470 = vadd.f32 %v5947, %v6469
    %v6471 = vpop.f32.mrb[0].mxu0
    %v6472 = vpop.f32.mrb[0].mxu0
    %v6473 = vadd.f32 %v5947, %v6472
    %v6474 = vpop.f32.mrb[0].mxu0
    %6475 = vmatprep.mubr.bf16.mxu0 0
    %6476 = vmatmul.mubr.bf16.gmra.mrb[0].mxu0 %v5995
    %v6477 = vpop.f32.mrb[0].mxu0
    %v6478 = vadd.f32 %v5947, %v6477
    %v6479 = vpop.f32.mrb[0].mxu0
    %v6480 = vpop.f32.mrb[0].mxu0
    %v6481 = vadd.f32 %v5947, %v6480
    %v6482 = vpop.f32.mrb[0].mxu0
    %6483 = vmatprep.mubr.bf16.mxu0 0
    %6484 = vmatmul.mubr.bf16.gmra.mrb[0].mxu0 %v5998
    %v6485 = vpop.f32.mrb[0].mxu0
    %v6486 = vadd.f32 %v5947, %v6485
    %v6487 = vpop.f32.mrb[0].mxu0
    %v6488 = vpop.f32.mrb[0].mxu0
    %v6489 = vadd.f32 %v5947, %v6488
    %v6490 = vpop.f32.mrb[0].mxu0
    %6491 = vmatprep.mubr.bf16.mxu0 0
    %6492 = vmatmul.mubr.bf16.gmra.mrb[0].mxu0 %v6001
    %v6493 = vpop.f32.mrb[0].mxu0
    %v6494 = vadd.f32 %v5947, %v6493
    %v6495 = vpop.f32.mrb[0].mxu0
    %v6496 = vpop.f32.mrb[0].mxu0
    %v6497 = vadd.f32 %v5947, %v6496
    %v6498 = vpop.f32.mrb[0].mxu0
    %6499 = vmatprep.mubr.bf16.mxu0 0
    %6500 = vmatmul.mubr.bf16.gmra.mrb[0].mxu0 %v6004
    %v6501 = vpop.f32.mrb[0].mxu0
    %v6502 = vadd.f32 %v5947, %v6501
    %v6503 = vpop.f32.mrb[0].mxu0
    %v6504 = vpop.f32.mrb[0].mxu0
    %v6505 = vadd.f32 %v5947, %v6504
    %v6506 = vpop.f32.mrb[0].mxu0
    %6507 = vmatprep.mubr.bf16.mxu0 0
    %6508 = vmatmul.mubr.bf16.gmra.mrb[0].mxu0 %v6007
    %v6509 = vpop.f32.mrb[0].mxu0
    %v6510 = vadd.f32 %v5947, %v6509
    %v6511 = vpop.f32.mrb[0].mxu0
    %v6512 = vpop.f32.mrb[0].mxu0
    %v6513 = vadd.f32 %v5947, %v6512
    %v6514 = vpop.f32.mrb[0].mxu0
    %6515 = vmatprep.mubr.bf16.mxu0 0
    %6516 = vmatmul.mubr.bf16.gmra.mrb[0].mxu0 %v6010
    %v6517 = vpop.f32.mrb[0].mxu0
    %v6518 = vadd.f32 %v5947, %v6517
    %v6519 = vpop.f32.mrb[0].mxu0
    %v6520 = vpop.f32.mrb[0].mxu0
    %v6521 = vadd.f32 %v5947, %v6520
    %v6522 = vpop.f32.mrb[0].mxu0
    %6523 = vmatprep.mubr.bf16.mxu0 0
    %6524 = vmatmul.mubr.bf16.gmra.mrb[0].mxu0 %v6013
    %v6525 = vpop.f32.mrb[0].mxu0
    %v6526 = vadd.f32 %v5947, %v6525
    %v6527 = vpop.f32.mrb[0].mxu0
    %v6528 = vpop.f32.mrb[0].mxu0
    %v6529 = vadd.f32 %v5947, %v6528
    %v6530 = vpop.f32.mrb[0].mxu0
    %6531 = vmatprep.mubr.bf16.mxu0 0
    %6532 = vmatmul.mubr.bf16.gmra.mrb[0].mxu0 %v6016
    %v6533 = vpop.f32.mrb[0].mxu0
    %v6534 = vadd.f32 %v5947, %v6533
    %v6535 = vpop.f32.mrb[0].mxu0
    %v6536 = vpop.f32.mrb[0].mxu0
    %v6537 = vadd.f32 %v5947, %v6536
    %v6538 = vpop.f32.mrb[0].mxu0
    %6539 = vmatprep.mubr.bf16.mxu0 0
    %6540 = vmatmul.mubr.bf16.gmra.mrb[0].mxu0 %v6019
    %v6541 = vpop.f32.mrb[0].mxu0
    %v6542 = vadd.f32 %v5947, %v6541
    %v6543 = vpop.f32.mrb[0].mxu0
    %v6544 = vpop.f32.mrb[0].mxu0
    %v6545 = vadd.f32 %v5947, %v6544
    %v6546 = vpop.f32.mrb[0].mxu0
    %6547 = vmatprep.mubr.bf16.mxu0 0
    %6548 = vmatmul.mubr.bf16.gmra.mrb[0].mxu0 %v6022
    %v6549 = vpop.f32.mrb[0].mxu0
    %v6550 = vadd.f32 %v5947, %v6549
    %v6551 = vpop.f32.mrb[0].mxu0
    %v6552 = vpop.f32.mrb[0].mxu0
    %v6553 = vadd.f32 %v5947, %v6552
    %v6554 = vpop.f32.mrb[0].mxu0
    %6555 = vmatprep.mubr.bf16.mxu0 0
    %6556 = vmatmul.mubr.bf16.gmra.mrb[0].mxu0 %v6025
    %v6557 = vpop.f32.mrb[0].mxu0
    %v6558 = vadd.f32 %v5947, %v6557
    %v6559 = vpop.f32.mrb[0].mxu0
    %v6560 = vpop.f32.mrb[0].mxu0
    %v6561 = vadd.f32 %v5947, %v6560
    %v6562 = vpop.f32.mrb[0].mxu0
    %6563 = vmatprep.mubr.bf16.mxu0 0
    %6564 = vmatmul.mubr.bf16.gmra.mrb[0].mxu0 %v6028
    %v6565 = vpop.f32.mrb[0].mxu0
    %v6566 = vadd.f32 %v5947, %v6565
    %v6567 = vpop.f32.mrb[0].mxu0
    %v6568 = vpop.f32.mrb[0].mxu0
    %v6569 = vadd.f32 %v5947, %v6568
    %v6570 = vpop.f32.mrb[0].mxu0
    %6571 = vmatprep.mubr.bf16.mxu0 0
    %6572 = vmatmul.mubr.bf16.gmra.mrb[0].mxu0 %v6031
    %v6573 = vpop.f32.mrb[0].mxu0
    %v6574 = vadd.f32 %v5947, %v6573
    %v6575 = vpop.f32.mrb[0].mxu0
    %v6576 = vpop.f32.mrb[0].mxu0
    %v6577 = vadd.f32 %v5947, %v6576
    %v6578 = vpop.f32.mrb[0].mxu0
    %6579 = vmatprep.mubr.bf16.mxu0 0
    %6580 = vmatmul.mubr.bf16.gmra.mrb[0].mxu0 %v6034
    %v6581 = vpop.f32.mrb[0].mxu0
    %v6582 = vadd.f32 %v5947, %v6581
    %v6583 = vpop.f32.mrb[0].mxu0
    %v6584 = vpop.f32.mrb[0].mxu0
    %v6585 = vadd.f32 %v5947, %v6584
    %v6586 = vpop.f32.mrb[0].mxu0
    %6587 = vmatprep.mubr.bf16.mxu0 0
    %6588 = vmatmul.mubr.bf16.gmra.mrb[0].mxu0 %v6037
    %v6589 = vpop.f32.mrb[0].mxu0
    %v6590 = vadd.f32 %v5947, %v6589
    %v6591 = vpop.f32.mrb[0].mxu0
    %v6592 = vpop.f32.mrb[0].mxu0
    %v6593 = vadd.f32 %v5947, %v6592
    %v6594 = vpop.f32.mrb[0].mxu0
    %6595 = vmatprep.mubr.bf16.mxu0 0
    %6596 = vmatmul.mubr.bf16.gmra.mrb[0].mxu0 %v6040
    %v6597 = vpop.f32.mrb[0].mxu0
    %v6598 = vadd.f32 %v5947, %v6597
    %v6599 = vpop.f32.mrb[0].mxu0
    %v6600 = vpop.f32.mrb[0].mxu0
    %v6601 = vadd.f32 %v5947, %v6600
    %v6602 = vpop.f32.mrb[0].mxu0
    %6603 = vmatprep.mubr.bf16.mxu0 0
    %6604 = vmatmul.mubr.bf16.gmra.mrb[0].mxu0 %v6043
    %v6605 = vpop.f32.mrb[0].mxu0
    %v6606 = vadd.f32 %v5947, %v6605
    %v6607 = vpop.f32.mrb[0].mxu0
    %v6608 = vpop.f32.mrb[0].mxu0
    %v6609 = vadd.f32 %v5947, %v6608
    %v6610 = vpop.f32.mrb[0].mxu0
    %6611 = vmatprep.mubr.bf16.mxu0 0
    %6612 = vmatmul.mubr.bf16.gmra.mrb[0].mxu0 %v6046
    %v6613 = vpop.f32.mrb[0].mxu0
    %v6614 = vadd.f32 %v5947, %v6613
    %v6615 = vpop.f32.mrb[0].mxu0
    %v6616 = vpop.f32.mrb[0].mxu0
    %v6617 = vadd.f32 %v5947, %v6616
    %v6618 = vpop.f32.mrb[0].mxu0
    %6619 = vmatprep.mubr.bf16.mxu0 0
    %6620 = vmatmul.mubr.bf16.gmra.mrb[0].mxu0 %v6049
    %v6621 = vpop.f32.mrb[0].mxu0
    %v6622 = vadd.f32 %v5947, %v6621
    %v6623 = vpop.f32.mrb[0].mxu0
    %v6624 = vpop.f32.mrb[0].mxu0
    %v6625 = vadd.f32 %v5947, %v6624
    %v6626 = vpop.f32.mrb[0].mxu0
    %6627 = vmatprep.mubr.bf16.mxu0 0
    %6628 = vmatmul.mubr.bf16.gmra.mrb[0].mxu0 %v6052
    %v6629 = vpop.f32.mrb[0].mxu0
    %v6630 = vadd.f32 %v5947, %v6629
    %v6631 = vpop.f32.mrb[0].mxu0
    %v6632 = vpop.f32.mrb[0].mxu0
    %v6633 = vadd.f32 %v5947, %v6632
    %v6634 = vpop.f32.mrb[0].mxu0
    %6635 = vmatprep.mubr.bf16.mxu0 0
    %6636 = vmatmul.mubr.bf16.gmra.mrb[0].mxu0 %v6055
    %v6637 = vpop.f32.mrb[0].mxu0
    %v6638 = vadd.f32 %v5947, %v6637
    %v6639 = vpop.f32.mrb[0].mxu0
    %v6640 = vpop.f32.mrb[0].mxu0
    %v6641 = vadd.f32 %v5947, %v6640
    %v6642 = vpop.f32.mrb[0].mxu0
    %6643 = vmatprep.mubr.bf16.mxu0 0
    %6644 = vmatmul.mubr.bf16.gmra.mrb[0].mxu0 %v6058
    %v6645 = vpop.f32.mrb[0].mxu0
    %v6646 = vadd.f32 %v5947, %v6645
    %v6647 = vpop.f32.mrb[0].mxu0
    %v6648 = vpop.f32.mrb[0].mxu0
    %v6649 = vadd.f32 %v5947, %v6648
    %v6650 = vpop.f32.mrb[0].mxu0
    %6651 = vmatprep.mubr.bf16.mxu0 0
    %6652 = vmatmul.mubr.bf16.gmra.mrb[0].mxu0 %v6061
    %v6653 = vpop.f32.mrb[0].mxu0
    %v6654 = vadd.f32 %v5947, %v6653
    %v6655 = vpop.f32.mrb[0].mxu0
    %v6656 = vpop.f32.mrb[0].mxu0
    %v6657 = vadd.f32 %v5947, %v6656
    %v6658 = vpop.f32.mrb[0].mxu0
    %6659 = vmatprep.mubr.bf16.mxu0 0
    %6660 = vmatmul.mubr.bf16.gmra.mrb[0].mxu0 %v6064
    %v6661 = vpop.f32.mrb[0].mxu0
    %v6662 = vadd.f32 %v5947, %v6661
    %v6663 = vpop.f32.mrb[0].mxu0
    %v6664 = vpop.f32.mrb[0].mxu0
    %v6665 = vadd.f32 %v5947, %v6664
    %v6666 = vpop.f32.mrb[0].mxu0
    %6667 = vmatprep.mubr.bf16.mxu0 0
    %6668 = vmatmul.mubr.bf16.gmra.mrb[0].mxu0 %v6067
    %v6669 = vpop.f32.mrb[0].mxu0
    %v6670 = vadd.f32 %v5947, %v6669
    %v6671 = vpop.f32.mrb[0].mxu0
    %v6672 = vpop.f32.mrb[0].mxu0
    %v6673 = vadd.f32 %v5947, %v6672
    %v6674 = vpop.f32.mrb[0].mxu0
    %6675 = vmatprep.mubr.bf16.mxu0 0
    %6676 = vmatmul.mubr.bf16.gmra.mrb[0].mxu0 %v6070
    %v6677 = vpop.f32.mrb[0].mxu0
    %v6678 = vadd.f32 %v5947, %v6677
    %v6679 = vpop.f32.mrb[0].mxu0
    %v6680 = vpop.f32.mrb[0].mxu0
    %v6681 = vadd.f32 %v5947, %v6680
    %v6682 = vpop.f32.mrb[0].mxu0
    %6683 = vmatprep.mubr.bf16.mxu0 0
    %6684 = vmatmul.mubr.bf16.gmra.mrb[0].mxu0 %v6073
    %v6685 = vpop.f32.mrb[0].mxu0
    %v6686 = vadd.f32 %v5947, %v6685
    %v6687 = vpop.f32.mrb[0].mxu0
    %v6688 = vpop.f32.mrb[0].mxu0
    %v6689 = vadd.f32 %v5947, %v6688
    %v6690 = vpop.f32.mrb[0].mxu0
    %6691 = vmatprep.mubr.bf16.mxu0 0
    %6692 = vmatmul.mubr.bf16.gmra.mrb[0].mxu0 %v6076
    %v6693 = vpop.f32.mrb[0].mxu0
    %v6694 = vadd.f32 %v5947, %v6693
    %v6695 = vpop.f32.mrb[0].mxu0
    %v6696 = vpop.f32.mrb[0].mxu0
    %v6697 = vadd.f32 %v5947, %v6696
    %v6698 = vpop.f32.mrb[0].mxu0
    %6699 = vmatprep.mubr.bf16.mxu0 0
    %6700 = vmatmul.mubr.bf16.gmra.mrb[0].mxu0 %v6079
    %v6701 = vpop.f32.mrb[0].mxu0
    %v6702 = vadd.f32 %v5947, %v6701
    %v6703 = vpop.f32.mrb[0].mxu0
    %v6704 = vpop.f32.mrb[0].mxu0
    %v6705 = vadd.f32 %v5947, %v6704
    %v6706 = vpop.f32.mrb[0].mxu0
    %6707 = vmatprep.mubr.bf16.mxu0 0
    %6708 = vmatmul.mubr.bf16.gmra.mrb[0].mxu0 %v6082
    %v6709 = vpop.f32.mrb[0].mxu0
    %v6710 = vadd.f32 %v5947, %v6709
    %v6711 = vpop.f32.mrb[0].mxu0
    %v6712 = vpop.f32.mrb[0].mxu0
    %v6713 = vadd.f32 %v5947, %v6712
    %v6714 = vpop.f32.mrb[0].mxu0
    %6715 = vmatprep.mubr.bf16.mxu0 0
    %6716 = vmatmul.mubr.bf16.gmra.mrb[0].mxu0 %v6085
    %v6717 = vpop.f32.mrb[0].mxu0
    %v6718 = vadd.f32 %v5947, %v6717
    %v6719 = vpop.f32.mrb[0].mxu0
    %v6720 = vpop.f32.mrb[0].mxu0
    %v6721 = vadd.f32 %v5947, %v6720
    %v6722 = vpop.f32.mrb[0].mxu0
    %6723 = vmatprep.mubr.bf16.mxu0 0
    %6724 = vmatmul.mubr.bf16.gmra.mrb[0].mxu0 %v6088
    %v6725 = vpop.f32.mrb[0].mxu0
    %v6726 = vadd.f32 %v5947, %v6725
    %v6727 = vpop.f32.mrb[0].mxu0
    %v6728 = vpop.f32.mrb[0].mxu0
    %v6729 = vadd.f32 %v5947, %v6728
    %v6730 = vpop.f32.mrb[0].mxu0
    %6731 = vmatprep.mubr.bf16.mxu0 0
    %6732 = vmatmul.mubr.bf16.gmra.mrb[0].mxu0 %v6091
    %v6733 = vpop.f32.mrb[0].mxu0
    %v6734 = vadd.f32 %v5947, %v6733
    %v6735 = vpop.f32.mrb[0].mxu0
    %v6736 = vpop.f32.mrb[0].mxu0
    %v6737 = vadd.f32 %v5947, %v6736
    %v6738 = vpop.f32.mrb[0].mxu0
    %6739 = vmatprep.mubr.bf16.mxu0 0
    %6740 = vmatmul.mubr.bf16.gmra.mrb[0].mxu0 %v6094
    %v6741 = vpop.f32.mrb[0].mxu0
    %v6742 = vadd.f32 %v5947, %v6741
    %v6743 = vpop.f32.mrb[0].mxu0
    %v6744 = vpop.f32.mrb[0].mxu0
    %v6745 = vadd.f32 %v5947, %v6744
    %v6746 = vpop.f32.mrb[0].mxu0
    %6747 = vmatprep.mubr.bf16.mxu0 0
    %6748 = vmatmul.mubr.bf16.gmra.mrb[0].mxu0 %v6097
    %v6749 = vpop.f32.mrb[0].mxu0
    %v6750 = vadd.f32 %v5947, %v6749
    %v6751 = vpop.f32.mrb[0].mxu0
    %v6752 = vpop.f32.mrb[0].mxu0
    %v6753 = vadd.f32 %v5947, %v6752
    %v6754 = vpop.f32.mrb[0].mxu0
    %6755 = vmatprep.mubr.bf16.mxu0 0
    %6756 = vmatmul.mubr.bf16.gmra.mrb[0].mxu0 %v6100
    %v6757 = vpop.f32.mrb[0].mxu0
    %v6758 = vadd.f32 %v5947, %v6757
    %v6759 = vpop.f32.mrb[0].mxu0
    %v6760 = vpop.f32.mrb[0].mxu0
    %v6761 = vadd.f32 %v5947, %v6760
    %v6762 = vpop.f32.mrb[0].mxu0
    %6763 = vmatprep.mubr.bf16.mxu0 0
    %6764 = vmatmul.mubr.bf16.gmra.mrb[0].mxu0 %v6103
    %v6765 = vpop.f32.mrb[0].mxu0
    %v6766 = vadd.f32 %v5947, %v6765
    %v6767 = vpop.f32.mrb[0].mxu0
    %v6768 = vpop.f32.mrb[0].mxu0
    %v6769 = vadd.f32 %v5947, %v6768
    %v6770 = vpop.f32.mrb[0].mxu0
    %6771 = vmatprep.mubr.bf16.mxu0 0
    %6772 = vmatmul.mubr.bf16.gmra.mrb[0].mxu0 %v6106
    %v6773 = vpop.f32.mrb[0].mxu0
    %v6774 = vadd.f32 %v5947, %v6773
    %v6775 = vpop.f32.mrb[0].mxu0
    %v6776 = vpop.f32.mrb[0].mxu0
    %v6777 = vadd.f32 %v5947, %v6776
    %v6778 = vpop.f32.mrb[0].mxu0
    %6779 = vmatprep.mubr.bf16.mxu0 0
    %6780 = vmatmul.mubr.bf16.gmra.mrb[0].mxu0 %v6109
    %v6781 = vpop.f32.mrb[0].mxu0
    %v6782 = vadd.f32 %v5947, %v6781
    %v6783 = vpop.f32.mrb[0].mxu0
    %v6784 = vpop.f32.mrb[0].mxu0
    %v6785 = vadd.f32 %v5947, %v6784
    %v6786 = vpop.f32.mrb[0].mxu0
    %6787 = vmatprep.mubr.bf16.mxu0 0
    %6788 = vmatmul.mubr.bf16.gmra.mrb[0].mxu0 %v6112
    %v6789 = vpop.f32.mrb[0].mxu0
    %v6790 = vadd.f32 %v5947, %v6789
    %v6791 = vpop.f32.mrb[0].mxu0
    %v6792 = vpop.f32.mrb[0].mxu0
    %v6793 = vadd.f32 %v5947, %v6792
    %v6794 = vpop.f32.mrb[0].mxu0
    %6795 = vmatprep.mubr.bf16.mxu0 0
    %6796 = vmatmul.mubr.bf16.gmra.mrb[0].mxu0 %v6115
    %v6797 = vpop.f32.mrb[0].mxu0
    %v6798 = vadd.f32 %v5947, %v6797
    %v6799 = vpop.f32.mrb[0].mxu0
    %v6800 = vpop.f32.mrb[0].mxu0
    %v6801 = vadd.f32 %v5947, %v6800
    %v6802 = vpop.f32.mrb[0].mxu0
    %6803 = vmatprep.mubr.bf16.mxu0 0
    %6804 = vmatmul.mubr.bf16.gmra.mrb[0].mxu0 %v6118
    %v6805 = vpop.f32.mrb[0].mxu0
    %v6806 = vadd.f32 %v5947, %v6805
    %v6807 = vpop.f32.mrb[0].mxu0
    %v6808 = vpop.f32.mrb[0].mxu0
    %v6809 = vadd.f32 %v5947, %v6808
    %v6810 = vpop.f32.mrb[0].mxu0
    %6811 = vmatprep.mubr.bf16.mxu0 0
    %6812 = vmatmul.mubr.bf16.gmra.mrb[0].mxu0 %v6121
    %v6813 = vpop.f32.mrb[0].mxu0
    %v6814 = vadd.f32 %v5947, %v6813
    %v6815 = vpop.f32.mrb[0].mxu0
    %v6816 = vpop.f32.mrb[0].mxu0
    %v6817 = vadd.f32 %v5947, %v6816
    %v6818 = vpop.f32.mrb[0].mxu0
    %6819 = vmatprep.mubr.bf16.mxu0 0
    %6820 = vmatmul.mubr.bf16.gmra.mrb[0].mxu0 %v6124
    %v6821 = vpop.f32.mrb[0].mxu0
    %v6822 = vadd.f32 %v5947, %v6821
    %v6823 = vpop.f32.mrb[0].mxu0
    %v6824 = vpop.f32.mrb[0].mxu0
    %v6825 = vadd.f32 %v5947, %v6824
    %v6826 = vpop.f32.mrb[0].mxu0
    %6827 = vmatprep.mubr.bf16.mxu0 0
    %6828 = vmatmul.mubr.bf16.gmra.mrb[0].mxu0 %v6127
    %v6829 = vpop.f32.mrb[0].mxu0
    %v6830 = vadd.f32 %v5947, %v6829
    %v6831 = vpop.f32.mrb[0].mxu0
    %v6832 = vpop.f32.mrb[0].mxu0
    %v6833 = vadd.f32 %v5947, %v6832
    %v6834 = vpop.f32.mrb[0].mxu0
    %6835 = vmatprep.mubr.bf16.mxu0 0
    %6836 = vmatmul.mubr.bf16.gmra.mrb[0].mxu0 %v6130
    %v6837 = vpop.f32.mrb[0].mxu0
    %v6838 = vadd.f32 %v5947, %v6837
    %v6839 = vpop.f32.mrb[0].mxu0
    %v6840 = vpop.f32.mrb[0].mxu0
    %v6841 = vadd.f32 %v5947, %v6840
    %v6842 = vpop.f32.mrb[0].mxu0
    %6843 = vmatprep.mubr.bf16.mxu0 0
    %6844 = vmatmul.mubr.bf16.gmra.mrb[0].mxu0 %v6133
    %v6845 = vpop.f32.mrb[0].mxu0
    %v6846 = vadd.f32 %v5947, %v6845
    %v6847 = vpop.f32.mrb[0].mxu0
    %v6848 = vpop.f32.mrb[0].mxu0
    %v6849 = vadd.f32 %v5947, %v6848
    %v6850 = vpop.f32.mrb[0].mxu0
    %6851 = vmatprep.mubr.bf16.mxu0 0
    %6852 = vmatmul.mubr.bf16.gmra.mrb[0].mxu0 %v6136
    %v6853 = vpop.f32.mrb[0].mxu0
    %v6854 = vadd.f32 %v5947, %v6853
    %v6855 = vpop.f32.mrb[0].mxu0
    %v6856 = vpop.f32.mrb[0].mxu0
    %v6857 = vadd.f32 %v5947, %v6856
    %v6858 = vpop.f32.mrb[0].mxu0
    %6859 = vmatprep.mubr.bf16.mxu0 0
    %6860 = vmatmul.mubr.bf16.gmra.mrb[0].mxu0 %v6139
    %v6861 = vpop.f32.mrb[0].mxu0
    %v6862 = vadd.f32 %v5947, %v6861
    %v6863 = vpop.f32.mrb[0].mxu0
    %v6864 = vpop.f32.mrb[0].mxu0
    %v6865 = vadd.f32 %v5947, %v6864
    %v6866 = vpop.f32.mrb[0].mxu0
    %6867 = vmatprep.mubr.bf16.mxu0 0
    %6868 = vmatmul.mubr.bf16.gmra.mrb[0].mxu0 %v6142
    %v6869 = vpop.f32.mrb[0].mxu0
    %v6870 = vadd.f32 %v5947, %v6869
    %v6871 = vpop.f32.mrb[0].mxu0
    %v6872 = vpop.f32.mrb[0].mxu0
    %v6873 = vadd.f32 %v5947, %v6872
    %v6874 = vpop.f32.mrb[0].mxu0
    %6875 = vmatprep.mubr.bf16.mxu0 0
    %6876 = vmatmul.mubr.bf16.gmra.mrb[0].mxu0 %v6145
    %v6877 = vpop.f32.mrb[0].mxu0
    %v6878 = vadd.f32 %v5947, %v6877
    %v6879 = vpop.f32.mrb[0].mxu0
    %v6880 = vpop.f32.mrb[0].mxu0
    %v6881 = vadd.f32 %v5947, %v6880
    %v6882 = vpop.f32.mrb[0].mxu0
    %6883 = vmatprep.mubr.bf16.mxu0 0
    %6884 = vmatmul.mubr.bf16.gmra.mrb[0].mxu0 %v6148
    %v6885 = vpop.f32.mrb[0].mxu0
    %v6886 = vadd.f32 %v5947, %v6885
    %v6887 = vpop.f32.mrb[0].mxu0
    %v6888 = vpop.f32.mrb[0].mxu0
    %v6889 = vadd.f32 %v5947, %v6888
    %v6890 = vpop.f32.mrb[0].mxu0
    %6891 = vmatprep.mubr.bf16.mxu0 0
    %6892 = vmatmul.mubr.bf16.gmra.mrb[0].mxu0 %v6151
    %v6893 = vpop.f32.mrb[0].mxu0
    %v6894 = vadd.f32 %v5947, %v6893
    %v6895 = vpop.f32.mrb[0].mxu0
    %v6896 = vpop.f32.mrb[0].mxu0
    %v6897 = vadd.f32 %v5947, %v6896
    %v6898 = vpop.f32.mrb[0].mxu0
    %6899 = vmatprep.mubr.bf16.mxu0 0
    %6900 = vmatmul.mubr.bf16.gmra.mrb[0].mxu0 %v6154
    %v6901 = vpop.f32.mrb[0].mxu0
    %v6902 = vadd.f32 %v5947, %v6901
    %v6903 = vpop.f32.mrb[0].mxu0
    %v6904 = vpop.f32.mrb[0].mxu0
    %v6905 = vadd.f32 %v5947, %v6904
    %v6906 = vpop.f32.mrb[0].mxu0
    %6907 = vmatprep.mubr.bf16.mxu0 0
    %6908 = vmatmul.mubr.bf16.gmra.mrb[0].mxu0 %v6157
    %v6909 = vpop.f32.mrb[0].mxu0
    %v6910 = vadd.f32 %v5947, %v6909
    %v6911 = vpop.f32.mrb[0].mxu0
    %v6912 = vpop.f32.mrb[0].mxu0
    %v6913 = vadd.f32 %v5947, %v6912
    %v6914 = vpop.f32.mrb[0].mxu0
    %6915 = vmatprep.mubr.bf16.mxu0 0
    %6916 = vmatmul.mubr.bf16.gmra.mrb[0].mxu0 %v6160
    %v6917 = vpop.f32.mrb[0].mxu0
    %v6918 = vadd.f32 %v5947, %v6917
    %v6919 = vpop.f32.mrb[0].mxu0
    %v6920 = vpop.f32.mrb[0].mxu0
    %v6921 = vadd.f32 %v5947, %v6920
    %v6922 = vpop.f32.mrb[0].mxu0
    %6923 = vmatprep.mubr.bf16.mxu0 0
    %6924 = vmatmul.mubr.bf16.gmra.mrb[0].mxu0 %v6163
    %v6925 = vpop.f32.mrb[0].mxu0
    %v6926 = vadd.f32 %v5947, %v6925
    %v6927 = vpop.f32.mrb[0].mxu0
    %v6928 = vpop.f32.mrb[0].mxu0
    %v6929 = vadd.f32 %v5947, %v6928
    %v6930 = vpop.f32.mrb[0].mxu0
    %6931 = vmatprep.mubr.bf16.mxu0 0
    %6932 = vmatmul.mubr.bf16.gmra.mrb[0].mxu0 %v6166
    %v6933 = vpop.f32.mrb[0].mxu0
    %v6934 = vadd.f32 %v5947, %v6933
    %v6935 = vpop.f32.mrb[0].mxu0
    %v6936 = vpop.f32.mrb[0].mxu0
    %v6937 = vadd.f32 %v5947, %v6936
    %v6938 = vpop.f32.mrb[0].mxu0
    %6939 = vmatprep.mubr.bf16.mxu0 0
    %6940 = vmatmul.mubr.bf16.gmra.mrb[0].mxu0 %v6169
    %v6941 = vpop.f32.mrb[0].mxu0
    %v6942 = vadd.f32 %v5947, %v6941
    %v6943 = vpop.f32.mrb[0].mxu0
    %v6944 = vpop.f32.mrb[0].mxu0
    %v6945 = vadd.f32 %v5947, %v6944
    %v6946 = vpop.f32.mrb[0].mxu0
    %6947 = vmatprep.mubr.bf16.mxu0 0
    %6948 = vmatmul.mubr.bf16.gmra.mrb[0].mxu0 %v6172
    %v6949 = vpop.f32.mrb[0].mxu0
    %v6950 = vadd.f32 %v5947, %v6949
    %v6951 = vpop.f32.mrb[0].mxu0
    %v6952 = vpop.f32.mrb[0].mxu0
    %v6953 = vadd.f32 %v5947, %v6952
    %v6954 = vpop.f32.mrb[0].mxu0
    %6955 = vmatprep.mubr.bf16.mxu0 0
    %6956 = vmatmul.mubr.bf16.gmra.mrb[0].mxu0 %v6175
    %v6957 = vpop.f32.mrb[0].mxu0
    %v6958 = vadd.f32 %v5947, %v6957
    %v6959 = vpop.f32.mrb[0].mxu0
    %v6960 = vpop.f32.mrb[0].mxu0
    %v6961 = vadd.f32 %v5947, %v6960
    %v6962 = vpop.f32.mrb[0].mxu0
    %6963 = vmatprep.mubr.bf16.mxu0 0
    %6964 = vmatmul.mubr.bf16.gmra.mrb[0].mxu0 %v6178
    %v6965 = vpop.f32.mrb[0].mxu0
    %v6966 = vadd.f32 %v5947, %v6965
    %v6967 = vpop.f32.mrb[0].mxu0
    %v6968 = vpop.f32.mrb[0].mxu0
    %v6969 = vadd.f32 %v5947, %v6968
    %v6970 = vpop.f32.mrb[0].mxu0
    %6971 = vmatprep.mubr.bf16.mxu0 0
    %6972 = vmatmul.mubr.bf16.gmra.mrb[0].mxu0 %v6181
    %v6973 = vpop.f32.mrb[0].mxu0
    %v6974 = vadd.f32 %v5947, %v6973
    %v6975 = vpop.f32.mrb[0].mxu0
    %v6976 = vpop.f32.mrb[0].mxu0
    %v6977 = vadd.f32 %v5947, %v6976
    %v6978 = vpop.f32.mrb[0].mxu0
    %6979 = vmatprep.mubr.bf16.mxu0 0
    %6980 = vmatmul.mubr.bf16.gmra.mrb[0].mxu0 %v6184
    %v6981 = vpop.f32.mrb[0].mxu0
    %v6982 = vadd.f32 %v5947, %v6981
    %v6983 = vpop.f32.mrb[0].mxu0
    %v6984 = vpop.f32.mrb[0].mxu0
    %v6985 = vadd.f32 %v5947, %v6984
    %v6986 = vpop.f32.mrb[0].mxu0
    %6987 = vmatprep.mubr.bf16.mxu0 0
    %6988 = vmatmul.mubr.bf16.gmra.mrb[0].mxu0 %v6187
    %v6989 = vpop.f32.mrb[0].mxu0
    %v6990 = vadd.f32 %v5947, %v6989
    %v6991 = vpop.f32.mrb[0].mxu0
    %v6992 = vpop.f32.mrb[0].mxu0
    %v6993 = vadd.f32 %v5947, %v6992
    %v6994 = vpop.f32.mrb[0].mxu0
    %6995 = vmatprep.mubr.bf16.mxu0 0
    %6996 = vmatmul.mubr.bf16.gmra.mrb[0].mxu0 %v6190
    %v6997 = vpop.f32.mrb[0].mxu0
    %v6998 = vadd.f32 %v5947, %v6997
    %v6999 = vpop.f32.mrb[0].mxu0
    %v7000 = vpop.f32.mrb[0].mxu0
    %v7001 = vadd.f32 %v5947, %v7000
    %v7002 = vpop.f32.mrb[0].mxu0
    %7003 = vmatprep.mubr.bf16.mxu0 0
    %7004 = vmatmul.mubr.bf16.gmra.mrb[0].mxu0 %v6193
    %v7005 = vpop.f32.mrb[0].mxu0
    %v7006 = vadd.f32 %v5947, %v7005
    %v7007 = vpop.f32.mrb[0].mxu0
    %v7008 = vpop.f32.mrb[0].mxu0
    %v7009 = vadd.f32 %v5947, %v7008
    %v7010 = vpop.f32.mrb[0].mxu0
    %7011 = vmatprep.mubr.bf16.mxu0 0
    %7012 = vmatmul.mubr.bf16.gmra.mrb[0].mxu0 %v6196
    %v7013 = vpop.f32.mrb[0].mxu0
    %v7014 = vadd.f32 %v5947, %v7013
    %v7015 = vpop.f32.mrb[0].mxu0
    %v7016 = vpop.f32.mrb[0].mxu0
    %v7017 = vadd.f32 %v5947, %v7016
    %v7018 = vpop.f32.mrb[0].mxu0
    %7019 = vmatprep.mubr.bf16.mxu0 0
    %7020 = vmatmul.mubr.bf16.gmra.mrb[0].mxu0 %v6199
    %v7021 = vpop.f32.mrb[0].mxu0
    %v7022 = vadd.f32 %v5947, %v7021
    %v7023 = vpop.f32.mrb[0].mxu0
    %v7024 = vpop.f32.mrb[0].mxu0
    %v7025 = vadd.f32 %v5947, %v7024
    %v7026 = vpop.f32.mrb[0].mxu0
    %7027 = vmatprep.mubr.bf16.mxu0 0
    %7028 = vmatmul.mubr.bf16.gmra.mrb[0].mxu0 %v6202
    %v7029 = vpop.f32.mrb[0].mxu0
    %v7030 = vadd.f32 %v5947, %v7029
    %v7031 = vpop.f32.mrb[0].mxu0
    %v7032 = vpop.f32.mrb[0].mxu0
    %v7033 = vadd.f32 %v5947, %v7032
    %v7034 = vpop.f32.mrb[0].mxu0
    %7035 = vmatprep.mubr.bf16.mxu0 0
    %7036 = vmatmul.mubr.bf16.gmra.mrb[0].mxu0 %v6205
    %v7037 = vpop.f32.mrb[0].mxu0
    %v7038 = vadd.f32 %v5947, %v7037
    %v7039 = vpop.f32.mrb[0].mxu0
    %v7040 = vpop.f32.mrb[0].mxu0
    %v7041 = vadd.f32 %v5947, %v7040
    %v7042 = vpop.f32.mrb[0].mxu0
    %7043 = vmatprep.mubr.bf16.mxu0 0
    %7044 = vmatmul.mubr.bf16.gmra.mrb[0].mxu0 %v6208
    %v7045 = vpop.f32.mrb[0].mxu0
    %v7046 = vadd.f32 %v5947, %v7045
    %v7047 = vpop.f32.mrb[0].mxu0
    %v7048 = vpop.f32.mrb[0].mxu0
    %v7049 = vadd.f32 %v5947, %v7048
    %v7050 = vpop.f32.mrb[0].mxu0
    %7051 = vmatprep.mubr.bf16.mxu0 0
    %7052 = vmatmul.mubr.bf16.gmra.mrb[0].mxu0 %v6211
    %v7053 = vpop.f32.mrb[0].mxu0
    %v7054 = vadd.f32 %v5947, %v7053
    %v7055 = vpop.f32.mrb[0].mxu0
    %v7056 = vpop.f32.mrb[0].mxu0
    %v7057 = vadd.f32 %v5947, %v7056
    %v7058 = vpop.f32.mrb[0].mxu0
    %7059 = vmatprep.mubr.bf16.mxu0 0
    %7060 = vmatmul.mubr.bf16.gmra.mrb[0].mxu0 %v6214
    %v7061 = vpop.f32.mrb[0].mxu0
    %v7062 = vadd.f32 %v5947, %v7061
    %v7063 = vpop.f32.mrb[0].mxu0
    %v7064 = vpop.f32.mrb[0].mxu0
    %v7065 = vadd.f32 %v5947, %v7064
    %v7066 = vpop.f32.mrb[0].mxu0
    %7067 = vmatprep.mubr.bf16.mxu0 0
    %7068 = vmatmul.mubr.bf16.gmra.mrb[0].mxu0 %v6217
    %v7069 = vpop.f32.mrb[0].mxu0
    %v7070 = vadd.f32 %v5947, %v7069
    %v7071 = vpop.f32.mrb[0].mxu0
    %v7072 = vpop.f32.mrb[0].mxu0
    %v7073 = vadd.f32 %v5947, %v7072
    %v7074 = vpop.f32.mrb[0].mxu0
    %7075 = vmatprep.mubr.bf16.mxu0 0
    %7076 = vmatmul.mubr.bf16.gmra.mrb[0].mxu0 %v6220
    %v7077 = vpop.f32.mrb[0].mxu0
    %v7078 = vadd.f32 %v5947, %v7077
    %v7079 = vpop.f32.mrb[0].mxu0
    %v7080 = vpop.f32.mrb[0].mxu0
    %v7081 = vadd.f32 %v5947, %v7080
    %v7082 = vpop.f32.mrb[0].mxu0
    %7083 = vmatprep.mubr.bf16.mxu0 0
    %7084 = vmatmul.mubr.bf16.gmra.mrb[0].mxu0 %v6223
    %v7085 = vpop.f32.mrb[0].mxu0
    %v7086 = vadd.f32 %v5947, %v7085
    %v7087 = vpop.f32.mrb[0].mxu0
    %v7088 = vpop.f32.mrb[0].mxu0
    %v7089 = vadd.f32 %v5947, %v7088
    %v7090 = vpop.f32.mrb[0].mxu0
    %7091 = vmatprep.mubr.bf16.mxu0 0
    %7092 = vmatmul.mubr.bf16.gmra.mrb[0].mxu0 %v6226
    %v7093 = vpop.f32.mrb[0].mxu0
    %v7094 = vadd.f32 %v5947, %v7093
    %v7095 = vpop.f32.mrb[0].mxu0
    %v7096 = vpop.f32.mrb[0].mxu0
    %v7097 = vadd.f32 %v5947, %v7096
    %v7098 = vpop.f32.mrb[0].mxu0
    %7099 = vmatprep.mubr.bf16.mxu0 0
    %7100 = vmatmul.mubr.bf16.gmra.mrb[0].mxu0 %v6229
    %v7101 = vpop.f32.mrb[0].mxu0
    %v7102 = vadd.f32 %v5947, %v7101
    %v7103 = vpop.f32.mrb[0].mxu0
    %v7104 = vpop.f32.mrb[0].mxu0
    %v7105 = vadd.f32 %v5947, %v7104
    %v7106 = vpop.f32.mrb[0].mxu0
    %7107 = vmatprep.mubr.bf16.mxu0 0
    %7108 = vmatmul.mubr.bf16.gmra.mrb[0].mxu0 %v6232
    %v7109 = vpop.f32.mrb[0].mxu0
    %v7110 = vadd.f32 %v5947, %v7109
    %v7111 = vpop.f32.mrb[0].mxu0
    %v7112 = vpop.f32.mrb[0].mxu0
    %v7113 = vadd.f32 %v5947, %v7112
    %v7114 = vpop.f32.mrb[0].mxu0
    %7115 = vmatprep.mubr.bf16.mxu0 0
    %7116 = vmatmul.mubr.bf16.gmra.mrb[0].mxu0 %v6235
    %v7117 = vpop.f32.mrb[0].mxu0
    %v7118 = vadd.f32 %v5947, %v7117
    %v7119 = vpop.f32.mrb[0].mxu0
    %v7120 = vpop.f32.mrb[0].mxu0
    %v7121 = vadd.f32 %v5947, %v7120
    %v7122 = vpop.f32.mrb[0].mxu0
    %7123 = vmatprep.mubr.bf16.mxu0 0
    %7124 = vmatmul.mubr.bf16.gmra.mrb[0].mxu0 %v6238
    %v7125 = vpop.f32.mrb[0].mxu0
    %v7126 = vadd.f32 %v5947, %v7125
    %v7127 = vpop.f32.mrb[0].mxu0
    %v7128 = vpop.f32.mrb[0].mxu0
    %v7129 = vadd.f32 %v5947, %v7128
    %v7130 = vpop.f32.mrb[0].mxu0
    %7131 = vmatprep.mubr.bf16.mxu0 0
    %7132 = vmatmul.mubr.bf16.gmra.mrb[0].mxu0 %v6241
    %v7133 = vpop.f32.mrb[0].mxu0
    %v7134 = vadd.f32 %v5947, %v7133
    %v7135 = vpop.f32.mrb[0].mxu0
    %v7136 = vpop.f32.mrb[0].mxu0
    %v7137 = vadd.f32 %v5947, %v7136
    %v7138 = vpop.f32.mrb[0].mxu0
    %7139 = vmatprep.mubr.bf16.mxu0 0
    %7140 = vmatmul.mubr.bf16.gmra.mrb[0].mxu0 %v6244
    %v7141 = vpop.f32.mrb[0].mxu0
    %v7142 = vadd.f32 %v5947, %v7141
    %v7143 = vpop.f32.mrb[0].mxu0
    %v7144 = vpop.f32.mrb[0].mxu0
    %v7145 = vadd.f32 %v5947, %v7144
    %v7146 = vpop.f32.mrb[0].mxu0
    %7147 = vmatprep.mubr.bf16.mxu0 0
    %7148 = vmatmul.mubr.bf16.gmra.mrb[0].mxu0 %v6247
    %v7149 = vpop.f32.mrb[0].mxu0
    %v7150 = vadd.f32 %v5947, %v7149
    %v7151 = vpop.f32.mrb[0].mxu0
    %v7152 = vpop.f32.mrb[0].mxu0
    %v7153 = vadd.f32 %v5947, %v7152
    %v7154 = vpop.f32.mrb[0].mxu0
    %7155 = vmatprep.mubr.bf16.mxu0 0
    %7156 = vmatmul.mubr.bf16.gmra.mrb[0].mxu0 %v6250
    %v7157 = vpop.f32.mrb[0].mxu0
    %v7158 = vadd.f32 %v5947, %v7157
    %v7159 = vpop.f32.mrb[0].mxu0
    %v7160 = vpop.f32.mrb[0].mxu0
    %v7161 = vadd.f32 %v5947, %v7160
    %v7162 = vpop.f32.mrb[0].mxu0
    %7163 = vmatprep.mubr.bf16.mxu0 0
    %7164 = vmatmul.mubr.bf16.gmra.mrb[0].mxu0 %v6253
    %v7165 = vpop.f32.mrb[0].mxu0
    %v7166 = vadd.f32 %v5947, %v7165
    %v7167 = vpop.f32.mrb[0].mxu0
    %v7168 = vpop.f32.mrb[0].mxu0
    %v7169 = vadd.f32 %v5947, %v7168
    %v7170 = vpop.f32.mrb[0].mxu0
    %7171 = vmatprep.mubr.bf16.mxu0 0
    %7172 = vmatmul.mubr.bf16.gmra.mrb[0].mxu0 %v6256
    %v7173 = vpop.f32.mrb[0].mxu0
    %v7174 = vadd.f32 %v5947, %v7173
    %v7175 = vpop.f32.mrb[0].mxu0
    %v7176 = vpop.f32.mrb[0].mxu0
    %v7177 = vadd.f32 %v5947, %v7176
    %v7178 = vpop.f32.mrb[0].mxu0
    %7179 = vmatprep.mubr.bf16.mxu0 0
    %7180 = vmatmul.mubr.bf16.gmra.mrb[0].mxu0 %v6259
    %v7181 = vpop.f32.mrb[0].mxu0
    %v7182 = vadd.f32 %v5947, %v7181
    %v7183 = vpop.f32.mrb[0].mxu0
    %v7184 = vpop.f32.mrb[0].mxu0
    %v7185 = vadd.f32 %v5947, %v7184
    %v7186 = vpop.f32.mrb[0].mxu0
    %7187 = vmatprep.mubr.bf16.mxu0 0
    %7188 = vmatmul.mubr.bf16.gmra.mrb[0].mxu0 %v6262
    %v7189 = vpop.f32.mrb[0].mxu0
    %v7190 = vadd.f32 %v5947, %v7189
    %v7191 = vpop.f32.mrb[0].mxu0
    %v7192 = vpop.f32.mrb[0].mxu0
    %v7193 = vadd.f32 %v5947, %v7192
    %v7194 = vpop.f32.mrb[0].mxu0
    %7195 = vmatprep.mubr.bf16.mxu0 0
    %7196 = vmatmul.mubr.bf16.gmra.mrb[0].mxu0 %v6265
    %v7197 = vpop.f32.mrb[0].mxu0
    %v7198 = vadd.f32 %v5947, %v7197
    %v7199 = vpop.f32.mrb[0].mxu0
    %v7200 = vpop.f32.mrb[0].mxu0
    %v7201 = vadd.f32 %v5947, %v7200
    %v7202 = vpop.f32.mrb[0].mxu0
    %7203 = vmatprep.mubr.bf16.mxu0 0
    %7204 = vmatmul.mubr.bf16.gmra.mrb[0].mxu0 %v6268
    %v7205 = vpop.f32.mrb[0].mxu0
    %v7206 = vadd.f32 %v5947, %v7205
    %v7207 = vpop.f32.mrb[0].mxu0
    %v7208 = vpop.f32.mrb[0].mxu0
    %v7209 = vadd.f32 %v5947, %v7208
    %v7210 = vpop.f32.mrb[0].mxu0
    %7211 = vmatprep.mubr.bf16.mxu0 0
    %7212 = vmatmul.mubr.bf16.gmra.mrb[0].mxu0 %v6271
    %v7213 = vpop.f32.mrb[0].mxu0
    %v7214 = vadd.f32 %v5947, %v7213
    %v7215 = vpop.f32.mrb[0].mxu0
    %v7216 = vpop.f32.mrb[0].mxu0
    %v7217 = vadd.f32 %v5947, %v7216
    %v7218 = vpop.f32.mrb[0].mxu0
    %7219 = vmatprep.mubr.bf16.mxu0 0
    %7220 = vmatmul.mubr.bf16.gmra.mrb[0].mxu0 %v6274
    %v7221 = vpop.f32.mrb[0].mxu0
    %v7222 = vadd.f32 %v5947, %v7221
    %v7223 = vpop.f32.mrb[0].mxu0
    %v7224 = vpop.f32.mrb[0].mxu0
    %v7225 = vadd.f32 %v5947, %v7224
    %v7226 = vpop.f32.mrb[0].mxu0
    %7227 = vmatprep.mubr.bf16.mxu0 0
    %7228 = vmatmul.mubr.bf16.gmra.mrb[0].mxu0 %v6277
    %v7229 = vpop.f32.mrb[0].mxu0
    %v7230 = vadd.f32 %v5947, %v7229
    %v7231 = vpop.f32.mrb[0].mxu0
    %v7232 = vpop.f32.mrb[0].mxu0
    %v7233 = vadd.f32 %v5947, %v7232
    %v7234 = vpop.f32.mrb[0].mxu0
    %7235 = vmatprep.mubr.bf16.mxu0 0
    %7236 = vmatmul.mubr.bf16.gmra.mrb[0].mxu0 %v6280
    %v7237 = vpop.f32.mrb[0].mxu0
    %v7238 = vadd.f32 %v5947, %v7237
    %v7239 = vpop.f32.mrb[0].mxu0
    %v7240 = vpop.f32.mrb[0].mxu0
    %v7241 = vadd.f32 %v5947, %v7240
    %v7242 = vpop.f32.mrb[0].mxu0
    %7243 = vmatprep.mubr.bf16.mxu0 0
    %7244 = vmatmul.mubr.bf16.gmra.mrb[0].mxu0 %v6283
    %v7245 = vpop.f32.mrb[0].mxu0
    %v7246 = vadd.f32 %v5947, %v7245
    %v7247 = vpop.f32.mrb[0].mxu0
    %v7248 = vpop.f32.mrb[0].mxu0
    %v7249 = vadd.f32 %v5947, %v7248
    %v7250 = vpop.f32.mrb[0].mxu0
    %7251 = vmatprep.mubr.bf16.mxu0 0
    %7252 = vmatmul.mubr.bf16.gmra.mrb[0].mxu0 %v6286
    %v7253 = vpop.f32.mrb[0].mxu0
    %v7254 = vadd.f32 %v5947, %v7253
    %v7255 = vpop.f32.mrb[0].mxu0
    %v7256 = vpop.f32.mrb[0].mxu0
    %v7257 = vadd.f32 %v5947, %v7256
    %v7258 = vpop.f32.mrb[0].mxu0
    %7259 = vmatprep.mubr.bf16.mxu0 0
    %7260 = vmatmul.mubr.bf16.gmra.mrb[0].mxu0 %v6289
    %v7261 = vpop.f32.mrb[0].mxu0
    %v7262 = vadd.f32 %v5947, %v7261
    %v7263 = vpop.f32.mrb[0].mxu0
    %v7264 = vpop.f32.mrb[0].mxu0
    %v7265 = vadd.f32 %v5947, %v7264
    %v7266 = vpop.f32.mrb[0].mxu0
    %7267 = vmatprep.mubr.bf16.mxu0 0
    %7268 = vmatmul.mubr.bf16.gmra.mrb[0].mxu0 %v6292
    %v7269 = vpop.f32.mrb[0].mxu0
    %v7270 = vadd.f32 %v5947, %v7269
    %v7271 = vpop.f32.mrb[0].mxu0
    %v7272 = vpop.f32.mrb[0].mxu0
    %v7273 = vadd.f32 %v5947, %v7272
    %v7274 = vpop.f32.mrb[0].mxu0
    %7275 = vmatprep.mubr.bf16.mxu0 0
    %7276 = vmatmul.mubr.bf16.gmra.mrb[0].mxu0 %v6295
    %v7277 = vpop.f32.mrb[0].mxu0
    %v7278 = vadd.f32 %v5947, %v7277
    %v7279 = vpop.f32.mrb[0].mxu0
    %v7280 = vpop.f32.mrb[0].mxu0
    %v7281 = vadd.f32 %v5947, %v7280
    %v7282 = vpop.f32.mrb[0].mxu0
    %7283 = vmatprep.mubr.bf16.mxu0 0
    %7284 = vmatmul.mubr.bf16.gmra.mrb[0].mxu0 %v6298
    %v7285 = vpop.f32.mrb[0].mxu0
    %v7286 = vadd.f32 %v5947, %v7285
    %v7287 = vpop.f32.mrb[0].mxu0
    %v7288 = vpop.f32.mrb[0].mxu0
    %v7289 = vadd.f32 %v5947, %v7288
    %v7290 = vpop.f32.mrb[0].mxu0
    %7291 = vmatprep.mubr.bf16.mxu0 0
    %7292 = vmatmul.mubr.bf16.gmra.mrb[0].mxu0 %v6301
    %v7293 = vpop.f32.mrb[0].mxu0
    %v7294 = vadd.f32 %v5947, %v7293
    %v7295 = vpop.f32.mrb[0].mxu0
    %v7296 = vpop.f32.mrb[0].mxu0
    %v7297 = vadd.f32 %v5947, %v7296
    %v7298 = vpop.f32.mrb[0].mxu0
    %7299 = vmatprep.mubr.bf16.mxu0 0
    %7300 = vmatmul.mubr.bf16.gmra.mrb[0].mxu0 %v6304
    %v7301 = vpop.f32.mrb[0].mxu0
    %v7302 = vadd.f32 %v5947, %v7301
    %v7303 = vpop.f32.mrb[0].mxu0
    %v7304 = vpop.f32.mrb[0].mxu0
    %v7305 = vadd.f32 %v5947, %v7304
    %v7306 = vpop.f32.mrb[0].mxu0
    %7307 = vmatprep.mubr.bf16.mxu0 0
    %7308 = vmatmul.mubr.bf16.gmra.mrb[0].mxu0 %v6307
    %v7309 = vpop.f32.mrb[0].mxu0
    %v7310 = vadd.f32 %v5947, %v7309
    %v7311 = vpop.f32.mrb[0].mxu0
    %v7312 = vpop.f32.mrb[0].mxu0
    %v7313 = vadd.f32 %v5947, %v7312
    %v7314 = vpop.f32.mrb[0].mxu0
    %7315 = vmatprep.mubr.bf16.mxu0 0
    %7316 = vmatmul.mubr.bf16.gmra.mrb[0].mxu0 %v6310
    %v7317 = vpop.f32.mrb[0].mxu0
    %v7318 = vadd.f32 %v5947, %v7317
    %v7319 = vpop.f32.mrb[0].mxu0
    %v7320 = vpop.f32.mrb[0].mxu0
    %v7321 = vadd.f32 %v5947, %v7320
    %v7322 = vpop.f32.mrb[0].mxu0
    %7323 = vmatprep.mubr.bf16.mxu0 0
    %7324 = vmatmul.mubr.bf16.gmra.mrb[0].mxu0 %v6313
    %v7325 = vpop.f32.mrb[0].mxu0
    %v7326 = vadd.f32 %v5947, %v7325
    %v7327 = vpop.f32.mrb[0].mxu0
    %v7328 = vpop.f32.mrb[0].mxu0
    %v7329 = vadd.f32 %v5947, %v7328
    %v7330 = vpop.f32.mrb[0].mxu0
    %7331 = vmatprep.mubr.bf16.mxu0 0
    %7332 = vmatmul.mubr.bf16.gmra.mrb[0].mxu0 %v6316
    %v7333 = vpop.f32.mrb[0].mxu0
    %v7334 = vadd.f32 %v5947, %v7333
    %v7335 = vpop.f32.mrb[0].mxu0
    %v7336 = vpop.f32.mrb[0].mxu0
    %v7337 = vadd.f32 %v5947, %v7336
    %v7338 = vpop.f32.mrb[0].mxu0
    %7339 = vmatprep.mubr.bf16.mxu0 0
    %7340 = vmatmul.mubr.bf16.gmra.mrb[0].mxu0 %v6319
    %v7341 = vpop.f32.mrb[0].mxu0
    %v7342 = vadd.f32 %v5947, %v7341
    %v7343 = vpop.f32.mrb[0].mxu0
    %v7344 = vpop.f32.mrb[0].mxu0
    %v7345 = vadd.f32 %v5947, %v7344
    %v7346 = vpop.f32.mrb[0].mxu0
    %7347 = vmatprep.mubr.bf16.mxu0 0
    %7348 = vmatmul.mubr.bf16.gmra.mrb[0].mxu0 %v6322
    %v7349 = vpop.f32.mrb[0].mxu0
    %v7350 = vadd.f32 %v5947, %v7349
    %v7351 = vpop.f32.mrb[0].mxu0
    %v7352 = vpop.f32.mrb[0].mxu0
    %v7353 = vadd.f32 %v5947, %v7352
    %v7354 = vpop.f32.mrb[0].mxu0
    %7355 = vmatprep.mubr.bf16.mxu0 0
    %7356 = vmatmul.mubr.bf16.gmra.mrb[0].mxu0 %v6325
    %v7357 = vpop.f32.mrb[0].mxu0
    %v7358 = vadd.f32 %v5947, %v7357
    %v7359 = vpop.f32.mrb[0].mxu0
    %v7360 = vpop.f32.mrb[0].mxu0
    %v7361 = vadd.f32 %v5947, %v7360
    %v7362 = vpop.f32.mrb[0].mxu0
    %7363 = vmatprep.mubr.bf16.mxu0 0
    %7364 = vmatmul.mubr.bf16.gmra.mrb[0].mxu0 %v6328
    %v7365 = vpop.f32.mrb[0].mxu0
    %v7366 = vadd.f32 %v5947, %v7365
    %v7367 = vpop.f32.mrb[0].mxu0
    %v7368 = vpop.f32.mrb[0].mxu0
    %v7369 = vadd.f32 %v5947, %v7368
    %v7370 = vpop.f32.mrb[0].mxu0
    %7371 = vmatprep.mubr.bf16.mxu0 0
    %7372 = vmatmul.mubr.bf16.gmra.mrb[0].mxu0 %v6331
    %v7373 = vpop.f32.mrb[0].mxu0
    %v7374 = vadd.f32 %v5947, %v7373
    %v7375 = vpop.f32.mrb[0].mxu0
    %v7376 = vpop.f32.mrb[0].mxu0
    %v7377 = vadd.f32 %v5947, %v7376
    %v7378 = vpop.f32.mrb[0].mxu0
    %7379 = vmatprep.mubr.bf16.mxu0 0
    %7380 = vmatmul.mubr.bf16.gmra.mrb[0].mxu0 %v6334
    %v7381 = vpop.f32.mrb[0].mxu0
    %v7382 = vadd.f32 %v5947, %v7381
    %v7383 = vpop.f32.mrb[0].mxu0
    %v7384 = vpop.f32.mrb[0].mxu0
    %v7385 = vadd.f32 %v5947, %v7384
    %v7386 = vpop.f32.mrb[0].mxu0
    %7387 = vmatprep.mubr.bf16.mxu0 0
    %7388 = vmatmul.mubr.bf16.gmra.mrb[0].mxu0 %v6337
    %v7389 = vpop.f32.mrb[0].mxu0
    %v7390 = vadd.f32 %v5947, %v7389
    %v7391 = vpop.f32.mrb[0].mxu0
    %v7392 = vpop.f32.mrb[0].mxu0
    %v7393 = vadd.f32 %v5947, %v7392
    %v7394 = vpop.f32.mrb[0].mxu0
    %7395 = vdwg.mxu0
    %v7396 = vmax.f32 %v6374, 0.0
    %v7397 = vmax.f32 %v6377, 0.0
    %v7398 = vmax.f32 %v6382, 0.0
    %v7399 = vmax.f32 %v6385, 0.0
    %v7400 = vmax.f32 %v6390, 0.0
    %v7401 = vmax.f32 %v6393, 0.0
    %v7402 = vmax.f32 %v6398, 0.0
    %v7403 = vmax.f32 %v6401, 0.0
    %v7404 = vmax.f32 %v6406, 0.0
    %v7405 = vmax.f32 %v6409, 0.0
    %v7406 = vmax.f32 %v6414, 0.0
    %v7407 = vmax.f32 %v6417, 0.0
    %v7408 = vmax.f32 %v6422, 0.0
    %v7409 = vmax.f32 %v6425, 0.0
    %v7410 = vmax.f32 %v6430, 0.0
    %v7411 = vmax.f32 %v6433, 0.0
    %v7412 = vmax.f32 %v6438, 0.0
    %v7413 = vmax.f32 %v6441, 0.0
    %v7414 = vmax.f32 %v6446, 0.0
    %v7415 = vmax.f32 %v6449, 0.0
    %v7416 = vmax.f32 %v6454, 0.0
    %v7417 = vmax.f32 %v6457, 0.0
    %v7418 = vmax.f32 %v6462, 0.0
    %v7419 = vmax.f32 %v6465, 0.0
    %v7420 = vmax.f32 %v6470, 0.0
    %v7421 = vmax.f32 %v6473, 0.0
    %v7422 = vmax.f32 %v6478, 0.0
    %v7423 = vmax.f32 %v6481, 0.0
    %v7424 = vmax.f32 %v6486, 0.0
    %v7425 = vmax.f32 %v6489, 0.0
    %v7426 = vmax.f32 %v6494, 0.0
    %v7427 = vmax.f32 %v6497, 0.0
    %v7428 = vmax.f32 %v6502, 0.0
    %v7429 = vmax.f32 %v6505, 0.0
    %v7430 = vmax.f32 %v6510, 0.0
    %v7431 = vmax.f32 %v6513, 0.0
    %v7432 = vmax.f32 %v6518, 0.0
    %v7433 = vmax.f32 %v6521, 0.0
    %v7434 = vmax.f32 %v6526, 0.0
    %v7435 = vmax.f32 %v6529, 0.0
    %v7436 = vmax.f32 %v6534, 0.0
    %v7437 = vmax.f32 %v6537, 0.0
    %v7438 = vmax.f32 %v6542, 0.0
    %v7439 = vmax.f32 %v6545, 0.0
    %v7440 = vmax.f32 %v6550, 0.0
    %v7441 = vmax.f32 %v6553, 0.0
    %v7442 = vmax.f32 %v6558, 0.0
    %v7443 = vmax.f32 %v6561, 0.0
    %v7444 = vmax.f32 %v6566, 0.0
    %v7445 = vmax.f32 %v6569, 0.0
    %v7446 = vmax.f32 %v6574, 0.0
    %v7447 = vmax.f32 %v6577, 0.0
    %v7448 = vmax.f32 %v6582, 0.0
    %v7449 = vmax.f32 %v6585, 0.0
    %v7450 = vmax.f32 %v6590, 0.0
    %v7451 = vmax.f32 %v6593, 0.0
    %v7452 = vmax.f32 %v6598, 0.0
    %v7453 = vmax.f32 %v6601, 0.0
    %v7454 = vmax.f32 %v6606, 0.0
    %v7455 = vmax.f32 %v6609, 0.0
    %v7456 = vmax.f32 %v6614, 0.0
    %v7457 = vmax.f32 %v6617, 0.0
    %v7458 = vmax.f32 %v6622, 0.0
    %v7459 = vmax.f32 %v6625, 0.0
    %v7460 = vmax.f32 %v6630, 0.0
    %v7461 = vmax.f32 %v6633, 0.0
    %v7462 = vmax.f32 %v6638, 0.0
    %v7463 = vmax.f32 %v6641, 0.0
    %v7464 = vmax.f32 %v6646, 0.0
    %v7465 = vmax.f32 %v6649, 0.0
    %v7466 = vmax.f32 %v6654, 0.0
    %v7467 = vmax.f32 %v6657, 0.0
    %v7468 = vmax.f32 %v6662, 0.0
    %v7469 = vmax.f32 %v6665, 0.0
    %v7470 = vmax.f32 %v6670, 0.0
    %v7471 = vmax.f32 %v6673, 0.0
    %v7472 = vmax.f32 %v6678, 0.0
    %v7473 = vmax.f32 %v6681, 0.0
    %v7474 = vmax.f32 %v6686, 0.0
    %v7475 = vmax.f32 %v6689, 0.0
    %v7476 = vmax.f32 %v6694, 0.0
    %v7477 = vmax.f32 %v6697, 0.0
    %v7478 = vmax.f32 %v6702, 0.0
    %v7479 = vmax.f32 %v6705, 0.0
    %v7480 = vmax.f32 %v6710, 0.0
    %v7481 = vmax.f32 %v6713, 0.0
    %v7482 = vmax.f32 %v6718, 0.0
    %v7483 = vmax.f32 %v6721, 0.0
    %v7484 = vmax.f32 %v6726, 0.0
    %v7485 = vmax.f32 %v6729, 0.0
    %v7486 = vmax.f32 %v6734, 0.0
    %v7487 = vmax.f32 %v6737, 0.0
    %v7488 = vmax.f32 %v6742, 0.0
    %v7489 = vmax.f32 %v6745, 0.0
    %v7490 = vmax.f32 %v6750, 0.0
    %v7491 = vmax.f32 %v6753, 0.0
    %v7492 = vmax.f32 %v6758, 0.0
    %v7493 = vmax.f32 %v6761, 0.0
    %v7494 = vmax.f32 %v6766, 0.0
    %v7495 = vmax.f32 %v6769, 0.0
    %v7496 = vmax.f32 %v6774, 0.0
    %v7497 = vmax.f32 %v6777, 0.0
    %v7498 = vmax.f32 %v6782, 0.0
    %v7499 = vmax.f32 %v6785, 0.0
    %v7500 = vmax.f32 %v6790, 0.0
    %v7501 = vmax.f32 %v6793, 0.0
    %v7502 = vmax.f32 %v6798, 0.0
    %v7503 = vmax.f32 %v6801, 0.0
    %v7504 = vmax.f32 %v6806, 0.0
    %v7505 = vmax.f32 %v6809, 0.0
    %v7506 = vmax.f32 %v6814, 0.0
    %v7507 = vmax.f32 %v6817, 0.0
    %v7508 = vmax.f32 %v6822, 0.0
    %v7509 = vmax.f32 %v6825, 0.0
    %v7510 = vmax.f32 %v6830, 0.0
    %v7511 = vmax.f32 %v6833, 0.0
    %v7512 = vmax.f32 %v6838, 0.0
    %v7513 = vmax.f32 %v6841, 0.0
    %v7514 = vmax.f32 %v6846, 0.0
    %v7515 = vmax.f32 %v6849, 0.0
    %v7516 = vmax.f32 %v6854, 0.0
    %v7517 = vmax.f32 %v6857, 0.0
    %v7518 = vmax.f32 %v6862, 0.0
    %v7519 = vmax.f32 %v6865, 0.0
    %v7520 = vmax.f32 %v6870, 0.0
    %v7521 = vmax.f32 %v6873, 0.0
    %v7522 = vmax.f32 %v6878, 0.0
    %v7523 = vmax.f32 %v6881, 0.0
    %v7524 = vmax.f32 %v6886, 0.0
    %v7525 = vmax.f32 %v6889, 0.0
    %v7526 = vmax.f32 %v6894, 0.0
    %v7527 = vmax.f32 %v6897, 0.0
    %v7528 = vmax.f32 %v6902, 0.0
    %v7529 = vmax.f32 %v6905, 0.0
    %v7530 = vmax.f32 %v6910, 0.0
    %v7531 = vmax.f32 %v6913, 0.0
    %v7532 = vmax.f32 %v6918, 0.0
    %v7533 = vmax.f32 %v6921, 0.0
    %v7534 = vmax.f32 %v6926, 0.0
    %v7535 = vmax.f32 %v6929, 0.0
    %v7536 = vmax.f32 %v6934, 0.0
    %v7537 = vmax.f32 %v6937, 0.0
    %v7538 = vmax.f32 %v6942, 0.0
    %v7539 = vmax.f32 %v6945, 0.0
    %v7540 = vmax.f32 %v6950, 0.0
    %v7541 = vmax.f32 %v6953, 0.0
    %v7542 = vmax.f32 %v6958, 0.0
    %v7543 = vmax.f32 %v6961, 0.0
    %v7544 = vmax.f32 %v6966, 0.0
    %v7545 = vmax.f32 %v6969, 0.0
    %v7546 = vmax.f32 %v6974, 0.0
    %v7547 = vmax.f32 %v6977, 0.0
    %v7548 = vmax.f32 %v6982, 0.0
    %v7549 = vmax.f32 %v6985, 0.0
    %v7550 = vmax.f32 %v6990, 0.0
    %v7551 = vmax.f32 %v6993, 0.0
    %v7552 = vmax.f32 %v6998, 0.0
    %v7553 = vmax.f32 %v7001, 0.0
    %v7554 = vmax.f32 %v7006, 0.0
    %v7555 = vmax.f32 %v7009, 0.0
    %v7556 = vmax.f32 %v7014, 0.0
    %v7557 = vmax.f32 %v7017, 0.0
    %v7558 = vmax.f32 %v7022, 0.0
    %v7559 = vmax.f32 %v7025, 0.0
    %v7560 = vmax.f32 %v7030, 0.0
    %v7561 = vmax.f32 %v7033, 0.0
    %v7562 = vmax.f32 %v7038, 0.0
    %v7563 = vmax.f32 %v7041, 0.0
    %v7564 = vmax.f32 %v7046, 0.0
    %v7565 = vmax.f32 %v7049, 0.0
    %v7566 = vmax.f32 %v7054, 0.0
    %v7567 = vmax.f32 %v7057, 0.0
    %v7568 = vmax.f32 %v7062, 0.0
    %v7569 = vmax.f32 %v7065, 0.0
    %v7570 = vmax.f32 %v7070, 0.0
    %v7571 = vmax.f32 %v7073, 0.0
    %v7572 = vmax.f32 %v7078, 0.0
    %v7573 = vmax.f32 %v7081, 0.0
    %v7574 = vmax.f32 %v7086, 0.0
    %v7575 = vmax.f32 %v7089, 0.0
    %v7576 = vmax.f32 %v7094, 0.0
    %v7577 = vmax.f32 %v7097, 0.0
    %v7578 = vmax.f32 %v7102, 0.0
    %v7579 = vmax.f32 %v7105, 0.0
    %v7580 = vmax.f32 %v7110, 0.0
    %v7581 = vmax.f32 %v7113, 0.0
    %v7582 = vmax.f32 %v7118, 0.0
    %v7583 = vmax.f32 %v7121, 0.0
    %v7584 = vmax.f32 %v7126, 0.0
    %v7585 = vmax.f32 %v7129, 0.0
    %v7586 = vmax.f32 %v7134, 0.0
    %v7587 = vmax.f32 %v7137, 0.0
    %v7588 = vmax.f32 %v7142, 0.0
    %v7589 = vmax.f32 %v7145, 0.0
    %v7590 = vmax.f32 %v7150, 0.0
    %v7591 = vmax.f32 %v7153, 0.0
    %v7592 = vmax.f32 %v7158, 0.0
    %v7593 = vmax.f32 %v7161, 0.0
    %v7594 = vmax.f32 %v7166, 0.0
    %v7595 = vmax.f32 %v7169, 0.0
    %v7596 = vmax.f32 %v7174, 0.0
    %v7597 = vmax.f32 %v7177, 0.0
    %v7598 = vmax.f32 %v7182, 0.0
    %v7599 = vmax.f32 %v7185, 0.0
    %v7600 = vmax.f32 %v7190, 0.0
    %v7601 = vmax.f32 %v7193, 0.0
    %v7602 = vmax.f32 %v7198, 0.0
    %v7603 = vmax.f32 %v7201, 0.0
    %v7604 = vmax.f32 %v7206, 0.0
    %v7605 = vmax.f32 %v7209, 0.0
    %v7606 = vmax.f32 %v7214, 0.0
    %v7607 = vmax.f32 %v7217, 0.0
    %v7608 = vmax.f32 %v7222, 0.0
    %v7609 = vmax.f32 %v7225, 0.0
    %v7610 = vmax.f32 %v7230, 0.0
    %v7611 = vmax.f32 %v7233, 0.0
    %v7612 = vmax.f32 %v7238, 0.0
    %v7613 = vmax.f32 %v7241, 0.0
    %v7614 = vmax.f32 %v7246, 0.0
    %v7615 = vmax.f32 %v7249, 0.0
    %v7616 = vmax.f32 %v7254, 0.0
    %v7617 = vmax.f32 %v7257, 0.0
    %v7618 = vmax.f32 %v7262, 0.0
    %v7619 = vmax.f32 %v7265, 0.0
    %v7620 = vmax.f32 %v7270, 0.0
    %v7621 = vmax.f32 %v7273, 0.0
    %v7622 = vmax.f32 %v7278, 0.0
    %v7623 = vmax.f32 %v7281, 0.0
    %v7624 = vmax.f32 %v7286, 0.0
    %v7625 = vmax.f32 %v7289, 0.0
    %v7626 = vmax.f32 %v7294, 0.0
    %v7627 = vmax.f32 %v7297, 0.0
    %v7628 = vmax.f32 %v7302, 0.0
    %v7629 = vmax.f32 %v7305, 0.0
    %v7630 = vmax.f32 %v7310, 0.0
    %v7631 = vmax.f32 %v7313, 0.0
    %v7632 = vmax.f32 %v7318, 0.0
    %v7633 = vmax.f32 %v7321, 0.0
    %v7634 = vmax.f32 %v7326, 0.0
    %v7635 = vmax.f32 %v7329, 0.0
    %v7636 = vmax.f32 %v7334, 0.0
    %v7637 = vmax.f32 %v7337, 0.0
    %v7638 = vmax.f32 %v7342, 0.0
    %v7639 = vmax.f32 %v7345, 0.0
    %v7640 = vmax.f32 %v7350, 0.0
    %v7641 = vmax.f32 %v7353, 0.0
    %v7642 = vmax.f32 %v7358, 0.0
    %v7643 = vmax.f32 %v7361, 0.0
    %v7644 = vmax.f32 %v7366, 0.0
    %v7645 = vmax.f32 %v7369, 0.0
    %v7646 = vmax.f32 %v7374, 0.0
    %v7647 = vmax.f32 %v7377, 0.0
    %v7648 = vmax.f32 %v7382, 0.0
    %v7649 = vmax.f32 %v7385, 0.0
    %v7650 = vmax.f32 %v7390, 0.0
    %v7651 = vmax.f32 %v7393, 0.0
    %v7652 = vsel %vm2311, %v7396, -inf
    %v7653 = vsel %vm2311, %v7397, -inf
    %v7654 = vmax.f32 %v7652, %v7653
    %v7655 = vrot.slane %v7654, 4
    %v7656 = vmax.f32 %v7654, %v7655
    %v7657 = vrot.slane %v7656, 2
    %v7658 = vmax.f32 %v7656, %v7657
    %v7659 = vrot.slane %v7658, 1
    %v7660 = vmax.f32 %v7658, %v7659
    %v7661 = vsel %vm2311, %v7398, -inf
    %v7662 = vsel %vm2311, %v7399, -inf
    %v7663 = vmax.f32 %v7661, %v7662
    %v7664 = vrot.slane %v7663, 4
    %v7665 = vmax.f32 %v7663, %v7664
    %v7666 = vrot.slane %v7665, 2
    %v7667 = vmax.f32 %v7665, %v7666
    %v7668 = vrot.slane %v7667, 1
    %v7669 = vmax.f32 %v7667, %v7668
    %v7670 = vsel %vm2311, %v7400, -inf
    %v7671 = vsel %vm2311, %v7401, -inf
    %v7672 = vmax.f32 %v7670, %v7671
    %v7673 = vrot.slane %v7672, 4
    %v7674 = vmax.f32 %v7672, %v7673
    %v7675 = vrot.slane %v7674, 2
    %v7676 = vmax.f32 %v7674, %v7675
    %v7677 = vrot.slane %v7676, 1
    %v7678 = vmax.f32 %v7676, %v7677
    %v7679 = vsel %vm2311, %v7402, -inf
    %v7680 = vsel %vm2311, %v7403, -inf
    %v7681 = vmax.f32 %v7679, %v7680
    %v7682 = vrot.slane %v7681, 4
    %v7683 = vmax.f32 %v7681, %v7682
    %v7684 = vrot.slane %v7683, 2
    %v7685 = vmax.f32 %v7683, %v7684
    %v7686 = vrot.slane %v7685, 1
    %v7687 = vmax.f32 %v7685, %v7686
    %v7688 = vsel %vm2311, %v7404, -inf
    %v7689 = vsel %vm2311, %v7405, -inf
    %v7690 = vmax.f32 %v7688, %v7689
    %v7691 = vrot.slane %v7690, 4
    %v7692 = vmax.f32 %v7690, %v7691
    %v7693 = vrot.slane %v7692, 2
    %v7694 = vmax.f32 %v7692, %v7693
    %v7695 = vrot.slane %v7694, 1
    %v7696 = vmax.f32 %v7694, %v7695
    %v7697 = vsel %vm2311, %v7406, -inf
    %v7698 = vsel %vm2311, %v7407, -inf
    %v7699 = vmax.f32 %v7697, %v7698
    %v7700 = vrot.slane %v7699, 4
    %v7701 = vmax.f32 %v7699, %v7700
    %v7702 = vrot.slane %v7701, 2
    %v7703 = vmax.f32 %v7701, %v7702
    %v7704 = vrot.slane %v7703, 1
    %v7705 = vmax.f32 %v7703, %v7704
    %v7706 = vsel %vm2311, %v7408, -inf
    %v7707 = vsel %vm2311, %v7409, -inf
    %v7708 = vmax.f32 %v7706, %v7707
    %v7709 = vrot.slane %v7708, 4
    %v7710 = vmax.f32 %v7708, %v7709
    %v7711 = vrot.slane %v7710, 2
    %v7712 = vmax.f32 %v7710, %v7711
    %v7713 = vrot.slane %v7712, 1
    %v7714 = vmax.f32 %v7712, %v7713
    %v7715 = vsel %vm2311, %v7410, -inf
    %v7716 = vsel %vm2311, %v7411, -inf
    %v7717 = vmax.f32 %v7715, %v7716
    %v7718 = vrot.slane %v7717, 4
    %v7719 = vmax.f32 %v7717, %v7718
    %v7720 = vrot.slane %v7719, 2
    %v7721 = vmax.f32 %v7719, %v7720
    %v7722 = vrot.slane %v7721, 1
    %v7723 = vmax.f32 %v7721, %v7722
    %v7724 = vsel %vm2311, %v7412, -inf
    %v7725 = vsel %vm2311, %v7413, -inf
    %v7726 = vmax.f32 %v7724, %v7725
    %v7727 = vrot.slane %v7726, 4
    %v7728 = vmax.f32 %v7726, %v7727
    %v7729 = vrot.slane %v7728, 2
    %v7730 = vmax.f32 %v7728, %v7729
    %v7731 = vrot.slane %v7730, 1
    %v7732 = vmax.f32 %v7730, %v7731
    %v7733 = vsel %vm2311, %v7414, -inf
    %v7734 = vsel %vm2311, %v7415, -inf
    %v7735 = vmax.f32 %v7733, %v7734
    %v7736 = vrot.slane %v7735, 4
    %v7737 = vmax.f32 %v7735, %v7736
    %v7738 = vrot.slane %v7737, 2
    %v7739 = vmax.f32 %v7737, %v7738
    %v7740 = vrot.slane %v7739, 1
    %v7741 = vmax.f32 %v7739, %v7740
    %v7742 = vsel %vm2311, %v7416, -inf
    %v7743 = vsel %vm2311, %v7417, -inf
    %v7744 = vmax.f32 %v7742, %v7743
    %v7745 = vrot.slane %v7744, 4
    %v7746 = vmax.f32 %v7744, %v7745
    %v7747 = vrot.slane %v7746, 2
    %v7748 = vmax.f32 %v7746, %v7747
    %v7749 = vrot.slane %v7748, 1
    %v7750 = vmax.f32 %v7748, %v7749
    %v7751 = vsel %vm2311, %v7418, -inf
    %v7752 = vsel %vm2311, %v7419, -inf
    %v7753 = vmax.f32 %v7751, %v7752
    %v7754 = vrot.slane %v7753, 4
    %v7755 = vmax.f32 %v7753, %v7754
    %v7756 = vrot.slane %v7755, 2
    %v7757 = vmax.f32 %v7755, %v7756
    %v7758 = vrot.slane %v7757, 1
    %v7759 = vmax.f32 %v7757, %v7758
    %v7760 = vsel %vm2311, %v7420, -inf
    %v7761 = vsel %vm2311, %v7421, -inf
    %v7762 = vmax.f32 %v7760, %v7761
    %v7763 = vrot.slane %v7762, 4
    %v7764 = vmax.f32 %v7762, %v7763
    %v7765 = vrot.slane %v7764, 2
    %v7766 = vmax.f32 %v7764, %v7765
    %v7767 = vrot.slane %v7766, 1
    %v7768 = vmax.f32 %v7766, %v7767
    %v7769 = vsel %vm2311, %v7422, -inf
    %v7770 = vsel %vm2311, %v7423, -inf
    %v7771 = vmax.f32 %v7769, %v7770
    %v7772 = vrot.slane %v7771, 4
    %v7773 = vmax.f32 %v7771, %v7772
    %v7774 = vrot.slane %v7773, 2
    %v7775 = vmax.f32 %v7773, %v7774
    %v7776 = vrot.slane %v7775, 1
    %v7777 = vmax.f32 %v7775, %v7776
    %v7778 = vsel %vm2311, %v7424, -inf
    %v7779 = vsel %vm2311, %v7425, -inf
    %v7780 = vmax.f32 %v7778, %v7779
    %v7781 = vrot.slane %v7780, 4
    %v7782 = vmax.f32 %v7780, %v7781
    %v7783 = vrot.slane %v7782, 2
    %v7784 = vmax.f32 %v7782, %v7783
    %v7785 = vrot.slane %v7784, 1
    %v7786 = vmax.f32 %v7784, %v7785
    %v7787 = vsel %vm2311, %v7426, -inf
    %v7788 = vsel %vm2311, %v7427, -inf
    %v7789 = vmax.f32 %v7787, %v7788
    %v7790 = vrot.slane %v7789, 4
    %v7791 = vmax.f32 %v7789, %v7790
    %v7792 = vrot.slane %v7791, 2
    %v7793 = vmax.f32 %v7791, %v7792
    %v7794 = vrot.slane %v7793, 1
    %v7795 = vmax.f32 %v7793, %v7794
    %v7796 = vsel %vm2311, %v7428, -inf
    %v7797 = vsel %vm2311, %v7429, -inf
    %v7798 = vmax.f32 %v7796, %v7797
    %v7799 = vrot.slane %v7798, 4
    %v7800 = vmax.f32 %v7798, %v7799
    %v7801 = vrot.slane %v7800, 2
    %v7802 = vmax.f32 %v7800, %v7801
    %v7803 = vrot.slane %v7802, 1
    %v7804 = vmax.f32 %v7802, %v7803
    %v7805 = vsel %vm2311, %v7430, -inf
    %v7806 = vsel %vm2311, %v7431, -inf
    %v7807 = vmax.f32 %v7805, %v7806
    %v7808 = vrot.slane %v7807, 4
    %v7809 = vmax.f32 %v7807, %v7808
    %v7810 = vrot.slane %v7809, 2
    %v7811 = vmax.f32 %v7809, %v7810
    %v7812 = vrot.slane %v7811, 1
    %v7813 = vmax.f32 %v7811, %v7812
    %v7814 = vsel %vm2311, %v7432, -inf
    %v7815 = vsel %vm2311, %v7433, -inf
    %v7816 = vmax.f32 %v7814, %v7815
    %v7817 = vrot.slane %v7816, 4
    %v7818 = vmax.f32 %v7816, %v7817
    %v7819 = vrot.slane %v7818, 2
    %v7820 = vmax.f32 %v7818, %v7819
    %v7821 = vrot.slane %v7820, 1
    %v7822 = vmax.f32 %v7820, %v7821
    %v7823 = vsel %vm2311, %v7434, -inf
    %v7824 = vsel %vm2311, %v7435, -inf
    %v7825 = vmax.f32 %v7823, %v7824
    %v7826 = vrot.slane %v7825, 4
    %v7827 = vmax.f32 %v7825, %v7826
    %v7828 = vrot.slane %v7827, 2
    %v7829 = vmax.f32 %v7827, %v7828
    %v7830 = vrot.slane %v7829, 1
    %v7831 = vmax.f32 %v7829, %v7830
    %v7832 = vsel %vm2311, %v7436, -inf
    %v7833 = vsel %vm2311, %v7437, -inf
    %v7834 = vmax.f32 %v7832, %v7833
    %v7835 = vrot.slane %v7834, 4
    %v7836 = vmax.f32 %v7834, %v7835
    %v7837 = vrot.slane %v7836, 2
    %v7838 = vmax.f32 %v7836, %v7837
    %v7839 = vrot.slane %v7838, 1
    %v7840 = vmax.f32 %v7838, %v7839
    %v7841 = vsel %vm2311, %v7438, -inf
    %v7842 = vsel %vm2311, %v7439, -inf
    %v7843 = vmax.f32 %v7841, %v7842
    %v7844 = vrot.slane %v7843, 4
    %v7845 = vmax.f32 %v7843, %v7844
    %v7846 = vrot.slane %v7845, 2
    %v7847 = vmax.f32 %v7845, %v7846
    %v7848 = vrot.slane %v7847, 1
    %v7849 = vmax.f32 %v7847, %v7848
    %v7850 = vsel %vm2311, %v7440, -inf
    %v7851 = vsel %vm2311, %v7441, -inf
    %v7852 = vmax.f32 %v7850, %v7851
    %v7853 = vrot.slane %v7852, 4
    %v7854 = vmax.f32 %v7852, %v7853
    %v7855 = vrot.slane %v7854, 2
    %v7856 = vmax.f32 %v7854, %v7855
    %v7857 = vrot.slane %v7856, 1
    %v7858 = vmax.f32 %v7856, %v7857
    %v7859 = vsel %vm2311, %v7442, -inf
    %v7860 = vsel %vm2311, %v7443, -inf
    %v7861 = vmax.f32 %v7859, %v7860
    %v7862 = vrot.slane %v7861, 4
    %v7863 = vmax.f32 %v7861, %v7862
    %v7864 = vrot.slane %v7863, 2
    %v7865 = vmax.f32 %v7863, %v7864
    %v7866 = vrot.slane %v7865, 1
    %v7867 = vmax.f32 %v7865, %v7866
    %v7868 = vsel %vm2311, %v7444, -inf
    %v7869 = vsel %vm2311, %v7445, -inf
    %v7870 = vmax.f32 %v7868, %v7869
    %v7871 = vrot.slane %v7870, 4
    %v7872 = vmax.f32 %v7870, %v7871
    %v7873 = vrot.slane %v7872, 2
    %v7874 = vmax.f32 %v7872, %v7873
    %v7875 = vrot.slane %v7874, 1
    %v7876 = vmax.f32 %v7874, %v7875
    %v7877 = vsel %vm2311, %v7446, -inf
    %v7878 = vsel %vm2311, %v7447, -inf
    %v7879 = vmax.f32 %v7877, %v7878
    %v7880 = vrot.slane %v7879, 4
    %v7881 = vmax.f32 %v7879, %v7880
    %v7882 = vrot.slane %v7881, 2
    %v7883 = vmax.f32 %v7881, %v7882
    %v7884 = vrot.slane %v7883, 1
    %v7885 = vmax.f32 %v7883, %v7884
    %v7886 = vsel %vm2311, %v7448, -inf
    %v7887 = vsel %vm2311, %v7449, -inf
    %v7888 = vmax.f32 %v7886, %v7887
    %v7889 = vrot.slane %v7888, 4
    %v7890 = vmax.f32 %v7888, %v7889
    %v7891 = vrot.slane %v7890, 2
    %v7892 = vmax.f32 %v7890, %v7891
    %v7893 = vrot.slane %v7892, 1
    %v7894 = vmax.f32 %v7892, %v7893
    %v7895 = vsel %vm2311, %v7450, -inf
    %v7896 = vsel %vm2311, %v7451, -inf
    %v7897 = vmax.f32 %v7895, %v7896
    %v7898 = vrot.slane %v7897, 4
    %v7899 = vmax.f32 %v7897, %v7898
    %v7900 = vrot.slane %v7899, 2
    %v7901 = vmax.f32 %v7899, %v7900
    %v7902 = vrot.slane %v7901, 1
    %v7903 = vmax.f32 %v7901, %v7902
    %v7904 = vsel %vm2311, %v7452, -inf
    %v7905 = vsel %vm2311, %v7453, -inf
    %v7906 = vmax.f32 %v7904, %v7905
    %v7907 = vrot.slane %v7906, 4
    %v7908 = vmax.f32 %v7906, %v7907
    %v7909 = vrot.slane %v7908, 2
    %v7910 = vmax.f32 %v7908, %v7909
    %v7911 = vrot.slane %v7910, 1
    %v7912 = vmax.f32 %v7910, %v7911
    %v7913 = vsel %vm2311, %v7454, -inf
    %v7914 = vsel %vm2311, %v7455, -inf
    %v7915 = vmax.f32 %v7913, %v7914
    %v7916 = vrot.slane %v7915, 4
    %v7917 = vmax.f32 %v7915, %v7916
    %v7918 = vrot.slane %v7917, 2
    %v7919 = vmax.f32 %v7917, %v7918
    %v7920 = vrot.slane %v7919, 1
    %v7921 = vmax.f32 %v7919, %v7920
    %v7922 = vsel %vm2311, %v7456, -inf
    %v7923 = vsel %vm2311, %v7457, -inf
    %v7924 = vmax.f32 %v7922, %v7923
    %v7925 = vrot.slane %v7924, 4
    %v7926 = vmax.f32 %v7924, %v7925
    %v7927 = vrot.slane %v7926, 2
    %v7928 = vmax.f32 %v7926, %v7927
    %v7929 = vrot.slane %v7928, 1
    %v7930 = vmax.f32 %v7928, %v7929
    %v7931 = vsel %vm2311, %v7458, -inf
    %v7932 = vsel %vm2311, %v7459, -inf
    %v7933 = vmax.f32 %v7931, %v7932
    %v7934 = vrot.slane %v7933, 4
    %v7935 = vmax.f32 %v7933, %v7934
    %v7936 = vrot.slane %v7935, 2
    %v7937 = vmax.f32 %v7935, %v7936
    %v7938 = vrot.slane %v7937, 1
    %v7939 = vmax.f32 %v7937, %v7938
    %v7940 = vsel %vm2311, %v7460, -inf
    %v7941 = vsel %vm2311, %v7461, -inf
    %v7942 = vmax.f32 %v7940, %v7941
    %v7943 = vrot.slane %v7942, 4
    %v7944 = vmax.f32 %v7942, %v7943
    %v7945 = vrot.slane %v7944, 2
    %v7946 = vmax.f32 %v7944, %v7945
    %v7947 = vrot.slane %v7946, 1
    %v7948 = vmax.f32 %v7946, %v7947
    %v7949 = vsel %vm2311, %v7462, -inf
    %v7950 = vsel %vm2311, %v7463, -inf
    %v7951 = vmax.f32 %v7949, %v7950
    %v7952 = vrot.slane %v7951, 4
    %v7953 = vmax.f32 %v7951, %v7952
    %v7954 = vrot.slane %v7953, 2
    %v7955 = vmax.f32 %v7953, %v7954
    %v7956 = vrot.slane %v7955, 1
    %v7957 = vmax.f32 %v7955, %v7956
    %v7958 = vsel %vm2311, %v7464, -inf
    %v7959 = vsel %vm2311, %v7465, -inf
    %v7960 = vmax.f32 %v7958, %v7959
    %v7961 = vrot.slane %v7960, 4
    %v7962 = vmax.f32 %v7960, %v7961
    %v7963 = vrot.slane %v7962, 2
    %v7964 = vmax.f32 %v7962, %v7963
    %v7965 = vrot.slane %v7964, 1
    %v7966 = vmax.f32 %v7964, %v7965
    %v7967 = vsel %vm2311, %v7466, -inf
    %v7968 = vsel %vm2311, %v7467, -inf
    %v7969 = vmax.f32 %v7967, %v7968
    %v7970 = vrot.slane %v7969, 4
    %v7971 = vmax.f32 %v7969, %v7970
    %v7972 = vrot.slane %v7971, 2
    %v7973 = vmax.f32 %v7971, %v7972
    %v7974 = vrot.slane %v7973, 1
    %v7975 = vmax.f32 %v7973, %v7974
    %v7976 = vsel %vm2311, %v7468, -inf
    %v7977 = vsel %vm2311, %v7469, -inf
    %v7978 = vmax.f32 %v7976, %v7977
    %v7979 = vrot.slane %v7978, 4
    %v7980 = vmax.f32 %v7978, %v7979
    %v7981 = vrot.slane %v7980, 2
    %v7982 = vmax.f32 %v7980, %v7981
    %v7983 = vrot.slane %v7982, 1
    %v7984 = vmax.f32 %v7982, %v7983
    %v7985 = vsel %vm2311, %v7470, -inf
    %v7986 = vsel %vm2311, %v7471, -inf
    %v7987 = vmax.f32 %v7985, %v7986
    %v7988 = vrot.slane %v7987, 4
    %v7989 = vmax.f32 %v7987, %v7988
    %v7990 = vrot.slane %v7989, 2
    %v7991 = vmax.f32 %v7989, %v7990
    %v7992 = vrot.slane %v7991, 1
    %v7993 = vmax.f32 %v7991, %v7992
    %v7994 = vsel %vm2311, %v7472, -inf
    %v7995 = vsel %vm2311, %v7473, -inf
    %v7996 = vmax.f32 %v7994, %v7995
    %v7997 = vrot.slane %v7996, 4
    %v7998 = vmax.f32 %v7996, %v7997
    %v7999 = vrot.slane %v7998, 2
    %v8000 = vmax.f32 %v7998, %v7999
    %v8001 = vrot.slane %v8000, 1
    %v8002 = vmax.f32 %v8000, %v8001
    %v8003 = vsel %vm2311, %v7474, -inf
    %v8004 = vsel %vm2311, %v7475, -inf
    %v8005 = vmax.f32 %v8003, %v8004
    %v8006 = vrot.slane %v8005, 4
    %v8007 = vmax.f32 %v8005, %v8006
    %v8008 = vrot.slane %v8007, 2
    %v8009 = vmax.f32 %v8007, %v8008
    %v8010 = vrot.slane %v8009, 1
    %v8011 = vmax.f32 %v8009, %v8010
    %v8012 = vsel %vm2311, %v7476, -inf
    %v8013 = vsel %vm2311, %v7477, -inf
    %v8014 = vmax.f32 %v8012, %v8013
    %v8015 = vrot.slane %v8014, 4
    %v8016 = vmax.f32 %v8014, %v8015
    %v8017 = vrot.slane %v8016, 2
    %v8018 = vmax.f32 %v8016, %v8017
    %v8019 = vrot.slane %v8018, 1
    %v8020 = vmax.f32 %v8018, %v8019
    %v8021 = vsel %vm2311, %v7478, -inf
    %v8022 = vsel %vm2311, %v7479, -inf
    %v8023 = vmax.f32 %v8021, %v8022
    %v8024 = vrot.slane %v8023, 4
    %v8025 = vmax.f32 %v8023, %v8024
    %v8026 = vrot.slane %v8025, 2
    %v8027 = vmax.f32 %v8025, %v8026
    %v8028 = vrot.slane %v8027, 1
    %v8029 = vmax.f32 %v8027, %v8028
    %v8030 = vsel %vm2311, %v7480, -inf
    %v8031 = vsel %vm2311, %v7481, -inf
    %v8032 = vmax.f32 %v8030, %v8031
    %v8033 = vrot.slane %v8032, 4
    %v8034 = vmax.f32 %v8032, %v8033
    %v8035 = vrot.slane %v8034, 2
    %v8036 = vmax.f32 %v8034, %v8035
    %v8037 = vrot.slane %v8036, 1
    %v8038 = vmax.f32 %v8036, %v8037
    %v8039 = vsel %vm2311, %v7482, -inf
    %v8040 = vsel %vm2311, %v7483, -inf
    %v8041 = vmax.f32 %v8039, %v8040
    %v8042 = vrot.slane %v8041, 4
    %v8043 = vmax.f32 %v8041, %v8042
    %v8044 = vrot.slane %v8043, 2
    %v8045 = vmax.f32 %v8043, %v8044
    %v8046 = vrot.slane %v8045, 1
    %v8047 = vmax.f32 %v8045, %v8046
    %v8048 = vsel %vm2311, %v7484, -inf
    %v8049 = vsel %vm2311, %v7485, -inf
    %v8050 = vmax.f32 %v8048, %v8049
    %v8051 = vrot.slane %v8050, 4
    %v8052 = vmax.f32 %v8050, %v8051
    %v8053 = vrot.slane %v8052, 2
    %v8054 = vmax.f32 %v8052, %v8053
    %v8055 = vrot.slane %v8054, 1
    %v8056 = vmax.f32 %v8054, %v8055
    %v8057 = vsel %vm2311, %v7486, -inf
    %v8058 = vsel %vm2311, %v7487, -inf
    %v8059 = vmax.f32 %v8057, %v8058
    %v8060 = vrot.slane %v8059, 4
    %v8061 = vmax.f32 %v8059, %v8060
    %v8062 = vrot.slane %v8061, 2
    %v8063 = vmax.f32 %v8061, %v8062
    %v8064 = vrot.slane %v8063, 1
    %v8065 = vmax.f32 %v8063, %v8064
    %v8066 = vsel %vm2311, %v7488, -inf
    %v8067 = vsel %vm2311, %v7489, -inf
    %v8068 = vmax.f32 %v8066, %v8067
    %v8069 = vrot.slane %v8068, 4
    %v8070 = vmax.f32 %v8068, %v8069
    %v8071 = vrot.slane %v8070, 2
    %v8072 = vmax.f32 %v8070, %v8071
    %v8073 = vrot.slane %v8072, 1
    %v8074 = vmax.f32 %v8072, %v8073
    %v8075 = vsel %vm2311, %v7490, -inf
    %v8076 = vsel %vm2311, %v7491, -inf
    %v8077 = vmax.f32 %v8075, %v8076
    %v8078 = vrot.slane %v8077, 4
    %v8079 = vmax.f32 %v8077, %v8078
    %v8080 = vrot.slane %v8079, 2
    %v8081 = vmax.f32 %v8079, %v8080
    %v8082 = vrot.slane %v8081, 1
    %v8083 = vmax.f32 %v8081, %v8082
    %v8084 = vsel %vm2311, %v7492, -inf
    %v8085 = vsel %vm2311, %v7493, -inf
    %v8086 = vmax.f32 %v8084, %v8085
    %v8087 = vrot.slane %v8086, 4
    %v8088 = vmax.f32 %v8086, %v8087
    %v8089 = vrot.slane %v8088, 2
    %v8090 = vmax.f32 %v8088, %v8089
    %v8091 = vrot.slane %v8090, 1
    %v8092 = vmax.f32 %v8090, %v8091
    %v8093 = vsel %vm2311, %v7494, -inf
    %v8094 = vsel %vm2311, %v7495, -inf
    %v8095 = vmax.f32 %v8093, %v8094
    %v8096 = vrot.slane %v8095, 4
    %v8097 = vmax.f32 %v8095, %v8096
    %v8098 = vrot.slane %v8097, 2
    %v8099 = vmax.f32 %v8097, %v8098
    %v8100 = vrot.slane %v8099, 1
    %v8101 = vmax.f32 %v8099, %v8100
    %v8102 = vsel %vm2311, %v7496, -inf
    %v8103 = vsel %vm2311, %v7497, -inf
    %v8104 = vmax.f32 %v8102, %v8103
    %v8105 = vrot.slane %v8104, 4
    %v8106 = vmax.f32 %v8104, %v8105
    %v8107 = vrot.slane %v8106, 2
    %v8108 = vmax.f32 %v8106, %v8107
    %v8109 = vrot.slane %v8108, 1
    %v8110 = vmax.f32 %v8108, %v8109
    %v8111 = vsel %vm2311, %v7498, -inf
    %v8112 = vsel %vm2311, %v7499, -inf
    %v8113 = vmax.f32 %v8111, %v8112
    %v8114 = vrot.slane %v8113, 4
    %v8115 = vmax.f32 %v8113, %v8114
    %v8116 = vrot.slane %v8115, 2
    %v8117 = vmax.f32 %v8115, %v8116
    %v8118 = vrot.slane %v8117, 1
    %v8119 = vmax.f32 %v8117, %v8118
    %v8120 = vsel %vm2311, %v7500, -inf
    %v8121 = vsel %vm2311, %v7501, -inf
    %v8122 = vmax.f32 %v8120, %v8121
    %v8123 = vrot.slane %v8122, 4
    %v8124 = vmax.f32 %v8122, %v8123
    %v8125 = vrot.slane %v8124, 2
    %v8126 = vmax.f32 %v8124, %v8125
    %v8127 = vrot.slane %v8126, 1
    %v8128 = vmax.f32 %v8126, %v8127
    %v8129 = vsel %vm2311, %v7502, -inf
    %v8130 = vsel %vm2311, %v7503, -inf
    %v8131 = vmax.f32 %v8129, %v8130
    %v8132 = vrot.slane %v8131, 4
    %v8133 = vmax.f32 %v8131, %v8132
    %v8134 = vrot.slane %v8133, 2
    %v8135 = vmax.f32 %v8133, %v8134
    %v8136 = vrot.slane %v8135, 1
    %v8137 = vmax.f32 %v8135, %v8136
    %v8138 = vsel %vm2311, %v7504, -inf
    %v8139 = vsel %vm2311, %v7505, -inf
    %v8140 = vmax.f32 %v8138, %v8139
    %v8141 = vrot.slane %v8140, 4
    %v8142 = vmax.f32 %v8140, %v8141
    %v8143 = vrot.slane %v8142, 2
    %v8144 = vmax.f32 %v8142, %v8143
    %v8145 = vrot.slane %v8144, 1
    %v8146 = vmax.f32 %v8144, %v8145
    %v8147 = vsel %vm2311, %v7506, -inf
    %v8148 = vsel %vm2311, %v7507, -inf
    %v8149 = vmax.f32 %v8147, %v8148
    %v8150 = vrot.slane %v8149, 4
    %v8151 = vmax.f32 %v8149, %v8150
    %v8152 = vrot.slane %v8151, 2
    %v8153 = vmax.f32 %v8151, %v8152
    %v8154 = vrot.slane %v8153, 1
    %v8155 = vmax.f32 %v8153, %v8154
    %v8156 = vsel %vm2311, %v7508, -inf
    %v8157 = vsel %vm2311, %v7509, -inf
    %v8158 = vmax.f32 %v8156, %v8157
    %v8159 = vrot.slane %v8158, 4
    %v8160 = vmax.f32 %v8158, %v8159
    %v8161 = vrot.slane %v8160, 2
    %v8162 = vmax.f32 %v8160, %v8161
    %v8163 = vrot.slane %v8162, 1
    %v8164 = vmax.f32 %v8162, %v8163
    %v8165 = vsel %vm2311, %v7510, -inf
    %v8166 = vsel %vm2311, %v7511, -inf
    %v8167 = vmax.f32 %v8165, %v8166
    %v8168 = vrot.slane %v8167, 4
    %v8169 = vmax.f32 %v8167, %v8168
    %v8170 = vrot.slane %v8169, 2
    %v8171 = vmax.f32 %v8169, %v8170
    %v8172 = vrot.slane %v8171, 1
    %v8173 = vmax.f32 %v8171, %v8172
    %v8174 = vsel %vm2311, %v7512, -inf
    %v8175 = vsel %vm2311, %v7513, -inf
    %v8176 = vmax.f32 %v8174, %v8175
    %v8177 = vrot.slane %v8176, 4
    %v8178 = vmax.f32 %v8176, %v8177
    %v8179 = vrot.slane %v8178, 2
    %v8180 = vmax.f32 %v8178, %v8179
    %v8181 = vrot.slane %v8180, 1
    %v8182 = vmax.f32 %v8180, %v8181
    %v8183 = vsel %vm2311, %v7514, -inf
    %v8184 = vsel %vm2311, %v7515, -inf
    %v8185 = vmax.f32 %v8183, %v8184
    %v8186 = vrot.slane %v8185, 4
    %v8187 = vmax.f32 %v8185, %v8186
    %v8188 = vrot.slane %v8187, 2
    %v8189 = vmax.f32 %v8187, %v8188
    %v8190 = vrot.slane %v8189, 1
    %v8191 = vmax.f32 %v8189, %v8190
    %v8192 = vsel %vm2311, %v7516, -inf
    %v8193 = vsel %vm2311, %v7517, -inf
    %v8194 = vmax.f32 %v8192, %v8193
    %v8195 = vrot.slane %v8194, 4
    %v8196 = vmax.f32 %v8194, %v8195
    %v8197 = vrot.slane %v8196, 2
    %v8198 = vmax.f32 %v8196, %v8197
    %v8199 = vrot.slane %v8198, 1
    %v8200 = vmax.f32 %v8198, %v8199
    %v8201 = vsel %vm2311, %v7518, -inf
    %v8202 = vsel %vm2311, %v7519, -inf
    %v8203 = vmax.f32 %v8201, %v8202
    %v8204 = vrot.slane %v8203, 4
    %v8205 = vmax.f32 %v8203, %v8204
    %v8206 = vrot.slane %v8205, 2
    %v8207 = vmax.f32 %v8205, %v8206
    %v8208 = vrot.slane %v8207, 1
    %v8209 = vmax.f32 %v8207, %v8208
    %v8210 = vsel %vm2311, %v7520, -inf
    %v8211 = vsel %vm2311, %v7521, -inf
    %v8212 = vmax.f32 %v8210, %v8211
    %v8213 = vrot.slane %v8212, 4
    %v8214 = vmax.f32 %v8212, %v8213
    %v8215 = vrot.slane %v8214, 2
    %v8216 = vmax.f32 %v8214, %v8215
    %v8217 = vrot.slane %v8216, 1
    %v8218 = vmax.f32 %v8216, %v8217
    %v8219 = vsel %vm2311, %v7522, -inf
    %v8220 = vsel %vm2311, %v7523, -inf
    %v8221 = vmax.f32 %v8219, %v8220
    %v8222 = vrot.slane %v8221, 4
    %v8223 = vmax.f32 %v8221, %v8222
    %v8224 = vrot.slane %v8223, 2
    %v8225 = vmax.f32 %v8223, %v8224
    %v8226 = vrot.slane %v8225, 1
    %v8227 = vmax.f32 %v8225, %v8226
    %v8228 = vsel %vm2311, %v7524, -inf
    %v8229 = vsel %vm2311, %v7525, -inf
    %v8230 = vmax.f32 %v8228, %v8229
    %v8231 = vrot.slane %v8230, 4
    %v8232 = vmax.f32 %v8230, %v8231
    %v8233 = vrot.slane %v8232, 2
    %v8234 = vmax.f32 %v8232, %v8233
    %v8235 = vrot.slane %v8234, 1
    %v8236 = vmax.f32 %v8234, %v8235
    %v8237 = vsel %vm2311, %v7526, -inf
    %v8238 = vsel %vm2311, %v7527, -inf
    %v8239 = vmax.f32 %v8237, %v8238
    %v8240 = vrot.slane %v8239, 4
    %v8241 = vmax.f32 %v8239, %v8240
    %v8242 = vrot.slane %v8241, 2
    %v8243 = vmax.f32 %v8241, %v8242
    %v8244 = vrot.slane %v8243, 1
    %v8245 = vmax.f32 %v8243, %v8244
    %v8246 = vsel %vm2311, %v7528, -inf
    %v8247 = vsel %vm2311, %v7529, -inf
    %v8248 = vmax.f32 %v8246, %v8247
    %v8249 = vrot.slane %v8248, 4
    %v8250 = vmax.f32 %v8248, %v8249
    %v8251 = vrot.slane %v8250, 2
    %v8252 = vmax.f32 %v8250, %v8251
    %v8253 = vrot.slane %v8252, 1
    %v8254 = vmax.f32 %v8252, %v8253
    %v8255 = vsel %vm2311, %v7530, -inf
    %v8256 = vsel %vm2311, %v7531, -inf
    %v8257 = vmax.f32 %v8255, %v8256
    %v8258 = vrot.slane %v8257, 4
    %v8259 = vmax.f32 %v8257, %v8258
    %v8260 = vrot.slane %v8259, 2
    %v8261 = vmax.f32 %v8259, %v8260
    %v8262 = vrot.slane %v8261, 1
    %v8263 = vmax.f32 %v8261, %v8262
    %v8264 = vsel %vm2311, %v7532, -inf
    %v8265 = vsel %vm2311, %v7533, -inf
    %v8266 = vmax.f32 %v8264, %v8265
    %v8267 = vrot.slane %v8266, 4
    %v8268 = vmax.f32 %v8266, %v8267
    %v8269 = vrot.slane %v8268, 2
    %v8270 = vmax.f32 %v8268, %v8269
    %v8271 = vrot.slane %v8270, 1
    %v8272 = vmax.f32 %v8270, %v8271
    %v8273 = vsel %vm2311, %v7534, -inf
    %v8274 = vsel %vm2311, %v7535, -inf
    %v8275 = vmax.f32 %v8273, %v8274
    %v8276 = vrot.slane %v8275, 4
    %v8277 = vmax.f32 %v8275, %v8276
    %v8278 = vrot.slane %v8277, 2
    %v8279 = vmax.f32 %v8277, %v8278
    %v8280 = vrot.slane %v8279, 1
    %v8281 = vmax.f32 %v8279, %v8280
    %v8282 = vsel %vm2311, %v7536, -inf
    %v8283 = vsel %vm2311, %v7537, -inf
    %v8284 = vmax.f32 %v8282, %v8283
    %v8285 = vrot.slane %v8284, 4
    %v8286 = vmax.f32 %v8284, %v8285
    %v8287 = vrot.slane %v8286, 2
    %v8288 = vmax.f32 %v8286, %v8287
    %v8289 = vrot.slane %v8288, 1
    %v8290 = vmax.f32 %v8288, %v8289
    %v8291 = vsel %vm2311, %v7538, -inf
    %v8292 = vsel %vm2311, %v7539, -inf
    %v8293 = vmax.f32 %v8291, %v8292
    %v8294 = vrot.slane %v8293, 4
    %v8295 = vmax.f32 %v8293, %v8294
    %v8296 = vrot.slane %v8295, 2
    %v8297 = vmax.f32 %v8295, %v8296
    %v8298 = vrot.slane %v8297, 1
    %v8299 = vmax.f32 %v8297, %v8298
    %v8300 = vsel %vm2311, %v7540, -inf
    %v8301 = vsel %vm2311, %v7541, -inf
    %v8302 = vmax.f32 %v8300, %v8301
    %v8303 = vrot.slane %v8302, 4
    %v8304 = vmax.f32 %v8302, %v8303
    %v8305 = vrot.slane %v8304, 2
    %v8306 = vmax.f32 %v8304, %v8305
    %v8307 = vrot.slane %v8306, 1
    %v8308 = vmax.f32 %v8306, %v8307
    %v8309 = vsel %vm2311, %v7542, -inf
    %v8310 = vsel %vm2311, %v7543, -inf
    %v8311 = vmax.f32 %v8309, %v8310
    %v8312 = vrot.slane %v8311, 4
    %v8313 = vmax.f32 %v8311, %v8312
    %v8314 = vrot.slane %v8313, 2
    %v8315 = vmax.f32 %v8313, %v8314
    %v8316 = vrot.slane %v8315, 1
    %v8317 = vmax.f32 %v8315, %v8316
    %v8318 = vsel %vm2311, %v7544, -inf
    %v8319 = vsel %vm2311, %v7545, -inf
    %v8320 = vmax.f32 %v8318, %v8319
    %v8321 = vrot.slane %v8320, 4
    %v8322 = vmax.f32 %v8320, %v8321
    %v8323 = vrot.slane %v8322, 2
    %v8324 = vmax.f32 %v8322, %v8323
    %v8325 = vrot.slane %v8324, 1
    %v8326 = vmax.f32 %v8324, %v8325
    %v8327 = vsel %vm2311, %v7546, -inf
    %v8328 = vsel %vm2311, %v7547, -inf
    %v8329 = vmax.f32 %v8327, %v8328
    %v8330 = vrot.slane %v8329, 4
    %v8331 = vmax.f32 %v8329, %v8330
    %v8332 = vrot.slane %v8331, 2
    %v8333 = vmax.f32 %v8331, %v8332
    %v8334 = vrot.slane %v8333, 1
    %v8335 = vmax.f32 %v8333, %v8334
    %v8336 = vsel %vm2311, %v7548, -inf
    %v8337 = vsel %vm2311, %v7549, -inf
    %v8338 = vmax.f32 %v8336, %v8337
    %v8339 = vrot.slane %v8338, 4
    %v8340 = vmax.f32 %v8338, %v8339
    %v8341 = vrot.slane %v8340, 2
    %v8342 = vmax.f32 %v8340, %v8341
    %v8343 = vrot.slane %v8342, 1
    %v8344 = vmax.f32 %v8342, %v8343
    %v8345 = vsel %vm2311, %v7550, -inf
    %v8346 = vsel %vm2311, %v7551, -inf
    %v8347 = vmax.f32 %v8345, %v8346
    %v8348 = vrot.slane %v8347, 4
    %v8349 = vmax.f32 %v8347, %v8348
    %v8350 = vrot.slane %v8349, 2
    %v8351 = vmax.f32 %v8349, %v8350
    %v8352 = vrot.slane %v8351, 1
    %v8353 = vmax.f32 %v8351, %v8352
    %v8354 = vsel %vm2311, %v7552, -inf
    %v8355 = vsel %vm2311, %v7553, -inf
    %v8356 = vmax.f32 %v8354, %v8355
    %v8357 = vrot.slane %v8356, 4
    %v8358 = vmax.f32 %v8356, %v8357
    %v8359 = vrot.slane %v8358, 2
    %v8360 = vmax.f32 %v8358, %v8359
    %v8361 = vrot.slane %v8360, 1
    %v8362 = vmax.f32 %v8360, %v8361
    %v8363 = vsel %vm2311, %v7554, -inf
    %v8364 = vsel %vm2311, %v7555, -inf
    %v8365 = vmax.f32 %v8363, %v8364
    %v8366 = vrot.slane %v8365, 4
    %v8367 = vmax.f32 %v8365, %v8366
    %v8368 = vrot.slane %v8367, 2
    %v8369 = vmax.f32 %v8367, %v8368
    %v8370 = vrot.slane %v8369, 1
    %v8371 = vmax.f32 %v8369, %v8370
    %v8372 = vsel %vm2311, %v7556, -inf
    %v8373 = vsel %vm2311, %v7557, -inf
    %v8374 = vmax.f32 %v8372, %v8373
    %v8375 = vrot.slane %v8374, 4
    %v8376 = vmax.f32 %v8374, %v8375
    %v8377 = vrot.slane %v8376, 2
    %v8378 = vmax.f32 %v8376, %v8377
    %v8379 = vrot.slane %v8378, 1
    %v8380 = vmax.f32 %v8378, %v8379
    %v8381 = vsel %vm2311, %v7558, -inf
    %v8382 = vsel %vm2311, %v7559, -inf
    %v8383 = vmax.f32 %v8381, %v8382
    %v8384 = vrot.slane %v8383, 4
    %v8385 = vmax.f32 %v8383, %v8384
    %v8386 = vrot.slane %v8385, 2
    %v8387 = vmax.f32 %v8385, %v8386
    %v8388 = vrot.slane %v8387, 1
    %v8389 = vmax.f32 %v8387, %v8388
    %v8390 = vsel %vm2311, %v7560, -inf
    %v8391 = vsel %vm2311, %v7561, -inf
    %v8392 = vmax.f32 %v8390, %v8391
    %v8393 = vrot.slane %v8392, 4
    %v8394 = vmax.f32 %v8392, %v8393
    %v8395 = vrot.slane %v8394, 2
    %v8396 = vmax.f32 %v8394, %v8395
    %v8397 = vrot.slane %v8396, 1
    %v8398 = vmax.f32 %v8396, %v8397
    %v8399 = vsel %vm2311, %v7562, -inf
    %v8400 = vsel %vm2311, %v7563, -inf
    %v8401 = vmax.f32 %v8399, %v8400
    %v8402 = vrot.slane %v8401, 4
    %v8403 = vmax.f32 %v8401, %v8402
    %v8404 = vrot.slane %v8403, 2
    %v8405 = vmax.f32 %v8403, %v8404
    %v8406 = vrot.slane %v8405, 1
    %v8407 = vmax.f32 %v8405, %v8406
    %v8408 = vsel %vm2311, %v7564, -inf
    %v8409 = vsel %vm2311, %v7565, -inf
    %v8410 = vmax.f32 %v8408, %v8409
    %v8411 = vrot.slane %v8410, 4
    %v8412 = vmax.f32 %v8410, %v8411
    %v8413 = vrot.slane %v8412, 2
    %v8414 = vmax.f32 %v8412, %v8413
    %v8415 = vrot.slane %v8414, 1
    %v8416 = vmax.f32 %v8414, %v8415
    %v8417 = vsel %vm2311, %v7566, -inf
    %v8418 = vsel %vm2311, %v7567, -inf
    %v8419 = vmax.f32 %v8417, %v8418
    %v8420 = vrot.slane %v8419, 4
    %v8421 = vmax.f32 %v8419, %v8420
    %v8422 = vrot.slane %v8421, 2
    %v8423 = vmax.f32 %v8421, %v8422
    %v8424 = vrot.slane %v8423, 1
    %v8425 = vmax.f32 %v8423, %v8424
    %v8426 = vsel %vm2311, %v7568, -inf
    %v8427 = vsel %vm2311, %v7569, -inf
    %v8428 = vmax.f32 %v8426, %v8427
    %v8429 = vrot.slane %v8428, 4
    %v8430 = vmax.f32 %v8428, %v8429
    %v8431 = vrot.slane %v8430, 2
    %v8432 = vmax.f32 %v8430, %v8431
    %v8433 = vrot.slane %v8432, 1
    %v8434 = vmax.f32 %v8432, %v8433
    %v8435 = vsel %vm2311, %v7570, -inf
    %v8436 = vsel %vm2311, %v7571, -inf
    %v8437 = vmax.f32 %v8435, %v8436
    %v8438 = vrot.slane %v8437, 4
    %v8439 = vmax.f32 %v8437, %v8438
    %v8440 = vrot.slane %v8439, 2
    %v8441 = vmax.f32 %v8439, %v8440
    %v8442 = vrot.slane %v8441, 1
    %v8443 = vmax.f32 %v8441, %v8442
    %v8444 = vsel %vm2311, %v7572, -inf
    %v8445 = vsel %vm2311, %v7573, -inf
    %v8446 = vmax.f32 %v8444, %v8445
    %v8447 = vrot.slane %v8446, 4
    %v8448 = vmax.f32 %v8446, %v8447
    %v8449 = vrot.slane %v8448, 2
    %v8450 = vmax.f32 %v8448, %v8449
    %v8451 = vrot.slane %v8450, 1
    %v8452 = vmax.f32 %v8450, %v8451
    %v8453 = vsel %vm2311, %v7574, -inf
    %v8454 = vsel %vm2311, %v7575, -inf
    %v8455 = vmax.f32 %v8453, %v8454
    %v8456 = vrot.slane %v8455, 4
    %v8457 = vmax.f32 %v8455, %v8456
    %v8458 = vrot.slane %v8457, 2
    %v8459 = vmax.f32 %v8457, %v8458
    %v8460 = vrot.slane %v8459, 1
    %v8461 = vmax.f32 %v8459, %v8460
    %v8462 = vsel %vm2311, %v7576, -inf
    %v8463 = vsel %vm2311, %v7577, -inf
    %v8464 = vmax.f32 %v8462, %v8463
    %v8465 = vrot.slane %v8464, 4
    %v8466 = vmax.f32 %v8464, %v8465
    %v8467 = vrot.slane %v8466, 2
    %v8468 = vmax.f32 %v8466, %v8467
    %v8469 = vrot.slane %v8468, 1
    %v8470 = vmax.f32 %v8468, %v8469
    %v8471 = vsel %vm2311, %v7578, -inf
    %v8472 = vsel %vm2311, %v7579, -inf
    %v8473 = vmax.f32 %v8471, %v8472
    %v8474 = vrot.slane %v8473, 4
    %v8475 = vmax.f32 %v8473, %v8474
    %v8476 = vrot.slane %v8475, 2
    %v8477 = vmax.f32 %v8475, %v8476
    %v8478 = vrot.slane %v8477, 1
    %v8479 = vmax.f32 %v8477, %v8478
    %v8480 = vsel %vm2311, %v7580, -inf
    %v8481 = vsel %vm2311, %v7581, -inf
    %v8482 = vmax.f32 %v8480, %v8481
    %v8483 = vrot.slane %v8482, 4
    %v8484 = vmax.f32 %v8482, %v8483
    %v8485 = vrot.slane %v8484, 2
    %v8486 = vmax.f32 %v8484, %v8485
    %v8487 = vrot.slane %v8486, 1
    %v8488 = vmax.f32 %v8486, %v8487
    %v8489 = vsel %vm2311, %v7582, -inf
    %v8490 = vsel %vm2311, %v7583, -inf
    %v8491 = vmax.f32 %v8489, %v8490
    %v8492 = vrot.slane %v8491, 4
    %v8493 = vmax.f32 %v8491, %v8492
    %v8494 = vrot.slane %v8493, 2
    %v8495 = vmax.f32 %v8493, %v8494
    %v8496 = vrot.slane %v8495, 1
    %v8497 = vmax.f32 %v8495, %v8496
    %v8498 = vsel %vm2311, %v7584, -inf
    %v8499 = vsel %vm2311, %v7585, -inf
    %v8500 = vmax.f32 %v8498, %v8499
    %v8501 = vrot.slane %v8500, 4
    %v8502 = vmax.f32 %v8500, %v8501
    %v8503 = vrot.slane %v8502, 2
    %v8504 = vmax.f32 %v8502, %v8503
    %v8505 = vrot.slane %v8504, 1
    %v8506 = vmax.f32 %v8504, %v8505
    %v8507 = vsel %vm2311, %v7586, -inf
    %v8508 = vsel %vm2311, %v7587, -inf
    %v8509 = vmax.f32 %v8507, %v8508
    %v8510 = vrot.slane %v8509, 4
    %v8511 = vmax.f32 %v8509, %v8510
    %v8512 = vrot.slane %v8511, 2
    %v8513 = vmax.f32 %v8511, %v8512
    %v8514 = vrot.slane %v8513, 1
    %v8515 = vmax.f32 %v8513, %v8514
    %v8516 = vsel %vm2311, %v7588, -inf
    %v8517 = vsel %vm2311, %v7589, -inf
    %v8518 = vmax.f32 %v8516, %v8517
    %v8519 = vrot.slane %v8518, 4
    %v8520 = vmax.f32 %v8518, %v8519
    %v8521 = vrot.slane %v8520, 2
    %v8522 = vmax.f32 %v8520, %v8521
    %v8523 = vrot.slane %v8522, 1
    %v8524 = vmax.f32 %v8522, %v8523
    %v8525 = vsel %vm2311, %v7590, -inf
    %v8526 = vsel %vm2311, %v7591, -inf
    %v8527 = vmax.f32 %v8525, %v8526
    %v8528 = vrot.slane %v8527, 4
    %v8529 = vmax.f32 %v8527, %v8528
    %v8530 = vrot.slane %v8529, 2
    %v8531 = vmax.f32 %v8529, %v8530
    %v8532 = vrot.slane %v8531, 1
    %v8533 = vmax.f32 %v8531, %v8532
    %v8534 = vsel %vm2311, %v7592, -inf
    %v8535 = vsel %vm2311, %v7593, -inf
    %v8536 = vmax.f32 %v8534, %v8535
    %v8537 = vrot.slane %v8536, 4
    %v8538 = vmax.f32 %v8536, %v8537
    %v8539 = vrot.slane %v8538, 2
    %v8540 = vmax.f32 %v8538, %v8539
    %v8541 = vrot.slane %v8540, 1
    %v8542 = vmax.f32 %v8540, %v8541
    %v8543 = vsel %vm2311, %v7594, -inf
    %v8544 = vsel %vm2311, %v7595, -inf
    %v8545 = vmax.f32 %v8543, %v8544
    %v8546 = vrot.slane %v8545, 4
    %v8547 = vmax.f32 %v8545, %v8546
    %v8548 = vrot.slane %v8547, 2
    %v8549 = vmax.f32 %v8547, %v8548
    %v8550 = vrot.slane %v8549, 1
    %v8551 = vmax.f32 %v8549, %v8550
    %v8552 = vsel %vm2311, %v7596, -inf
    %v8553 = vsel %vm2311, %v7597, -inf
    %v8554 = vmax.f32 %v8552, %v8553
    %v8555 = vrot.slane %v8554, 4
    %v8556 = vmax.f32 %v8554, %v8555
    %v8557 = vrot.slane %v8556, 2
    %v8558 = vmax.f32 %v8556, %v8557
    %v8559 = vrot.slane %v8558, 1
    %v8560 = vmax.f32 %v8558, %v8559
    %v8561 = vsel %vm2311, %v7598, -inf
    %v8562 = vsel %vm2311, %v7599, -inf
    %v8563 = vmax.f32 %v8561, %v8562
    %v8564 = vrot.slane %v8563, 4
    %v8565 = vmax.f32 %v8563, %v8564
    %v8566 = vrot.slane %v8565, 2
    %v8567 = vmax.f32 %v8565, %v8566
    %v8568 = vrot.slane %v8567, 1
    %v8569 = vmax.f32 %v8567, %v8568
    %v8570 = vsel %vm2311, %v7600, -inf
    %v8571 = vsel %vm2311, %v7601, -inf
    %v8572 = vmax.f32 %v8570, %v8571
    %v8573 = vrot.slane %v8572, 4
    %v8574 = vmax.f32 %v8572, %v8573
    %v8575 = vrot.slane %v8574, 2
    %v8576 = vmax.f32 %v8574, %v8575
    %v8577 = vrot.slane %v8576, 1
    %v8578 = vmax.f32 %v8576, %v8577
    %v8579 = vsel %vm2311, %v7602, -inf
    %v8580 = vsel %vm2311, %v7603, -inf
    %v8581 = vmax.f32 %v8579, %v8580
    %v8582 = vrot.slane %v8581, 4
    %v8583 = vmax.f32 %v8581, %v8582
    %v8584 = vrot.slane %v8583, 2
    %v8585 = vmax.f32 %v8583, %v8584
    %v8586 = vrot.slane %v8585, 1
    %v8587 = vmax.f32 %v8585, %v8586
    %v8588 = vsel %vm2311, %v7604, -inf
    %v8589 = vsel %vm2311, %v7605, -inf
    %v8590 = vmax.f32 %v8588, %v8589
    %v8591 = vrot.slane %v8590, 4
    %v8592 = vmax.f32 %v8590, %v8591
    %v8593 = vrot.slane %v8592, 2
    %v8594 = vmax.f32 %v8592, %v8593
    %v8595 = vrot.slane %v8594, 1
    %v8596 = vmax.f32 %v8594, %v8595
    %v8597 = vsel %vm2311, %v7606, -inf
    %v8598 = vsel %vm2311, %v7607, -inf
    %v8599 = vmax.f32 %v8597, %v8598
    %v8600 = vrot.slane %v8599, 4
    %v8601 = vmax.f32 %v8599, %v8600
    %v8602 = vrot.slane %v8601, 2
    %v8603 = vmax.f32 %v8601, %v8602
    %v8604 = vrot.slane %v8603, 1
    %v8605 = vmax.f32 %v8603, %v8604
    %v8606 = vsel %vm2311, %v7608, -inf
    %v8607 = vsel %vm2311, %v7609, -inf
    %v8608 = vmax.f32 %v8606, %v8607
    %v8609 = vrot.slane %v8608, 4
    %v8610 = vmax.f32 %v8608, %v8609
    %v8611 = vrot.slane %v8610, 2
    %v8612 = vmax.f32 %v8610, %v8611
    %v8613 = vrot.slane %v8612, 1
    %v8614 = vmax.f32 %v8612, %v8613
    %v8615 = vsel %vm2311, %v7610, -inf
    %v8616 = vsel %vm2311, %v7611, -inf
    %v8617 = vmax.f32 %v8615, %v8616
    %v8618 = vrot.slane %v8617, 4
    %v8619 = vmax.f32 %v8617, %v8618
    %v8620 = vrot.slane %v8619, 2
    %v8621 = vmax.f32 %v8619, %v8620
    %v8622 = vrot.slane %v8621, 1
    %v8623 = vmax.f32 %v8621, %v8622
    %v8624 = vsel %vm2311, %v7612, -inf
    %v8625 = vsel %vm2311, %v7613, -inf
    %v8626 = vmax.f32 %v8624, %v8625
    %v8627 = vrot.slane %v8626, 4
    %v8628 = vmax.f32 %v8626, %v8627
    %v8629 = vrot.slane %v8628, 2
    %v8630 = vmax.f32 %v8628, %v8629
    %v8631 = vrot.slane %v8630, 1
    %v8632 = vmax.f32 %v8630, %v8631
    %v8633 = vsel %vm2311, %v7614, -inf
    %v8634 = vsel %vm2311, %v7615, -inf
    %v8635 = vmax.f32 %v8633, %v8634
    %v8636 = vrot.slane %v8635, 4
    %v8637 = vmax.f32 %v8635, %v8636
    %v8638 = vrot.slane %v8637, 2
    %v8639 = vmax.f32 %v8637, %v8638
    %v8640 = vrot.slane %v8639, 1
    %v8641 = vmax.f32 %v8639, %v8640
    %v8642 = vsel %vm2311, %v7616, -inf
    %v8643 = vsel %vm2311, %v7617, -inf
    %v8644 = vmax.f32 %v8642, %v8643
    %v8645 = vrot.slane %v8644, 4
    %v8646 = vmax.f32 %v8644, %v8645
    %v8647 = vrot.slane %v8646, 2
    %v8648 = vmax.f32 %v8646, %v8647
    %v8649 = vrot.slane %v8648, 1
    %v8650 = vmax.f32 %v8648, %v8649
    %v8651 = vsel %vm2311, %v7618, -inf
    %v8652 = vsel %vm2311, %v7619, -inf
    %v8653 = vmax.f32 %v8651, %v8652
    %v8654 = vrot.slane %v8653, 4
    %v8655 = vmax.f32 %v8653, %v8654
    %v8656 = vrot.slane %v8655, 2
    %v8657 = vmax.f32 %v8655, %v8656
    %v8658 = vrot.slane %v8657, 1
    %v8659 = vmax.f32 %v8657, %v8658
    %v8660 = vsel %vm2311, %v7620, -inf
    %v8661 = vsel %vm2311, %v7621, -inf
    %v8662 = vmax.f32 %v8660, %v8661
    %v8663 = vrot.slane %v8662, 4
    %v8664 = vmax.f32 %v8662, %v8663
    %v8665 = vrot.slane %v8664, 2
    %v8666 = vmax.f32 %v8664, %v8665
    %v8667 = vrot.slane %v8666, 1
    %v8668 = vmax.f32 %v8666, %v8667
    %v8669 = vsel %vm2311, %v7622, -inf
    %v8670 = vsel %vm2311, %v7623, -inf
    %v8671 = vmax.f32 %v8669, %v8670
    %v8672 = vrot.slane %v8671, 4
    %v8673 = vmax.f32 %v8671, %v8672
    %v8674 = vrot.slane %v8673, 2
    %v8675 = vmax.f32 %v8673, %v8674
    %v8676 = vrot.slane %v8675, 1
    %v8677 = vmax.f32 %v8675, %v8676
    %v8678 = vsel %vm2311, %v7624, -inf
    %v8679 = vsel %vm2311, %v7625, -inf
    %v8680 = vmax.f32 %v8678, %v8679
    %v8681 = vrot.slane %v8680, 4
    %v8682 = vmax.f32 %v8680, %v8681
    %v8683 = vrot.slane %v8682, 2
    %v8684 = vmax.f32 %v8682, %v8683
    %v8685 = vrot.slane %v8684, 1
    %v8686 = vmax.f32 %v8684, %v8685
    %v8687 = vsel %vm2311, %v7626, -inf
    %v8688 = vsel %vm2311, %v7627, -inf
    %v8689 = vmax.f32 %v8687, %v8688
    %v8690 = vrot.slane %v8689, 4
    %v8691 = vmax.f32 %v8689, %v8690
    %v8692 = vrot.slane %v8691, 2
    %v8693 = vmax.f32 %v8691, %v8692
    %v8694 = vrot.slane %v8693, 1
    %v8695 = vmax.f32 %v8693, %v8694
    %v8696 = vsel %vm2311, %v7628, -inf
    %v8697 = vsel %vm2311, %v7629, -inf
    %v8698 = vmax.f32 %v8696, %v8697
    %v8699 = vrot.slane %v8698, 4
    %v8700 = vmax.f32 %v8698, %v8699
    %v8701 = vrot.slane %v8700, 2
    %v8702 = vmax.f32 %v8700, %v8701
    %v8703 = vrot.slane %v8702, 1
    %v8704 = vmax.f32 %v8702, %v8703
    %v8705 = vsel %vm2311, %v7630, -inf
    %v8706 = vsel %vm2311, %v7631, -inf
    %v8707 = vmax.f32 %v8705, %v8706
    %v8708 = vrot.slane %v8707, 4
    %v8709 = vmax.f32 %v8707, %v8708
    %v8710 = vrot.slane %v8709, 2
    %v8711 = vmax.f32 %v8709, %v8710
    %v8712 = vrot.slane %v8711, 1
    %v8713 = vmax.f32 %v8711, %v8712
    %v8714 = vsel %vm2311, %v7632, -inf
    %v8715 = vsel %vm2311, %v7633, -inf
    %v8716 = vmax.f32 %v8714, %v8715
    %v8717 = vrot.slane %v8716, 4
    %v8718 = vmax.f32 %v8716, %v8717
    %v8719 = vrot.slane %v8718, 2
    %v8720 = vmax.f32 %v8718, %v8719
    %v8721 = vrot.slane %v8720, 1
    %v8722 = vmax.f32 %v8720, %v8721
    %v8723 = vsel %vm2311, %v7634, -inf
    %v8724 = vsel %vm2311, %v7635, -inf
    %v8725 = vmax.f32 %v8723, %v8724
    %v8726 = vrot.slane %v8725, 4
    %v8727 = vmax.f32 %v8725, %v8726
    %v8728 = vrot.slane %v8727, 2
    %v8729 = vmax.f32 %v8727, %v8728
    %v8730 = vrot.slane %v8729, 1
    %v8731 = vmax.f32 %v8729, %v8730
    %v8732 = vsel %vm2311, %v7636, -inf
    %v8733 = vsel %vm2311, %v7637, -inf
    %v8734 = vmax.f32 %v8732, %v8733
    %v8735 = vrot.slane %v8734, 4
    %v8736 = vmax.f32 %v8734, %v8735
    %v8737 = vrot.slane %v8736, 2
    %v8738 = vmax.f32 %v8736, %v8737
    %v8739 = vrot.slane %v8738, 1
    %v8740 = vmax.f32 %v8738, %v8739
    %v8741 = vsel %vm2311, %v7638, -inf
    %v8742 = vsel %vm2311, %v7639, -inf
    %v8743 = vmax.f32 %v8741, %v8742
    %v8744 = vrot.slane %v8743, 4
    %v8745 = vmax.f32 %v8743, %v8744
    %v8746 = vrot.slane %v8745, 2
    %v8747 = vmax.f32 %v8745, %v8746
    %v8748 = vrot.slane %v8747, 1
    %v8749 = vmax.f32 %v8747, %v8748
    %v8750 = vsel %vm2311, %v7640, -inf
    %v8751 = vsel %vm2311, %v7641, -inf
    %v8752 = vmax.f32 %v8750, %v8751
    %v8753 = vrot.slane %v8752, 4
    %v8754 = vmax.f32 %v8752, %v8753
    %v8755 = vrot.slane %v8754, 2
    %v8756 = vmax.f32 %v8754, %v8755
    %v8757 = vrot.slane %v8756, 1
    %v8758 = vmax.f32 %v8756, %v8757
    %v8759 = vsel %vm2311, %v7642, -inf
    %v8760 = vsel %vm2311, %v7643, -inf
    %v8761 = vmax.f32 %v8759, %v8760
    %v8762 = vrot.slane %v8761, 4
    %v8763 = vmax.f32 %v8761, %v8762
    %v8764 = vrot.slane %v8763, 2
    %v8765 = vmax.f32 %v8763, %v8764
    %v8766 = vrot.slane %v8765, 1
    %v8767 = vmax.f32 %v8765, %v8766
    %v8768 = vsel %vm2311, %v7644, -inf
    %v8769 = vsel %vm2311, %v7645, -inf
    %v8770 = vmax.f32 %v8768, %v8769
    %v8771 = vrot.slane %v8770, 4
    %v8772 = vmax.f32 %v8770, %v8771
    %v8773 = vrot.slane %v8772, 2
    %v8774 = vmax.f32 %v8772, %v8773
    %v8775 = vrot.slane %v8774, 1
    %v8776 = vmax.f32 %v8774, %v8775
    %v8777 = vsel %vm2311, %v7646, -inf
    %v8778 = vsel %vm2311, %v7647, -inf
    %v8779 = vmax.f32 %v8777, %v8778
    %v8780 = vrot.slane %v8779, 4
    %v8781 = vmax.f32 %v8779, %v8780
    %v8782 = vrot.slane %v8781, 2
    %v8783 = vmax.f32 %v8781, %v8782
    %v8784 = vrot.slane %v8783, 1
    %v8785 = vmax.f32 %v8783, %v8784
    %v8786 = vsel %vm2311, %v7648, -inf
    %v8787 = vsel %vm2311, %v7649, -inf
    %v8788 = vmax.f32 %v8786, %v8787
    %v8789 = vrot.slane %v8788, 4
    %v8790 = vmax.f32 %v8788, %v8789
    %v8791 = vrot.slane %v8790, 2
    %v8792 = vmax.f32 %v8790, %v8791
    %v8793 = vrot.slane %v8792, 1
    %v8794 = vmax.f32 %v8792, %v8793
    %v8795 = vsel %vm2311, %v7650, -inf
    %v8796 = vsel %vm2311, %v7651, -inf
    %v8797 = vmax.f32 %v8795, %v8796
    %v8798 = vrot.slane %v8797, 4
    %v8799 = vmax.f32 %v8797, %v8798
    %v8800 = vrot.slane %v8799, 2
    %v8801 = vmax.f32 %v8799, %v8800
    %v8802 = vrot.slane %v8801, 1
    %v8803 = vmax.f32 %v8801, %v8802
    %vm8932 = vcmask 1041409
    %v8933 = vsel %vm8932, %v2325, %v2318
    %vm8934 = vcmask 1042434
    %v8935 = vsel %vm8934, %v2332, %v8933
    %vm8936 = vcmask 1043459
    %v8937 = vsel %vm8936, %v2339, %v8935
    %vm8938 = vcmask 1044484
    %v8939 = vsel %vm8938, %v2346, %v8937
    %vm8940 = vcmask 1045509
    %v8941 = vsel %vm8940, %v2353, %v8939
    %vm8942 = vcmask 1046534
    %v8943 = vsel %vm8942, %v2360, %v8941
    %vm8944 = vcmask 1047559
    %v8945 = vsel %vm8944, %v2367, %v8943
    %v8946 = vsel %vm8932, %v2381, %v2374
    %v8947 = vsel %vm8934, %v2388, %v8946
    %v8948 = vsel %vm8936, %v2395, %v8947
    %v8949 = vsel %vm8938, %v2402, %v8948
    %v8950 = vsel %vm8940, %v2409, %v8949
    %v8951 = vsel %vm8942, %v2416, %v8950
    %v8952 = vsel %vm8944, %v2423, %v8951
    %v8953 = vsel %vm8932, %v2437, %v2430
    %v8954 = vsel %vm8934, %v2444, %v8953
    %v8955 = vsel %vm8936, %v2451, %v8954
    %v8956 = vsel %vm8938, %v2458, %v8955
    %v8957 = vsel %vm8940, %v2465, %v8956
    %v8958 = vsel %vm8942, %v2472, %v8957
    %v8959 = vsel %vm8944, %v2479, %v8958
    %v8960 = vsel %vm8932, %v2493, %v2486
    %v8961 = vsel %vm8934, %v2500, %v8960
    %v8962 = vsel %vm8936, %v2507, %v8961
    %v8963 = vsel %vm8938, %v2514, %v8962
    %v8964 = vsel %vm8940, %v2521, %v8963
    %v8965 = vsel %vm8942, %v2528, %v8964
    %v8966 = vsel %vm8944, %v2535, %v8965
    %v8967 = vsel %vm8932, %v2549, %v2542
    %v8968 = vsel %vm8934, %v2556, %v8967
    %v8969 = vsel %vm8936, %v2563, %v8968
    %v8970 = vsel %vm8938, %v2570, %v8969
    %v8971 = vsel %vm8940, %v2577, %v8970
    %v8972 = vsel %vm8942, %v2584, %v8971
    %v8973 = vsel %vm8944, %v2591, %v8972
    %v8974 = vsel %vm8932, %v2605, %v2598
    %v8975 = vsel %vm8934, %v2612, %v8974
    %v8976 = vsel %vm8936, %v2619, %v8975
    %v8977 = vsel %vm8938, %v2626, %v8976
    %v8978 = vsel %vm8940, %v2633, %v8977
    %v8979 = vsel %vm8942, %v2640, %v8978
    %v8980 = vsel %vm8944, %v2647, %v8979
    %v8981 = vsel %vm8932, %v2661, %v2654
    %v8982 = vsel %vm8934, %v2668, %v8981
    %v8983 = vsel %vm8936, %v2675, %v8982
    %v8984 = vsel %vm8938, %v2682, %v8983
    %v8985 = vsel %vm8940, %v2689, %v8984
    %v8986 = vsel %vm8942, %v2696, %v8985
    %v8987 = vsel %vm8944, %v2703, %v8986
    %v8988 = vsel %vm8932, %v2717, %v2710
    %v8989 = vsel %vm8934, %v2724, %v8988
    %v8990 = vsel %vm8936, %v2731, %v8989
    %v8991 = vsel %vm8938, %v2738, %v8990
    %v8992 = vsel %vm8940, %v2745, %v8991
    %v8993 = vsel %vm8942, %v2752, %v8992
    %v8994 = vsel %vm8944, %v2759, %v8993
    %v8995 = vsel %vm8932, %v2773, %v2766
    %v8996 = vsel %vm8934, %v2780, %v8995
    %v8997 = vsel %vm8936, %v2787, %v8996
    %v8998 = vsel %vm8938, %v2794, %v8997
    %v8999 = vsel %vm8940, %v2801, %v8998
    %v9000 = vsel %vm8942, %v2808, %v8999
    %v9001 = vsel %vm8944, %v2815, %v9000
    %v9002 = vsel %vm8932, %v2829, %v2822
    %v9003 = vsel %vm8934, %v2836, %v9002
    %v9004 = vsel %vm8936, %v2843, %v9003
    %v9005 = vsel %vm8938, %v2850, %v9004
    %v9006 = vsel %vm8940, %v2857, %v9005
    %v9007 = vsel %vm8942, %v2864, %v9006
    %v9008 = vsel %vm8944, %v2871, %v9007
    %v9009 = vsel %vm8932, %v2885, %v2878
    %v9010 = vsel %vm8934, %v2892, %v9009
    %v9011 = vsel %vm8936, %v2899, %v9010
    %v9012 = vsel %vm8938, %v2906, %v9011
    %v9013 = vsel %vm8940, %v2913, %v9012
    %v9014 = vsel %vm8942, %v2920, %v9013
    %v9015 = vsel %vm8944, %v2927, %v9014
    %v9016 = vsel %vm8932, %v2941, %v2934
    %v9017 = vsel %vm8934, %v2948, %v9016
    %v9018 = vsel %vm8936, %v2955, %v9017
    %v9019 = vsel %vm8938, %v2962, %v9018
    %v9020 = vsel %vm8940, %v2969, %v9019
    %v9021 = vsel %vm8942, %v2976, %v9020
    %v9022 = vsel %vm8944, %v2983, %v9021
    %v9023 = vsel %vm8932, %v2997, %v2990
    %v9024 = vsel %vm8934, %v3004, %v9023
    %v9025 = vsel %vm8936, %v3011, %v9024
    %v9026 = vsel %vm8938, %v3018, %v9025
    %v9027 = vsel %vm8940, %v3025, %v9026
    %v9028 = vsel %vm8942, %v3032, %v9027
    %v9029 = vsel %vm8944, %v3039, %v9028
    %v9030 = vsel %vm8932, %v3053, %v3046
    %v9031 = vsel %vm8934, %v3060, %v9030
    %v9032 = vsel %vm8936, %v3067, %v9031
    %v9033 = vsel %vm8938, %v3074, %v9032
    %v9034 = vsel %vm8940, %v3081, %v9033
    %v9035 = vsel %vm8942, %v3088, %v9034
    %v9036 = vsel %vm8944, %v3095, %v9035
    %v9037 = vsel %vm8932, %v3109, %v3102
    %v9038 = vsel %vm8934, %v3116, %v9037
    %v9039 = vsel %vm8936, %v3123, %v9038
    %v9040 = vsel %vm8938, %v3130, %v9039
    %v9041 = vsel %vm8940, %v3137, %v9040
    %v9042 = vsel %vm8942, %v3144, %v9041
    %v9043 = vsel %vm8944, %v3151, %v9042
    %v9044 = vsel %vm8932, %v3165, %v3158
    %v9045 = vsel %vm8934, %v3172, %v9044
    %v9046 = vsel %vm8936, %v3179, %v9045
    %v9047 = vsel %vm8938, %v3186, %v9046
    %v9048 = vsel %vm8940, %v3193, %v9047
    %v9049 = vsel %vm8942, %v3200, %v9048
    %v9050 = vsel %vm8944, %v3207, %v9049
    %v9195 = vsel %vm8932, %v7669, %v7660
    %v9196 = vsel %vm8934, %v7678, %v9195
    %v9197 = vsel %vm8936, %v7687, %v9196
    %v9198 = vsel %vm8938, %v7696, %v9197
    %v9199 = vsel %vm8940, %v7705, %v9198
    %v9200 = vsel %vm8942, %v7714, %v9199
    %v9201 = vsel %vm8944, %v7723, %v9200
    %v9202 = vsel %vm8932, %v7741, %v7732
    %v9203 = vsel %vm8934, %v7750, %v9202
    %v9204 = vsel %vm8936, %v7759, %v9203
    %v9205 = vsel %vm8938, %v7768, %v9204
    %v9206 = vsel %vm8940, %v7777, %v9205
    %v9207 = vsel %vm8942, %v7786, %v9206
    %v9208 = vsel %vm8944, %v7795, %v9207
    %v9209 = vsel %vm8932, %v7813, %v7804
    %v9210 = vsel %vm8934, %v7822, %v9209
    %v9211 = vsel %vm8936, %v7831, %v9210
    %v9212 = vsel %vm8938, %v7840, %v9211
    %v9213 = vsel %vm8940, %v7849, %v9212
    %v9214 = vsel %vm8942, %v7858, %v9213
    %v9215 = vsel %vm8944, %v7867, %v9214
    %v9216 = vsel %vm8932, %v7885, %v7876
    %v9217 = vsel %vm8934, %v7894, %v9216
    %v9218 = vsel %vm8936, %v7903, %v9217
    %v9219 = vsel %vm8938, %v7912, %v9218
    %v9220 = vsel %vm8940, %v7921, %v9219
    %v9221 = vsel %vm8942, %v7930, %v9220
    %v9222 = vsel %vm8944, %v7939, %v9221
    %v9223 = vsel %vm8932, %v7957, %v7948
    %v9224 = vsel %vm8934, %v7966, %v9223
    %v9225 = vsel %vm8936, %v7975, %v9224
    %v9226 = vsel %vm8938, %v7984, %v9225
    %v9227 = vsel %vm8940, %v7993, %v9226
    %v9228 = vsel %vm8942, %v8002, %v9227
    %v9229 = vsel %vm8944, %v8011, %v9228
    %v9230 = vsel %vm8932, %v8029, %v8020
    %v9231 = vsel %vm8934, %v8038, %v9230
    %v9232 = vsel %vm8936, %v8047, %v9231
    %v9233 = vsel %vm8938, %v8056, %v9232
    %v9234 = vsel %vm8940, %v8065, %v9233
    %v9235 = vsel %vm8942, %v8074, %v9234
    %v9236 = vsel %vm8944, %v8083, %v9235
    %v9237 = vsel %vm8932, %v8101, %v8092
    %v9238 = vsel %vm8934, %v8110, %v9237
    %v9239 = vsel %vm8936, %v8119, %v9238
    %v9240 = vsel %vm8938, %v8128, %v9239
    %v9241 = vsel %vm8940, %v8137, %v9240
    %v9242 = vsel %vm8942, %v8146, %v9241
    %v9243 = vsel %vm8944, %v8155, %v9242
    %v9244 = vsel %vm8932, %v8173, %v8164
    %v9245 = vsel %vm8934, %v8182, %v9244
    %v9246 = vsel %vm8936, %v8191, %v9245
    %v9247 = vsel %vm8938, %v8200, %v9246
    %v9248 = vsel %vm8940, %v8209, %v9247
    %v9249 = vsel %vm8942, %v8218, %v9248
    %v9250 = vsel %vm8944, %v8227, %v9249
    %v9251 = vsel %vm8932, %v8245, %v8236
    %v9252 = vsel %vm8934, %v8254, %v9251
    %v9253 = vsel %vm8936, %v8263, %v9252
    %v9254 = vsel %vm8938, %v8272, %v9253
    %v9255 = vsel %vm8940, %v8281, %v9254
    %v9256 = vsel %vm8942, %v8290, %v9255
    %v9257 = vsel %vm8944, %v8299, %v9256
    %v9258 = vsel %vm8932, %v8317, %v8308
    %v9259 = vsel %vm8934, %v8326, %v9258
    %v9260 = vsel %vm8936, %v8335, %v9259
    %v9261 = vsel %vm8938, %v8344, %v9260
    %v9262 = vsel %vm8940, %v8353, %v9261
    %v9263 = vsel %vm8942, %v8362, %v9262
    %v9264 = vsel %vm8944, %v8371, %v9263
    %v9265 = vsel %vm8932, %v8389, %v8380
    %v9266 = vsel %vm8934, %v8398, %v9265
    %v9267 = vsel %vm8936, %v8407, %v9266
    %v9268 = vsel %vm8938, %v8416, %v9267
    %v9269 = vsel %vm8940, %v8425, %v9268
    %v9270 = vsel %vm8942, %v8434, %v9269
    %v9271 = vsel %vm8944, %v8443, %v9270
    %v9272 = vsel %vm8932, %v8461, %v8452
    %v9273 = vsel %vm8934, %v8470, %v9272
    %v9274 = vsel %vm8936, %v8479, %v9273
    %v9275 = vsel %vm8938, %v8488, %v9274
    %v9276 = vsel %vm8940, %v8497, %v9275
    %v9277 = vsel %vm8942, %v8506, %v9276
    %v9278 = vsel %vm8944, %v8515, %v9277
    %v9279 = vsel %vm8932, %v8533, %v8524
    %v9280 = vsel %vm8934, %v8542, %v9279
    %v9281 = vsel %vm8936, %v8551, %v9280
    %v9282 = vsel %vm8938, %v8560, %v9281
    %v9283 = vsel %vm8940, %v8569, %v9282
    %v9284 = vsel %vm8942, %v8578, %v9283
    %v9285 = vsel %vm8944, %v8587, %v9284
    %v9286 = vsel %vm8932, %v8605, %v8596
    %v9287 = vsel %vm8934, %v8614, %v9286
    %v9288 = vsel %vm8936, %v8623, %v9287
    %v9289 = vsel %vm8938, %v8632, %v9288
    %v9290 = vsel %vm8940, %v8641, %v9289
    %v9291 = vsel %vm8942, %v8650, %v9290
    %v9292 = vsel %vm8944, %v8659, %v9291
    %v9293 = vsel %vm8932, %v8677, %v8668
    %v9294 = vsel %vm8934, %v8686, %v9293
    %v9295 = vsel %vm8936, %v8695, %v9294
    %v9296 = vsel %vm8938, %v8704, %v9295
    %v9297 = vsel %vm8940, %v8713, %v9296
    %v9298 = vsel %vm8942, %v8722, %v9297
    %v9299 = vsel %vm8944, %v8731, %v9298
    %v9300 = vsel %vm8932, %v8749, %v8740
    %v9301 = vsel %vm8934, %v8758, %v9300
    %v9302 = vsel %vm8936, %v8767, %v9301
    %v9303 = vsel %vm8938, %v8776, %v9302
    %v9304 = vsel %vm8940, %v8785, %v9303
    %v9305 = vsel %vm8942, %v8794, %v9304
    %v9306 = vsel %vm8944, %v8803, %v9305
    %9307 = vrot.lane.b32.xlu0 %v9201, 32
    %v9308 = vpop.permute.xlu0 %9307
    %9309 = vrot.lane.b32.xlu0 %v9208, 32
    %v9310 = vpop.permute.xlu0 %9309
    %9311 = vrot.lane.b32.xlu0 %v9215, 32
    %v9312 = vpop.permute.xlu0 %9311
    %9313 = vrot.lane.b32.xlu0 %v9222, 32
    %v9314 = vpop.permute.xlu0 %9313
    %9315 = vrot.lane.b32.xlu0 %v9229, 32
    %v9316 = vpop.permute.xlu0 %9315
    %9317 = vrot.lane.b32.xlu0 %v9236, 32
    %v9318 = vpop.permute.xlu0 %9317
    %9319 = vrot.lane.b32.xlu0 %v9243, 32
    %v9320 = vpop.permute.xlu0 %9319
    %9321 = vrot.lane.b32.xlu0 %v9250, 32
    %v9322 = vpop.permute.xlu0 %9321
    %9323 = vrot.lane.b32.xlu0 %v9257, 32
    %v9324 = vpop.permute.xlu0 %9323
    %9325 = vrot.lane.b32.xlu0 %v9264, 32
    %v9326 = vpop.permute.xlu0 %9325
    %9327 = vrot.lane.b32.xlu0 %v9271, 32
    %v9328 = vpop.permute.xlu0 %9327
    %9329 = vrot.lane.b32.xlu0 %v9278, 32
    %v9330 = vpop.permute.xlu0 %9329
    %9331 = vrot.lane.b32.xlu0 %v9285, 32
    %v9332 = vpop.permute.xlu0 %9331
    %9333 = vrot.lane.b32.xlu0 %v9292, 32
    %v9334 = vpop.permute.xlu0 %9333
    %9335 = vrot.lane.b32.xlu0 %v9299, 32
    %v9336 = vpop.permute.xlu0 %9335
    %9337 = vrot.lane.b32.xlu0 %v9306, 32
    %v9338 = vpop.permute.xlu0 %9337
    %v9355 = vsel %vm2311, %v8945, %v9308
    %v9356 = vsel %vm2311, %v8952, %v9310
    %v9357 = vsel %vm2311, %v8959, %v9312
    %v9358 = vsel %vm2311, %v8966, %v9314
    %v9359 = vsel %vm2311, %v8973, %v9316
    %v9360 = vsel %vm2311, %v8980, %v9318
    %v9361 = vsel %vm2311, %v8987, %v9320
    %v9362 = vsel %vm2311, %v8994, %v9322
    %v9363 = vsel %vm2311, %v9001, %v9324
    %v9364 = vsel %vm2311, %v9008, %v9326
    %v9365 = vsel %vm2311, %v9015, %v9328
    %v9366 = vsel %vm2311, %v9022, %v9330
    %v9367 = vsel %vm2311, %v9029, %v9332
    %v9368 = vsel %vm2311, %v9036, %v9334
    %v9369 = vsel %vm2311, %v9043, %v9336
    %v9370 = vsel %vm2311, %v9050, %v9338
    %vm9371 = vcmask 523264
    %v9372 = vsel %vm9371, %v9355, 0.0
    %v9373 = vsel %vm9371, %v9356, 0.0
    %v9374 = vsel %vm9371, %v9357, 0.0
    %v9375 = vsel %vm9371, %v9358, 0.0
    %v9376 = vsel %vm9371, %v9359, 0.0
    %v9377 = vsel %vm9371, %v9360, 0.0
    %v9378 = vsel %vm9371, %v9361, 0.0
    %v9379 = vsel %vm9371, %v9362, 0.0
    %v9380 = vsel %vm9371, %v9363, 0.0
    %v9381 = vsel %vm9371, %v9364, 0.0
    %v9382 = vsel %vm9371, %v9365, 0.0
    %v9383 = vsel %vm9371, %v9366, 0.0
    %v9384 = vsel %vm9371, %v9367, 0.0
    %v9385 = vsel %vm9371, %v9368, 0.0
    %v9386 = vsel %vm9371, %v9369, 0.0
    %v9387 = vsel %vm9371, %v9370, 0.0
    %9388 = vst [vmem:[#allocation2] sm:$0xff] %v9372
    %9389 = vst [vmem:[#allocation2 + $0x8] sm:$0xff] %v9373
    %9390 = vst [vmem:[#allocation2 + $0x10] sm:$0xff] %v9374
    %9391 = vst [vmem:[#allocation2 + $0x18] sm:$0xff] %v9375
    %9392 = vst [vmem:[#allocation2 + $0x20] sm:$0xff] %v9376
    %9393 = vst [vmem:[#allocation2 + $0x28] sm:$0xff] %v9377
    %9394 = vst [vmem:[#allocation2 + $0x30] sm:$0xff] %v9378
    %9395 = vst [vmem:[#allocation2 + $0x38] sm:$0xff] %v9379
    %9396 = vst [vmem:[#allocation2 + $0x40] sm:$0xff] %v9380
    %9397 = vst [vmem:[#allocation2 + $0x48] sm:$0xff] %v9381
    %9398 = vst [vmem:[#allocation2 + $0x50] sm:$0xff] %v9382
    %9399 = vst [vmem:[#allocation2 + $0x58] sm:$0xff] %v9383
    %9400 = vst [vmem:[#allocation2 + $0x60] sm:$0xff] %v9384
    %9401 = vst [vmem:[#allocation2 + $0x68] sm:$0xff] %v9385
    %9402 = vst [vmem:[#allocation2 + $0x70] sm:$0xff] %v9386
    %9403 = vst [vmem:[#allocation2 + $0x78] sm:$0xff] %v9387
    // Predicated region
    $region42: #{tpu_custom_call.1} parent=1 // pred_check
      _
    $region43: #{tpu_custom_call.1} parent=1 // pred_check_branch
      %9405 = sbr.rel (0) target = $region45
    $region44: #{tpu_custom_call.1} parent=1 // pred_region
      %s9407 = ssub.s32 2048, 2048
      %9408 = vsyncadd [#allocation3], %s9407
      %s9409 = sshll.u32 [#allocation2], 4
      %s9410 = int_to_ptr.vmem [resolvable:$true] %s9409
      %9415 = dma.vmem_to_hbm [thread:$0]  %s9410, 2048, %s10, [#allocation3], 128, 128, 8
    $region45: #{tpu_custom_call.1} parent=1 // pred_fallthru
      _
    // Predicated region
    $region46: #{tpu_custom_call.1} parent=1 // pred_check
      _
    $region47: #{tpu_custom_call.1} parent=1 // pred_check_branch
      %9417 = sbr.rel (0) target = $region49
    $region48: #{tpu_custom_call.1} parent=1 // pred_region
      %9418 = dma.done [#allocation3], 2048
    $region49: #{tpu_custom_call.1} parent=1 // pred_fallthru
      _
    %9419 = vsyncpa [#allocation3], 1

</llo_original>
